<compile_context>
chip_gen: v7x
topology: tpu7x:2x2x1
jax: 0.10.0
libtpu: 0.0.40
codegen_flags: <defaults>
</compile_context>

<pallas_src>
import functools

import jax
import jax.numpy as jnp
from jax import lax
from jax.experimental import pallas as pl
from jax.experimental.pallas import tpu as pltpu

LEAKY_SLOPE = 0.2
BN_EPS = 1e-5
VMEM_LIMIT = 32 * 1024 * 1024   # <= half of v7x's 64 MiB physical VMEM
M_TARGET = 256                  # target MXU M (= band_rows * wo_pad) per dot


def _round_up(v, m):
    return ((v + m - 1) // m) * m


def _band_plan(ho, wo):
    """Pick a row band so each MXU dot has M = band_rows * wo_pad ~ M_TARGET."""
    wo_pad = _round_up(wo, 8)                       # sublane-aligned flatten
    band_rows = max(1, min(ho, M_TARGET // wo_pad))
    n_bands = -(-ho // band_rows)
    return wo_pad, band_rows, n_bands


def _pad_for_bands(xp, k, band_rows, n_bands, wo_pad):
    """Zero-pad H/W so every band's window reads stay in-bounds."""
    n, hp, wp, c = xp.shape
    need_h = n_bands * band_rows + k - 1
    need_w = wo_pad + k - 1
    ph, pw = max(0, need_h - hp), max(0, need_w - wp)
    if ph or pw:
        xp = jnp.pad(xp, ((0, 0), (0, ph), (0, pw), (0, 0)))
    return xp


# ---------------------------------------------------------------- kernels ---
def _band_matmul(x_ref, w_ref, r0, band_rows, wo_pad, k):
    """Implicit-GEMM over one row band: sum of k*k (M, ce) @ (ce, cout) dots."""
    ce = x_ref.shape[-1]
    cout = w_ref.shape[-1]
    m = band_rows * wo_pad
    acc = jnp.zeros((m, cout), jnp.float32)
    for t in range(k * k):                          # static unroll, k*k in {4,16}
        dh, dw = divmod(t, k)
        a = x_ref[0, pl.ds(r0 + dh, band_rows), pl.ds(dw, wo_pad), :]
        acc = acc + jnp.dot(a.reshape(m, ce), w_ref[t],
                            preferred_element_type=jnp.float32)
    return acc


def _conv_bias_lrelu_kernel(x_ref, w_ref, b_ref, o_ref, *, k, band_rows, wo_pad):
    """Banded implicit-GEMM conv + bias + LeakyReLU (first layer, no BN)."""
    r0 = pl.program_id(1) * band_rows
    cout = w_ref.shape[-1]
    acc = _band_matmul(x_ref, w_ref, r0, band_rows, wo_pad, k)
    acc = acc + b_ref[...]
    acc = jnp.where(acc >= 0.0, acc, acc * LEAKY_SLOPE)
    o_ref[0] = acc.reshape(band_rows, wo_pad, cout).astype(o_ref.dtype)


def _conv_stats_kernel(x_ref, w_ref, y_ref, sum_ref, ssq_ref, *,
                       k, band_rows, wo_pad, ho, wo, needs_mask):
    """Banded implicit-GEMM conv (no bias) + per-band partial BN stats."""
    r0 = pl.program_id(1) * band_rows
    cout = w_ref.shape[-1]
    acc = _band_matmul(x_ref, w_ref, r0, band_rows, wo_pad, k)
    acc3 = acc.reshape(band_rows, wo_pad, cout)
    y_ref[0] = acc3.astype(y_ref.dtype)             # bf16 pre-BN activation

    stats_src = acc3
    if needs_mask:                                  # static: exclude alignment rows/cols
        rows = r0 + lax.broadcasted_iota(jnp.int32, (band_rows, wo_pad, 1), 0)
        cols = lax.broadcasted_iota(jnp.int32, (band_rows, wo_pad, 1), 1)
        valid = jnp.logical_and(rows < ho, cols < wo)
        stats_src = jnp.where(valid, acc3, 0.0)

    flat = stats_src.reshape(band_rows * wo_pad, cout)
    psum = jnp.sum(flat, axis=0, keepdims=True)                 # (1, cout) f32
    pssq = jnp.sum(flat * flat, axis=0, keepdims=True)
    sum_ref[0, 0] = jnp.broadcast_to(psum, (8, cout))
    ssq_ref[0, 0] = jnp.broadcast_to(pssq, (8, cout))


def _bn_lrelu_kernel(y_ref, sc_ref, sh_ref, o_ref):
    """Fused BatchNorm-apply (per-channel affine) + LeakyReLU, bf16 in/out."""
    y = y_ref[...].astype(jnp.float32) * sc_ref[...] + sh_ref[...]
    o_ref[...] = jnp.where(y >= 0.0, y, y * LEAKY_SLOPE).astype(o_ref.dtype)


def _conv_cout1_kernel(x_ref, w_ref, b_ref, o_ref, *, k, ho, wo):
    """Final Cout=1 head: one cast, accumulate across taps, single lane reduce."""
    ce = x_ref.shape[-1]
    xv = x_ref[0].astype(jnp.float32)
    acc = jnp.zeros((ho, wo, ce), jnp.float32)
    for t in range(k * k):
        dh, dw = divmod(t, k)
        acc = acc + xv[dh:dh + ho, dw:dw + wo, :] * w_ref[t:t + 1, :]
    o_ref[0] = jnp.sum(acc, axis=-1) + b_ref[...]


# --------------------------------------------------------------- wrappers ---
def conv_bias_lrelu(x, w3, b, *, k, wo_pad, band_rows, n_bands):
    n, hp, wp, ce = x.shape
    kk, _, cout = w3.shape
    kern = functools.partial(_conv_bias_lrelu_kernel, k=k,
                             band_rows=band_rows, wo_pad=wo_pad)
    return pl.pallas_call(
        kern,
        out_shape=jax.ShapeDtypeStruct((n, n_bands * band_rows, wo_pad, cout),
                                       jnp.bfloat16),
        grid=(n, n_bands),
        in_specs=[
            pl.BlockSpec((1, hp, wp, ce), lambda i, b: (i, 0, 0, 0)),
            pl.BlockSpec((kk, ce, cout), lambda i, b: (0, 0, 0)),
            pl.BlockSpec((1, cout), lambda i, b: (0, 0)),
        ],
        out_specs=pl.BlockSpec((1, band_rows, wo_pad, cout),
                               lambda i, b: (i, b, 0, 0)),
        compiler_params=pltpu.CompilerParams(
            dimension_semantics=("parallel", "parallel"),
            vmem_limit_bytes=VMEM_LIMIT),
    )(x, w3, b)


def conv_with_stats(x, w3, *, k, ho, wo, wo_pad, band_rows, n_bands):
    n, hp, wp, ce = x.shape
    kk, _, cout = w3.shape
    needs_mask = (wo_pad != wo) or (n_bands * band_rows != ho)
    kern = functools.partial(_conv_stats_kernel, k=k, band_rows=band_rows,
                             wo_pad=wo_pad, ho=ho, wo=wo, needs_mask=needs_mask)
    return pl.pallas_call(
        kern,
        out_shape=(
            jax.ShapeDtypeStruct((n, n_bands * band_rows, wo_pad, cout),
                                 jnp.bfloat16),
            jax.ShapeDtypeStruct((n, n_bands, 8, cout), jnp.float32),
            jax.ShapeDtypeStruct((n, n_bands, 8, cout), jnp.float32),
        ),
        grid=(n, n_bands),
        in_specs=[
            pl.BlockSpec((1, hp, wp, ce), lambda i, b: (i, 0, 0, 0)),
            pl.BlockSpec((kk, ce, cout), lambda i, b: (0, 0, 0)),
        ],
        out_specs=(
            pl.BlockSpec((1, band_rows, wo_pad, cout), lambda i, b: (i, b, 0, 0)),
            pl.BlockSpec((1, 1, 8, cout), lambda i, b: (i, b, 0, 0)),
            pl.BlockSpec((1, 1, 8, cout), lambda i, b: (i, b, 0, 0)),
        ),
        compiler_params=pltpu.CompilerParams(
            dimension_semantics=("parallel", "parallel"),
            vmem_limit_bytes=VMEM_LIMIT),
    )(x, w3)


def bn_lrelu_apply(y, scale, shift, *, band_rows, n_bands):
    n, hb, wb, c = y.shape
    return pl.pallas_call(
        _bn_lrelu_kernel,
        out_shape=jax.ShapeDtypeStruct((n, hb, wb, c), jnp.bfloat16),
        grid=(n, n_bands),
        in_specs=[
            pl.BlockSpec((1, band_rows, wb, c), lambda i, b: (i, b, 0, 0)),
            pl.BlockSpec((1, c), lambda i, b: (0, 0)),
            pl.BlockSpec((1, c), lambda i, b: (0, 0)),
        ],
        out_specs=pl.BlockSpec((1, band_rows, wb, c), lambda i, b: (i, b, 0, 0)),
        compiler_params=pltpu.CompilerParams(
            dimension_semantics=("parallel", "parallel"),
            vmem_limit_bytes=VMEM_LIMIT),
    )(y, scale, shift)


def conv_cout1(x, w2, b, ho, wo, k):
    n, hp, wp, ce = x.shape
    kk = w2.shape[0]
    kern = functools.partial(_conv_cout1_kernel, k=k, ho=ho, wo=wo)
    return pl.pallas_call(
        kern,
        out_shape=jax.ShapeDtypeStruct((n, ho, wo), jnp.float32),
        grid=(n,),
        in_specs=[
            pl.BlockSpec((1, hp, wp, ce), lambda i: (i, 0, 0, 0)),
            pl.BlockSpec((kk, ce), lambda i: (0, 0)),
            pl.BlockSpec((1, 1), lambda i: (0, 0)),
        ],
        out_specs=pl.BlockSpec((1, ho, wo), lambda i: (i, 0, 0)),
        compiler_params=pltpu.CompilerParams(
            dimension_semantics=("parallel",), vmem_limit_bytes=VMEM_LIMIT),
    )(x, w2, b)


# ------------------------------------------------------------- glue (JAX) ---
def _space_to_depth2(xp):
    """(N, Hp, Wp, C) -> (N, Hp/2, Wp/2, 4C); turns a k=4/s=2 conv into k=2/s=1."""
    n, hp, wp, c = xp.shape
    if hp % 2:
        xp = jnp.pad(xp, ((0, 0), (0, 1), (0, 0), (0, 0)))
        hp += 1
    if wp % 2:
        xp = jnp.pad(xp, ((0, 0), (0, 0), (0, 1), (0, 0)))
        wp += 1
    xp = xp.reshape(n, hp // 2, 2, wp // 2, 2, c)
    xp = xp.transpose(0, 1, 3, 2, 4, 5)
    return xp.reshape(n, hp // 2, wp // 2, 4 * c)


def prepare_params(params):
    """Hoist all weight relayout out of the forward pass (done once)."""
    cfg = [("conv1", 2, False), ("conv2", 2, True), ("conv3", 2, True),
           ("conv4", 1, True), ("conv5", 1, False)]
    layers = []
    for idx, (name, stride, has_bn) in enumerate(cfg):
        w = params[name + "_w"].astype(jnp.float32)          # (cout, cin, 4, 4)
        cout, cin = int(w.shape[0]), int(w.shape[1])
        w_hwio = jnp.transpose(w, (2, 3, 1, 0))              # (4, 4, cin, cout)
        is_final = idx == len(cfg) - 1
        if stride == 2:
            # taps (dh, dw) over the space-to-depth image; channels packed (ph, pw, ci)
            w3 = (w_hwio.reshape(2, 2, 2, 2, cin, cout)
                        .transpose(0, 2, 1, 3, 4, 5)
                        .reshape(4, 4 * cin, cout))
            k = 2
        else:
            w3 = w_hwio.reshape(16, cin, cout)
            k = 4
        lp = {"stride": stride, "k": k, "has_bn": has_bn, "final": is_final}
        if is_final:                                         # Cout=1 VPU head
            lp["w"] = w3[:, :, 0]                            # (16, cin) f32
            lp["b"] = params[name + "_b"].reshape(1, 1).astype(jnp.float32)
        else:
            lp["w"] = w3.astype(jnp.bfloat16)                # MXU operands
            if has_bn:
                lp["gamma"] = params[name + "_gamma"].reshape(1, cout).astype(jnp.float32)
                lp["beta"] = params[name + "_beta"].reshape(1, cout).astype(jnp.float32)
            else:
                lp["b"] = params[name + "_b"].reshape(1, cout).astype(jnp.float32)
        layers.append(lp)
    return layers


def discriminator_forward(x_nchw, layers):
    n = x_nchw.shape[0]
    x = jnp.transpose(x_nchw, (0, 2, 3, 1)).astype(jnp.bfloat16)  # NHWC, bf16
    vh, vw = x.shape[1], x.shape[2]                               # valid extents
    out = None
    for lp in layers:
        stride, k = lp["stride"], lp["k"]
        ho = (vh + 2 - 4) // stride + 1
        wo = (vw + 2 - 4) // stride + 1
        # Crop alignment garbage of the previous layer, then conv zero-pad.
        xp = jnp.pad(x[:, :vh, :vw, :], ((0, 0), (1, 1), (1, 1), (0, 0)))
        if stride == 2:
            xp = _space_to_depth2(xp)
        if lp["final"]:
            y = conv_cout1(xp, lp["w"], lp["b"], ho, wo, k)       # (n, ho, wo) f32
            out = y[:, None, :, :].astype(jnp.float32)            # NCHW
            break
        wo_pad, band_rows, n_bands = _band_plan(ho, wo)
        xp = _pad_for_bands(xp, k, band_rows, n_bands, wo_pad)
        if lp["has_bn"]:
            y, s, sq = conv_with_stats(xp, lp["w"], k=k, ho=ho, wo=wo,
                                       wo_pad=wo_pad, band_rows=band_rows,
                                       n_bands=n_bands)
            cnt = float(n * ho * wo)
            ssum = jnp.sum(s[:, :, 0, :], axis=(0, 1))            # (cout,) f32
            ssq = jnp.sum(sq[:, :, 0, :], axis=(0, 1))
            mean = ssum / cnt
            var = jnp.maximum(ssq / cnt - mean * mean, 0.0)       # biased var, clamped
            scale = lp["gamma"] * lax.rsqrt(var + BN_EPS)         # (1, cout)
            shift = lp["beta"] - mean * scale
            x = bn_lrelu_apply(y, scale, shift, band_rows=band_rows,
                               n_bands=n_bands)                   # bf16
        else:
            x = conv_bias_lrelu(xp, lp["w"], lp["b"], k=k, wo_pad=wo_pad,
                                band_rows=band_rows, n_bands=n_bands)
        vh, vw = ho, wo
    return out


def init_params(key, input_nc, ndf):
    keys = jax.random.split(key, 5)

    def w(k, cout, cin):
        return 0.02 * jax.random.normal(k, (cout, cin, 4, 4), jnp.float32)

    return {
        "conv1_w": w(keys[0], ndf, input_nc),
        "conv1_b": jnp.zeros((ndf,), jnp.float32),
        "conv2_w": w(keys[1], ndf * 2, ndf),
        "conv2_gamma": jnp.ones((ndf * 2,), jnp.float32),
        "conv2_beta": jnp.zeros((ndf * 2,), jnp.float32),
        "conv3_w": w(keys[2], ndf * 4, ndf * 2),
        "conv3_gamma": jnp.ones((ndf * 4,), jnp.float32),
        "conv3_beta": jnp.zeros((ndf * 4,), jnp.float32),
        "conv4_w": w(keys[3], ndf * 8, ndf * 4),
        "conv4_gamma": jnp.ones((ndf * 8,), jnp.float32),
        "conv4_beta": jnp.zeros((ndf * 8,), jnp.float32),
        "conv5_w": w(keys[4], 1, ndf * 8),
        "conv5_b": jnp.zeros((1,), jnp.float32),
    }


# ------------------------------------------------------------- reference ----
def _ref_forward(x_nchw, params):
    """Pure-JAX reference (lax.conv) with the same bf16 storage policy."""
    f32, bf16 = jnp.float32, jnp.bfloat16

    def conv(x, w, stride, w_bf16=True):
        wv = w.astype(bf16).astype(f32) if w_bf16 else w.astype(f32)
        return lax.conv_general_dilated(
            x, wv, window_strides=(stride, stride), padding=((1, 1), (1, 1)),
            dimension_numbers=("NCHW", "OIHW", "NCHW"))

    def bn_lrelu(y, gamma, beta):
        mean = jnp.mean(y, axis=(0, 2, 3))
        var = jnp.maximum(jnp.mean(y * y, axis=(0, 2, 3)) - mean * mean, 0.0)
        scale = gamma * lax.rsqrt(var + BN_EPS)
        shift = beta - mean * scale
        yq = y.astype(bf16).astype(f32)
        yn = yq * scale.reshape(1, -1, 1, 1) + shift.reshape(1, -1, 1, 1)
        return jnp.where(yn >= 0.0, yn, yn * LEAKY_SLOPE)

    x = x_nchw.astype(bf16).astype(f32)
    y = conv(x, params["conv1_w"], 2) + params["conv1_b"].reshape(1, -1, 1, 1)
    x = jnp.where(y >= 0.0, y, y * LEAKY_SLOPE).astype(bf16).astype(f32)
    for name, stride in (("conv2", 2), ("conv3", 2), ("conv4", 1)):
        y = conv(x, params[name + "_w"], stride)
        x = bn_lrelu(y, params[name + "_gamma"],
                     params[name + "_beta"]).astype(bf16).astype(f32)
    y = conv(x, params["conv5_w"], 1, w_bf16=False)
    return y + params["conv5_b"].reshape(1, -1, 1, 1)


if __name__ == "__main__":
    key = jax.random.PRNGKey(0)
    pkey, xkey = jax.random.split(key)
    input_nc, ndf = 4, 8  # small synthetic config (default module uses ndf=64)
    params = init_params(pkey, input_nc, ndf)
    layers = prepare_params(params)
    # Spatial 32 so all five convs (strides 2,2,2,1,1, k=4, pad=1) are valid:
    # 32 -> 16 -> 8 -> 4 -> 3 -> 2
    x = jax.random.normal(xkey, (2, input_nc, 32, 32), jnp.float32)  # NCHW
    fwd = jax.jit(lambda inp: discriminator_forward(inp, layers))
    out = fwd(x)
    jax.block_until_ready(out)
    assert out.shape == (2, 1, 2, 2), out.shape
    assert bool(jnp.all(jnp.isfinite(out)))
    ref = _ref_forward(x, params)
    err = float(jnp.max(jnp.abs(out - ref)))
    assert err < 3e-2, f"max abs error vs lax.conv reference: {err}"
    print("KERNEL_OK")
</pallas_src>

<mosaic_0001>
module attributes {stable_mosaic.version = 11 : i64} {
  func.func @_conv_bias_lrelu_kernel(%arg0: i32, %arg1: i32, %arg2: memref<1x17x17x16xbf16, #tpu.memory_space<vmem>>, %arg3: memref<4x16x8xbf16, #tpu.memory_space<vmem>>, %arg4: memref<1x8xf32, #tpu.memory_space<vmem>>, %arg5: memref<1x16x16x8xbf16, #tpu.memory_space<vmem>>) attributes {dimension_semantics = [#tpu.dimension_semantics<parallel>, #tpu.dimension_semantics<parallel>], iteration_bounds = array<i64: 2, 1>, scalar_prefetch = 0 : i64, scratch_operands = 0 : i64, tpu.core_type = #tpu.core_type<tc>, window_params = [{transform_indices = @transform_0, window_bounds = array<i64: 1, 17, 17, 16>}, {pipeline_mode = #tpu.pipeline_mode<synchronous>, transform_indices = @transform_1, window_bounds = array<i64: 4, 16, 8>}, {pipeline_mode = #tpu.pipeline_mode<synchronous>, transform_indices = @transform_2, window_bounds = array<i64: 1, 8>}, {transform_indices = @transform_3, window_bounds = array<i64: 1, 16, 16, 8>}]} {
    %c16_i32 = arith.constant 16 : i32
    %0 = arith.muli %arg1, %c16_i32 : i32
    %cst = arith.constant 0.000000e+00 : f32
    %1 = vector.broadcast %cst : f32 to vector<256x8xf32>
    %c0_i32 = arith.constant 0 : i32
    %2 = arith.addi %0, %c0_i32 : i32
    %c0 = arith.constant 0 : index
    %3 = arith.index_cast %2 : i32 to index
    %c0_0 = arith.constant 0 : index
    %c0_1 = arith.constant 0 : index
    %4 = vector.load %arg2[%c0, %3, %c0_0, %c0_1] : memref<1x17x17x16xbf16, #tpu.memory_space<vmem>>, vector<1x16x16x16xbf16>
    %5 = vector.shape_cast %4 : vector<1x16x16x16xbf16> to vector<16x16x16xbf16>
    %6 = vector.shape_cast %5 : vector<16x16x16xbf16> to vector<256x16xbf16>
    %c0_2 = arith.constant 0 : index
    %c0_3 = arith.constant 0 : index
    %c0_4 = arith.constant 0 : index
    %7 = vector.load %arg3[%c0_2, %c0_3, %c0_4] : memref<4x16x8xbf16, #tpu.memory_space<vmem>>, vector<1x16x8xbf16>
    %8 = vector.shape_cast %7 : vector<1x16x8xbf16> to vector<16x8xbf16>
    %cst_5 = arith.constant dense<0.000000e+00> : vector<256x8xf32>
    %9 = tpu.matmul %6, %8, %cst_5 {dimension_numbers = #tpu.dot_dimension_numbers<[1], [0], [0], [1], [0, 0, 1, 1], [], []>} : vector<256x16xbf16>, vector<16x8xbf16>, vector<256x8xf32> -> vector<256x8xf32>
    %10 = arith.addf %1, %9 : vector<256x8xf32>
    %c0_i32_6 = arith.constant 0 : i32
    %11 = arith.addi %0, %c0_i32_6 : i32
    %c0_7 = arith.constant 0 : index
    %12 = arith.index_cast %11 : i32 to index
    %c1 = arith.constant 1 : index
    %c0_8 = arith.constant 0 : index
    %13 = vector.load %arg2[%c0_7, %12, %c1, %c0_8] : memref<1x17x17x16xbf16, #tpu.memory_space<vmem>>, vector<1x16x16x16xbf16>
    %14 = vector.shape_cast %13 : vector<1x16x16x16xbf16> to vector<16x16x16xbf16>
    %15 = vector.shape_cast %14 : vector<16x16x16xbf16> to vector<256x16xbf16>
    %c1_9 = arith.constant 1 : index
    %c0_10 = arith.constant 0 : index
    %c0_11 = arith.constant 0 : index
    %16 = vector.load %arg3[%c1_9, %c0_10, %c0_11] : memref<4x16x8xbf16, #tpu.memory_space<vmem>>, vector<1x16x8xbf16>
    %17 = vector.shape_cast %16 : vector<1x16x8xbf16> to vector<16x8xbf16>
    %cst_12 = arith.constant dense<0.000000e+00> : vector<256x8xf32>
    %18 = tpu.matmul %15, %17, %cst_12 {dimension_numbers = #tpu.dot_dimension_numbers<[1], [0], [0], [1], [0, 0, 1, 1], [], []>} : vector<256x16xbf16>, vector<16x8xbf16>, vector<256x8xf32> -> vector<256x8xf32>
    %19 = arith.addf %10, %18 : vector<256x8xf32>
    %c1_i32 = arith.constant 1 : i32
    %20 = arith.addi %0, %c1_i32 : i32
    %c0_13 = arith.constant 0 : index
    %21 = arith.index_cast %20 : i32 to index
    %c0_14 = arith.constant 0 : index
    %c0_15 = arith.constant 0 : index
    %22 = vector.load %arg2[%c0_13, %21, %c0_14, %c0_15] : memref<1x17x17x16xbf16, #tpu.memory_space<vmem>>, vector<1x16x16x16xbf16>
    %23 = vector.shape_cast %22 : vector<1x16x16x16xbf16> to vector<16x16x16xbf16>
    %24 = vector.shape_cast %23 : vector<16x16x16xbf16> to vector<256x16xbf16>
    %c2 = arith.constant 2 : index
    %c0_16 = arith.constant 0 : index
    %c0_17 = arith.constant 0 : index
    %25 = vector.load %arg3[%c2, %c0_16, %c0_17] : memref<4x16x8xbf16, #tpu.memory_space<vmem>>, vector<1x16x8xbf16>
    %26 = vector.shape_cast %25 : vector<1x16x8xbf16> to vector<16x8xbf16>
    %cst_18 = arith.constant dense<0.000000e+00> : vector<256x8xf32>
    %27 = tpu.matmul %24, %26, %cst_18 {dimension_numbers = #tpu.dot_dimension_numbers<[1], [0], [0], [1], [0, 0, 1, 1], [], []>} : vector<256x16xbf16>, vector<16x8xbf16>, vector<256x8xf32> -> vector<256x8xf32>
    %28 = arith.addf %19, %27 : vector<256x8xf32>
    %c1_i32_19 = arith.constant 1 : i32
    %29 = arith.addi %0, %c1_i32_19 : i32
    %c0_20 = arith.constant 0 : index
    %30 = arith.index_cast %29 : i32 to index
    %c1_21 = arith.constant 1 : index
    %c0_22 = arith.constant 0 : index
    %31 = vector.load %arg2[%c0_20, %30, %c1_21, %c0_22] : memref<1x17x17x16xbf16, #tpu.memory_space<vmem>>, vector<1x16x16x16xbf16>
    %32 = vector.shape_cast %31 : vector<1x16x16x16xbf16> to vector<16x16x16xbf16>
    %33 = vector.shape_cast %32 : vector<16x16x16xbf16> to vector<256x16xbf16>
    %c3 = arith.constant 3 : index
    %c0_23 = arith.constant 0 : index
    %c0_24 = arith.constant 0 : index
    %34 = vector.load %arg3[%c3, %c0_23, %c0_24] : memref<4x16x8xbf16, #tpu.memory_space<vmem>>, vector<1x16x8xbf16>
    %35 = vector.shape_cast %34 : vector<1x16x8xbf16> to vector<16x8xbf16>
    %cst_25 = arith.constant dense<0.000000e+00> : vector<256x8xf32>
    %36 = tpu.matmul %33, %35, %cst_25 {dimension_numbers = #tpu.dot_dimension_numbers<[1], [0], [0], [1], [0, 0, 1, 1], [], []>} : vector<256x16xbf16>, vector<16x8xbf16>, vector<256x8xf32> -> vector<256x8xf32>
    %37 = arith.addf %28, %36 : vector<256x8xf32>
    %c0_26 = arith.constant 0 : index
    %c0_27 = arith.constant 0 : index
    %38 = vector.load %arg4[%c0_26, %c0_27] : memref<1x8xf32, #tpu.memory_space<vmem>>, vector<1x8xf32>
    %39 = vector.broadcast %38 : vector<1x8xf32> to vector<256x8xf32>
    %40 = arith.addf %37, %39 : vector<256x8xf32>
    %cst_28 = arith.constant 0.000000e+00 : f32
    %41 = vector.broadcast %cst_28 : f32 to vector<256x8xf32>
    %42 = arith.cmpf oge, %40, %41 : vector<256x8xf32>
    %cst_29 = arith.constant 2.000000e-01 : f32
    %43 = vector.broadcast %cst_29 : f32 to vector<256x8xf32>
    %44 = arith.mulf %40, %43 : vector<256x8xf32>
    %45 = arith.select %42, %40, %44 : vector<256x8xi1>, vector<256x8xf32>
    %46 = vector.shape_cast %45 : vector<256x8xf32> to vector<16x16x8xf32>
    %47 = arith.truncf %46 : vector<16x16x8xf32> to vector<16x16x8xbf16>
    %c0_30 = arith.constant 0 : index
    %c0_31 = arith.constant 0 : index
    %c0_32 = arith.constant 0 : index
    %c0_33 = arith.constant 0 : index
    %48 = vector.load %arg5[%c0_30, %c0_31, %c0_32, %c0_33] : memref<1x16x16x8xbf16, #tpu.memory_space<vmem>>, vector<1x16x16x8xbf16>
    %49 = vector.shape_cast %48 : vector<1x16x16x8xbf16> to vector<16x16x8xbf16>
    %50 = vector.shape_cast %47 : vector<16x16x8xbf16> to vector<1x16x16x8xbf16>
    tpu.vector_store %arg5[%c0_30, %c0_31, %c0_32, %c0_33], %50 {strides = array<i32>} : memref<1x16x16x8xbf16, #tpu.memory_space<vmem>>, vector<1x16x16x8xbf16>,
    return
  }
  func.func @transform_0(%arg0: i32, %arg1: i32) -> (i32, i32, i32, i32) {
    %c0_i32 = arith.constant 0 : i32
    %c0_i32_0 = arith.constant 0 : i32
    %c0_i32_1 = arith.constant 0 : i32
    %c0_i32_2 = arith.constant 0 : i32
    return %arg0, %c0_i32, %c0_i32_0, %c0_i32_1 : i32, i32, i32, i32
  }
  func.func @transform_1(%arg0: i32, %arg1: i32) -> (i32, i32, i32) {
    %c0_i32 = arith.constant 0 : i32
    %c0_i32_0 = arith.constant 0 : i32
    %c0_i32_1 = arith.constant 0 : i32
    %c0_i32_2 = arith.constant 0 : i32
    return %c0_i32, %c0_i32_0, %c0_i32_1 : i32, i32, i32
  }
  func.func @transform_2(%arg0: i32, %arg1: i32) -> (i32, i32) {
    %c0_i32 = arith.constant 0 : i32
    %c0_i32_0 = arith.constant 0 : i32
    %c0_i32_1 = arith.constant 0 : i32
    return %c0_i32, %c0_i32_0 : i32, i32
  }
  func.func @transform_3(%arg0: i32, %arg1: i32) -> (i32, i32, i32, i32) {
    %c0_i32 = arith.constant 0 : i32
    %c0_i32_0 = arith.constant 0 : i32
    %c0_i32_1 = arith.constant 0 : i32
    return %arg0, %arg1, %c0_i32, %c0_i32_0 : i32, i32, i32, i32
  }
}

module attributes {stable_mosaic.version = 11 : i64} {
  func.func @_conv_stats_kernel(%arg0: i32, %arg1: i32, %arg2: memref<1x9x9x32xbf16, #tpu.memory_space<vmem>>, %arg3: memref<4x32x16xbf16, #tpu.memory_space<vmem>>, %arg4: memref<1x8x8x16xbf16, #tpu.memory_space<vmem>>, %arg5: memref<1x1x8x16xf32, #tpu.memory_space<vmem>>, %arg6: memref<1x1x8x16xf32, #tpu.memory_space<vmem>>) attributes {dimension_semantics = [#tpu.dimension_semantics<parallel>, #tpu.dimension_semantics<parallel>], iteration_bounds = array<i64: 2, 1>, scalar_prefetch = 0 : i64, scratch_operands = 0 : i64, tpu.core_type = #tpu.core_type<tc>, window_params = [{transform_indices = @transform_0, window_bounds = array<i64: 1, 9, 9, 32>}, {pipeline_mode = #tpu.pipeline_mode<synchronous>, transform_indices = @transform_1, window_bounds = array<i64: 4, 32, 16>}, {transform_indices = @transform_2, window_bounds = array<i64: 1, 8, 8, 16>}, {transform_indices = @transform_3, window_bounds = array<i64: 1, 1, 8, 16>}, {transform_indices = @transform_4, window_bounds = array<i64: 1, 1, 8, 16>}]} {
    %c8_i32 = arith.constant 8 : i32
    %0 = arith.muli %arg1, %c8_i32 : i32
    %cst = arith.constant 0.000000e+00 : f32
    %1 = vector.broadcast %cst : f32 to vector<64x16xf32>
    %c0_i32 = arith.constant 0 : i32
    %2 = arith.addi %0, %c0_i32 : i32
    %c0 = arith.constant 0 : index
    %3 = arith.index_cast %2 : i32 to index
    %c0_0 = arith.constant 0 : index
    %c0_1 = arith.constant 0 : index
    %4 = vector.load %arg2[%c0, %3, %c0_0, %c0_1] : memref<1x9x9x32xbf16, #tpu.memory_space<vmem>>, vector<1x8x8x32xbf16>
    %5 = vector.shape_cast %4 : vector<1x8x8x32xbf16> to vector<8x8x32xbf16>
    %6 = vector.shape_cast %5 : vector<8x8x32xbf16> to vector<64x32xbf16>
    %c0_2 = arith.constant 0 : index
    %c0_3 = arith.constant 0 : index
    %c0_4 = arith.constant 0 : index
    %7 = vector.load %arg3[%c0_2, %c0_3, %c0_4] : memref<4x32x16xbf16, #tpu.memory_space<vmem>>, vector<1x32x16xbf16>
    %8 = vector.shape_cast %7 : vector<1x32x16xbf16> to vector<32x16xbf16>
    %cst_5 = arith.constant dense<0.000000e+00> : vector<64x16xf32>
    %9 = tpu.matmul %6, %8, %cst_5 {dimension_numbers = #tpu.dot_dimension_numbers<[1], [0], [0], [1], [0, 0, 1, 1], [], []>} : vector<64x32xbf16>, vector<32x16xbf16>, vector<64x16xf32> -> vector<64x16xf32>
    %10 = arith.addf %1, %9 : vector<64x16xf32>
    %c0_i32_6 = arith.constant 0 : i32
    %11 = arith.addi %0, %c0_i32_6 : i32
    %c0_7 = arith.constant 0 : index
    %12 = arith.index_cast %11 : i32 to index
    %c1 = arith.constant 1 : index
    %c0_8 = arith.constant 0 : index
    %13 = vector.load %arg2[%c0_7, %12, %c1, %c0_8] : memref<1x9x9x32xbf16, #tpu.memory_space<vmem>>, vector<1x8x8x32xbf16>
    %14 = vector.shape_cast %13 : vector<1x8x8x32xbf16> to vector<8x8x32xbf16>
    %15 = vector.shape_cast %14 : vector<8x8x32xbf16> to vector<64x32xbf16>
    %c1_9 = arith.constant 1 : index
    %c0_10 = arith.constant 0 : index
    %c0_11 = arith.constant 0 : index
    %16 = vector.load %arg3[%c1_9, %c0_10, %c0_11] : memref<4x32x16xbf16, #tpu.memory_space<vmem>>, vector<1x32x16xbf16>
    %17 = vector.shape_cast %16 : vector<1x32x16xbf16> to vector<32x16xbf16>
    %cst_12 = arith.constant dense<0.000000e+00> : vector<64x16xf32>
    %18 = tpu.matmul %15, %17, %cst_12 {dimension_numbers = #tpu.dot_dimension_numbers<[1], [0], [0], [1], [0, 0, 1, 1], [], []>} : vector<64x32xbf16>, vector<32x16xbf16>, vector<64x16xf32> -> vector<64x16xf32>
    %19 = arith.addf %10, %18 : vector<64x16xf32>
    %c1_i32 = arith.constant 1 : i32
    %20 = arith.addi %0, %c1_i32 : i32
    %c0_13 = arith.constant 0 : index
    %21 = arith.index_cast %20 : i32 to index
    %c0_14 = arith.constant 0 : index
    %c0_15 = arith.constant 0 : index
    %22 = vector.load %arg2[%c0_13, %21, %c0_14, %c0_15] : memref<1x9x9x32xbf16, #tpu.memory_space<vmem>>, vector<1x8x8x32xbf16>
    %23 = vector.shape_cast %22 : vector<1x8x8x32xbf16> to vector<8x8x32xbf16>
    %24 = vector.shape_cast %23 : vector<8x8x32xbf16> to vector<64x32xbf16>
    %c2 = arith.constant 2 : index
    %c0_16 = arith.constant 0 : index
    %c0_17 = arith.constant 0 : index
    %25 = vector.load %arg3[%c2, %c0_16, %c0_17] : memref<4x32x16xbf16, #tpu.memory_space<vmem>>, vector<1x32x16xbf16>
    %26 = vector.shape_cast %25 : vector<1x32x16xbf16> to vector<32x16xbf16>
    %cst_18 = arith.constant dense<0.000000e+00> : vector<64x16xf32>
    %27 = tpu.matmul %24, %26, %cst_18 {dimension_numbers = #tpu.dot_dimension_numbers<[1], [0], [0], [1], [0, 0, 1, 1], [], []>} : vector<64x32xbf16>, vector<32x16xbf16>, vector<64x16xf32> -> vector<64x16xf32>
    %28 = arith.addf %19, %27 : vector<64x16xf32>
    %c1_i32_19 = arith.constant 1 : i32
    %29 = arith.addi %0, %c1_i32_19 : i32
    %c0_20 = arith.constant 0 : index
    %30 = arith.index_cast %29 : i32 to index
    %c1_21 = arith.constant 1 : index
    %c0_22 = arith.constant 0 : index
    %31 = vector.load %arg2[%c0_20, %30, %c1_21, %c0_22] : memref<1x9x9x32xbf16, #tpu.memory_space<vmem>>, vector<1x8x8x32xbf16>
    %32 = vector.shape_cast %31 : vector<1x8x8x32xbf16> to vector<8x8x32xbf16>
    %33 = vector.shape_cast %32 : vector<8x8x32xbf16> to vector<64x32xbf16>
    %c3 = arith.constant 3 : index
    %c0_23 = arith.constant 0 : index
    %c0_24 = arith.constant 0 : index
    %34 = vector.load %arg3[%c3, %c0_23, %c0_24] : memref<4x32x16xbf16, #tpu.memory_space<vmem>>, vector<1x32x16xbf16>
    %35 = vector.shape_cast %34 : vector<1x32x16xbf16> to vector<32x16xbf16>
    %cst_25 = arith.constant dense<0.000000e+00> : vector<64x16xf32>
    %36 = tpu.matmul %33, %35, %cst_25 {dimension_numbers = #tpu.dot_dimension_numbers<[1], [0], [0], [1], [0, 0, 1, 1], [], []>} : vector<64x32xbf16>, vector<32x16xbf16>, vector<64x16xf32> -> vector<64x16xf32>
    %37 = arith.addf %28, %36 : vector<64x16xf32>
    %38 = vector.shape_cast %37 : vector<64x16xf32> to vector<8x8x16xf32>
    %39 = arith.truncf %38 : vector<8x8x16xf32> to vector<8x8x16xbf16>
    %c0_26 = arith.constant 0 : index
    %c0_27 = arith.constant 0 : index
    %c0_28 = arith.constant 0 : index
    %c0_29 = arith.constant 0 : index
    %40 = vector.load %arg4[%c0_26, %c0_27, %c0_28, %c0_29] : memref<1x8x8x16xbf16, #tpu.memory_space<vmem>>, vector<1x8x8x16xbf16>
    %41 = vector.shape_cast %40 : vector<1x8x8x16xbf16> to vector<8x8x16xbf16>
    %42 = vector.shape_cast %39 : vector<8x8x16xbf16> to vector<1x8x8x16xbf16>
    tpu.vector_store %arg4[%c0_26, %c0_27, %c0_28, %c0_29], %42 {strides = array<i32>} : memref<1x8x8x16xbf16, #tpu.memory_space<vmem>>, vector<1x8x8x16xbf16>,
    %43 = vector.shape_cast %38 : vector<8x8x16xf32> to vector<64x16xf32>
    %cst_30 = arith.constant dense<0.000000e+00> : vector<16xf32>
    %44 = vector.multi_reduction <add>, %43, %cst_30 [0] : vector<64x16xf32> to vector<16xf32>
    %45 = vector.shape_cast %44 : vector<16xf32> to vector<1x16xf32>
    %46 = arith.mulf %43, %43 : vector<64x16xf32>
    %cst_31 = arith.constant dense<0.000000e+00> : vector<16xf32>
    %47 = vector.multi_reduction <add>, %46, %cst_31 [0] : vector<64x16xf32> to vector<16xf32>
    %48 = vector.shape_cast %47 : vector<16xf32> to vector<1x16xf32>
    %49 = vector.shape_cast %45 : vector<1x16xf32> to vector<1x16xf32>
    %50 = vector.broadcast %49 : vector<1x16xf32> to vector<8x16xf32>
    %c0_32 = arith.constant 0 : index
    %c0_33 = arith.constant 0 : index
    %c0_34 = arith.constant 0 : index
    %c0_35 = arith.constant 0 : index
    %51 = vector.load %arg5[%c0_32, %c0_33, %c0_34, %c0_35] : memref<1x1x8x16xf32, #tpu.memory_space<vmem>>, vector<1x1x8x16xf32>
    %52 = vector.shape_cast %51 : vector<1x1x8x16xf32> to vector<8x16xf32>
    %53 = vector.shape_cast %50 : vector<8x16xf32> to vector<1x1x8x16xf32>
    tpu.vector_store %arg5[%c0_32, %c0_33, %c0_34, %c0_35], %53 {strides = array<i32>} : memref<1x1x8x16xf32, #tpu.memory_space<vmem>>, vector<1x1x8x16xf32>,
    %54 = vector.shape_cast %48 : vector<1x16xf32> to vector<1x16xf32>
    %55 = vector.broadcast %54 : vector<1x16xf32> to vector<8x16xf32>
    %c0_36 = arith.constant 0 : index
    %c0_37 = arith.constant 0 : index
    %c0_38 = arith.constant 0 : index
    %c0_39 = arith.constant 0 : index
    %56 = vector.load %arg6[%c0_36, %c0_37, %c0_38, %c0_39] : memref<1x1x8x16xf32, #tpu.memory_space<vmem>>, vector<1x1x8x16xf32>
    %57 = vector.shape_cast %56 : vector<1x1x8x16xf32> to vector<8x16xf32>
    %58 = vector.shape_cast %55 : vector<8x16xf32> to vector<1x1x8x16xf32>
    tpu.vector_store %arg6[%c0_36, %c0_37, %c0_38, %c0_39], %58 {strides = array<i32>} : memref<1x1x8x16xf32, #tpu.memory_space<vmem>>, vector<1x1x8x16xf32>,
    return
  }
  func.func @transform_0(%arg0: i32, %arg1: i32) -> (i32, i32, i32, i32) {
    %c0_i32 = arith.constant 0 : i32
    %c0_i32_0 = arith.constant 0 : i32
    %c0_i32_1 = arith.constant 0 : i32
    %c0_i32_2 = arith.constant 0 : i32
    return %arg0, %c0_i32, %c0_i32_0, %c0_i32_1 : i32, i32, i32, i32
  }
  func.func @transform_1(%arg0: i32, %arg1: i32) -> (i32, i32, i32) {
    %c0_i32 = arith.constant 0 : i32
    %c0_i32_0 = arith.constant 0 : i32
    %c0_i32_1 = arith.constant 0 : i32
    %c0_i32_2 = arith.constant 0 : i32
    return %c0_i32, %c0_i32_0, %c0_i32_1 : i32, i32, i32
  }
  func.func @transform_2(%arg0: i32, %arg1: i32) -> (i32, i32, i32, i32) {
    %c0_i32 = arith.constant 0 : i32
    %c0_i32_0 = arith.constant 0 : i32
    %c0_i32_1 = arith.constant 0 : i32
    return %arg0, %arg1, %c0_i32, %c0_i32_0 : i32, i32, i32, i32
  }
  func.func @transform_3(%arg0: i32, %arg1: i32) -> (i32, i32, i32, i32) {
    %c0_i32 = arith.constant 0 : i32
    %c0_i32_0 = arith.constant 0 : i32
    %c0_i32_1 = arith.constant 0 : i32
    return %arg0, %arg1, %c0_i32, %c0_i32_0 : i32, i32, i32, i32
  }
  func.func @transform_4(%arg0: i32, %arg1: i32) -> (i32, i32, i32, i32) {
    %c0_i32 = arith.constant 0 : i32
    %c0_i32_0 = arith.constant 0 : i32
    %c0_i32_1 = arith.constant 0 : i32
    return %arg0, %arg1, %c0_i32, %c0_i32_0 : i32, i32, i32, i32
  }
}

module attributes {stable_mosaic.version = 11 : i64} {
  func.func @_bn_lrelu_kernel(%arg0: i32, %arg1: i32, %arg2: memref<1x8x8x16xbf16, #tpu.memory_space<vmem>>, %arg3: memref<1x16xf32, #tpu.memory_space<vmem>>, %arg4: memref<1x16xf32, #tpu.memory_space<vmem>>, %arg5: memref<1x8x8x16xbf16, #tpu.memory_space<vmem>>) attributes {dimension_semantics = [#tpu.dimension_semantics<parallel>, #tpu.dimension_semantics<parallel>], iteration_bounds = array<i64: 2, 1>, scalar_prefetch = 0 : i64, scratch_operands = 0 : i64, tpu.core_type = #tpu.core_type<tc>, window_params = [{transform_indices = @transform_0, window_bounds = array<i64: 1, 8, 8, 16>}, {pipeline_mode = #tpu.pipeline_mode<synchronous>, transform_indices = @transform_1, window_bounds = array<i64: 1, 16>}, {pipeline_mode = #tpu.pipeline_mode<synchronous>, transform_indices = @transform_2, window_bounds = array<i64: 1, 16>}, {transform_indices = @transform_3, window_bounds = array<i64: 1, 8, 8, 16>}]} {
    %c0 = arith.constant 0 : index
    %c0_0 = arith.constant 0 : index
    %c0_1 = arith.constant 0 : index
    %c0_2 = arith.constant 0 : index
    %0 = vector.load %arg2[%c0, %c0_0, %c0_1, %c0_2] : memref<1x8x8x16xbf16, #tpu.memory_space<vmem>>, vector<1x8x8x16xbf16>
    %1 = arith.extf %0 : vector<1x8x8x16xbf16> to vector<1x8x8x16xf32>
    %c0_3 = arith.constant 0 : index
    %c0_4 = arith.constant 0 : index
    %2 = vector.load %arg3[%c0_3, %c0_4] : memref<1x16xf32, #tpu.memory_space<vmem>>, vector<1x16xf32>
    %3 = vector.shape_cast %2 : vector<1x16xf32> to vector<1x1x1x16xf32>
    %4 = vector.broadcast %3 : vector<1x1x1x16xf32> to vector<1x8x8x16xf32>
    %5 = arith.mulf %1, %4 : vector<1x8x8x16xf32>
    %c0_5 = arith.constant 0 : index
    %c0_6 = arith.constant 0 : index
    %6 = vector.load %arg4[%c0_5, %c0_6] : memref<1x16xf32, #tpu.memory_space<vmem>>, vector<1x16xf32>
    %7 = vector.shape_cast %6 : vector<1x16xf32> to vector<1x1x1x16xf32>
    %8 = vector.broadcast %7 : vector<1x1x1x16xf32> to vector<1x8x8x16xf32>
    %9 = arith.addf %5, %8 : vector<1x8x8x16xf32>
    %cst = arith.constant 0.000000e+00 : f32
    %10 = vector.broadcast %cst : f32 to vector<1x8x8x16xf32>
    %11 = arith.cmpf oge, %9, %10 : vector<1x8x8x16xf32>
    %cst_7 = arith.constant 2.000000e-01 : f32
    %12 = vector.broadcast %cst_7 : f32 to vector<1x8x8x16xf32>
    %13 = arith.mulf %9, %12 : vector<1x8x8x16xf32>
    %14 = arith.select %11, %9, %13 : vector<1x8x8x16xi1>, vector<1x8x8x16xf32>
    %15 = arith.truncf %14 : vector<1x8x8x16xf32> to vector<1x8x8x16xbf16>
    %c0_8 = arith.constant 0 : index
    %c0_9 = arith.constant 0 : index
    %c0_10 = arith.constant 0 : index
    %c0_11 = arith.constant 0 : index
    %16 = vector.load %arg5[%c0_8, %c0_9, %c0_10, %c0_11] : memref<1x8x8x16xbf16, #tpu.memory_space<vmem>>, vector<1x8x8x16xbf16>
    tpu.vector_store %arg5[%c0_8, %c0_9, %c0_10, %c0_11], %15 {strides = array<i32>} : memref<1x8x8x16xbf16, #tpu.memory_space<vmem>>, vector<1x8x8x16xbf16>,
    return
  }
  func.func @transform_0(%arg0: i32, %arg1: i32) -> (i32, i32, i32, i32) {
    %c0_i32 = arith.constant 0 : i32
    %c0_i32_0 = arith.constant 0 : i32
    %c0_i32_1 = arith.constant 0 : i32
    return %arg0, %arg1, %c0_i32, %c0_i32_0 : i32, i32, i32, i32
  }
  func.func @transform_1(%arg0: i32, %arg1: i32) -> (i32, i32) {
    %c0_i32 = arith.constant 0 : i32
    %c0_i32_0 = arith.constant 0 : i32
    %c0_i32_1 = arith.constant 0 : i32
    return %c0_i32, %c0_i32_0 : i32, i32
  }
  func.func @transform_2(%arg0: i32, %arg1: i32) -> (i32, i32) {
    %c0_i32 = arith.constant 0 : i32
    %c0_i32_0 = arith.constant 0 : i32
    %c0_i32_1 = arith.constant 0 : i32
    return %c0_i32, %c0_i32_0 : i32, i32
  }
  func.func @transform_3(%arg0: i32, %arg1: i32) -> (i32, i32, i32, i32) {
    %c0_i32 = arith.constant 0 : i32
    %c0_i32_0 = arith.constant 0 : i32
    %c0_i32_1 = arith.constant 0 : i32
    return %arg0, %arg1, %c0_i32, %c0_i32_0 : i32, i32, i32, i32
  }
}

module attributes {stable_mosaic.version = 11 : i64} {
  func.func @_bn_lrelu_kernel(%arg0: i32, %arg1: i32, %arg2: memref<1x4x8x32xbf16, #tpu.memory_space<vmem>>, %arg3: memref<1x32xf32, #tpu.memory_space<vmem>>, %arg4: memref<1x32xf32, #tpu.memory_space<vmem>>, %arg5: memref<1x4x8x32xbf16, #tpu.memory_space<vmem>>) attributes {dimension_semantics = [#tpu.dimension_semantics<parallel>, #tpu.dimension_semantics<parallel>], iteration_bounds = array<i64: 2, 1>, scalar_prefetch = 0 : i64, scratch_operands = 0 : i64, tpu.core_type = #tpu.core_type<tc>, window_params = [{transform_indices = @transform_0, window_bounds = array<i64: 1, 4, 8, 32>}, {pipeline_mode = #tpu.pipeline_mode<synchronous>, transform_indices = @transform_1, window_bounds = array<i64: 1, 32>}, {pipeline_mode = #tpu.pipeline_mode<synchronous>, transform_indices = @transform_2, window_bounds = array<i64: 1, 32>}, {transform_indices = @transform_3, window_bounds = array<i64: 1, 4, 8, 32>}]} {
    %c0 = arith.constant 0 : index
    %c0_0 = arith.constant 0 : index
    %c0_1 = arith.constant 0 : index
    %c0_2 = arith.constant 0 : index
    %0 = vector.load %arg2[%c0, %c0_0, %c0_1, %c0_2] : memref<1x4x8x32xbf16, #tpu.memory_space<vmem>>, vector<1x4x8x32xbf16>
    %1 = arith.extf %0 : vector<1x4x8x32xbf16> to vector<1x4x8x32xf32>
    %c0_3 = arith.constant 0 : index
    %c0_4 = arith.constant 0 : index
    %2 = vector.load %arg3[%c0_3, %c0_4] : memref<1x32xf32, #tpu.memory_space<vmem>>, vector<1x32xf32>
    %3 = vector.shape_cast %2 : vector<1x32xf32> to vector<1x1x1x32xf32>
    %4 = vector.broadcast %3 : vector<1x1x1x32xf32> to vector<1x4x8x32xf32>
    %5 = arith.mulf %1, %4 : vector<1x4x8x32xf32>
    %c0_5 = arith.constant 0 : index
    %c0_6 = arith.constant 0 : index
    %6 = vector.load %arg4[%c0_5, %c0_6] : memref<1x32xf32, #tpu.memory_space<vmem>>, vector<1x32xf32>
    %7 = vector.shape_cast %6 : vector<1x32xf32> to vector<1x1x1x32xf32>
    %8 = vector.broadcast %7 : vector<1x1x1x32xf32> to vector<1x4x8x32xf32>
    %9 = arith.addf %5, %8 : vector<1x4x8x32xf32>
    %cst = arith.constant 0.000000e+00 : f32
    %10 = vector.broadcast %cst : f32 to vector<1x4x8x32xf32>
    %11 = arith.cmpf oge, %9, %10 : vector<1x4x8x32xf32>
    %cst_7 = arith.constant 2.000000e-01 : f32
    %12 = vector.broadcast %cst_7 : f32 to vector<1x4x8x32xf32>
    %13 = arith.mulf %9, %12 : vector<1x4x8x32xf32>
    %14 = arith.select %11, %9, %13 : vector<1x4x8x32xi1>, vector<1x4x8x32xf32>
    %15 = arith.truncf %14 : vector<1x4x8x32xf32> to vector<1x4x8x32xbf16>
    %c0_8 = arith.constant 0 : index
    %c0_9 = arith.constant 0 : index
    %c0_10 = arith.constant 0 : index
    %c0_11 = arith.constant 0 : index
    %16 = vector.load %arg5[%c0_8, %c0_9, %c0_10, %c0_11] : memref<1x4x8x32xbf16, #tpu.memory_space<vmem>>, vector<1x4x8x32xbf16>
    tpu.vector_store %arg5[%c0_8, %c0_9, %c0_10, %c0_11], %15 {strides = array<i32>} : memref<1x4x8x32xbf16, #tpu.memory_space<vmem>>, vector<1x4x8x32xbf16>,
    return
  }
  func.func @transform_0(%arg0: i32, %arg1: i32) -> (i32, i32, i32, i32) {
    %c0_i32 = arith.constant 0 : i32
    %c0_i32_0 = arith.constant 0 : i32
    %c0_i32_1 = arith.constant 0 : i32
    return %arg0, %arg1, %c0_i32, %c0_i32_0 : i32, i32, i32, i32
  }
  func.func @transform_1(%arg0: i32, %arg1: i32) -> (i32, i32) {
    %c0_i32 = arith.constant 0 : i32
    %c0_i32_0 = arith.constant 0 : i32
    %c0_i32_1 = arith.constant 0 : i32
    return %c0_i32, %c0_i32_0 : i32, i32
  }
  func.func @transform_2(%arg0: i32, %arg1: i32) -> (i32, i32) {
    %c0_i32 = arith.constant 0 : i32
    %c0_i32_0 = arith.constant 0 : i32
    %c0_i32_1 = arith.constant 0 : i32
    return %c0_i32, %c0_i32_0 : i32, i32
  }
  func.func @transform_3(%arg0: i32, %arg1: i32) -> (i32, i32, i32, i32) {
    %c0_i32 = arith.constant 0 : i32
    %c0_i32_0 = arith.constant 0 : i32
    %c0_i32_1 = arith.constant 0 : i32
    return %arg0, %arg1, %c0_i32, %c0_i32_0 : i32, i32, i32, i32
  }
}

module attributes {stable_mosaic.version = 11 : i64} {
  func.func @_conv_stats_kernel(%arg0: i32, %arg1: i32, %arg2: memref<1x5x9x64xbf16, #tpu.memory_space<vmem>>, %arg3: memref<4x64x32xbf16, #tpu.memory_space<vmem>>, %arg4: memref<1x4x8x32xbf16, #tpu.memory_space<vmem>>, %arg5: memref<1x1x8x32xf32, #tpu.memory_space<vmem>>, %arg6: memref<1x1x8x32xf32, #tpu.memory_space<vmem>>) attributes {dimension_semantics = [#tpu.dimension_semantics<parallel>, #tpu.dimension_semantics<parallel>], iteration_bounds = array<i64: 2, 1>, scalar_prefetch = 0 : i64, scratch_operands = 0 : i64, tpu.core_type = #tpu.core_type<tc>, window_params = [{transform_indices = @transform_0, window_bounds = array<i64: 1, 5, 9, 64>}, {pipeline_mode = #tpu.pipeline_mode<synchronous>, transform_indices = @transform_1, window_bounds = array<i64: 4, 64, 32>}, {transform_indices = @transform_2, window_bounds = array<i64: 1, 4, 8, 32>}, {transform_indices = @transform_3, window_bounds = array<i64: 1, 1, 8, 32>}, {transform_indices = @transform_4, window_bounds = array<i64: 1, 1, 8, 32>}]} {
    %c4_i32 = arith.constant 4 : i32
    %0 = arith.muli %arg1, %c4_i32 : i32
    %cst = arith.constant 0.000000e+00 : f32
    %1 = vector.broadcast %cst : f32 to vector<32x32xf32>
    %c0_i32 = arith.constant 0 : i32
    %2 = arith.addi %0, %c0_i32 : i32
    %c0 = arith.constant 0 : index
    %3 = arith.index_cast %2 : i32 to index
    %c0_0 = arith.constant 0 : index
    %c0_1 = arith.constant 0 : index
    %4 = vector.load %arg2[%c0, %3, %c0_0, %c0_1] : memref<1x5x9x64xbf16, #tpu.memory_space<vmem>>, vector<1x4x8x64xbf16>
    %5 = vector.shape_cast %4 : vector<1x4x8x64xbf16> to vector<4x8x64xbf16>
    %6 = vector.shape_cast %5 : vector<4x8x64xbf16> to vector<32x64xbf16>
    %c0_2 = arith.constant 0 : index
    %c0_3 = arith.constant 0 : index
    %c0_4 = arith.constant 0 : index
    %7 = vector.load %arg3[%c0_2, %c0_3, %c0_4] : memref<4x64x32xbf16, #tpu.memory_space<vmem>>, vector<1x64x32xbf16>
    %8 = vector.shape_cast %7 : vector<1x64x32xbf16> to vector<64x32xbf16>
    %cst_5 = arith.constant dense<0.000000e+00> : vector<32x32xf32>
    %9 = tpu.matmul %6, %8, %cst_5 {dimension_numbers = #tpu.dot_dimension_numbers<[1], [0], [0], [1], [0, 0, 1, 1], [], []>} : vector<32x64xbf16>, vector<64x32xbf16>, vector<32x32xf32> -> vector<32x32xf32>
    %10 = arith.addf %1, %9 : vector<32x32xf32>
    %c0_i32_6 = arith.constant 0 : i32
    %11 = arith.addi %0, %c0_i32_6 : i32
    %c0_7 = arith.constant 0 : index
    %12 = arith.index_cast %11 : i32 to index
    %c1 = arith.constant 1 : index
    %c0_8 = arith.constant 0 : index
    %13 = vector.load %arg2[%c0_7, %12, %c1, %c0_8] : memref<1x5x9x64xbf16, #tpu.memory_space<vmem>>, vector<1x4x8x64xbf16>
    %14 = vector.shape_cast %13 : vector<1x4x8x64xbf16> to vector<4x8x64xbf16>
    %15 = vector.shape_cast %14 : vector<4x8x64xbf16> to vector<32x64xbf16>
    %c1_9 = arith.constant 1 : index
    %c0_10 = arith.constant 0 : index
    %c0_11 = arith.constant 0 : index
    %16 = vector.load %arg3[%c1_9, %c0_10, %c0_11] : memref<4x64x32xbf16, #tpu.memory_space<vmem>>, vector<1x64x32xbf16>
    %17 = vector.shape_cast %16 : vector<1x64x32xbf16> to vector<64x32xbf16>
    %cst_12 = arith.constant dense<0.000000e+00> : vector<32x32xf32>
    %18 = tpu.matmul %15, %17, %cst_12 {dimension_numbers = #tpu.dot_dimension_numbers<[1], [0], [0], [1], [0, 0, 1, 1], [], []>} : vector<32x64xbf16>, vector<64x32xbf16>, vector<32x32xf32> -> vector<32x32xf32>
    %19 = arith.addf %10, %18 : vector<32x32xf32>
    %c1_i32 = arith.constant 1 : i32
    %20 = arith.addi %0, %c1_i32 : i32
    %c0_13 = arith.constant 0 : index
    %21 = arith.index_cast %20 : i32 to index
    %c0_14 = arith.constant 0 : index
    %c0_15 = arith.constant 0 : index
    %22 = vector.load %arg2[%c0_13, %21, %c0_14, %c0_15] : memref<1x5x9x64xbf16, #tpu.memory_space<vmem>>, vector<1x4x8x64xbf16>
    %23 = vector.shape_cast %22 : vector<1x4x8x64xbf16> to vector<4x8x64xbf16>
    %24 = vector.shape_cast %23 : vector<4x8x64xbf16> to vector<32x64xbf16>
    %c2 = arith.constant 2 : index
    %c0_16 = arith.constant 0 : index
    %c0_17 = arith.constant 0 : index
    %25 = vector.load %arg3[%c2, %c0_16, %c0_17] : memref<4x64x32xbf16, #tpu.memory_space<vmem>>, vector<1x64x32xbf16>
    %26 = vector.shape_cast %25 : vector<1x64x32xbf16> to vector<64x32xbf16>
    %cst_18 = arith.constant dense<0.000000e+00> : vector<32x32xf32>
    %27 = tpu.matmul %24, %26, %cst_18 {dimension_numbers = #tpu.dot_dimension_numbers<[1], [0], [0], [1], [0, 0, 1, 1], [], []>} : vector<32x64xbf16>, vector<64x32xbf16>, vector<32x32xf32> -> vector<32x32xf32>
    %28 = arith.addf %19, %27 : vector<32x32xf32>
    %c1_i32_19 = arith.constant 1 : i32
    %29 = arith.addi %0, %c1_i32_19 : i32
    %c0_20 = arith.constant 0 : index
    %30 = arith.index_cast %29 : i32 to index
    %c1_21 = arith.constant 1 : index
    %c0_22 = arith.constant 0 : index
    %31 = vector.load %arg2[%c0_20, %30, %c1_21, %c0_22] : memref<1x5x9x64xbf16, #tpu.memory_space<vmem>>, vector<1x4x8x64xbf16>
    %32 = vector.shape_cast %31 : vector<1x4x8x64xbf16> to vector<4x8x64xbf16>
    %33 = vector.shape_cast %32 : vector<4x8x64xbf16> to vector<32x64xbf16>
    %c3 = arith.constant 3 : index
    %c0_23 = arith.constant 0 : index
    %c0_24 = arith.constant 0 : index
    %34 = vector.load %arg3[%c3, %c0_23, %c0_24] : memref<4x64x32xbf16, #tpu.memory_space<vmem>>, vector<1x64x32xbf16>
    %35 = vector.shape_cast %34 : vector<1x64x32xbf16> to vector<64x32xbf16>
    %cst_25 = arith.constant dense<0.000000e+00> : vector<32x32xf32>
    %36 = tpu.matmul %33, %35, %cst_25 {dimension_numbers = #tpu.dot_dimension_numbers<[1], [0], [0], [1], [0, 0, 1, 1], [], []>} : vector<32x64xbf16>, vector<64x32xbf16>, vector<32x32xf32> -> vector<32x32xf32>
    %37 = arith.addf %28, %36 : vector<32x32xf32>
    %38 = vector.shape_cast %37 : vector<32x32xf32> to vector<4x8x32xf32>
    %39 = arith.truncf %38 : vector<4x8x32xf32> to vector<4x8x32xbf16>
    %c0_26 = arith.constant 0 : index
    %c0_27 = arith.constant 0 : index
    %c0_28 = arith.constant 0 : index
    %c0_29 = arith.constant 0 : index
    %40 = vector.load %arg4[%c0_26, %c0_27, %c0_28, %c0_29] : memref<1x4x8x32xbf16, #tpu.memory_space<vmem>>, vector<1x4x8x32xbf16>
    %41 = vector.shape_cast %40 : vector<1x4x8x32xbf16> to vector<4x8x32xbf16>
    %42 = vector.shape_cast %39 : vector<4x8x32xbf16> to vector<1x4x8x32xbf16>
    tpu.vector_store %arg4[%c0_26, %c0_27, %c0_28, %c0_29], %42 {strides = array<i32>} : memref<1x4x8x32xbf16, #tpu.memory_space<vmem>>, vector<1x4x8x32xbf16>,
    %43 = tpu.iota {dimensions = array<i32: 0>} : vector<4x8x1xi32>
    %44 = vector.broadcast %0 : i32 to vector<4x8x1xi32>
    %45 = arith.addi %44, %43 : vector<4x8x1xi32>
    %46 = tpu.iota {dimensions = array<i32: 1>} : vector<4x8x1xi32>
    %c4_i32_30 = arith.constant 4 : i32
    %47 = vector.broadcast %c4_i32_30 : i32 to vector<4x8x1xi32>
    %48 = arith.cmpi slt, %45, %47 : vector<4x8x1xi32>
    %c4_i32_31 = arith.constant 4 : i32
    %49 = vector.broadcast %c4_i32_31 : i32 to vector<4x8x1xi32>
    %50 = arith.cmpi slt, %46, %49 : vector<4x8x1xi32>
    %51 = arith.andi %48, %50 : vector<4x8x1xi1>
    %cst_32 = arith.constant 0.000000e+00 : f32
    %52 = vector.shape_cast %51 : vector<4x8x1xi1> to vector<4x8x1xi1>
    %53 = vector.broadcast %52 : vector<4x8x1xi1> to vector<4x8x32xi1>
    %54 = vector.broadcast %cst_32 : f32 to vector<4x8x32xf32>
    %55 = arith.select %53, %38, %54 : vector<4x8x32xi1>, vector<4x8x32xf32>
    %56 = vector.shape_cast %55 : vector<4x8x32xf32> to vector<32x32xf32>
    %cst_33 = arith.constant dense<0.000000e+00> : vector<32xf32>
    %57 = vector.multi_reduction <add>, %56, %cst_33 [0] : vector<32x32xf32> to vector<32xf32>
    %58 = vector.shape_cast %57 : vector<32xf32> to vector<1x32xf32>
    %59 = arith.mulf %56, %56 : vector<32x32xf32>
    %cst_34 = arith.constant dense<0.000000e+00> : vector<32xf32>
    %60 = vector.multi_reduction <add>, %59, %cst_34 [0] : vector<32x32xf32> to vector<32xf32>
    %61 = vector.shape_cast %60 : vector<32xf32> to vector<1x32xf32>
    %62 = vector.shape_cast %58 : vector<1x32xf32> to vector<1x32xf32>
    %63 = vector.broadcast %62 : vector<1x32xf32> to vector<8x32xf32>
    %c0_35 = arith.constant 0 : index
    %c0_36 = arith.constant 0 : index
    %c0_37 = arith.constant 0 : index
    %c0_38 = arith.constant 0 : index
    %64 = vector.load %arg5[%c0_35, %c0_36, %c0_37, %c0_38] : memref<1x1x8x32xf32, #tpu.memory_space<vmem>>, vector<1x1x8x32xf32>
    %65 = vector.shape_cast %64 : vector<1x1x8x32xf32> to vector<8x32xf32>
    %66 = vector.shape_cast %63 : vector<8x32xf32> to vector<1x1x8x32xf32>
    tpu.vector_store %arg5[%c0_35, %c0_36, %c0_37, %c0_38], %66 {strides = array<i32>} : memref<1x1x8x32xf32, #tpu.memory_space<vmem>>, vector<1x1x8x32xf32>,
    %67 = vector.shape_cast %61 : vector<1x32xf32> to vector<1x32xf32>
    %68 = vector.broadcast %67 : vector<1x32xf32> to vector<8x32xf32>
    %c0_39 = arith.constant 0 : index
    %c0_40 = arith.constant 0 : index
    %c0_41 = arith.constant 0 : index
    %c0_42 = arith.constant 0 : index
    %69 = vector.load %arg6[%c0_39, %c0_40, %c0_41, %c0_42] : memref<1x1x8x32xf32, #tpu.memory_space<vmem>>, vector<1x1x8x32xf32>
    %70 = vector.shape_cast %69 : vector<1x1x8x32xf32> to vector<8x32xf32>
    %71 = vector.shape_cast %68 : vector<8x32xf32> to vector<1x1x8x32xf32>
    tpu.vector_store %arg6[%c0_39, %c0_40, %c0_41, %c0_42], %71 {strides = array<i32>} : memref<1x1x8x32xf32, #tpu.memory_space<vmem>>, vector<1x1x8x32xf32>,
    return
  }
  func.func @transform_0(%arg0: i32, %arg1: i32) -> (i32, i32, i32, i32) {
    %c0_i32 = arith.constant 0 : i32
    %c0_i32_0 = arith.constant 0 : i32
    %c0_i32_1 = arith.constant 0 : i32
    %c0_i32_2 = arith.constant 0 : i32
    return %arg0, %c0_i32, %c0_i32_0, %c0_i32_1 : i32, i32, i32, i32
  }
  func.func @transform_1(%arg0: i32, %arg1: i32) -> (i32, i32, i32) {
    %c0_i32 = arith.constant 0 : i32
    %c0_i32_0 = arith.constant 0 : i32
    %c0_i32_1 = arith.constant 0 : i32
    %c0_i32_2 = arith.constant 0 : i32
    return %c0_i32, %c0_i32_0, %c0_i32_1 : i32, i32, i32
  }
  func.func @transform_2(%arg0: i32, %arg1: i32) -> (i32, i32, i32, i32) {
    %c0_i32 = arith.constant 0 : i32
    %c0_i32_0 = arith.constant 0 : i32
    %c0_i32_1 = arith.constant 0 : i32
    return %arg0, %arg1, %c0_i32, %c0_i32_0 : i32, i32, i32, i32
  }
  func.func @transform_3(%arg0: i32, %arg1: i32) -> (i32, i32, i32, i32) {
    %c0_i32 = arith.constant 0 : i32
    %c0_i32_0 = arith.constant 0 : i32
    %c0_i32_1 = arith.constant 0 : i32
    return %arg0, %arg1, %c0_i32, %c0_i32_0 : i32, i32, i32, i32
  }
  func.func @transform_4(%arg0: i32, %arg1: i32) -> (i32, i32, i32, i32) {
    %c0_i32 = arith.constant 0 : i32
    %c0_i32_0 = arith.constant 0 : i32
    %c0_i32_1 = arith.constant 0 : i32
    return %arg0, %arg1, %c0_i32, %c0_i32_0 : i32, i32, i32, i32
  }
}

module attributes {stable_mosaic.version = 11 : i64} {
  func.func @_conv_stats_kernel(%arg0: i32, %arg1: i32, %arg2: memref<1x6x11x32xbf16, #tpu.memory_space<vmem>>, %arg3: memref<16x32x64xbf16, #tpu.memory_space<vmem>>, %arg4: memref<1x3x8x64xbf16, #tpu.memory_space<vmem>>, %arg5: memref<1x1x8x64xf32, #tpu.memory_space<vmem>>, %arg6: memref<1x1x8x64xf32, #tpu.memory_space<vmem>>) attributes {dimension_semantics = [#tpu.dimension_semantics<parallel>, #tpu.dimension_semantics<parallel>], iteration_bounds = array<i64: 2, 1>, scalar_prefetch = 0 : i64, scratch_operands = 0 : i64, tpu.core_type = #tpu.core_type<tc>, window_params = [{transform_indices = @transform_0, window_bounds = array<i64: 1, 6, 11, 32>}, {pipeline_mode = #tpu.pipeline_mode<synchronous>, transform_indices = @transform_1, window_bounds = array<i64: 16, 32, 64>}, {transform_indices = @transform_2, window_bounds = array<i64: 1, 3, 8, 64>}, {transform_indices = @transform_3, window_bounds = array<i64: 1, 1, 8, 64>}, {transform_indices = @transform_4, window_bounds = array<i64: 1, 1, 8, 64>}]} {
    %c3_i32 = arith.constant 3 : i32
    %0 = arith.muli %arg1, %c3_i32 : i32
    %cst = arith.constant 0.000000e+00 : f32
    %1 = vector.broadcast %cst : f32 to vector<24x64xf32>
    %c0_i32 = arith.constant 0 : i32
    %2 = arith.addi %0, %c0_i32 : i32
    %c0 = arith.constant 0 : index
    %3 = arith.index_cast %2 : i32 to index
    %c0_0 = arith.constant 0 : index
    %c0_1 = arith.constant 0 : index
    %4 = vector.load %arg2[%c0, %3, %c0_0, %c0_1] : memref<1x6x11x32xbf16, #tpu.memory_space<vmem>>, vector<1x3x8x32xbf16>
    %5 = vector.shape_cast %4 : vector<1x3x8x32xbf16> to vector<3x8x32xbf16>
    %6 = vector.shape_cast %5 : vector<3x8x32xbf16> to vector<24x32xbf16>
    %c0_2 = arith.constant 0 : index
    %c0_3 = arith.constant 0 : index
    %c0_4 = arith.constant 0 : index
    %7 = vector.load %arg3[%c0_2, %c0_3, %c0_4] : memref<16x32x64xbf16, #tpu.memory_space<vmem>>, vector<1x32x64xbf16>
    %8 = vector.shape_cast %7 : vector<1x32x64xbf16> to vector<32x64xbf16>
    %cst_5 = arith.constant dense<0.000000e+00> : vector<24x64xf32>
    %9 = tpu.matmul %6, %8, %cst_5 {dimension_numbers = #tpu.dot_dimension_numbers<[1], [0], [0], [1], [0, 0, 1, 1], [], []>} : vector<24x32xbf16>, vector<32x64xbf16>, vector<24x64xf32> -> vector<24x64xf32>
    %10 = arith.addf %1, %9 : vector<24x64xf32>
    %c0_i32_6 = arith.constant 0 : i32
    %11 = arith.addi %0, %c0_i32_6 : i32
    %c0_7 = arith.constant 0 : index
    %12 = arith.index_cast %11 : i32 to index
    %c1 = arith.constant 1 : index
    %c0_8 = arith.constant 0 : index
    %13 = vector.load %arg2[%c0_7, %12, %c1, %c0_8] : memref<1x6x11x32xbf16, #tpu.memory_space<vmem>>, vector<1x3x8x32xbf16>
    %14 = vector.shape_cast %13 : vector<1x3x8x32xbf16> to vector<3x8x32xbf16>
    %15 = vector.shape_cast %14 : vector<3x8x32xbf16> to vector<24x32xbf16>
    %c1_9 = arith.constant 1 : index
    %c0_10 = arith.constant 0 : index
    %c0_11 = arith.constant 0 : index
    %16 = vector.load %arg3[%c1_9, %c0_10, %c0_11] : memref<16x32x64xbf16, #tpu.memory_space<vmem>>, vector<1x32x64xbf16>
    %17 = vector.shape_cast %16 : vector<1x32x64xbf16> to vector<32x64xbf16>
    %cst_12 = arith.constant dense<0.000000e+00> : vector<24x64xf32>
    %18 = tpu.matmul %15, %17, %cst_12 {dimension_numbers = #tpu.dot_dimension_numbers<[1], [0], [0], [1], [0, 0, 1, 1], [], []>} : vector<24x32xbf16>, vector<32x64xbf16>, vector<24x64xf32> -> vector<24x64xf32>
    %19 = arith.addf %10, %18 : vector<24x64xf32>
    %c0_i32_13 = arith.constant 0 : i32
    %20 = arith.addi %0, %c0_i32_13 : i32
    %c0_14 = arith.constant 0 : index
    %21 = arith.index_cast %20 : i32 to index
    %c2 = arith.constant 2 : index
    %c0_15 = arith.constant 0 : index
    %22 = vector.load %arg2[%c0_14, %21, %c2, %c0_15] : memref<1x6x11x32xbf16, #tpu.memory_space<vmem>>, vector<1x3x8x32xbf16>
    %23 = vector.shape_cast %22 : vector<1x3x8x32xbf16> to vector<3x8x32xbf16>
    %24 = vector.shape_cast %23 : vector<3x8x32xbf16> to vector<24x32xbf16>
    %c2_16 = arith.constant 2 : index
    %c0_17 = arith.constant 0 : index
    %c0_18 = arith.constant 0 : index
    %25 = vector.load %arg3[%c2_16, %c0_17, %c0_18] : memref<16x32x64xbf16, #tpu.memory_space<vmem>>, vector<1x32x64xbf16>
    %26 = vector.shape_cast %25 : vector<1x32x64xbf16> to vector<32x64xbf16>
    %cst_19 = arith.constant dense<0.000000e+00> : vector<24x64xf32>
    %27 = tpu.matmul %24, %26, %cst_19 {dimension_numbers = #tpu.dot_dimension_numbers<[1], [0], [0], [1], [0, 0, 1, 1], [], []>} : vector<24x32xbf16>, vector<32x64xbf16>, vector<24x64xf32> -> vector<24x64xf32>
    %28 = arith.addf %19, %27 : vector<24x64xf32>
    %c0_i32_20 = arith.constant 0 : i32
    %29 = arith.addi %0, %c0_i32_20 : i32
    %c0_21 = arith.constant 0 : index
    %30 = arith.index_cast %29 : i32 to index
    %c3 = arith.constant 3 : index
    %c0_22 = arith.constant 0 : index
    %31 = vector.load %arg2[%c0_21, %30, %c3, %c0_22] : memref<1x6x11x32xbf16, #tpu.memory_space<vmem>>, vector<1x3x8x32xbf16>
    %32 = vector.shape_cast %31 : vector<1x3x8x32xbf16> to vector<3x8x32xbf16>
    %33 = vector.shape_cast %32 : vector<3x8x32xbf16> to vector<24x32xbf16>
    %c3_23 = arith.constant 3 : index
    %c0_24 = arith.constant 0 : index
    %c0_25 = arith.constant 0 : index
    %34 = vector.load %arg3[%c3_23, %c0_24, %c0_25] : memref<16x32x64xbf16, #tpu.memory_space<vmem>>, vector<1x32x64xbf16>
    %35 = vector.shape_cast %34 : vector<1x32x64xbf16> to vector<32x64xbf16>
    %cst_26 = arith.constant dense<0.000000e+00> : vector<24x64xf32>
    %36 = tpu.matmul %33, %35, %cst_26 {dimension_numbers = #tpu.dot_dimension_numbers<[1], [0], [0], [1], [0, 0, 1, 1], [], []>} : vector<24x32xbf16>, vector<32x64xbf16>, vector<24x64xf32> -> vector<24x64xf32>
    %37 = arith.addf %28, %36 : vector<24x64xf32>
    %c1_i32 = arith.constant 1 : i32
    %38 = arith.addi %0, %c1_i32 : i32
    %c0_27 = arith.constant 0 : index
    %39 = arith.index_cast %38 : i32 to index
    %c0_28 = arith.constant 0 : index
    %c0_29 = arith.constant 0 : index
    %40 = vector.load %arg2[%c0_27, %39, %c0_28, %c0_29] : memref<1x6x11x32xbf16, #tpu.memory_space<vmem>>, vector<1x3x8x32xbf16>
    %41 = vector.shape_cast %40 : vector<1x3x8x32xbf16> to vector<3x8x32xbf16>
    %42 = vector.shape_cast %41 : vector<3x8x32xbf16> to vector<24x32xbf16>
    %c4 = arith.constant 4 : index
    %c0_30 = arith.constant 0 : index
    %c0_31 = arith.constant 0 : index
    %43 = vector.load %arg3[%c4, %c0_30, %c0_31] : memref<16x32x64xbf16, #tpu.memory_space<vmem>>, vector<1x32x64xbf16>
    %44 = vector.shape_cast %43 : vector<1x32x64xbf16> to vector<32x64xbf16>
    %cst_32 = arith.constant dense<0.000000e+00> : vector<24x64xf32>
    %45 = tpu.matmul %42, %44, %cst_32 {dimension_numbers = #tpu.dot_dimension_numbers<[1], [0], [0], [1], [0, 0, 1, 1], [], []>} : vector<24x32xbf16>, vector<32x64xbf16>, vector<24x64xf32> -> vector<24x64xf32>
    %46 = arith.addf %37, %45 : vector<24x64xf32>
    %c1_i32_33 = arith.constant 1 : i32
    %47 = arith.addi %0, %c1_i32_33 : i32
    %c0_34 = arith.constant 0 : index
    %48 = arith.index_cast %47 : i32 to index
    %c1_35 = arith.constant 1 : index
    %c0_36 = arith.constant 0 : index
    %49 = vector.load %arg2[%c0_34, %48, %c1_35, %c0_36] : memref<1x6x11x32xbf16, #tpu.memory_space<vmem>>, vector<1x3x8x32xbf16>
    %50 = vector.shape_cast %49 : vector<1x3x8x32xbf16> to vector<3x8x32xbf16>
    %51 = vector.shape_cast %50 : vector<3x8x32xbf16> to vector<24x32xbf16>
    %c5 = arith.constant 5 : index
    %c0_37 = arith.constant 0 : index
    %c0_38 = arith.constant 0 : index
    %52 = vector.load %arg3[%c5, %c0_37, %c0_38] : memref<16x32x64xbf16, #tpu.memory_space<vmem>>, vector<1x32x64xbf16>
    %53 = vector.shape_cast %52 : vector<1x32x64xbf16> to vector<32x64xbf16>
    %cst_39 = arith.constant dense<0.000000e+00> : vector<24x64xf32>
    %54 = tpu.matmul %51, %53, %cst_39 {dimension_numbers = #tpu.dot_dimension_numbers<[1], [0], [0], [1], [0, 0, 1, 1], [], []>} : vector<24x32xbf16>, vector<32x64xbf16>, vector<24x64xf32> -> vector<24x64xf32>
    %55 = arith.addf %46, %54 : vector<24x64xf32>
    %c1_i32_40 = arith.constant 1 : i32
    %56 = arith.addi %0, %c1_i32_40 : i32
    %c0_41 = arith.constant 0 : index
    %57 = arith.index_cast %56 : i32 to index
    %c2_42 = arith.constant 2 : index
    %c0_43 = arith.constant 0 : index
    %58 = vector.load %arg2[%c0_41, %57, %c2_42, %c0_43] : memref<1x6x11x32xbf16, #tpu.memory_space<vmem>>, vector<1x3x8x32xbf16>
    %59 = vector.shape_cast %58 : vector<1x3x8x32xbf16> to vector<3x8x32xbf16>
    %60 = vector.shape_cast %59 : vector<3x8x32xbf16> to vector<24x32xbf16>
    %c6 = arith.constant 6 : index
    %c0_44 = arith.constant 0 : index
    %c0_45 = arith.constant 0 : index
    %61 = vector.load %arg3[%c6, %c0_44, %c0_45] : memref<16x32x64xbf16, #tpu.memory_space<vmem>>, vector<1x32x64xbf16>
    %62 = vector.shape_cast %61 : vector<1x32x64xbf16> to vector<32x64xbf16>
    %cst_46 = arith.constant dense<0.000000e+00> : vector<24x64xf32>
    %63 = tpu.matmul %60, %62, %cst_46 {dimension_numbers = #tpu.dot_dimension_numbers<[1], [0], [0], [1], [0, 0, 1, 1], [], []>} : vector<24x32xbf16>, vector<32x64xbf16>, vector<24x64xf32> -> vector<24x64xf32>
    %64 = arith.addf %55, %63 : vector<24x64xf32>
    %c1_i32_47 = arith.constant 1 : i32
    %65 = arith.addi %0, %c1_i32_47 : i32
    %c0_48 = arith.constant 0 : index
    %66 = arith.index_cast %65 : i32 to index
    %c3_49 = arith.constant 3 : index
    %c0_50 = arith.constant 0 : index
    %67 = vector.load %arg2[%c0_48, %66, %c3_49, %c0_50] : memref<1x6x11x32xbf16, #tpu.memory_space<vmem>>, vector<1x3x8x32xbf16>
    %68 = vector.shape_cast %67 : vector<1x3x8x32xbf16> to vector<3x8x32xbf16>
    %69 = vector.shape_cast %68 : vector<3x8x32xbf16> to vector<24x32xbf16>
    %c7 = arith.constant 7 : index
    %c0_51 = arith.constant 0 : index
    %c0_52 = arith.constant 0 : index
    %70 = vector.load %arg3[%c7, %c0_51, %c0_52] : memref<16x32x64xbf16, #tpu.memory_space<vmem>>, vector<1x32x64xbf16>
    %71 = vector.shape_cast %70 : vector<1x32x64xbf16> to vector<32x64xbf16>
    %cst_53 = arith.constant dense<0.000000e+00> : vector<24x64xf32>
    %72 = tpu.matmul %69, %71, %cst_53 {dimension_numbers = #tpu.dot_dimension_numbers<[1], [0], [0], [1], [0, 0, 1, 1], [], []>} : vector<24x32xbf16>, vector<32x64xbf16>, vector<24x64xf32> -> vector<24x64xf32>
    %73 = arith.addf %64, %72 : vector<24x64xf32>
    %c2_i32 = arith.constant 2 : i32
    %74 = arith.addi %0, %c2_i32 : i32
    %c0_54 = arith.constant 0 : index
    %75 = arith.index_cast %74 : i32 to index
    %c0_55 = arith.constant 0 : index
    %c0_56 = arith.constant 0 : index
    %76 = vector.load %arg2[%c0_54, %75, %c0_55, %c0_56] : memref<1x6x11x32xbf16, #tpu.memory_space<vmem>>, vector<1x3x8x32xbf16>
    %77 = vector.shape_cast %76 : vector<1x3x8x32xbf16> to vector<3x8x32xbf16>
    %78 = vector.shape_cast %77 : vector<3x8x32xbf16> to vector<24x32xbf16>
    %c8 = arith.constant 8 : index
    %c0_57 = arith.constant 0 : index
    %c0_58 = arith.constant 0 : index
    %79 = vector.load %arg3[%c8, %c0_57, %c0_58] : memref<16x32x64xbf16, #tpu.memory_space<vmem>>, vector<1x32x64xbf16>
    %80 = vector.shape_cast %79 : vector<1x32x64xbf16> to vector<32x64xbf16>
    %cst_59 = arith.constant dense<0.000000e+00> : vector<24x64xf32>
    %81 = tpu.matmul %78, %80, %cst_59 {dimension_numbers = #tpu.dot_dimension_numbers<[1], [0], [0], [1], [0, 0, 1, 1], [], []>} : vector<24x32xbf16>, vector<32x64xbf16>, vector<24x64xf32> -> vector<24x64xf32>
    %82 = arith.addf %73, %81 : vector<24x64xf32>
    %c2_i32_60 = arith.constant 2 : i32
    %83 = arith.addi %0, %c2_i32_60 : i32
    %c0_61 = arith.constant 0 : index
    %84 = arith.index_cast %83 : i32 to index
    %c1_62 = arith.constant 1 : index
    %c0_63 = arith.constant 0 : index
    %85 = vector.load %arg2[%c0_61, %84, %c1_62, %c0_63] : memref<1x6x11x32xbf16, #tpu.memory_space<vmem>>, vector<1x3x8x32xbf16>
    %86 = vector.shape_cast %85 : vector<1x3x8x32xbf16> to vector<3x8x32xbf16>
    %87 = vector.shape_cast %86 : vector<3x8x32xbf16> to vector<24x32xbf16>
    %c9 = arith.constant 9 : index
    %c0_64 = arith.constant 0 : index
    %c0_65 = arith.constant 0 : index
    %88 = vector.load %arg3[%c9, %c0_64, %c0_65] : memref<16x32x64xbf16, #tpu.memory_space<vmem>>, vector<1x32x64xbf16>
    %89 = vector.shape_cast %88 : vector<1x32x64xbf16> to vector<32x64xbf16>
    %cst_66 = arith.constant dense<0.000000e+00> : vector<24x64xf32>
    %90 = tpu.matmul %87, %89, %cst_66 {dimension_numbers = #tpu.dot_dimension_numbers<[1], [0], [0], [1], [0, 0, 1, 1], [], []>} : vector<24x32xbf16>, vector<32x64xbf16>, vector<24x64xf32> -> vector<24x64xf32>
    %91 = arith.addf %82, %90 : vector<24x64xf32>
    %c2_i32_67 = arith.constant 2 : i32
    %92 = arith.addi %0, %c2_i32_67 : i32
    %c0_68 = arith.constant 0 : index
    %93 = arith.index_cast %92 : i32 to index
    %c2_69 = arith.constant 2 : index
    %c0_70 = arith.constant 0 : index
    %94 = vector.load %arg2[%c0_68, %93, %c2_69, %c0_70] : memref<1x6x11x32xbf16, #tpu.memory_space<vmem>>, vector<1x3x8x32xbf16>
    %95 = vector.shape_cast %94 : vector<1x3x8x32xbf16> to vector<3x8x32xbf16>
    %96 = vector.shape_cast %95 : vector<3x8x32xbf16> to vector<24x32xbf16>
    %c10 = arith.constant 10 : index
    %c0_71 = arith.constant 0 : index
    %c0_72 = arith.constant 0 : index
    %97 = vector.load %arg3[%c10, %c0_71, %c0_72] : memref<16x32x64xbf16, #tpu.memory_space<vmem>>, vector<1x32x64xbf16>
    %98 = vector.shape_cast %97 : vector<1x32x64xbf16> to vector<32x64xbf16>
    %cst_73 = arith.constant dense<0.000000e+00> : vector<24x64xf32>
    %99 = tpu.matmul %96, %98, %cst_73 {dimension_numbers = #tpu.dot_dimension_numbers<[1], [0], [0], [1], [0, 0, 1, 1], [], []>} : vector<24x32xbf16>, vector<32x64xbf16>, vector<24x64xf32> -> vector<24x64xf32>
    %100 = arith.addf %91, %99 : vector<24x64xf32>
    %c2_i32_74 = arith.constant 2 : i32
    %101 = arith.addi %0, %c2_i32_74 : i32
    %c0_75 = arith.constant 0 : index
    %102 = arith.index_cast %101 : i32 to index
    %c3_76 = arith.constant 3 : index
    %c0_77 = arith.constant 0 : index
    %103 = vector.load %arg2[%c0_75, %102, %c3_76, %c0_77] : memref<1x6x11x32xbf16, #tpu.memory_space<vmem>>, vector<1x3x8x32xbf16>
    %104 = vector.shape_cast %103 : vector<1x3x8x32xbf16> to vector<3x8x32xbf16>
    %105 = vector.shape_cast %104 : vector<3x8x32xbf16> to vector<24x32xbf16>
    %c11 = arith.constant 11 : index
    %c0_78 = arith.constant 0 : index
    %c0_79 = arith.constant 0 : index
    %106 = vector.load %arg3[%c11, %c0_78, %c0_79] : memref<16x32x64xbf16, #tpu.memory_space<vmem>>, vector<1x32x64xbf16>
    %107 = vector.shape_cast %106 : vector<1x32x64xbf16> to vector<32x64xbf16>
    %cst_80 = arith.constant dense<0.000000e+00> : vector<24x64xf32>
    %108 = tpu.matmul %105, %107, %cst_80 {dimension_numbers = #tpu.dot_dimension_numbers<[1], [0], [0], [1], [0, 0, 1, 1], [], []>} : vector<24x32xbf16>, vector<32x64xbf16>, vector<24x64xf32> -> vector<24x64xf32>
    %109 = arith.addf %100, %108 : vector<24x64xf32>
    %c3_i32_81 = arith.constant 3 : i32
    %110 = arith.addi %0, %c3_i32_81 : i32
    %c0_82 = arith.constant 0 : index
    %111 = arith.index_cast %110 : i32 to index
    %c0_83 = arith.constant 0 : index
    %c0_84 = arith.constant 0 : index
    %112 = vector.load %arg2[%c0_82, %111, %c0_83, %c0_84] : memref<1x6x11x32xbf16, #tpu.memory_space<vmem>>, vector<1x3x8x32xbf16>
    %113 = vector.shape_cast %112 : vector<1x3x8x32xbf16> to vector<3x8x32xbf16>
    %114 = vector.shape_cast %113 : vector<3x8x32xbf16> to vector<24x32xbf16>
    %c12 = arith.constant 12 : index
    %c0_85 = arith.constant 0 : index
    %c0_86 = arith.constant 0 : index
    %115 = vector.load %arg3[%c12, %c0_85, %c0_86] : memref<16x32x64xbf16, #tpu.memory_space<vmem>>, vector<1x32x64xbf16>
    %116 = vector.shape_cast %115 : vector<1x32x64xbf16> to vector<32x64xbf16>
    %cst_87 = arith.constant dense<0.000000e+00> : vector<24x64xf32>
    %117 = tpu.matmul %114, %116, %cst_87 {dimension_numbers = #tpu.dot_dimension_numbers<[1], [0], [0], [1], [0, 0, 1, 1], [], []>} : vector<24x32xbf16>, vector<32x64xbf16>, vector<24x64xf32> -> vector<24x64xf32>
    %118 = arith.addf %109, %117 : vector<24x64xf32>
    %c3_i32_88 = arith.constant 3 : i32
    %119 = arith.addi %0, %c3_i32_88 : i32
    %c0_89 = arith.constant 0 : index
    %120 = arith.index_cast %119 : i32 to index
    %c1_90 = arith.constant 1 : index
    %c0_91 = arith.constant 0 : index
    %121 = vector.load %arg2[%c0_89, %120, %c1_90, %c0_91] : memref<1x6x11x32xbf16, #tpu.memory_space<vmem>>, vector<1x3x8x32xbf16>
    %122 = vector.shape_cast %121 : vector<1x3x8x32xbf16> to vector<3x8x32xbf16>
    %123 = vector.shape_cast %122 : vector<3x8x32xbf16> to vector<24x32xbf16>
    %c13 = arith.constant 13 : index
    %c0_92 = arith.constant 0 : index
    %c0_93 = arith.constant 0 : index
    %124 = vector.load %arg3[%c13, %c0_92, %c0_93] : memref<16x32x64xbf16, #tpu.memory_space<vmem>>, vector<1x32x64xbf16>
    %125 = vector.shape_cast %124 : vector<1x32x64xbf16> to vector<32x64xbf16>
    %cst_94 = arith.constant dense<0.000000e+00> : vector<24x64xf32>
    %126 = tpu.matmul %123, %125, %cst_94 {dimension_numbers = #tpu.dot_dimension_numbers<[1], [0], [0], [1], [0, 0, 1, 1], [], []>} : vector<24x32xbf16>, vector<32x64xbf16>, vector<24x64xf32> -> vector<24x64xf32>
    %127 = arith.addf %118, %126 : vector<24x64xf32>
    %c3_i32_95 = arith.constant 3 : i32
    %128 = arith.addi %0, %c3_i32_95 : i32
    %c0_96 = arith.constant 0 : index
    %129 = arith.index_cast %128 : i32 to index
    %c2_97 = arith.constant 2 : index
    %c0_98 = arith.constant 0 : index
    %130 = vector.load %arg2[%c0_96, %129, %c2_97, %c0_98] : memref<1x6x11x32xbf16, #tpu.memory_space<vmem>>, vector<1x3x8x32xbf16>
    %131 = vector.shape_cast %130 : vector<1x3x8x32xbf16> to vector<3x8x32xbf16>
    %132 = vector.shape_cast %131 : vector<3x8x32xbf16> to vector<24x32xbf16>
    %c14 = arith.constant 14 : index
    %c0_99 = arith.constant 0 : index
    %c0_100 = arith.constant 0 : index
    %133 = vector.load %arg3[%c14, %c0_99, %c0_100] : memref<16x32x64xbf16, #tpu.memory_space<vmem>>, vector<1x32x64xbf16>
    %134 = vector.shape_cast %133 : vector<1x32x64xbf16> to vector<32x64xbf16>
    %cst_101 = arith.constant dense<0.000000e+00> : vector<24x64xf32>
    %135 = tpu.matmul %132, %134, %cst_101 {dimension_numbers = #tpu.dot_dimension_numbers<[1], [0], [0], [1], [0, 0, 1, 1], [], []>} : vector<24x32xbf16>, vector<32x64xbf16>, vector<24x64xf32> -> vector<24x64xf32>
    %136 = arith.addf %127, %135 : vector<24x64xf32>
    %c3_i32_102 = arith.constant 3 : i32
    %137 = arith.addi %0, %c3_i32_102 : i32
    %c0_103 = arith.constant 0 : index
    %138 = arith.index_cast %137 : i32 to index
    %c3_104 = arith.constant 3 : index
    %c0_105 = arith.constant 0 : index
    %139 = vector.load %arg2[%c0_103, %138, %c3_104, %c0_105] : memref<1x6x11x32xbf16, #tpu.memory_space<vmem>>, vector<1x3x8x32xbf16>
    %140 = vector.shape_cast %139 : vector<1x3x8x32xbf16> to vector<3x8x32xbf16>
    %141 = vector.shape_cast %140 : vector<3x8x32xbf16> to vector<24x32xbf16>
    %c15 = arith.constant 15 : index
    %c0_106 = arith.constant 0 : index
    %c0_107 = arith.constant 0 : index
    %142 = vector.load %arg3[%c15, %c0_106, %c0_107] : memref<16x32x64xbf16, #tpu.memory_space<vmem>>, vector<1x32x64xbf16>
    %143 = vector.shape_cast %142 : vector<1x32x64xbf16> to vector<32x64xbf16>
    %cst_108 = arith.constant dense<0.000000e+00> : vector<24x64xf32>
    %144 = tpu.matmul %141, %143, %cst_108 {dimension_numbers = #tpu.dot_dimension_numbers<[1], [0], [0], [1], [0, 0, 1, 1], [], []>} : vector<24x32xbf16>, vector<32x64xbf16>, vector<24x64xf32> -> vector<24x64xf32>
    %145 = arith.addf %136, %144 : vector<24x64xf32>
    %146 = vector.shape_cast %145 : vector<24x64xf32> to vector<3x8x64xf32>
    %147 = arith.truncf %146 : vector<3x8x64xf32> to vector<3x8x64xbf16>
    %c0_109 = arith.constant 0 : index
    %c0_110 = arith.constant 0 : index
    %c0_111 = arith.constant 0 : index
    %c0_112 = arith.constant 0 : index
    %148 = vector.load %arg4[%c0_109, %c0_110, %c0_111, %c0_112] : memref<1x3x8x64xbf16, #tpu.memory_space<vmem>>, vector<1x3x8x64xbf16>
    %149 = vector.shape_cast %148 : vector<1x3x8x64xbf16> to vector<3x8x64xbf16>
    %150 = vector.shape_cast %147 : vector<3x8x64xbf16> to vector<1x3x8x64xbf16>
    tpu.vector_store %arg4[%c0_109, %c0_110, %c0_111, %c0_112], %150 {strides = array<i32>} : memref<1x3x8x64xbf16, #tpu.memory_space<vmem>>, vector<1x3x8x64xbf16>,
    %151 = tpu.iota {dimensions = array<i32: 0>} : vector<3x8x1xi32>
    %152 = vector.broadcast %0 : i32 to vector<3x8x1xi32>
    %153 = arith.addi %152, %151 : vector<3x8x1xi32>
    %154 = tpu.iota {dimensions = array<i32: 1>} : vector<3x8x1xi32>
    %c3_i32_113 = arith.constant 3 : i32
    %155 = vector.broadcast %c3_i32_113 : i32 to vector<3x8x1xi32>
    %156 = arith.cmpi slt, %153, %155 : vector<3x8x1xi32>
    %c3_i32_114 = arith.constant 3 : i32
    %157 = vector.broadcast %c3_i32_114 : i32 to vector<3x8x1xi32>
    %158 = arith.cmpi slt, %154, %157 : vector<3x8x1xi32>
    %159 = arith.andi %156, %158 : vector<3x8x1xi1>
    %cst_115 = arith.constant 0.000000e+00 : f32
    %160 = vector.shape_cast %159 : vector<3x8x1xi1> to vector<3x8x1xi1>
    %161 = vector.broadcast %160 : vector<3x8x1xi1> to vector<3x8x64xi1>
    %162 = vector.broadcast %cst_115 : f32 to vector<3x8x64xf32>
    %163 = arith.select %161, %146, %162 : vector<3x8x64xi1>, vector<3x8x64xf32>
    %164 = vector.shape_cast %163 : vector<3x8x64xf32> to vector<24x64xf32>
    %cst_116 = arith.constant dense<0.000000e+00> : vector<64xf32>
    %165 = vector.multi_reduction <add>, %164, %cst_116 [0] : vector<24x64xf32> to vector<64xf32>
    %166 = vector.shape_cast %165 : vector<64xf32> to vector<1x64xf32>
    %167 = arith.mulf %164, %164 : vector<24x64xf32>
    %cst_117 = arith.constant dense<0.000000e+00> : vector<64xf32>
    %168 = vector.multi_reduction <add>, %167, %cst_117 [0] : vector<24x64xf32> to vector<64xf32>
    %169 = vector.shape_cast %168 : vector<64xf32> to vector<1x64xf32>
    %170 = vector.shape_cast %166 : vector<1x64xf32> to vector<1x64xf32>
    %171 = vector.broadcast %170 : vector<1x64xf32> to vector<8x64xf32>
    %c0_118 = arith.constant 0 : index
    %c0_119 = arith.constant 0 : index
    %c0_120 = arith.constant 0 : index
    %c0_121 = arith.constant 0 : index
    %172 = vector.load %arg5[%c0_118, %c0_119, %c0_120, %c0_121] : memref<1x1x8x64xf32, #tpu.memory_space<vmem>>, vector<1x1x8x64xf32>
    %173 = vector.shape_cast %172 : vector<1x1x8x64xf32> to vector<8x64xf32>
    %174 = vector.shape_cast %171 : vector<8x64xf32> to vector<1x1x8x64xf32>
    tpu.vector_store %arg5[%c0_118, %c0_119, %c0_120, %c0_121], %174 {strides = array<i32>} : memref<1x1x8x64xf32, #tpu.memory_space<vmem>>, vector<1x1x8x64xf32>,
    %175 = vector.shape_cast %169 : vector<1x64xf32> to vector<1x64xf32>
    %176 = vector.broadcast %175 : vector<1x64xf32> to vector<8x64xf32>
    %c0_122 = arith.constant 0 : index
    %c0_123 = arith.constant 0 : index
    %c0_124 = arith.constant 0 : index
    %c0_125 = arith.constant 0 : index
    %177 = vector.load %arg6[%c0_122, %c0_123, %c0_124, %c0_125] : memref<1x1x8x64xf32, #tpu.memory_space<vmem>>, vector<1x1x8x64xf32>
    %178 = vector.shape_cast %177 : vector<1x1x8x64xf32> to vector<8x64xf32>
    %179 = vector.shape_cast %176 : vector<8x64xf32> to vector<1x1x8x64xf32>
    tpu.vector_store %arg6[%c0_122, %c0_123, %c0_124, %c0_125], %179 {strides = array<i32>} : memref<1x1x8x64xf32, #tpu.memory_space<vmem>>, vector<1x1x8x64xf32>,
    return
  }
  func.func @transform_0(%arg0: i32, %arg1: i32) -> (i32, i32, i32, i32) {
    %c0_i32 = arith.constant 0 : i32
    %c0_i32_0 = arith.constant 0 : i32
    %c0_i32_1 = arith.constant 0 : i32
    %c0_i32_2 = arith.constant 0 : i32
    return %arg0, %c0_i32, %c0_i32_0, %c0_i32_1 : i32, i32, i32, i32
  }
  func.func @transform_1(%arg0: i32, %arg1: i32) -> (i32, i32, i32) {
    %c0_i32 = arith.constant 0 : i32
    %c0_i32_0 = arith.constant 0 : i32
    %c0_i32_1 = arith.constant 0 : i32
    %c0_i32_2 = arith.constant 0 : i32
    return %c0_i32, %c0_i32_0, %c0_i32_1 : i32, i32, i32
  }
  func.func @transform_2(%arg0: i32, %arg1: i32) -> (i32, i32, i32, i32) {
    %c0_i32 = arith.constant 0 : i32
    %c0_i32_0 = arith.constant 0 : i32
    %c0_i32_1 = arith.constant 0 : i32
    return %arg0, %arg1, %c0_i32, %c0_i32_0 : i32, i32, i32, i32
  }
  func.func @transform_3(%arg0: i32, %arg1: i32) -> (i32, i32, i32, i32) {
    %c0_i32 = arith.constant 0 : i32
    %c0_i32_0 = arith.constant 0 : i32
    %c0_i32_1 = arith.constant 0 : i32
    return %arg0, %arg1, %c0_i32, %c0_i32_0 : i32, i32, i32, i32
  }
  func.func @transform_4(%arg0: i32, %arg1: i32) -> (i32, i32, i32, i32) {
    %c0_i32 = arith.constant 0 : i32
    %c0_i32_0 = arith.constant 0 : i32
    %c0_i32_1 = arith.constant 0 : i32
    return %arg0, %arg1, %c0_i32, %c0_i32_0 : i32, i32, i32, i32
  }
}

module attributes {stable_mosaic.version = 11 : i64} {
  func.func @_bn_lrelu_kernel(%arg0: i32, %arg1: i32, %arg2: memref<1x3x8x64xbf16, #tpu.memory_space<vmem>>, %arg3: memref<1x64xf32, #tpu.memory_space<vmem>>, %arg4: memref<1x64xf32, #tpu.memory_space<vmem>>, %arg5: memref<1x3x8x64xbf16, #tpu.memory_space<vmem>>) attributes {dimension_semantics = [#tpu.dimension_semantics<parallel>, #tpu.dimension_semantics<parallel>], iteration_bounds = array<i64: 2, 1>, scalar_prefetch = 0 : i64, scratch_operands = 0 : i64, tpu.core_type = #tpu.core_type<tc>, window_params = [{transform_indices = @transform_0, window_bounds = array<i64: 1, 3, 8, 64>}, {pipeline_mode = #tpu.pipeline_mode<synchronous>, transform_indices = @transform_1, window_bounds = array<i64: 1, 64>}, {pipeline_mode = #tpu.pipeline_mode<synchronous>, transform_indices = @transform_2, window_bounds = array<i64: 1, 64>}, {transform_indices = @transform_3, window_bounds = array<i64: 1, 3, 8, 64>}]} {
    %c0 = arith.constant 0 : index
    %c0_0 = arith.constant 0 : index
    %c0_1 = arith.constant 0 : index
    %c0_2 = arith.constant 0 : index
    %0 = vector.load %arg2[%c0, %c0_0, %c0_1, %c0_2] : memref<1x3x8x64xbf16, #tpu.memory_space<vmem>>, vector<1x3x8x64xbf16>
    %1 = arith.extf %0 : vector<1x3x8x64xbf16> to vector<1x3x8x64xf32>
    %c0_3 = arith.constant 0 : index
    %c0_4 = arith.constant 0 : index
    %2 = vector.load %arg3[%c0_3, %c0_4] : memref<1x64xf32, #tpu.memory_space<vmem>>, vector<1x64xf32>
    %3 = vector.shape_cast %2 : vector<1x64xf32> to vector<1x1x1x64xf32>
    %4 = vector.broadcast %3 : vector<1x1x1x64xf32> to vector<1x3x8x64xf32>
    %5 = arith.mulf %1, %4 : vector<1x3x8x64xf32>
    %c0_5 = arith.constant 0 : index
    %c0_6 = arith.constant 0 : index
    %6 = vector.load %arg4[%c0_5, %c0_6] : memref<1x64xf32, #tpu.memory_space<vmem>>, vector<1x64xf32>
    %7 = vector.shape_cast %6 : vector<1x64xf32> to vector<1x1x1x64xf32>
    %8 = vector.broadcast %7 : vector<1x1x1x64xf32> to vector<1x3x8x64xf32>
    %9 = arith.addf %5, %8 : vector<1x3x8x64xf32>
    %cst = arith.constant 0.000000e+00 : f32
    %10 = vector.broadcast %cst : f32 to vector<1x3x8x64xf32>
    %11 = arith.cmpf oge, %9, %10 : vector<1x3x8x64xf32>
    %cst_7 = arith.constant 2.000000e-01 : f32
    %12 = vector.broadcast %cst_7 : f32 to vector<1x3x8x64xf32>
    %13 = arith.mulf %9, %12 : vector<1x3x8x64xf32>
    %14 = arith.select %11, %9, %13 : vector<1x3x8x64xi1>, vector<1x3x8x64xf32>
    %15 = arith.truncf %14 : vector<1x3x8x64xf32> to vector<1x3x8x64xbf16>
    %c0_8 = arith.constant 0 : index
    %c0_9 = arith.constant 0 : index
    %c0_10 = arith.constant 0 : index
    %c0_11 = arith.constant 0 : index
    %16 = vector.load %arg5[%c0_8, %c0_9, %c0_10, %c0_11] : memref<1x3x8x64xbf16, #tpu.memory_space<vmem>>, vector<1x3x8x64xbf16>
    tpu.vector_store %arg5[%c0_8, %c0_9, %c0_10, %c0_11], %15 {strides = array<i32>} : memref<1x3x8x64xbf16, #tpu.memory_space<vmem>>, vector<1x3x8x64xbf16>,
    return
  }
  func.func @transform_0(%arg0: i32, %arg1: i32) -> (i32, i32, i32, i32) {
    %c0_i32 = arith.constant 0 : i32
    %c0_i32_0 = arith.constant 0 : i32
    %c0_i32_1 = arith.constant 0 : i32
    return %arg0, %arg1, %c0_i32, %c0_i32_0 : i32, i32, i32, i32
  }
  func.func @transform_1(%arg0: i32, %arg1: i32) -> (i32, i32) {
    %c0_i32 = arith.constant 0 : i32
    %c0_i32_0 = arith.constant 0 : i32
    %c0_i32_1 = arith.constant 0 : i32
    return %c0_i32, %c0_i32_0 : i32, i32
  }
  func.func @transform_2(%arg0: i32, %arg1: i32) -> (i32, i32) {
    %c0_i32 = arith.constant 0 : i32
    %c0_i32_0 = arith.constant 0 : i32
    %c0_i32_1 = arith.constant 0 : i32
    return %c0_i32, %c0_i32_0 : i32, i32
  }
  func.func @transform_3(%arg0: i32, %arg1: i32) -> (i32, i32, i32, i32) {
    %c0_i32 = arith.constant 0 : i32
    %c0_i32_0 = arith.constant 0 : i32
    %c0_i32_1 = arith.constant 0 : i32
    return %arg0, %arg1, %c0_i32, %c0_i32_0 : i32, i32, i32, i32
  }
}

module attributes {stable_mosaic.version = 11 : i64} {
  func.func @_conv_cout1_kernel(%arg0: i32, %arg1: memref<1x5x5x64xbf16, #tpu.memory_space<vmem>>, %arg2: memref<16x64xf32, #tpu.memory_space<vmem>>, %arg3: memref<1x1xf32, #tpu.memory_space<vmem>>, %arg4: memref<1x2x2xf32, #tpu.memory_space<vmem>>) attributes {dimension_semantics = [#tpu.dimension_semantics<parallel>], iteration_bounds = array<i64: 2>, scalar_prefetch = 0 : i64, scratch_operands = 0 : i64, tpu.core_type = #tpu.core_type<tc>, window_params = [{transform_indices = @transform_0, window_bounds = array<i64: 1, 5, 5, 64>}, {pipeline_mode = #tpu.pipeline_mode<synchronous>, transform_indices = @transform_1, window_bounds = array<i64: 16, 64>}, {pipeline_mode = #tpu.pipeline_mode<synchronous>, transform_indices = @transform_2, window_bounds = array<i64: 1, 1>}, {transform_indices = @transform_3, window_bounds = array<i64: 1, 2, 2>}]} {
    %c0 = arith.constant 0 : index
    %c0_0 = arith.constant 0 : index
    %c0_1 = arith.constant 0 : index
    %c0_2 = arith.constant 0 : index
    %0 = vector.load %arg1[%c0, %c0_0, %c0_1, %c0_2] : memref<1x5x5x64xbf16, #tpu.memory_space<vmem>>, vector<1x5x5x64xbf16>
    %1 = vector.shape_cast %0 : vector<1x5x5x64xbf16> to vector<5x5x64xbf16>
    %2 = arith.extf %1 : vector<5x5x64xbf16> to vector<5x5x64xf32>
    %cst = arith.constant 0.000000e+00 : f32
    %3 = vector.broadcast %cst : f32 to vector<2x2x64xf32>
    %4 = vector.extract_strided_slice %2 {offsets = [0, 0, 0], sizes = [2, 2, 64], strides = [1, 1, 1]} : vector<5x5x64xf32> to vector<2x2x64xf32>
    %c0_3 = arith.constant 0 : index
    %c0_4 = arith.constant 0 : index
    %5 = vector.load %arg2[%c0_3, %c0_4] : memref<16x64xf32, #tpu.memory_space<vmem>>, vector<1x64xf32>
    %6 = vector.shape_cast %5 : vector<1x64xf32> to vector<1x1x64xf32>
    %7 = vector.broadcast %6 : vector<1x1x64xf32> to vector<2x2x64xf32>
    %8 = arith.mulf %4, %7 : vector<2x2x64xf32>
    %9 = arith.addf %3, %8 : vector<2x2x64xf32>
    %10 = vector.extract_strided_slice %2 {offsets = [0, 1, 0], sizes = [2, 2, 64], strides = [1, 1, 1]} : vector<5x5x64xf32> to vector<2x2x64xf32>
    %c1 = arith.constant 1 : index
    %c0_5 = arith.constant 0 : index
    %11 = vector.load %arg2[%c1, %c0_5] : memref<16x64xf32, #tpu.memory_space<vmem>>, vector<1x64xf32>
    %12 = vector.shape_cast %11 : vector<1x64xf32> to vector<1x1x64xf32>
    %13 = vector.broadcast %12 : vector<1x1x64xf32> to vector<2x2x64xf32>
    %14 = arith.mulf %10, %13 : vector<2x2x64xf32>
    %15 = arith.addf %9, %14 : vector<2x2x64xf32>
    %16 = vector.extract_strided_slice %2 {offsets = [0, 2, 0], sizes = [2, 2, 64], strides = [1, 1, 1]} : vector<5x5x64xf32> to vector<2x2x64xf32>
    %c2 = arith.constant 2 : index
    %c0_6 = arith.constant 0 : index
    %17 = vector.load %arg2[%c2, %c0_6] : memref<16x64xf32, #tpu.memory_space<vmem>>, vector<1x64xf32>
    %18 = vector.shape_cast %17 : vector<1x64xf32> to vector<1x1x64xf32>
    %19 = vector.broadcast %18 : vector<1x1x64xf32> to vector<2x2x64xf32>
    %20 = arith.mulf %16, %19 : vector<2x2x64xf32>
    %21 = arith.addf %15, %20 : vector<2x2x64xf32>
    %22 = vector.extract_strided_slice %2 {offsets = [0, 3, 0], sizes = [2, 2, 64], strides = [1, 1, 1]} : vector<5x5x64xf32> to vector<2x2x64xf32>
    %c3 = arith.constant 3 : index
    %c0_7 = arith.constant 0 : index
    %23 = vector.load %arg2[%c3, %c0_7] : memref<16x64xf32, #tpu.memory_space<vmem>>, vector<1x64xf32>
    %24 = vector.shape_cast %23 : vector<1x64xf32> to vector<1x1x64xf32>
    %25 = vector.broadcast %24 : vector<1x1x64xf32> to vector<2x2x64xf32>
    %26 = arith.mulf %22, %25 : vector<2x2x64xf32>
    %27 = arith.addf %21, %26 : vector<2x2x64xf32>
    %28 = vector.extract_strided_slice %2 {offsets = [1, 0, 0], sizes = [2, 2, 64], strides = [1, 1, 1]} : vector<5x5x64xf32> to vector<2x2x64xf32>
    %c4 = arith.constant 4 : index
    %c0_8 = arith.constant 0 : index
    %29 = vector.load %arg2[%c4, %c0_8] : memref<16x64xf32, #tpu.memory_space<vmem>>, vector<1x64xf32>
    %30 = vector.shape_cast %29 : vector<1x64xf32> to vector<1x1x64xf32>
    %31 = vector.broadcast %30 : vector<1x1x64xf32> to vector<2x2x64xf32>
    %32 = arith.mulf %28, %31 : vector<2x2x64xf32>
    %33 = arith.addf %27, %32 : vector<2x2x64xf32>
    %34 = vector.extract_strided_slice %2 {offsets = [1, 1, 0], sizes = [2, 2, 64], strides = [1, 1, 1]} : vector<5x5x64xf32> to vector<2x2x64xf32>
    %c5 = arith.constant 5 : index
    %c0_9 = arith.constant 0 : index
    %35 = vector.load %arg2[%c5, %c0_9] : memref<16x64xf32, #tpu.memory_space<vmem>>, vector<1x64xf32>
    %36 = vector.shape_cast %35 : vector<1x64xf32> to vector<1x1x64xf32>
    %37 = vector.broadcast %36 : vector<1x1x64xf32> to vector<2x2x64xf32>
    %38 = arith.mulf %34, %37 : vector<2x2x64xf32>
    %39 = arith.addf %33, %38 : vector<2x2x64xf32>
    %40 = vector.extract_strided_slice %2 {offsets = [1, 2, 0], sizes = [2, 2, 64], strides = [1, 1, 1]} : vector<5x5x64xf32> to vector<2x2x64xf32>
    %c6 = arith.constant 6 : index
    %c0_10 = arith.constant 0 : index
    %41 = vector.load %arg2[%c6, %c0_10] : memref<16x64xf32, #tpu.memory_space<vmem>>, vector<1x64xf32>
    %42 = vector.shape_cast %41 : vector<1x64xf32> to vector<1x1x64xf32>
    %43 = vector.broadcast %42 : vector<1x1x64xf32> to vector<2x2x64xf32>
    %44 = arith.mulf %40, %43 : vector<2x2x64xf32>
    %45 = arith.addf %39, %44 : vector<2x2x64xf32>
    %46 = vector.extract_strided_slice %2 {offsets = [1, 3, 0], sizes = [2, 2, 64], strides = [1, 1, 1]} : vector<5x5x64xf32> to vector<2x2x64xf32>
    %c7 = arith.constant 7 : index
    %c0_11 = arith.constant 0 : index
    %47 = vector.load %arg2[%c7, %c0_11] : memref<16x64xf32, #tpu.memory_space<vmem>>, vector<1x64xf32>
    %48 = vector.shape_cast %47 : vector<1x64xf32> to vector<1x1x64xf32>
    %49 = vector.broadcast %48 : vector<1x1x64xf32> to vector<2x2x64xf32>
    %50 = arith.mulf %46, %49 : vector<2x2x64xf32>
    %51 = arith.addf %45, %50 : vector<2x2x64xf32>
    %52 = vector.extract_strided_slice %2 {offsets = [2, 0, 0], sizes = [2, 2, 64], strides = [1, 1, 1]} : vector<5x5x64xf32> to vector<2x2x64xf32>
    %c8 = arith.constant 8 : index
    %c0_12 = arith.constant 0 : index
    %53 = vector.load %arg2[%c8, %c0_12] : memref<16x64xf32, #tpu.memory_space<vmem>>, vector<1x64xf32>
    %54 = vector.shape_cast %53 : vector<1x64xf32> to vector<1x1x64xf32>
    %55 = vector.broadcast %54 : vector<1x1x64xf32> to vector<2x2x64xf32>
    %56 = arith.mulf %52, %55 : vector<2x2x64xf32>
    %57 = arith.addf %51, %56 : vector<2x2x64xf32>
    %58 = vector.extract_strided_slice %2 {offsets = [2, 1, 0], sizes = [2, 2, 64], strides = [1, 1, 1]} : vector<5x5x64xf32> to vector<2x2x64xf32>
    %c9 = arith.constant 9 : index
    %c0_13 = arith.constant 0 : index
    %59 = vector.load %arg2[%c9, %c0_13] : memref<16x64xf32, #tpu.memory_space<vmem>>, vector<1x64xf32>
    %60 = vector.shape_cast %59 : vector<1x64xf32> to vector<1x1x64xf32>
    %61 = vector.broadcast %60 : vector<1x1x64xf32> to vector<2x2x64xf32>
    %62 = arith.mulf %58, %61 : vector<2x2x64xf32>
    %63 = arith.addf %57, %62 : vector<2x2x64xf32>
    %64 = vector.extract_strided_slice %2 {offsets = [2, 2, 0], sizes = [2, 2, 64], strides = [1, 1, 1]} : vector<5x5x64xf32> to vector<2x2x64xf32>
    %c10 = arith.constant 10 : index
    %c0_14 = arith.constant 0 : index
    %65 = vector.load %arg2[%c10, %c0_14] : memref<16x64xf32, #tpu.memory_space<vmem>>, vector<1x64xf32>
    %66 = vector.shape_cast %65 : vector<1x64xf32> to vector<1x1x64xf32>
    %67 = vector.broadcast %66 : vector<1x1x64xf32> to vector<2x2x64xf32>
    %68 = arith.mulf %64, %67 : vector<2x2x64xf32>
    %69 = arith.addf %63, %68 : vector<2x2x64xf32>
    %70 = vector.extract_strided_slice %2 {offsets = [2, 3, 0], sizes = [2, 2, 64], strides = [1, 1, 1]} : vector<5x5x64xf32> to vector<2x2x64xf32>
    %c11 = arith.constant 11 : index
    %c0_15 = arith.constant 0 : index
    %71 = vector.load %arg2[%c11, %c0_15] : memref<16x64xf32, #tpu.memory_space<vmem>>, vector<1x64xf32>
    %72 = vector.shape_cast %71 : vector<1x64xf32> to vector<1x1x64xf32>
    %73 = vector.broadcast %72 : vector<1x1x64xf32> to vector<2x2x64xf32>
    %74 = arith.mulf %70, %73 : vector<2x2x64xf32>
    %75 = arith.addf %69, %74 : vector<2x2x64xf32>
    %76 = vector.extract_strided_slice %2 {offsets = [3, 0, 0], sizes = [2, 2, 64], strides = [1, 1, 1]} : vector<5x5x64xf32> to vector<2x2x64xf32>
    %c12 = arith.constant 12 : index
    %c0_16 = arith.constant 0 : index
    %77 = vector.load %arg2[%c12, %c0_16] : memref<16x64xf32, #tpu.memory_space<vmem>>, vector<1x64xf32>
    %78 = vector.shape_cast %77 : vector<1x64xf32> to vector<1x1x64xf32>
    %79 = vector.broadcast %78 : vector<1x1x64xf32> to vector<2x2x64xf32>
    %80 = arith.mulf %76, %79 : vector<2x2x64xf32>
    %81 = arith.addf %75, %80 : vector<2x2x64xf32>
    %82 = vector.extract_strided_slice %2 {offsets = [3, 1, 0], sizes = [2, 2, 64], strides = [1, 1, 1]} : vector<5x5x64xf32> to vector<2x2x64xf32>
    %c13 = arith.constant 13 : index
    %c0_17 = arith.constant 0 : index
    %83 = vector.load %arg2[%c13, %c0_17] : memref<16x64xf32, #tpu.memory_space<vmem>>, vector<1x64xf32>
    %84 = vector.shape_cast %83 : vector<1x64xf32> to vector<1x1x64xf32>
    %85 = vector.broadcast %84 : vector<1x1x64xf32> to vector<2x2x64xf32>
    %86 = arith.mulf %82, %85 : vector<2x2x64xf32>
    %87 = arith.addf %81, %86 : vector<2x2x64xf32>
    %88 = vector.extract_strided_slice %2 {offsets = [3, 2, 0], sizes = [2, 2, 64], strides = [1, 1, 1]} : vector<5x5x64xf32> to vector<2x2x64xf32>
    %c14 = arith.constant 14 : index
    %c0_18 = arith.constant 0 : index
    %89 = vector.load %arg2[%c14, %c0_18] : memref<16x64xf32, #tpu.memory_space<vmem>>, vector<1x64xf32>
    %90 = vector.shape_cast %89 : vector<1x64xf32> to vector<1x1x64xf32>
    %91 = vector.broadcast %90 : vector<1x1x64xf32> to vector<2x2x64xf32>
    %92 = arith.mulf %88, %91 : vector<2x2x64xf32>
    %93 = arith.addf %87, %92 : vector<2x2x64xf32>
    %94 = vector.extract_strided_slice %2 {offsets = [3, 3, 0], sizes = [2, 2, 64], strides = [1, 1, 1]} : vector<5x5x64xf32> to vector<2x2x64xf32>
    %c15 = arith.constant 15 : index
    %c0_19 = arith.constant 0 : index
    %95 = vector.load %arg2[%c15, %c0_19] : memref<16x64xf32, #tpu.memory_space<vmem>>, vector<1x64xf32>
    %96 = vector.shape_cast %95 : vector<1x64xf32> to vector<1x1x64xf32>
    %97 = vector.broadcast %96 : vector<1x1x64xf32> to vector<2x2x64xf32>
    %98 = arith.mulf %94, %97 : vector<2x2x64xf32>
    %99 = arith.addf %93, %98 : vector<2x2x64xf32>
    %cst_20 = arith.constant dense<0.000000e+00> : vector<2x2xf32>
    %100 = vector.multi_reduction <add>, %99, %cst_20 [2] : vector<2x2x64xf32> to vector<2x2xf32>
    %c0_21 = arith.constant 0 : index
    %c0_22 = arith.constant 0 : index
    %101 = vector.load %arg3[%c0_21, %c0_22] : memref<1x1xf32, #tpu.memory_space<vmem>>, vector<1x1xf32>
    %102 = vector.broadcast %101 : vector<1x1xf32> to vector<2x2xf32>
    %103 = arith.addf %100, %102 : vector<2x2xf32>
    %c0_23 = arith.constant 0 : index
    %c0_24 = arith.constant 0 : index
    %c0_25 = arith.constant 0 : index
    %104 = vector.load %arg4[%c0_23, %c0_24, %c0_25] : memref<1x2x2xf32, #tpu.memory_space<vmem>>, vector<1x2x2xf32>
    %105 = vector.shape_cast %104 : vector<1x2x2xf32> to vector<2x2xf32>
    %106 = vector.shape_cast %103 : vector<2x2xf32> to vector<1x2x2xf32>
    tpu.vector_store %arg4[%c0_23, %c0_24, %c0_25], %106 {strides = array<i32>} : memref<1x2x2xf32, #tpu.memory_space<vmem>>, vector<1x2x2xf32>,
    return
  }
  func.func @transform_0(%arg0: i32) -> (i32, i32, i32, i32) {
    %c0_i32 = arith.constant 0 : i32
    %c0_i32_0 = arith.constant 0 : i32
    %c0_i32_1 = arith.constant 0 : i32
    %c0_i32_2 = arith.constant 0 : i32
    return %arg0, %c0_i32, %c0_i32_0, %c0_i32_1 : i32, i32, i32, i32
  }
  func.func @transform_1(%arg0: i32) -> (i32, i32) {
    %c0_i32 = arith.constant 0 : i32
    %c0_i32_0 = arith.constant 0 : i32
    %c0_i32_1 = arith.constant 0 : i32
    return %c0_i32, %c0_i32_0 : i32, i32
  }
  func.func @transform_2(%arg0: i32) -> (i32, i32) {
    %c0_i32 = arith.constant 0 : i32
    %c0_i32_0 = arith.constant 0 : i32
    %c0_i32_1 = arith.constant 0 : i32
    return %c0_i32, %c0_i32_0 : i32, i32
  }
  func.func @transform_3(%arg0: i32) -> (i32, i32, i32) {
    %c0_i32 = arith.constant 0 : i32
    %c0_i32_0 = arith.constant 0 : i32
    %c0_i32_1 = arith.constant 0 : i32
    return %arg0, %c0_i32, %c0_i32_0 : i32, i32, i32
  }
}

</mosaic_0001>

<llo_original>
// kernel: _lambda_.8
$region0: #{_lambda_.8}
  #allocation0 [shape = 'u32[]', space=smem, size = 0x4, offset = 0x4, fixed_abs, tag = 'smem constant byte address 0x4 - core index']
  #allocation1 [shape = 'u32[144,128]{1,0:T(1,128)}', space=vmem, size = 0x12000, scoped, tag = 'internal scratch']
  %s0 = inlined_call_operand.vmem [shape: bf16[2,17,17,16], index: 0, kind: input, shape index: {}]
  %s1 = inlined_call_operand.vmem [shape: bf16[4,16,8], index: 1, kind: input, shape index: {}]
  %s2 = inlined_call_operand.vmem [shape: f32[1,8], index: 2, kind: input, shape index: {}]
  %s3 = inlined_call_operand.vmem [shape: bf16[2,16,16,8], index: 3, kind: output, shape index: {}]
  %s4 = sld [smem:[#allocation0]]
  $region45: #{_lambda_.8} parent=0
    _
  %s6 = ssub.s32 1, %s4
  %s7 = scalar_select 0, %s6, %s4
  loop: start=0, step=1, limit=4
  $region2: #{_lambda_.8} parent=0 // loop_pre_header
    _
  $region3: #{_lambda_.8} parent=0 // loop_header
    %s9 = sphi 0, %s13
    %p10 = scmp.ge.s32.totalorder %s9, 4
    %s16 = sphi 0, %s28
    %s17 = sphi 0, %s24
    %s18 = sphi 0, %s16
    %s19 = sphi 0, %s17
    %s20 = sphi 0, %s18
    %s21 = sphi 0, %s19
    %s31 = sphi 0, %s33
    %s34 = sphi 0, %s31
    %s35 = sphi 0, %s34
    %s51 = sphi 0, %s35
    %s55 = sphi 0, %s55
    %s57 = sphi 0, %s55
    %s58 = sphi 0, %s57
    %s72 = sphi 0, %s58
    %s76 = sphi 0, %s76
    %s78 = sphi 0, %s76
    %s79 = sphi 0, %s78
    %s93 = sphi 0, %s79
    %s101 = sphi 0, %s103
    %s104 = sphi 0, %s101
    %s105 = sphi 0, %s104
    %s121 = sphi 0, %s105
  $region4: #{_lambda_.8} parent=0 // loop_header_branch
    %12 = sbr.rel (%p10) target = $region8
  $region5: #{_lambda_.8} parent=0 // loop_body
    %s14 = ssub.s32 %s9, 1
    %s15 = ssub.s32 %s9, 2
    %s22 = sadd.s32 1, %s17
    %p23 = scmp.ge.s32.totalorder %s22, 1
    %s24 = scalar_select %p23, 0, %s22
    %s25 = sadd.s32 1, %s16
    %s26 = scalar_select %p23, %s25, %s16
    %p27 = scmp.ge.s32.totalorder %s26, 2
    %s28 = scalar_select %p27, 0, %s26
    %s29 = ssub.s32 %s16, %s28
    %p30 = scmp.eq.s32.totalorder %s29, 0
    %s32 = sadd.s32 %s31, 1
    %s33 = scalar_select %p30, %s31, %s32
    %p36 = pneg %p30
    %p37 = scmp.eq.s32.totalorder %s9, 1
    %p38 = por %p36, %p37
    %p39 = scmp.ne.s32.totalorder %s31, %s34
    %p40 = scmp.eq.s32.totalorder %s9, 0
    %p41 = por %p39, %p40
    %p42 = scmp.ne.s32.totalorder %s31, %s34
    %p43 = scmp.eq.s32.totalorder %s14, 1
    %p44 = por %p42, %p43
    %p45 = scmp.ne.s32.totalorder %s34, %s35
    %p46 = scmp.eq.s32.totalorder %s14, 0
    %p47 = por %p45, %p46
    %p48 = scmp.ne.s32.totalorder %s34, %s35
    %p49 = scmp.eq.s32.totalorder %s15, 1
    %p50 = por %p48, %p49
    %p52 = scmp.ne.s32.totalorder %s35, %s51
    %p53 = scmp.eq.s32.totalorder %s15, 0
    %p54 = por %p52, %p53
    %s56 = sadd.s32 %s55, 1
    %p59 = scmp.eq.s32.totalorder %s9, 1
    %p60 = scmp.ne.s32.totalorder %s55, %s57
    %p61 = scmp.eq.s32.totalorder %s9, 0
    %p62 = por %p60, %p61
    %p63 = scmp.ne.s32.totalorder %s55, %s57
    %p64 = scmp.eq.s32.totalorder %s14, 1
    %p65 = por %p63, %p64
    %p66 = scmp.ne.s32.totalorder %s57, %s58
    %p67 = scmp.eq.s32.totalorder %s14, 0
    %p68 = por %p66, %p67
    %p69 = scmp.ne.s32.totalorder %s57, %s58
    %p70 = scmp.eq.s32.totalorder %s15, 1
    %p71 = por %p69, %p70
    %p73 = scmp.ne.s32.totalorder %s58, %s72
    %p74 = scmp.eq.s32.totalorder %s15, 0
    %p75 = por %p73, %p74
    %s77 = sadd.s32 %s76, 1
    %p80 = scmp.eq.s32.totalorder %s9, 1
    %p81 = scmp.ne.s32.totalorder %s76, %s78
    %p82 = scmp.eq.s32.totalorder %s9, 0
    %p83 = por %p81, %p82
    %p84 = scmp.ne.s32.totalorder %s76, %s78
    %p85 = scmp.eq.s32.totalorder %s14, 1
    %p86 = por %p84, %p85
    %p87 = scmp.ne.s32.totalorder %s78, %s79
    %p88 = scmp.eq.s32.totalorder %s14, 0
    %p89 = por %p87, %p88
    %p90 = scmp.ne.s32.totalorder %s78, %s79
    %p91 = scmp.eq.s32.totalorder %s15, 1
    %p92 = por %p90, %p91
    %p94 = scmp.ne.s32.totalorder %s79, %s93
    %p95 = scmp.eq.s32.totalorder %s15, 0
    %p96 = por %p94, %p95
    %s97 = ssub.s32 %s16, %s28
    %s98 = ssub.s32 %s17, %s24
    %s99 = sor.u32 %s97, %s98
    %p100 = scmp.eq.s32.totalorder %s99, 0
    %s102 = sadd.s32 %s101, 1
    %s103 = scalar_select %p100, %s101, %s102
    %p106 = pneg %p100
    %p107 = scmp.eq.s32.totalorder %s9, 1
    %p108 = por %p106, %p107
    %p109 = scmp.ne.s32.totalorder %s101, %s104
    %p110 = scmp.eq.s32.totalorder %s9, 0
    %p111 = por %p109, %p110
    %p112 = scmp.ne.s32.totalorder %s101, %s104
    %p113 = scmp.eq.s32.totalorder %s14, 1
    %p114 = por %p112, %p113
    %p115 = scmp.ne.s32.totalorder %s104, %s105
    %p116 = scmp.eq.s32.totalorder %s14, 0
    %p117 = por %p115, %p116
    %p118 = scmp.ne.s32.totalorder %s104, %s105
    %p119 = scmp.eq.s32.totalorder %s15, 1
    %p120 = por %p118, %p119
    %p122 = scmp.ne.s32.totalorder %s105, %s121
    %p123 = scmp.eq.s32.totalorder %s15, 0
    %p124 = por %p122, %p123
    %p125 = scmp.le.s32.totalorder 1, %s9
    %p126 = scmp.lt.s32.totalorder %s9, 3
    %p127 = pnand %p125, %p126
    %p128 = pneg %p127
    // Predicated region
    $region9: #{_lambda_.8} parent=5 // pred_check
      _
    $region10: #{_lambda_.8} parent=5 // pred_check_branch
      %130 = sbr.rel (%p127) target = $region12
    $region11: #{_lambda_.8} parent=5 // pred_region
      %s131 = ssub.s32 %s9, 1
      // Predicated region
      $region13: #{_lambda_.8} parent=11 // pred_check
        %p132 = pneg %p68
      $region14: #{_lambda_.8} parent=11 // pred_check_branch
        %134 = sbr.rel (%p132) target = $region16
      $region15: #{_lambda_.8} parent=11 // pred_region
        _
      $region16: #{_lambda_.8} parent=11 // pred_fallthru
        _
      // Predicated region
      $region17: #{_lambda_.8} parent=11 // pred_check
        %p135 = pneg %p89
      $region18: #{_lambda_.8} parent=11 // pred_check_branch
        %137 = sbr.rel (%p135) target = $region20
      $region19: #{_lambda_.8} parent=11 // pred_region
        _
      $region20: #{_lambda_.8} parent=11 // pred_fallthru
        _
    $region12: #{_lambda_.8} parent=5 // pred_fallthru
      _
    %p138 = scmp.lt.s32.totalorder %s9, 2
    // Predicated region
    $region21: #{_lambda_.8} parent=5 // pred_check
      %p139 = pneg %p138
    $region22: #{_lambda_.8} parent=5 // pred_check_branch
      %141 = sbr.rel (%p139) target = $region24
    $region23: #{_lambda_.8} parent=5 // pred_region
      // Predicated region
      $region25: #{_lambda_.8} parent=23 // pred_check
        %p142 = pneg %p41
      $region26: #{_lambda_.8} parent=23 // pred_check_branch
        %144 = sbr.rel (%p142) target = $region28
      $region27: #{_lambda_.8} parent=23 // pred_region
        %p145 = scmp.lt.s32.totalorder %s16, 1
        %s146 = scalar_select %p145, %s16, 1
        %s147 = smul.addr %s146, 51
        %s148 = smul.addr %s147, 4
        %s149 = scalar_lea.vmem %s0, %s148
      $region28: #{_lambda_.8} parent=23 // pred_fallthru
        _
    $region24: #{_lambda_.8} parent=5 // pred_fallthru
      _
    %p150 = scmp.le.s32.totalorder 1, %s9
    %p151 = scmp.lt.s32.totalorder %s9, 3
    %p152 = pnand %p150, %p151
    %p153 = pneg %p152
    // Predicated region
    $region29: #{_lambda_.8} parent=5 // pred_check
      _
    $region30: #{_lambda_.8} parent=5 // pred_check_branch
      %155 = sbr.rel (%p152) target = $region32
    $region31: #{_lambda_.8} parent=5 // pred_region
      %s156 = ssub.s32 %s9, 1
      %p157 = scmp.lt.s32.totalorder %s18, 1
      %s158 = scalar_select %p157, %s18, 1
      %s159 = smul.addr %s158, 51
      %s160 = smul.addr %s159, 4
      %s161 = scalar_lea.vmem %s0, %s160
      %p162 = pneg %p47
      %p163 = pneg %p44
      %p164 = pneg %p68
      %p165 = pneg %p65
      %p166 = pneg %p89
      %p167 = pneg %p86
      %p168 = pneg %p117
      %p169 = pneg %p114
      %s170 = smul.u32 16, %s19
      %p171 = scmp.lt.s32.totalorder %s18, 1
      %s172 = scalar_select %p171, %s18, 1
      %p173 = scmp.lt.s32.totalorder %s170, 15
      %s174 = scalar_select %p173, %s170, 15
      %s175 = smul.addr %s174, 2
      %s176 = smul.addr %s172, 32
      %s177 = sadd.s32 %s175, %s176
      %s178 = smul.addr %s177, 4
      %s179 = scalar_lea.vmem %s3, %s178
      %p180 = scmp.lt.s32.totalorder %s18, 1
      %s181 = scalar_select %p180, %s18, 1
      %s182 = smul.addr %s181, 51
      %s183 = smul.addr %s182, 4
      %s184 = scalar_lea.vmem %s0, %s183
      %s185 = smul.u32 16, %s19
      %p186 = scmp.lt.s32.totalorder %s18, 1
      %s187 = scalar_select %p186, %s18, 1
      %p188 = scmp.lt.s32.totalorder %s185, 15
      %s189 = scalar_select %p188, %s185, 15
      %s190 = smul.addr %s189, 2
      %s191 = smul.addr %s187, 32
      %s192 = sadd.s32 %s190, %s191
      %s193 = smul.addr %s192, 4
      %s194 = scalar_lea.vmem %s3, %s193
      %s195 = smul.u32 16, %s19
      %s197 = smul.u32 %s19, 16
      %s198 = smul.u32 %s197, 3
      %s199 = smul.addr %s198, 4
      %s200 = scalar_lea.vmem %s184, %s199
      %v201 = vld [vmem:[%s200] sm:$0xf]
      %v202 = vld [vmem:[%s200 + $0x4] sm:$0xf]
      %v203 = vld [vmem:[%s200 + $0xc] sm:$0xf]
      %v204 = vld [vmem:[%s200 + $0x10] sm:$0xf]
      %v205 = vld [vmem:[%s200 + $0x18] sm:$0xf]
      %v206 = vld [vmem:[%s200 + $0x1c] sm:$0xf]
      %v207 = vld [vmem:[%s200 + $0x24] sm:$0xf]
      %v208 = vld [vmem:[%s200 + $0x28] sm:$0xf]
      %v209 = vld [vmem:[%s200 + $0x30] sm:$0xf]
      %v210 = vld [vmem:[%s200 + $0x34] sm:$0xf]
      %v211 = vld [vmem:[%s200 + $0x3c] sm:$0xf]
      %v212 = vld [vmem:[%s200 + $0x40] sm:$0xf]
      %v213 = vld [vmem:[%s200 + $0x48] sm:$0xf]
      %v214 = vld [vmem:[%s200 + $0x4c] sm:$0xf]
      %v215 = vld [vmem:[%s200 + $0x54] sm:$0xf]
      %v216 = vld [vmem:[%s200 + $0x58] sm:$0xf]
      %v217 = vld [vmem:[%s200 + $0x60] sm:$0xf]
      %v218 = vld [vmem:[%s200 + $0x64] sm:$0xf]
      %v219 = vld [vmem:[%s200 + $0x6c] sm:$0xf]
      %v220 = vld [vmem:[%s200 + $0x70] sm:$0xf]
      %v221 = vld [vmem:[%s200 + $0x78] sm:$0xf]
      %v222 = vld [vmem:[%s200 + $0x7c] sm:$0xf]
      %v223 = vld [vmem:[%s200 + $0x84] sm:$0xf]
      %v224 = vld [vmem:[%s200 + $0x88] sm:$0xf]
      %v225 = vld [vmem:[%s200 + $0x90] sm:$0xf]
      %v226 = vld [vmem:[%s200 + $0x94] sm:$0xf]
      %v227 = vld [vmem:[%s200 + $0x9c] sm:$0xf]
      %v228 = vld [vmem:[%s200 + $0xa0] sm:$0xf]
      %v229 = vld [vmem:[%s200 + $0xa8] sm:$0xf]
      %v230 = vld [vmem:[%s200 + $0xac] sm:$0xf]
      %v231 = vld [vmem:[%s200 + $0xb4] sm:$0xf]
      %v232 = vld [vmem:[%s200 + $0xb8] sm:$0xf]
      %v233 = vld [vmem:[%s1] sm:$0xf]
      %v234 = vld [vmem:[%s1 + $0x4] sm:$0xf]
      %v235 = vld [vmem:[%s200 + $0x8] sm:$0x1]
      %v236 = vld [vmem:[%s200 + $0x14] sm:$0x1]
      %v237 = vld [vmem:[%s200 + $0x20] sm:$0x1]
      %v238 = vld [vmem:[%s200 + $0x2c] sm:$0x1]
      %v239 = vld [vmem:[%s200 + $0x38] sm:$0x1]
      %v240 = vld [vmem:[%s200 + $0x44] sm:$0x1]
      %v241 = vld [vmem:[%s200 + $0x50] sm:$0x1]
      %v242 = vld [vmem:[%s200 + $0x5c] sm:$0x1]
      %v243 = vld [vmem:[%s200 + $0x68] sm:$0x1]
      %v244 = vld [vmem:[%s200 + $0x74] sm:$0x1]
      %v245 = vld [vmem:[%s200 + $0x80] sm:$0x1]
      %v246 = vld [vmem:[%s200 + $0x8c] sm:$0x1]
      %v247 = vld [vmem:[%s200 + $0x98] sm:$0x1]
      %v248 = vld [vmem:[%s200 + $0xa4] sm:$0x1]
      %v249 = vld [vmem:[%s200 + $0xb0] sm:$0x1]
      %v250 = vld [vmem:[%s200 + $0xbc] sm:$0x1]
      %vm251 = vsmask.f32 3328
      %vm252 = vsmask.f32 7440
      %vm253 = vmor %vm251, %vm252
      %v255 = vshrl.u32 %v201, 16
      %v257 = vrot.slane %v255, 4
      %v258 = vshll.u32 %v201, 16
      %v260 = vrot.slane %v258, 5
      %v261 = vor.u32 %v257, %v260
      %v262 = vrot.slane %v261, 4
      %v264 = vshll.u32 %v202, 16
      %v266 = vrot.slane %v264, 5
      %v267 = vsel %vm253, %v262, %v266
      %v268 = vshrl.u32 %v202, 16
      %v270 = vrot.slane %v268, 4
      %v271 = vor.u32 %v270, %v266
      %v272 = vrot.slane %v271, 4
      %v274 = vshll.u32 %v235, 16
      %v276 = vrot.slane %v274, 5
      %v277 = vsel %vm253, %v272, %v276
      %v279 = vshrl.u32 %v203, 16
      %v281 = vrot.slane %v279, 4
      %v282 = vshll.u32 %v203, 16
      %v284 = vrot.slane %v282, 5
      %v285 = vor.u32 %v281, %v284
      %v286 = vrot.slane %v285, 4
      %v288 = vshll.u32 %v204, 16
      %v290 = vrot.slane %v288, 5
      %v291 = vsel %vm253, %v286, %v290
      %v292 = vshrl.u32 %v204, 16
      %v294 = vrot.slane %v292, 4
      %v295 = vor.u32 %v294, %v290
      %v296 = vrot.slane %v295, 4
      %v298 = vshll.u32 %v236, 16
      %v300 = vrot.slane %v298, 5
      %v301 = vsel %vm253, %v296, %v300
      %v303 = vshrl.u32 %v205, 16
      %v305 = vrot.slane %v303, 4
      %v306 = vshll.u32 %v205, 16
      %v308 = vrot.slane %v306, 5
      %v309 = vor.u32 %v305, %v308
      %v310 = vrot.slane %v309, 4
      %v312 = vshll.u32 %v206, 16
      %v314 = vrot.slane %v312, 5
      %v315 = vsel %vm253, %v310, %v314
      %v316 = vshrl.u32 %v206, 16
      %v318 = vrot.slane %v316, 4
      %v319 = vor.u32 %v318, %v314
      %v320 = vrot.slane %v319, 4
      %v322 = vshll.u32 %v237, 16
      %v324 = vrot.slane %v322, 5
      %v325 = vsel %vm253, %v320, %v324
      %v327 = vshrl.u32 %v207, 16
      %v329 = vrot.slane %v327, 4
      %v330 = vshll.u32 %v207, 16
      %v332 = vrot.slane %v330, 5
      %v333 = vor.u32 %v329, %v332
      %v334 = vrot.slane %v333, 4
      %v336 = vshll.u32 %v208, 16
      %v338 = vrot.slane %v336, 5
      %v339 = vsel %vm253, %v334, %v338
      %v340 = vshrl.u32 %v208, 16
      %v342 = vrot.slane %v340, 4
      %v343 = vor.u32 %v342, %v338
      %v344 = vrot.slane %v343, 4
      %v346 = vshll.u32 %v238, 16
      %v348 = vrot.slane %v346, 5
      %v349 = vsel %vm253, %v344, %v348
      %v351 = vshrl.u32 %v209, 16
      %v353 = vrot.slane %v351, 4
      %v354 = vshll.u32 %v209, 16
      %v356 = vrot.slane %v354, 5
      %v357 = vor.u32 %v353, %v356
      %v358 = vrot.slane %v357, 4
      %v360 = vshll.u32 %v210, 16
      %v362 = vrot.slane %v360, 5
      %v363 = vsel %vm253, %v358, %v362
      %v364 = vshrl.u32 %v210, 16
      %v366 = vrot.slane %v364, 4
      %v367 = vor.u32 %v366, %v362
      %v368 = vrot.slane %v367, 4
      %v370 = vshll.u32 %v239, 16
      %v372 = vrot.slane %v370, 5
      %v373 = vsel %vm253, %v368, %v372
      %v375 = vshrl.u32 %v211, 16
      %v377 = vrot.slane %v375, 4
      %v378 = vshll.u32 %v211, 16
      %v380 = vrot.slane %v378, 5
      %v381 = vor.u32 %v377, %v380
      %v382 = vrot.slane %v381, 4
      %v384 = vshll.u32 %v212, 16
      %v386 = vrot.slane %v384, 5
      %v387 = vsel %vm253, %v382, %v386
      %v388 = vshrl.u32 %v212, 16
      %v390 = vrot.slane %v388, 4
      %v391 = vor.u32 %v390, %v386
      %v392 = vrot.slane %v391, 4
      %v394 = vshll.u32 %v240, 16
      %v396 = vrot.slane %v394, 5
      %v397 = vsel %vm253, %v392, %v396
      %v399 = vshrl.u32 %v213, 16
      %v401 = vrot.slane %v399, 4
      %v402 = vshll.u32 %v213, 16
      %v404 = vrot.slane %v402, 5
      %v405 = vor.u32 %v401, %v404
      %v406 = vrot.slane %v405, 4
      %v408 = vshll.u32 %v214, 16
      %v410 = vrot.slane %v408, 5
      %v411 = vsel %vm253, %v406, %v410
      %v412 = vshrl.u32 %v214, 16
      %v414 = vrot.slane %v412, 4
      %v415 = vor.u32 %v414, %v410
      %v416 = vrot.slane %v415, 4
      %v418 = vshll.u32 %v241, 16
      %v420 = vrot.slane %v418, 5
      %v421 = vsel %vm253, %v416, %v420
      %v423 = vshrl.u32 %v215, 16
      %v425 = vrot.slane %v423, 4
      %v426 = vshll.u32 %v215, 16
      %v428 = vrot.slane %v426, 5
      %v429 = vor.u32 %v425, %v428
      %v430 = vrot.slane %v429, 4
      %v432 = vshll.u32 %v216, 16
      %v434 = vrot.slane %v432, 5
      %v435 = vsel %vm253, %v430, %v434
      %v436 = vshrl.u32 %v216, 16
      %v438 = vrot.slane %v436, 4
      %v439 = vor.u32 %v438, %v434
      %v440 = vrot.slane %v439, 4
      %v442 = vshll.u32 %v242, 16
      %v444 = vrot.slane %v442, 5
      %v445 = vsel %vm253, %v440, %v444
      %v447 = vshrl.u32 %v217, 16
      %v449 = vrot.slane %v447, 4
      %v450 = vshll.u32 %v217, 16
      %v452 = vrot.slane %v450, 5
      %v453 = vor.u32 %v449, %v452
      %v454 = vrot.slane %v453, 4
      %v456 = vshll.u32 %v218, 16
      %v458 = vrot.slane %v456, 5
      %v459 = vsel %vm253, %v454, %v458
      %v460 = vshrl.u32 %v218, 16
      %v462 = vrot.slane %v460, 4
      %v463 = vor.u32 %v462, %v458
      %v464 = vrot.slane %v463, 4
      %v466 = vshll.u32 %v243, 16
      %v468 = vrot.slane %v466, 5
      %v469 = vsel %vm253, %v464, %v468
      %v471 = vshrl.u32 %v219, 16
      %v473 = vrot.slane %v471, 4
      %v474 = vshll.u32 %v219, 16
      %v476 = vrot.slane %v474, 5
      %v477 = vor.u32 %v473, %v476
      %v478 = vrot.slane %v477, 4
      %v480 = vshll.u32 %v220, 16
      %v482 = vrot.slane %v480, 5
      %v483 = vsel %vm253, %v478, %v482
      %v484 = vshrl.u32 %v220, 16
      %v486 = vrot.slane %v484, 4
      %v487 = vor.u32 %v486, %v482
      %v488 = vrot.slane %v487, 4
      %v490 = vshll.u32 %v244, 16
      %v492 = vrot.slane %v490, 5
      %v493 = vsel %vm253, %v488, %v492
      %v495 = vshrl.u32 %v221, 16
      %v497 = vrot.slane %v495, 4
      %v498 = vshll.u32 %v221, 16
      %v500 = vrot.slane %v498, 5
      %v501 = vor.u32 %v497, %v500
      %v502 = vrot.slane %v501, 4
      %v504 = vshll.u32 %v222, 16
      %v506 = vrot.slane %v504, 5
      %v507 = vsel %vm253, %v502, %v506
      %v508 = vshrl.u32 %v222, 16
      %v510 = vrot.slane %v508, 4
      %v511 = vor.u32 %v510, %v506
      %v512 = vrot.slane %v511, 4
      %v514 = vshll.u32 %v245, 16
      %v516 = vrot.slane %v514, 5
      %v517 = vsel %vm253, %v512, %v516
      %v519 = vshrl.u32 %v223, 16
      %v521 = vrot.slane %v519, 4
      %v522 = vshll.u32 %v223, 16
      %v524 = vrot.slane %v522, 5
      %v525 = vor.u32 %v521, %v524
      %v526 = vrot.slane %v525, 4
      %v528 = vshll.u32 %v224, 16
      %v530 = vrot.slane %v528, 5
      %v531 = vsel %vm253, %v526, %v530
      %v532 = vshrl.u32 %v224, 16
      %v534 = vrot.slane %v532, 4
      %v535 = vor.u32 %v534, %v530
      %v536 = vrot.slane %v535, 4
      %v538 = vshll.u32 %v246, 16
      %v540 = vrot.slane %v538, 5
      %v541 = vsel %vm253, %v536, %v540
      %v543 = vshrl.u32 %v225, 16
      %v545 = vrot.slane %v543, 4
      %v546 = vshll.u32 %v225, 16
      %v548 = vrot.slane %v546, 5
      %v549 = vor.u32 %v545, %v548
      %v550 = vrot.slane %v549, 4
      %v552 = vshll.u32 %v226, 16
      %v554 = vrot.slane %v552, 5
      %v555 = vsel %vm253, %v550, %v554
      %v556 = vshrl.u32 %v226, 16
      %v558 = vrot.slane %v556, 4
      %v559 = vor.u32 %v558, %v554
      %v560 = vrot.slane %v559, 4
      %v562 = vshll.u32 %v247, 16
      %v564 = vrot.slane %v562, 5
      %v565 = vsel %vm253, %v560, %v564
      %v567 = vshrl.u32 %v227, 16
      %v569 = vrot.slane %v567, 4
      %v570 = vshll.u32 %v227, 16
      %v572 = vrot.slane %v570, 5
      %v573 = vor.u32 %v569, %v572
      %v574 = vrot.slane %v573, 4
      %v576 = vshll.u32 %v228, 16
      %v578 = vrot.slane %v576, 5
      %v579 = vsel %vm253, %v574, %v578
      %v580 = vshrl.u32 %v228, 16
      %v582 = vrot.slane %v580, 4
      %v583 = vor.u32 %v582, %v578
      %v584 = vrot.slane %v583, 4
      %v586 = vshll.u32 %v248, 16
      %v588 = vrot.slane %v586, 5
      %v589 = vsel %vm253, %v584, %v588
      %v591 = vshrl.u32 %v229, 16
      %v593 = vrot.slane %v591, 4
      %v594 = vshll.u32 %v229, 16
      %v596 = vrot.slane %v594, 5
      %v597 = vor.u32 %v593, %v596
      %v598 = vrot.slane %v597, 4
      %v600 = vshll.u32 %v230, 16
      %v602 = vrot.slane %v600, 5
      %v603 = vsel %vm253, %v598, %v602
      %v604 = vshrl.u32 %v230, 16
      %v606 = vrot.slane %v604, 4
      %v607 = vor.u32 %v606, %v602
      %v608 = vrot.slane %v607, 4
      %v610 = vshll.u32 %v249, 16
      %v612 = vrot.slane %v610, 5
      %v613 = vsel %vm253, %v608, %v612
      %v615 = vshrl.u32 %v231, 16
      %v617 = vrot.slane %v615, 4
      %v618 = vshll.u32 %v231, 16
      %v620 = vrot.slane %v618, 5
      %v621 = vor.u32 %v617, %v620
      %v622 = vrot.slane %v621, 4
      %v624 = vshll.u32 %v232, 16
      %v626 = vrot.slane %v624, 5
      %v627 = vsel %vm253, %v622, %v626
      %v628 = vshrl.u32 %v232, 16
      %v630 = vrot.slane %v628, 4
      %v631 = vor.u32 %v630, %v626
      %v632 = vrot.slane %v631, 4
      %v634 = vshll.u32 %v250, 16
      %v636 = vrot.slane %v634, 5
      %v637 = vsel %vm253, %v632, %v636
      %s638 = scalar_lea.vmem %s1, 8
      %v639 = vld [vmem:[%s638] sm:$0xf]
      %v640 = vld [vmem:[%s638 + $0x4] sm:$0xf]
      %v641 = vunpack.c.l.b16 %v267
      %v642 = vunpack.c.l.b16 %v277
      %v643 = vunpack.c.l.b16 %v291
      %v644 = vunpack.c.l.b16 %v301
      %v645 = vunpack.c.l.b16 %v315
      %v646 = vunpack.c.l.b16 %v325
      %v647 = vunpack.c.l.b16 %v339
      %v648 = vunpack.c.l.b16 %v349
      %v649 = vunpack.c.l.b16 %v363
      %v650 = vunpack.c.l.b16 %v373
      %v651 = vunpack.c.l.b16 %v387
      %v652 = vunpack.c.l.b16 %v397
      %v653 = vunpack.c.l.b16 %v411
      %v654 = vunpack.c.l.b16 %v421
      %v655 = vunpack.c.l.b16 %v435
      %v656 = vunpack.c.l.b16 %v445
      %v657 = vunpack.c.l.b16 %v459
      %v658 = vunpack.c.l.b16 %v469
      %v659 = vunpack.c.l.b16 %v483
      %v660 = vunpack.c.l.b16 %v493
      %v661 = vunpack.c.l.b16 %v507
      %v662 = vunpack.c.l.b16 %v517
      %v663 = vunpack.c.l.b16 %v531
      %v664 = vunpack.c.l.b16 %v541
      %v665 = vunpack.c.l.b16 %v555
      %v666 = vunpack.c.l.b16 %v565
      %v667 = vunpack.c.l.b16 %v579
      %v668 = vunpack.c.l.b16 %v589
      %v669 = vunpack.c.l.b16 %v603
      %v670 = vunpack.c.l.b16 %v613
      %v671 = vunpack.c.l.b16 %v627
      %v672 = vunpack.c.l.b16 %v637
      %v673 = vpack.c.b16 %v642, %v641
      %v674 = vpack.c.b16 %v644, %v643
      %v675 = vpack.c.b16 %v646, %v645
      %v676 = vpack.c.b16 %v648, %v647
      %v677 = vpack.c.b16 %v650, %v649
      %v678 = vpack.c.b16 %v652, %v651
      %v679 = vpack.c.b16 %v654, %v653
      %v680 = vpack.c.b16 %v656, %v655
      %v681 = vpack.c.b16 %v658, %v657
      %v682 = vpack.c.b16 %v660, %v659
      %v683 = vpack.c.b16 %v662, %v661
      %v684 = vpack.c.b16 %v664, %v663
      %v685 = vpack.c.b16 %v666, %v665
      %v686 = vpack.c.b16 %v668, %v667
      %v687 = vpack.c.b16 %v670, %v669
      %v688 = vpack.c.b16 %v672, %v671
      %v691 = vunpack.c.l.b16 %v639
      %v692 = vunpack.c.l.b16 %v640
      %v693 = vpack.c.b16 %v692, %v691
      %vm695 = vcmask 130048
      %v697 = vsel %vm695, %v673, 0
      %v700 = vsel %vm695, %v674, 0
      %v703 = vsel %vm695, %v675, 0
      %v706 = vsel %vm695, %v676, 0
      %v709 = vsel %vm695, %v677, 0
      %v712 = vsel %vm695, %v678, 0
      %v715 = vsel %vm695, %v679, 0
      %v718 = vsel %vm695, %v680, 0
      %v721 = vsel %vm695, %v681, 0
      %v724 = vsel %vm695, %v682, 0
      %v727 = vsel %vm695, %v683, 0
      %v730 = vsel %vm695, %v684, 0
      %v733 = vsel %vm695, %v685, 0
      %v736 = vsel %vm695, %v686, 0
      %v739 = vsel %vm695, %v687, 0
      %v742 = vsel %vm695, %v688, 0
      %744 = vmatprep.subr.bf16.mxu0 0
      %745 = vmatpush1.bf16.msra.mxu0 %v693
      %746 = vmatprep.subr.bf16.mxu0 0
      %747 = vmatpush1.bf16.msra.mxu0 0
      %748 = vmatprep.subr.bf16.mxu0 0
      %749 = vmatpush1.bf16.msra.mxu0 0
      %750 = vmatprep.subr.bf16.mxu0 0
      %751 = vmatpush1.bf16.msra.mxu0 0
      %752 = vmatprep.subr.bf16.mxu0 0
      %753 = vmatpush1.bf16.msra.mxu0 0
      %754 = vmatprep.subr.bf16.mxu0 0
      %755 = vmatpush1.bf16.msra.mxu0 0
      %756 = vmatprep.subr.bf16.mxu0 0
      %757 = vmatpush1.bf16.msra.mxu0 0
      %758 = vmatprep.subr.bf16.mxu0 0
      %759 = vmatpush1.bf16.msra.mxu0 0
      %760 = vmatprep.subr.bf16.mxu0 0
      %761 = vmatpush1.bf16.msra.mxu0 0
      %762 = vmatprep.subr.bf16.mxu0 0
      %763 = vmatpush1.bf16.msra.mxu0 0
      %764 = vmatprep.subr.bf16.mxu0 0
      %765 = vmatpush1.bf16.msra.mxu0 0
      %766 = vmatprep.subr.bf16.mxu0 0
      %767 = vmatpush1.bf16.msra.mxu0 0
      %768 = vmatprep.subr.bf16.mxu0 0
      %769 = vmatpush1.bf16.msra.mxu0 0
      %770 = vmatprep.subr.bf16.mxu0 0
      %771 = vmatpush1.bf16.msra.mxu0 0
      %772 = vmatprep.subr.bf16.mxu0 0
      %773 = vmatpush1.bf16.msra.mxu0 0
      %774 = vmatprep.subr.bf16.mxu0 0
      %775 = vmatpush1.bf16.msra.mxu0 0
      %776 = vmatprep.mubr.bf16.mxu0 0
      %777 = vmatmul.mubr.bf16.gmra.mrb[0].mxu0 %v697
      %v778 = vpop.f32.mrb[0].mxu0
      %v779 = vadd.f32 0.0, %v778
      %v780 = vpop.f32.mrb[0].mxu0
      %v781 = vpop.f32.mrb[0].mxu0
      %v782 = vadd.f32 0.0, %v781
      %v783 = vpop.f32.mrb[0].mxu0
      %784 = vmatprep.mubr.bf16.mxu0 0
      %785 = vmatmul.mubr.bf16.gmra.mrb[0].mxu0 %v700
      %v786 = vpop.f32.mrb[0].mxu0
      %v787 = vadd.f32 0.0, %v786
      %v788 = vpop.f32.mrb[0].mxu0
      %v789 = vpop.f32.mrb[0].mxu0
      %v790 = vadd.f32 0.0, %v789
      %v791 = vpop.f32.mrb[0].mxu0
      %792 = vmatprep.mubr.bf16.mxu0 0
      %793 = vmatmul.mubr.bf16.gmra.mrb[0].mxu0 %v703
      %v794 = vpop.f32.mrb[0].mxu0
      %v795 = vadd.f32 0.0, %v794
      %v796 = vpop.f32.mrb[0].mxu0
      %v797 = vpop.f32.mrb[0].mxu0
      %v798 = vadd.f32 0.0, %v797
      %v799 = vpop.f32.mrb[0].mxu0
      %800 = vmatprep.mubr.bf16.mxu0 0
      %801 = vmatmul.mubr.bf16.gmra.mrb[0].mxu0 %v706
      %v802 = vpop.f32.mrb[0].mxu0
      %v803 = vadd.f32 0.0, %v802
      %v804 = vpop.f32.mrb[0].mxu0
      %v805 = vpop.f32.mrb[0].mxu0
      %v806 = vadd.f32 0.0, %v805
      %v807 = vpop.f32.mrb[0].mxu0
      %808 = vmatprep.mubr.bf16.mxu0 0
      %809 = vmatmul.mubr.bf16.gmra.mrb[0].mxu0 %v709
      %v810 = vpop.f32.mrb[0].mxu0
      %v811 = vadd.f32 0.0, %v810
      %v812 = vpop.f32.mrb[0].mxu0
      %v813 = vpop.f32.mrb[0].mxu0
      %v814 = vadd.f32 0.0, %v813
      %v815 = vpop.f32.mrb[0].mxu0
      %816 = vmatprep.mubr.bf16.mxu0 0
      %817 = vmatmul.mubr.bf16.gmra.mrb[0].mxu0 %v712
      %v818 = vpop.f32.mrb[0].mxu0
      %v819 = vadd.f32 0.0, %v818
      %v820 = vpop.f32.mrb[0].mxu0
      %v821 = vpop.f32.mrb[0].mxu0
      %v822 = vadd.f32 0.0, %v821
      %v823 = vpop.f32.mrb[0].mxu0
      %824 = vmatprep.mubr.bf16.mxu0 0
      %825 = vmatmul.mubr.bf16.gmra.mrb[0].mxu0 %v715
      %v826 = vpop.f32.mrb[0].mxu0
      %v827 = vadd.f32 0.0, %v826
      %v828 = vpop.f32.mrb[0].mxu0
      %v829 = vpop.f32.mrb[0].mxu0
      %v830 = vadd.f32 0.0, %v829
      %v831 = vpop.f32.mrb[0].mxu0
      %832 = vmatprep.mubr.bf16.mxu0 0
      %833 = vmatmul.mubr.bf16.gmra.mrb[0].mxu0 %v718
      %v834 = vpop.f32.mrb[0].mxu0
      %v835 = vadd.f32 0.0, %v834
      %v836 = vpop.f32.mrb[0].mxu0
      %v837 = vpop.f32.mrb[0].mxu0
      %v838 = vadd.f32 0.0, %v837
      %v839 = vpop.f32.mrb[0].mxu0
      %840 = vmatprep.mubr.bf16.mxu0 0
      %841 = vmatmul.mubr.bf16.gmra.mrb[0].mxu0 %v721
      %v842 = vpop.f32.mrb[0].mxu0
      %v843 = vadd.f32 0.0, %v842
      %v844 = vpop.f32.mrb[0].mxu0
      %v845 = vpop.f32.mrb[0].mxu0
      %v846 = vadd.f32 0.0, %v845
      %v847 = vpop.f32.mrb[0].mxu0
      %848 = vmatprep.mubr.bf16.mxu0 0
      %849 = vmatmul.mubr.bf16.gmra.mrb[0].mxu0 %v724
      %v850 = vpop.f32.mrb[0].mxu0
      %v851 = vadd.f32 0.0, %v850
      %v852 = vpop.f32.mrb[0].mxu0
      %v853 = vpop.f32.mrb[0].mxu0
      %v854 = vadd.f32 0.0, %v853
      %v855 = vpop.f32.mrb[0].mxu0
      %856 = vmatprep.mubr.bf16.mxu0 0
      %857 = vmatmul.mubr.bf16.gmra.mrb[0].mxu0 %v727
      %v858 = vpop.f32.mrb[0].mxu0
      %v859 = vadd.f32 0.0, %v858
      %v860 = vpop.f32.mrb[0].mxu0
      %v861 = vpop.f32.mrb[0].mxu0
      %v862 = vadd.f32 0.0, %v861
      %v863 = vpop.f32.mrb[0].mxu0
      %864 = vmatprep.mubr.bf16.mxu0 0
      %865 = vmatmul.mubr.bf16.gmra.mrb[0].mxu0 %v730
      %v866 = vpop.f32.mrb[0].mxu0
      %v867 = vadd.f32 0.0, %v866
      %v868 = vpop.f32.mrb[0].mxu0
      %v869 = vpop.f32.mrb[0].mxu0
      %v870 = vadd.f32 0.0, %v869
      %v871 = vpop.f32.mrb[0].mxu0
      %872 = vmatprep.mubr.bf16.mxu0 0
      %873 = vmatmul.mubr.bf16.gmra.mrb[0].mxu0 %v733
      %v874 = vpop.f32.mrb[0].mxu0
      %v875 = vadd.f32 0.0, %v874
      %v876 = vpop.f32.mrb[0].mxu0
      %v877 = vpop.f32.mrb[0].mxu0
      %v878 = vadd.f32 0.0, %v877
      %v879 = vpop.f32.mrb[0].mxu0
      %880 = vmatprep.mubr.bf16.mxu0 0
      %881 = vmatmul.mubr.bf16.gmra.mrb[0].mxu0 %v736
      %v882 = vpop.f32.mrb[0].mxu0
      %v883 = vadd.f32 0.0, %v882
      %v884 = vpop.f32.mrb[0].mxu0
      %v885 = vpop.f32.mrb[0].mxu0
      %v886 = vadd.f32 0.0, %v885
      %v887 = vpop.f32.mrb[0].mxu0
      %888 = vmatprep.mubr.bf16.mxu0 0
      %889 = vmatmul.mubr.bf16.gmra.mrb[0].mxu0 %v739
      %v890 = vpop.f32.mrb[0].mxu0
      %v891 = vadd.f32 0.0, %v890
      %v892 = vpop.f32.mrb[0].mxu0
      %v893 = vpop.f32.mrb[0].mxu0
      %v894 = vadd.f32 0.0, %v893
      %v895 = vpop.f32.mrb[0].mxu0
      %896 = vmatprep.mubr.bf16.mxu0 0
      %897 = vmatmul.mubr.bf16.gmra.mrb[0].mxu0 %v742
      %v898 = vpop.f32.mrb[0].mxu0
      %v899 = vadd.f32 0.0, %v898
      %v900 = vpop.f32.mrb[0].mxu0
      %v901 = vpop.f32.mrb[0].mxu0
      %v902 = vadd.f32 0.0, %v901
      %v903 = vpop.f32.mrb[0].mxu0
      %904 = vdwg.mxu0
      %v937 = vunpack.c.l.b16 %v201
      %v938 = vunpack.c.l.b16 %v202
      %v939 = vunpack.c.l.b16 %v203
      %v940 = vunpack.c.l.b16 %v204
      %v941 = vunpack.c.l.b16 %v205
      %v942 = vunpack.c.l.b16 %v206
      %v943 = vunpack.c.l.b16 %v207
      %v944 = vunpack.c.l.b16 %v208
      %v945 = vunpack.c.l.b16 %v209
      %v946 = vunpack.c.l.b16 %v210
      %v947 = vunpack.c.l.b16 %v211
      %v948 = vunpack.c.l.b16 %v212
      %v949 = vunpack.c.l.b16 %v213
      %v950 = vunpack.c.l.b16 %v214
      %v951 = vunpack.c.l.b16 %v215
      %v952 = vunpack.c.l.b16 %v216
      %v953 = vunpack.c.l.b16 %v217
      %v954 = vunpack.c.l.b16 %v218
      %v955 = vunpack.c.l.b16 %v219
      %v956 = vunpack.c.l.b16 %v220
      %v957 = vunpack.c.l.b16 %v221
      %v958 = vunpack.c.l.b16 %v222
      %v959 = vunpack.c.l.b16 %v223
      %v960 = vunpack.c.l.b16 %v224
      %v961 = vunpack.c.l.b16 %v225
      %v962 = vunpack.c.l.b16 %v226
      %v963 = vunpack.c.l.b16 %v227
      %v964 = vunpack.c.l.b16 %v228
      %v965 = vunpack.c.l.b16 %v229
      %v966 = vunpack.c.l.b16 %v230
      %v967 = vunpack.c.l.b16 %v231
      %v968 = vunpack.c.l.b16 %v232
      %v969 = vpack.c.b16 %v938, %v937
      %v970 = vpack.c.b16 %v940, %v939
      %v971 = vpack.c.b16 %v942, %v941
      %v972 = vpack.c.b16 %v944, %v943
      %v973 = vpack.c.b16 %v946, %v945
      %v974 = vpack.c.b16 %v948, %v947
      %v975 = vpack.c.b16 %v950, %v949
      %v976 = vpack.c.b16 %v952, %v951
      %v977 = vpack.c.b16 %v954, %v953
      %v978 = vpack.c.b16 %v956, %v955
      %v979 = vpack.c.b16 %v958, %v957
      %v980 = vpack.c.b16 %v960, %v959
      %v981 = vpack.c.b16 %v962, %v961
      %v982 = vpack.c.b16 %v964, %v963
      %v983 = vpack.c.b16 %v966, %v965
      %v984 = vpack.c.b16 %v968, %v967
      %v987 = vunpack.c.l.b16 %v233
      %v988 = vunpack.c.l.b16 %v234
      %v989 = vpack.c.b16 %v988, %v987
      %v992 = vsel %vm695, %v969, 0
      %v995 = vsel %vm695, %v970, 0
      %v998 = vsel %vm695, %v971, 0
      %v1001 = vsel %vm695, %v972, 0
      %v1004 = vsel %vm695, %v973, 0
      %v1007 = vsel %vm695, %v974, 0
      %v1010 = vsel %vm695, %v975, 0
      %v1013 = vsel %vm695, %v976, 0
      %v1016 = vsel %vm695, %v977, 0
      %v1019 = vsel %vm695, %v978, 0
      %v1022 = vsel %vm695, %v979, 0
      %v1025 = vsel %vm695, %v980, 0
      %v1028 = vsel %vm695, %v981, 0
      %v1031 = vsel %vm695, %v982, 0
      %v1034 = vsel %vm695, %v983, 0
      %v1037 = vsel %vm695, %v984, 0
      %1039 = vmatprep.subr.bf16.mxu0 0
      %1040 = vmatpush1.bf16.msra.mxu0 %v989
      %1041 = vmatprep.subr.bf16.mxu0 0
      %1042 = vmatpush1.bf16.msra.mxu0 0
      %1043 = vmatprep.subr.bf16.mxu0 0
      %1044 = vmatpush1.bf16.msra.mxu0 0
      %1045 = vmatprep.subr.bf16.mxu0 0
      %1046 = vmatpush1.bf16.msra.mxu0 0
      %1047 = vmatprep.subr.bf16.mxu0 0
      %1048 = vmatpush1.bf16.msra.mxu0 0
      %1049 = vmatprep.subr.bf16.mxu0 0
      %1050 = vmatpush1.bf16.msra.mxu0 0
      %1051 = vmatprep.subr.bf16.mxu0 0
      %1052 = vmatpush1.bf16.msra.mxu0 0
      %1053 = vmatprep.subr.bf16.mxu0 0
      %1054 = vmatpush1.bf16.msra.mxu0 0
      %1055 = vmatprep.subr.bf16.mxu0 0
      %1056 = vmatpush1.bf16.msra.mxu0 0
      %1057 = vmatprep.subr.bf16.mxu0 0
      %1058 = vmatpush1.bf16.msra.mxu0 0
      %1059 = vmatprep.subr.bf16.mxu0 0
      %1060 = vmatpush1.bf16.msra.mxu0 0
      %1061 = vmatprep.subr.bf16.mxu0 0
      %1062 = vmatpush1.bf16.msra.mxu0 0
      %1063 = vmatprep.subr.bf16.mxu0 0
      %1064 = vmatpush1.bf16.msra.mxu0 0
      %1065 = vmatprep.subr.bf16.mxu0 0
      %1066 = vmatpush1.bf16.msra.mxu0 0
      %1067 = vmatprep.subr.bf16.mxu0 0
      %1068 = vmatpush1.bf16.msra.mxu0 0
      %1069 = vmatprep.subr.bf16.mxu0 0
      %1070 = vmatpush1.bf16.msra.mxu0 0
      %1071 = vmatprep.mubr.bf16.mxu0 0
      %1072 = vmatmul.mubr.bf16.gmra.mrb[0].mxu0 %v992
      %v1073 = vpop.f32.mrb[0].mxu0
      %v1074 = vadd.f32 %v779, %v1073
      %v1075 = vpop.f32.mrb[0].mxu0
      %v1076 = vpop.f32.mrb[0].mxu0
      %v1077 = vadd.f32 %v782, %v1076
      %v1078 = vpop.f32.mrb[0].mxu0
      %1079 = vmatprep.mubr.bf16.mxu0 0
      %1080 = vmatmul.mubr.bf16.gmra.mrb[0].mxu0 %v995
      %v1081 = vpop.f32.mrb[0].mxu0
      %v1082 = vadd.f32 %v787, %v1081
      %v1083 = vpop.f32.mrb[0].mxu0
      %v1084 = vpop.f32.mrb[0].mxu0
      %v1085 = vadd.f32 %v790, %v1084
      %v1086 = vpop.f32.mrb[0].mxu0
      %1087 = vmatprep.mubr.bf16.mxu0 0
      %1088 = vmatmul.mubr.bf16.gmra.mrb[0].mxu0 %v998
      %v1089 = vpop.f32.mrb[0].mxu0
      %v1090 = vadd.f32 %v795, %v1089
      %v1091 = vpop.f32.mrb[0].mxu0
      %v1092 = vpop.f32.mrb[0].mxu0
      %v1093 = vadd.f32 %v798, %v1092
      %v1094 = vpop.f32.mrb[0].mxu0
      %1095 = vmatprep.mubr.bf16.mxu0 0
      %1096 = vmatmul.mubr.bf16.gmra.mrb[0].mxu0 %v1001
      %v1097 = vpop.f32.mrb[0].mxu0
      %v1098 = vadd.f32 %v803, %v1097
      %v1099 = vpop.f32.mrb[0].mxu0
      %v1100 = vpop.f32.mrb[0].mxu0
      %v1101 = vadd.f32 %v806, %v1100
      %v1102 = vpop.f32.mrb[0].mxu0
      %1103 = vmatprep.mubr.bf16.mxu0 0
      %1104 = vmatmul.mubr.bf16.gmra.mrb[0].mxu0 %v1004
      %v1105 = vpop.f32.mrb[0].mxu0
      %v1106 = vadd.f32 %v811, %v1105
      %v1107 = vpop.f32.mrb[0].mxu0
      %v1108 = vpop.f32.mrb[0].mxu0
      %v1109 = vadd.f32 %v814, %v1108
      %v1110 = vpop.f32.mrb[0].mxu0
      %1111 = vmatprep.mubr.bf16.mxu0 0
      %1112 = vmatmul.mubr.bf16.gmra.mrb[0].mxu0 %v1007
      %v1113 = vpop.f32.mrb[0].mxu0
      %v1114 = vadd.f32 %v819, %v1113
      %v1115 = vpop.f32.mrb[0].mxu0
      %v1116 = vpop.f32.mrb[0].mxu0
      %v1117 = vadd.f32 %v822, %v1116
      %v1118 = vpop.f32.mrb[0].mxu0
      %1119 = vmatprep.mubr.bf16.mxu0 0
      %1120 = vmatmul.mubr.bf16.gmra.mrb[0].mxu0 %v1010
      %v1121 = vpop.f32.mrb[0].mxu0
      %v1122 = vadd.f32 %v827, %v1121
      %v1123 = vpop.f32.mrb[0].mxu0
      %v1124 = vpop.f32.mrb[0].mxu0
      %v1125 = vadd.f32 %v830, %v1124
      %v1126 = vpop.f32.mrb[0].mxu0
      %1127 = vmatprep.mubr.bf16.mxu0 0
      %1128 = vmatmul.mubr.bf16.gmra.mrb[0].mxu0 %v1013
      %v1129 = vpop.f32.mrb[0].mxu0
      %v1130 = vadd.f32 %v835, %v1129
      %v1131 = vpop.f32.mrb[0].mxu0
      %v1132 = vpop.f32.mrb[0].mxu0
      %v1133 = vadd.f32 %v838, %v1132
      %v1134 = vpop.f32.mrb[0].mxu0
      %1135 = vmatprep.mubr.bf16.mxu0 0
      %1136 = vmatmul.mubr.bf16.gmra.mrb[0].mxu0 %v1016
      %v1137 = vpop.f32.mrb[0].mxu0
      %v1138 = vadd.f32 %v843, %v1137
      %v1139 = vpop.f32.mrb[0].mxu0
      %v1140 = vpop.f32.mrb[0].mxu0
      %v1141 = vadd.f32 %v846, %v1140
      %v1142 = vpop.f32.mrb[0].mxu0
      %1143 = vmatprep.mubr.bf16.mxu0 0
      %1144 = vmatmul.mubr.bf16.gmra.mrb[0].mxu0 %v1019
      %v1145 = vpop.f32.mrb[0].mxu0
      %v1146 = vadd.f32 %v851, %v1145
      %v1147 = vpop.f32.mrb[0].mxu0
      %v1148 = vpop.f32.mrb[0].mxu0
      %v1149 = vadd.f32 %v854, %v1148
      %v1150 = vpop.f32.mrb[0].mxu0
      %1151 = vmatprep.mubr.bf16.mxu0 0
      %1152 = vmatmul.mubr.bf16.gmra.mrb[0].mxu0 %v1022
      %v1153 = vpop.f32.mrb[0].mxu0
      %v1154 = vadd.f32 %v859, %v1153
      %v1155 = vpop.f32.mrb[0].mxu0
      %v1156 = vpop.f32.mrb[0].mxu0
      %v1157 = vadd.f32 %v862, %v1156
      %v1158 = vpop.f32.mrb[0].mxu0
      %1159 = vmatprep.mubr.bf16.mxu0 0
      %1160 = vmatmul.mubr.bf16.gmra.mrb[0].mxu0 %v1025
      %v1161 = vpop.f32.mrb[0].mxu0
      %v1162 = vadd.f32 %v867, %v1161
      %v1163 = vpop.f32.mrb[0].mxu0
      %v1164 = vpop.f32.mrb[0].mxu0
      %v1165 = vadd.f32 %v870, %v1164
      %v1166 = vpop.f32.mrb[0].mxu0
      %1167 = vmatprep.mubr.bf16.mxu0 0
      %1168 = vmatmul.mubr.bf16.gmra.mrb[0].mxu0 %v1028
      %v1169 = vpop.f32.mrb[0].mxu0
      %v1170 = vadd.f32 %v875, %v1169
      %v1171 = vpop.f32.mrb[0].mxu0
      %v1172 = vpop.f32.mrb[0].mxu0
      %v1173 = vadd.f32 %v878, %v1172
      %v1174 = vpop.f32.mrb[0].mxu0
      %1175 = vmatprep.mubr.bf16.mxu0 0
      %1176 = vmatmul.mubr.bf16.gmra.mrb[0].mxu0 %v1031
      %v1177 = vpop.f32.mrb[0].mxu0
      %v1178 = vadd.f32 %v883, %v1177
      %v1179 = vpop.f32.mrb[0].mxu0
      %v1180 = vpop.f32.mrb[0].mxu0
      %v1181 = vadd.f32 %v886, %v1180
      %v1182 = vpop.f32.mrb[0].mxu0
      %1183 = vmatprep.mubr.bf16.mxu0 0
      %1184 = vmatmul.mubr.bf16.gmra.mrb[0].mxu0 %v1034
      %v1185 = vpop.f32.mrb[0].mxu0
      %v1186 = vadd.f32 %v891, %v1185
      %v1187 = vpop.f32.mrb[0].mxu0
      %v1188 = vpop.f32.mrb[0].mxu0
      %v1189 = vadd.f32 %v894, %v1188
      %v1190 = vpop.f32.mrb[0].mxu0
      %1191 = vmatprep.mubr.bf16.mxu0 0
      %1192 = vmatmul.mubr.bf16.gmra.mrb[0].mxu0 %v1037
      %v1193 = vpop.f32.mrb[0].mxu0
      %v1194 = vadd.f32 %v899, %v1193
      %v1195 = vpop.f32.mrb[0].mxu0
      %v1196 = vpop.f32.mrb[0].mxu0
      %v1197 = vadd.f32 %v902, %v1196
      %v1198 = vpop.f32.mrb[0].mxu0
      %1199 = vdwg.mxu0
      %s1200 = sadd.s32 %s197, 1
      %s1201 = smul.u32 %s1200, 3
      %s1202 = smul.addr %s1201, 4
      %s1203 = scalar_lea.vmem %s184, %s1202
      %v1204 = vld [vmem:[%s1203] sm:$0xf]
      %v1205 = vld [vmem:[%s1203 + $0x4] sm:$0xf]
      %v1206 = vld [vmem:[%s1203 + $0xc] sm:$0xf]
      %v1207 = vld [vmem:[%s1203 + $0x10] sm:$0xf]
      %v1208 = vld [vmem:[%s1203 + $0x18] sm:$0xf]
      %v1209 = vld [vmem:[%s1203 + $0x1c] sm:$0xf]
      %v1210 = vld [vmem:[%s1203 + $0x24] sm:$0xf]
      %v1211 = vld [vmem:[%s1203 + $0x28] sm:$0xf]
      %v1212 = vld [vmem:[%s1203 + $0x30] sm:$0xf]
      %v1213 = vld [vmem:[%s1203 + $0x34] sm:$0xf]
      %v1214 = vld [vmem:[%s1203 + $0x3c] sm:$0xf]
      %v1215 = vld [vmem:[%s1203 + $0x40] sm:$0xf]
      %v1216 = vld [vmem:[%s1203 + $0x48] sm:$0xf]
      %v1217 = vld [vmem:[%s1203 + $0x4c] sm:$0xf]
      %v1218 = vld [vmem:[%s1203 + $0x54] sm:$0xf]
      %v1219 = vld [vmem:[%s1203 + $0x58] sm:$0xf]
      %v1220 = vld [vmem:[%s1203 + $0x60] sm:$0xf]
      %v1221 = vld [vmem:[%s1203 + $0x64] sm:$0xf]
      %v1222 = vld [vmem:[%s1203 + $0x6c] sm:$0xf]
      %v1223 = vld [vmem:[%s1203 + $0x70] sm:$0xf]
      %v1224 = vld [vmem:[%s1203 + $0x78] sm:$0xf]
      %v1225 = vld [vmem:[%s1203 + $0x7c] sm:$0xf]
      %v1226 = vld [vmem:[%s1203 + $0x84] sm:$0xf]
      %v1227 = vld [vmem:[%s1203 + $0x88] sm:$0xf]
      %v1228 = vld [vmem:[%s1203 + $0x90] sm:$0xf]
      %v1229 = vld [vmem:[%s1203 + $0x94] sm:$0xf]
      %v1230 = vld [vmem:[%s1203 + $0x9c] sm:$0xf]
      %v1231 = vld [vmem:[%s1203 + $0xa0] sm:$0xf]
      %v1232 = vld [vmem:[%s1203 + $0xa8] sm:$0xf]
      %v1233 = vld [vmem:[%s1203 + $0xac] sm:$0xf]
      %v1234 = vld [vmem:[%s1203 + $0xb4] sm:$0xf]
      %v1235 = vld [vmem:[%s1203 + $0xb8] sm:$0xf]
      %s1236 = scalar_lea.vmem %s1, 16
      %v1237 = vld [vmem:[%s1236] sm:$0xf]
      %v1238 = vld [vmem:[%s1236 + $0x4] sm:$0xf]
      %v1271 = vunpack.c.l.b16 %v1204
      %v1272 = vunpack.c.l.b16 %v1205
      %v1273 = vunpack.c.l.b16 %v1206
      %v1274 = vunpack.c.l.b16 %v1207
      %v1275 = vunpack.c.l.b16 %v1208
      %v1276 = vunpack.c.l.b16 %v1209
      %v1277 = vunpack.c.l.b16 %v1210
      %v1278 = vunpack.c.l.b16 %v1211
      %v1279 = vunpack.c.l.b16 %v1212
      %v1280 = vunpack.c.l.b16 %v1213
      %v1281 = vunpack.c.l.b16 %v1214
      %v1282 = vunpack.c.l.b16 %v1215
      %v1283 = vunpack.c.l.b16 %v1216
      %v1284 = vunpack.c.l.b16 %v1217
      %v1285 = vunpack.c.l.b16 %v1218
      %v1286 = vunpack.c.l.b16 %v1219
      %v1287 = vunpack.c.l.b16 %v1220
      %v1288 = vunpack.c.l.b16 %v1221
      %v1289 = vunpack.c.l.b16 %v1222
      %v1290 = vunpack.c.l.b16 %v1223
      %v1291 = vunpack.c.l.b16 %v1224
      %v1292 = vunpack.c.l.b16 %v1225
      %v1293 = vunpack.c.l.b16 %v1226
      %v1294 = vunpack.c.l.b16 %v1227
      %v1295 = vunpack.c.l.b16 %v1228
      %v1296 = vunpack.c.l.b16 %v1229
      %v1297 = vunpack.c.l.b16 %v1230
      %v1298 = vunpack.c.l.b16 %v1231
      %v1299 = vunpack.c.l.b16 %v1232
      %v1300 = vunpack.c.l.b16 %v1233
      %v1301 = vunpack.c.l.b16 %v1234
      %v1302 = vunpack.c.l.b16 %v1235
      %v1303 = vpack.c.b16 %v1272, %v1271
      %v1304 = vpack.c.b16 %v1274, %v1273
      %v1305 = vpack.c.b16 %v1276, %v1275
      %v1306 = vpack.c.b16 %v1278, %v1277
      %v1307 = vpack.c.b16 %v1280, %v1279
      %v1308 = vpack.c.b16 %v1282, %v1281
      %v1309 = vpack.c.b16 %v1284, %v1283
      %v1310 = vpack.c.b16 %v1286, %v1285
      %v1311 = vpack.c.b16 %v1288, %v1287
      %v1312 = vpack.c.b16 %v1290, %v1289
      %v1313 = vpack.c.b16 %v1292, %v1291
      %v1314 = vpack.c.b16 %v1294, %v1293
      %v1315 = vpack.c.b16 %v1296, %v1295
      %v1316 = vpack.c.b16 %v1298, %v1297
      %v1317 = vpack.c.b16 %v1300, %v1299
      %v1318 = vpack.c.b16 %v1302, %v1301
      %v1321 = vunpack.c.l.b16 %v1237
      %v1322 = vunpack.c.l.b16 %v1238
      %v1323 = vpack.c.b16 %v1322, %v1321
      %v1326 = vsel %vm695, %v1303, 0
      %v1329 = vsel %vm695, %v1304, 0
      %v1332 = vsel %vm695, %v1305, 0
      %v1335 = vsel %vm695, %v1306, 0
      %v1338 = vsel %vm695, %v1307, 0
      %v1341 = vsel %vm695, %v1308, 0
      %v1344 = vsel %vm695, %v1309, 0
      %v1347 = vsel %vm695, %v1310, 0
      %v1350 = vsel %vm695, %v1311, 0
      %v1353 = vsel %vm695, %v1312, 0
      %v1356 = vsel %vm695, %v1313, 0
      %v1359 = vsel %vm695, %v1314, 0
      %v1362 = vsel %vm695, %v1315, 0
      %v1365 = vsel %vm695, %v1316, 0
      %v1368 = vsel %vm695, %v1317, 0
      %v1371 = vsel %vm695, %v1318, 0
      %1373 = vmatprep.subr.bf16.mxu0 0
      %1374 = vmatpush1.bf16.msra.mxu0 %v1323
      %1375 = vmatprep.subr.bf16.mxu0 0
      %1376 = vmatpush1.bf16.msra.mxu0 0
      %1377 = vmatprep.subr.bf16.mxu0 0
      %1378 = vmatpush1.bf16.msra.mxu0 0
      %1379 = vmatprep.subr.bf16.mxu0 0
      %1380 = vmatpush1.bf16.msra.mxu0 0
      %1381 = vmatprep.subr.bf16.mxu0 0
      %1382 = vmatpush1.bf16.msra.mxu0 0
      %1383 = vmatprep.subr.bf16.mxu0 0
      %1384 = vmatpush1.bf16.msra.mxu0 0
      %1385 = vmatprep.subr.bf16.mxu0 0
      %1386 = vmatpush1.bf16.msra.mxu0 0
      %1387 = vmatprep.subr.bf16.mxu0 0
      %1388 = vmatpush1.bf16.msra.mxu0 0
      %1389 = vmatprep.subr.bf16.mxu0 0
      %1390 = vmatpush1.bf16.msra.mxu0 0
      %1391 = vmatprep.subr.bf16.mxu0 0
      %1392 = vmatpush1.bf16.msra.mxu0 0
      %1393 = vmatprep.subr.bf16.mxu0 0
      %1394 = vmatpush1.bf16.msra.mxu0 0
      %1395 = vmatprep.subr.bf16.mxu0 0
      %1396 = vmatpush1.bf16.msra.mxu0 0
      %1397 = vmatprep.subr.bf16.mxu0 0
      %1398 = vmatpush1.bf16.msra.mxu0 0
      %1399 = vmatprep.subr.bf16.mxu0 0
      %1400 = vmatpush1.bf16.msra.mxu0 0
      %1401 = vmatprep.subr.bf16.mxu0 0
      %1402 = vmatpush1.bf16.msra.mxu0 0
      %1403 = vmatprep.subr.bf16.mxu0 0
      %1404 = vmatpush1.bf16.msra.mxu0 0
      %1405 = vmatprep.mubr.bf16.mxu0 0
      %1406 = vmatmul.mubr.bf16.gmra.mrb[0].mxu0 %v1326
      %v1407 = vpop.f32.mrb[0].mxu0
      %v1408 = vadd.f32 0.0, %v1407
      %v1409 = vpop.f32.mrb[0].mxu0
      %v1410 = vpop.f32.mrb[0].mxu0
      %v1411 = vadd.f32 0.0, %v1410
      %v1412 = vpop.f32.mrb[0].mxu0
      %1413 = vmatprep.mubr.bf16.mxu0 0
      %1414 = vmatmul.mubr.bf16.gmra.mrb[0].mxu0 %v1329
      %v1415 = vpop.f32.mrb[0].mxu0
      %v1416 = vadd.f32 0.0, %v1415
      %v1417 = vpop.f32.mrb[0].mxu0
      %v1418 = vpop.f32.mrb[0].mxu0
      %v1419 = vadd.f32 0.0, %v1418
      %v1420 = vpop.f32.mrb[0].mxu0
      %1421 = vmatprep.mubr.bf16.mxu0 0
      %1422 = vmatmul.mubr.bf16.gmra.mrb[0].mxu0 %v1332
      %v1423 = vpop.f32.mrb[0].mxu0
      %v1424 = vadd.f32 0.0, %v1423
      %v1425 = vpop.f32.mrb[0].mxu0
      %v1426 = vpop.f32.mrb[0].mxu0
      %v1427 = vadd.f32 0.0, %v1426
      %v1428 = vpop.f32.mrb[0].mxu0
      %1429 = vmatprep.mubr.bf16.mxu0 0
      %1430 = vmatmul.mubr.bf16.gmra.mrb[0].mxu0 %v1335
      %v1431 = vpop.f32.mrb[0].mxu0
      %v1432 = vadd.f32 0.0, %v1431
      %v1433 = vpop.f32.mrb[0].mxu0
      %v1434 = vpop.f32.mrb[0].mxu0
      %v1435 = vadd.f32 0.0, %v1434
      %v1436 = vpop.f32.mrb[0].mxu0
      %1437 = vmatprep.mubr.bf16.mxu0 0
      %1438 = vmatmul.mubr.bf16.gmra.mrb[0].mxu0 %v1338
      %v1439 = vpop.f32.mrb[0].mxu0
      %v1440 = vadd.f32 0.0, %v1439
      %v1441 = vpop.f32.mrb[0].mxu0
      %v1442 = vpop.f32.mrb[0].mxu0
      %v1443 = vadd.f32 0.0, %v1442
      %v1444 = vpop.f32.mrb[0].mxu0
      %1445 = vmatprep.mubr.bf16.mxu0 0
      %1446 = vmatmul.mubr.bf16.gmra.mrb[0].mxu0 %v1341
      %v1447 = vpop.f32.mrb[0].mxu0
      %v1448 = vadd.f32 0.0, %v1447
      %v1449 = vpop.f32.mrb[0].mxu0
      %v1450 = vpop.f32.mrb[0].mxu0
      %v1451 = vadd.f32 0.0, %v1450
      %v1452 = vpop.f32.mrb[0].mxu0
      %1453 = vmatprep.mubr.bf16.mxu0 0
      %1454 = vmatmul.mubr.bf16.gmra.mrb[0].mxu0 %v1344
      %v1455 = vpop.f32.mrb[0].mxu0
      %v1456 = vadd.f32 0.0, %v1455
      %v1457 = vpop.f32.mrb[0].mxu0
      %v1458 = vpop.f32.mrb[0].mxu0
      %v1459 = vadd.f32 0.0, %v1458
      %v1460 = vpop.f32.mrb[0].mxu0
      %1461 = vmatprep.mubr.bf16.mxu0 0
      %1462 = vmatmul.mubr.bf16.gmra.mrb[0].mxu0 %v1347
      %v1463 = vpop.f32.mrb[0].mxu0
      %v1464 = vadd.f32 0.0, %v1463
      %v1465 = vpop.f32.mrb[0].mxu0
      %v1466 = vpop.f32.mrb[0].mxu0
      %v1467 = vadd.f32 0.0, %v1466
      %v1468 = vpop.f32.mrb[0].mxu0
      %1469 = vmatprep.mubr.bf16.mxu0 0
      %1470 = vmatmul.mubr.bf16.gmra.mrb[0].mxu0 %v1350
      %v1471 = vpop.f32.mrb[0].mxu0
      %v1472 = vadd.f32 0.0, %v1471
      %v1473 = vpop.f32.mrb[0].mxu0
      %v1474 = vpop.f32.mrb[0].mxu0
      %v1475 = vadd.f32 0.0, %v1474
      %v1476 = vpop.f32.mrb[0].mxu0
      %1477 = vmatprep.mubr.bf16.mxu0 0
      %1478 = vmatmul.mubr.bf16.gmra.mrb[0].mxu0 %v1353
      %v1479 = vpop.f32.mrb[0].mxu0
      %v1480 = vadd.f32 0.0, %v1479
      %v1481 = vpop.f32.mrb[0].mxu0
      %v1482 = vpop.f32.mrb[0].mxu0
      %v1483 = vadd.f32 0.0, %v1482
      %v1484 = vpop.f32.mrb[0].mxu0
      %1485 = vmatprep.mubr.bf16.mxu0 0
      %1486 = vmatmul.mubr.bf16.gmra.mrb[0].mxu0 %v1356
      %v1487 = vpop.f32.mrb[0].mxu0
      %v1488 = vadd.f32 0.0, %v1487
      %v1489 = vpop.f32.mrb[0].mxu0
      %v1490 = vpop.f32.mrb[0].mxu0
      %v1491 = vadd.f32 0.0, %v1490
      %v1492 = vpop.f32.mrb[0].mxu0
      %1493 = vmatprep.mubr.bf16.mxu0 0
      %1494 = vmatmul.mubr.bf16.gmra.mrb[0].mxu0 %v1359
      %v1495 = vpop.f32.mrb[0].mxu0
      %v1496 = vadd.f32 0.0, %v1495
      %v1497 = vpop.f32.mrb[0].mxu0
      %v1498 = vpop.f32.mrb[0].mxu0
      %v1499 = vadd.f32 0.0, %v1498
      %v1500 = vpop.f32.mrb[0].mxu0
      %1501 = vmatprep.mubr.bf16.mxu0 0
      %1502 = vmatmul.mubr.bf16.gmra.mrb[0].mxu0 %v1362
      %v1503 = vpop.f32.mrb[0].mxu0
      %v1504 = vadd.f32 0.0, %v1503
      %v1505 = vpop.f32.mrb[0].mxu0
      %v1506 = vpop.f32.mrb[0].mxu0
      %v1507 = vadd.f32 0.0, %v1506
      %v1508 = vpop.f32.mrb[0].mxu0
      %1509 = vmatprep.mubr.bf16.mxu0 0
      %1510 = vmatmul.mubr.bf16.gmra.mrb[0].mxu0 %v1365
      %v1511 = vpop.f32.mrb[0].mxu0
      %v1512 = vadd.f32 0.0, %v1511
      %v1513 = vpop.f32.mrb[0].mxu0
      %v1514 = vpop.f32.mrb[0].mxu0
      %v1515 = vadd.f32 0.0, %v1514
      %v1516 = vpop.f32.mrb[0].mxu0
      %1517 = vmatprep.mubr.bf16.mxu0 0
      %1518 = vmatmul.mubr.bf16.gmra.mrb[0].mxu0 %v1368
      %v1519 = vpop.f32.mrb[0].mxu0
      %v1520 = vadd.f32 0.0, %v1519
      %v1521 = vpop.f32.mrb[0].mxu0
      %v1522 = vpop.f32.mrb[0].mxu0
      %v1523 = vadd.f32 0.0, %v1522
      %v1524 = vpop.f32.mrb[0].mxu0
      %1525 = vmatprep.mubr.bf16.mxu0 0
      %1526 = vmatmul.mubr.bf16.gmra.mrb[0].mxu0 %v1371
      %v1527 = vpop.f32.mrb[0].mxu0
      %v1528 = vadd.f32 0.0, %v1527
      %v1529 = vpop.f32.mrb[0].mxu0
      %v1530 = vpop.f32.mrb[0].mxu0
      %v1531 = vadd.f32 0.0, %v1530
      %v1532 = vpop.f32.mrb[0].mxu0
      %1533 = vdwg.mxu0
      %v1534 = vadd.f32 %v1074, %v1408
      %v1535 = vadd.f32 %v1077, %v1411
      %v1536 = vadd.f32 %v1082, %v1416
      %v1537 = vadd.f32 %v1085, %v1419
      %v1538 = vadd.f32 %v1090, %v1424
      %v1539 = vadd.f32 %v1093, %v1427
      %v1540 = vadd.f32 %v1098, %v1432
      %v1541 = vadd.f32 %v1101, %v1435
      %v1542 = vadd.f32 %v1106, %v1440
      %v1543 = vadd.f32 %v1109, %v1443
      %v1544 = vadd.f32 %v1114, %v1448
      %v1545 = vadd.f32 %v1117, %v1451
      %v1546 = vadd.f32 %v1122, %v1456
      %v1547 = vadd.f32 %v1125, %v1459
      %v1548 = vadd.f32 %v1130, %v1464
      %v1549 = vadd.f32 %v1133, %v1467
      %v1550 = vadd.f32 %v1138, %v1472
      %v1551 = vadd.f32 %v1141, %v1475
      %v1552 = vadd.f32 %v1146, %v1480
      %v1553 = vadd.f32 %v1149, %v1483
      %v1554 = vadd.f32 %v1154, %v1488
      %v1555 = vadd.f32 %v1157, %v1491
      %v1556 = vadd.f32 %v1162, %v1496
      %v1557 = vadd.f32 %v1165, %v1499
      %v1558 = vadd.f32 %v1170, %v1504
      %v1559 = vadd.f32 %v1173, %v1507
      %v1560 = vadd.f32 %v1178, %v1512
      %v1561 = vadd.f32 %v1181, %v1515
      %v1562 = vadd.f32 %v1186, %v1520
      %v1563 = vadd.f32 %v1189, %v1523
      %v1564 = vadd.f32 %v1194, %v1528
      %v1565 = vadd.f32 %v1197, %v1531
      %v1566 = vld [vmem:[%s1203] sm:$0xf]
      %v1567 = vld [vmem:[%s1203 + $0x4] sm:$0xf]
      %v1568 = vld [vmem:[%s1203 + $0x8] sm:$0x1]
      %v1569 = vld [vmem:[%s1203 + $0xc] sm:$0xf]
      %v1570 = vld [vmem:[%s1203 + $0x10] sm:$0xf]
      %v1571 = vld [vmem:[%s1203 + $0x14] sm:$0x1]
      %v1572 = vld [vmem:[%s1203 + $0x18] sm:$0xf]
      %v1573 = vld [vmem:[%s1203 + $0x1c] sm:$0xf]
      %v1574 = vld [vmem:[%s1203 + $0x20] sm:$0x1]
      %v1575 = vld [vmem:[%s1203 + $0x24] sm:$0xf]
      %v1576 = vld [vmem:[%s1203 + $0x28] sm:$0xf]
      %v1577 = vld [vmem:[%s1203 + $0x2c] sm:$0x1]
      %v1578 = vld [vmem:[%s1203 + $0x30] sm:$0xf]
      %v1579 = vld [vmem:[%s1203 + $0x34] sm:$0xf]
      %v1580 = vld [vmem:[%s1203 + $0x38] sm:$0x1]
      %v1581 = vld [vmem:[%s1203 + $0x3c] sm:$0xf]
      %v1582 = vld [vmem:[%s1203 + $0x40] sm:$0xf]
      %v1583 = vld [vmem:[%s1203 + $0x44] sm:$0x1]
      %v1584 = vld [vmem:[%s1203 + $0x48] sm:$0xf]
      %v1585 = vld [vmem:[%s1203 + $0x4c] sm:$0xf]
      %v1586 = vld [vmem:[%s1203 + $0x50] sm:$0x1]
      %v1587 = vld [vmem:[%s1203 + $0x54] sm:$0xf]
      %v1588 = vld [vmem:[%s1203 + $0x58] sm:$0xf]
      %v1589 = vld [vmem:[%s1203 + $0x5c] sm:$0x1]
      %v1590 = vld [vmem:[%s1203 + $0x60] sm:$0xf]
      %v1591 = vld [vmem:[%s1203 + $0x64] sm:$0xf]
      %v1592 = vld [vmem:[%s1203 + $0x68] sm:$0x1]
      %v1593 = vld [vmem:[%s1203 + $0x6c] sm:$0xf]
      %v1594 = vld [vmem:[%s1203 + $0x70] sm:$0xf]
      %v1595 = vld [vmem:[%s1203 + $0x74] sm:$0x1]
      %v1596 = vld [vmem:[%s1203 + $0x78] sm:$0xf]
      %v1597 = vld [vmem:[%s1203 + $0x7c] sm:$0xf]
      %v1598 = vld [vmem:[%s1203 + $0x80] sm:$0x1]
      %v1599 = vld [vmem:[%s1203 + $0x84] sm:$0xf]
      %v1600 = vld [vmem:[%s1203 + $0x88] sm:$0xf]
      %v1601 = vld [vmem:[%s1203 + $0x8c] sm:$0x1]
      %v1602 = vld [vmem:[%s1203 + $0x90] sm:$0xf]
      %v1603 = vld [vmem:[%s1203 + $0x94] sm:$0xf]
      %v1604 = vld [vmem:[%s1203 + $0x98] sm:$0x1]
      %v1605 = vld [vmem:[%s1203 + $0x9c] sm:$0xf]
      %v1606 = vld [vmem:[%s1203 + $0xa0] sm:$0xf]
      %v1607 = vld [vmem:[%s1203 + $0xa4] sm:$0x1]
      %v1608 = vld [vmem:[%s1203 + $0xa8] sm:$0xf]
      %v1609 = vld [vmem:[%s1203 + $0xac] sm:$0xf]
      %v1610 = vld [vmem:[%s1203 + $0xb0] sm:$0x1]
      %v1611 = vld [vmem:[%s1203 + $0xb4] sm:$0xf]
      %v1612 = vld [vmem:[%s1203 + $0xb8] sm:$0xf]
      %v1613 = vld [vmem:[%s1203 + $0xbc] sm:$0x1]
      %v1615 = vshrl.u32 %v1566, 16
      %v1617 = vrot.slane %v1615, 4
      %v1618 = vshll.u32 %v1566, 16
      %v1620 = vrot.slane %v1618, 5
      %v1621 = vor.u32 %v1617, %v1620
      %v1622 = vrot.slane %v1621, 4
      %v1624 = vshll.u32 %v1567, 16
      %v1626 = vrot.slane %v1624, 5
      %v1627 = vsel %vm253, %v1622, %v1626
      %v1628 = vshrl.u32 %v1567, 16
      %v1630 = vrot.slane %v1628, 4
      %v1631 = vor.u32 %v1630, %v1626
      %v1632 = vrot.slane %v1631, 4
      %v1634 = vshll.u32 %v1568, 16
      %v1636 = vrot.slane %v1634, 5
      %v1637 = vsel %vm253, %v1632, %v1636
      %v1639 = vshrl.u32 %v1569, 16
      %v1641 = vrot.slane %v1639, 4
      %v1642 = vshll.u32 %v1569, 16
      %v1644 = vrot.slane %v1642, 5
      %v1645 = vor.u32 %v1641, %v1644
      %v1646 = vrot.slane %v1645, 4
      %v1648 = vshll.u32 %v1570, 16
      %v1650 = vrot.slane %v1648, 5
      %v1651 = vsel %vm253, %v1646, %v1650
      %v1652 = vshrl.u32 %v1570, 16
      %v1654 = vrot.slane %v1652, 4
      %v1655 = vor.u32 %v1654, %v1650
      %v1656 = vrot.slane %v1655, 4
      %v1658 = vshll.u32 %v1571, 16
      %v1660 = vrot.slane %v1658, 5
      %v1661 = vsel %vm253, %v1656, %v1660
      %v1663 = vshrl.u32 %v1572, 16
      %v1665 = vrot.slane %v1663, 4
      %v1666 = vshll.u32 %v1572, 16
      %v1668 = vrot.slane %v1666, 5
      %v1669 = vor.u32 %v1665, %v1668
      %v1670 = vrot.slane %v1669, 4
      %v1672 = vshll.u32 %v1573, 16
      %v1674 = vrot.slane %v1672, 5
      %v1675 = vsel %vm253, %v1670, %v1674
      %v1676 = vshrl.u32 %v1573, 16
      %v1678 = vrot.slane %v1676, 4
      %v1679 = vor.u32 %v1678, %v1674
      %v1680 = vrot.slane %v1679, 4
      %v1682 = vshll.u32 %v1574, 16
      %v1684 = vrot.slane %v1682, 5
      %v1685 = vsel %vm253, %v1680, %v1684
      %v1687 = vshrl.u32 %v1575, 16
      %v1689 = vrot.slane %v1687, 4
      %v1690 = vshll.u32 %v1575, 16
      %v1692 = vrot.slane %v1690, 5
      %v1693 = vor.u32 %v1689, %v1692
      %v1694 = vrot.slane %v1693, 4
      %v1696 = vshll.u32 %v1576, 16
      %v1698 = vrot.slane %v1696, 5
      %v1699 = vsel %vm253, %v1694, %v1698
      %v1700 = vshrl.u32 %v1576, 16
      %v1702 = vrot.slane %v1700, 4
      %v1703 = vor.u32 %v1702, %v1698
      %v1704 = vrot.slane %v1703, 4
      %v1706 = vshll.u32 %v1577, 16
      %v1708 = vrot.slane %v1706, 5
      %v1709 = vsel %vm253, %v1704, %v1708
      %v1711 = vshrl.u32 %v1578, 16
      %v1713 = vrot.slane %v1711, 4
      %v1714 = vshll.u32 %v1578, 16
      %v1716 = vrot.slane %v1714, 5
      %v1717 = vor.u32 %v1713, %v1716
      %v1718 = vrot.slane %v1717, 4
      %v1720 = vshll.u32 %v1579, 16
      %v1722 = vrot.slane %v1720, 5
      %v1723 = vsel %vm253, %v1718, %v1722
      %v1724 = vshrl.u32 %v1579, 16
      %v1726 = vrot.slane %v1724, 4
      %v1727 = vor.u32 %v1726, %v1722
      %v1728 = vrot.slane %v1727, 4
      %v1730 = vshll.u32 %v1580, 16
      %v1732 = vrot.slane %v1730, 5
      %v1733 = vsel %vm253, %v1728, %v1732
      %v1735 = vshrl.u32 %v1581, 16
      %v1737 = vrot.slane %v1735, 4
      %v1738 = vshll.u32 %v1581, 16
      %v1740 = vrot.slane %v1738, 5
      %v1741 = vor.u32 %v1737, %v1740
      %v1742 = vrot.slane %v1741, 4
      %v1744 = vshll.u32 %v1582, 16
      %v1746 = vrot.slane %v1744, 5
      %v1747 = vsel %vm253, %v1742, %v1746
      %v1748 = vshrl.u32 %v1582, 16
      %v1750 = vrot.slane %v1748, 4
      %v1751 = vor.u32 %v1750, %v1746
      %v1752 = vrot.slane %v1751, 4
      %v1754 = vshll.u32 %v1583, 16
      %v1756 = vrot.slane %v1754, 5
      %v1757 = vsel %vm253, %v1752, %v1756
      %v1759 = vshrl.u32 %v1584, 16
      %v1761 = vrot.slane %v1759, 4
      %v1762 = vshll.u32 %v1584, 16
      %v1764 = vrot.slane %v1762, 5
      %v1765 = vor.u32 %v1761, %v1764
      %v1766 = vrot.slane %v1765, 4
      %v1768 = vshll.u32 %v1585, 16
      %v1770 = vrot.slane %v1768, 5
      %v1771 = vsel %vm253, %v1766, %v1770
      %v1772 = vshrl.u32 %v1585, 16
      %v1774 = vrot.slane %v1772, 4
      %v1775 = vor.u32 %v1774, %v1770
      %v1776 = vrot.slane %v1775, 4
      %v1778 = vshll.u32 %v1586, 16
      %v1780 = vrot.slane %v1778, 5
      %v1781 = vsel %vm253, %v1776, %v1780
      %v1783 = vshrl.u32 %v1587, 16
      %v1785 = vrot.slane %v1783, 4
      %v1786 = vshll.u32 %v1587, 16
      %v1788 = vrot.slane %v1786, 5
      %v1789 = vor.u32 %v1785, %v1788
      %v1790 = vrot.slane %v1789, 4
      %v1792 = vshll.u32 %v1588, 16
      %v1794 = vrot.slane %v1792, 5
      %v1795 = vsel %vm253, %v1790, %v1794
      %v1796 = vshrl.u32 %v1588, 16
      %v1798 = vrot.slane %v1796, 4
      %v1799 = vor.u32 %v1798, %v1794
      %v1800 = vrot.slane %v1799, 4
      %v1802 = vshll.u32 %v1589, 16
      %v1804 = vrot.slane %v1802, 5
      %v1805 = vsel %vm253, %v1800, %v1804
      %v1807 = vshrl.u32 %v1590, 16
      %v1809 = vrot.slane %v1807, 4
      %v1810 = vshll.u32 %v1590, 16
      %v1812 = vrot.slane %v1810, 5
      %v1813 = vor.u32 %v1809, %v1812
      %v1814 = vrot.slane %v1813, 4
      %v1816 = vshll.u32 %v1591, 16
      %v1818 = vrot.slane %v1816, 5
      %v1819 = vsel %vm253, %v1814, %v1818
      %v1820 = vshrl.u32 %v1591, 16
      %v1822 = vrot.slane %v1820, 4
      %v1823 = vor.u32 %v1822, %v1818
      %v1824 = vrot.slane %v1823, 4
      %v1826 = vshll.u32 %v1592, 16
      %v1828 = vrot.slane %v1826, 5
      %v1829 = vsel %vm253, %v1824, %v1828
      %v1831 = vshrl.u32 %v1593, 16
      %v1833 = vrot.slane %v1831, 4
      %v1834 = vshll.u32 %v1593, 16
      %v1836 = vrot.slane %v1834, 5
      %v1837 = vor.u32 %v1833, %v1836
      %v1838 = vrot.slane %v1837, 4
      %v1840 = vshll.u32 %v1594, 16
      %v1842 = vrot.slane %v1840, 5
      %v1843 = vsel %vm253, %v1838, %v1842
      %v1844 = vshrl.u32 %v1594, 16
      %v1846 = vrot.slane %v1844, 4
      %v1847 = vor.u32 %v1846, %v1842
      %v1848 = vrot.slane %v1847, 4
      %v1850 = vshll.u32 %v1595, 16
      %v1852 = vrot.slane %v1850, 5
      %v1853 = vsel %vm253, %v1848, %v1852
      %v1855 = vshrl.u32 %v1596, 16
      %v1857 = vrot.slane %v1855, 4
      %v1858 = vshll.u32 %v1596, 16
      %v1860 = vrot.slane %v1858, 5
      %v1861 = vor.u32 %v1857, %v1860
      %v1862 = vrot.slane %v1861, 4
      %v1864 = vshll.u32 %v1597, 16
      %v1866 = vrot.slane %v1864, 5
      %v1867 = vsel %vm253, %v1862, %v1866
      %v1868 = vshrl.u32 %v1597, 16
      %v1870 = vrot.slane %v1868, 4
      %v1871 = vor.u32 %v1870, %v1866
      %v1872 = vrot.slane %v1871, 4
      %v1874 = vshll.u32 %v1598, 16
      %v1876 = vrot.slane %v1874, 5
      %v1877 = vsel %vm253, %v1872, %v1876
      %v1879 = vshrl.u32 %v1599, 16
      %v1881 = vrot.slane %v1879, 4
      %v1882 = vshll.u32 %v1599, 16
      %v1884 = vrot.slane %v1882, 5
      %v1885 = vor.u32 %v1881, %v1884
      %v1886 = vrot.slane %v1885, 4
      %v1888 = vshll.u32 %v1600, 16
      %v1890 = vrot.slane %v1888, 5
      %v1891 = vsel %vm253, %v1886, %v1890
      %v1892 = vshrl.u32 %v1600, 16
      %v1894 = vrot.slane %v1892, 4
      %v1895 = vor.u32 %v1894, %v1890
      %v1896 = vrot.slane %v1895, 4
      %v1898 = vshll.u32 %v1601, 16
      %v1900 = vrot.slane %v1898, 5
      %v1901 = vsel %vm253, %v1896, %v1900
      %v1903 = vshrl.u32 %v1602, 16
      %v1905 = vrot.slane %v1903, 4
      %v1906 = vshll.u32 %v1602, 16
      %v1908 = vrot.slane %v1906, 5
      %v1909 = vor.u32 %v1905, %v1908
      %v1910 = vrot.slane %v1909, 4
      %v1912 = vshll.u32 %v1603, 16
      %v1914 = vrot.slane %v1912, 5
      %v1915 = vsel %vm253, %v1910, %v1914
      %v1916 = vshrl.u32 %v1603, 16
      %v1918 = vrot.slane %v1916, 4
      %v1919 = vor.u32 %v1918, %v1914
      %v1920 = vrot.slane %v1919, 4
      %v1922 = vshll.u32 %v1604, 16
      %v1924 = vrot.slane %v1922, 5
      %v1925 = vsel %vm253, %v1920, %v1924
      %v1927 = vshrl.u32 %v1605, 16
      %v1929 = vrot.slane %v1927, 4
      %v1930 = vshll.u32 %v1605, 16
      %v1932 = vrot.slane %v1930, 5
      %v1933 = vor.u32 %v1929, %v1932
      %v1934 = vrot.slane %v1933, 4
      %v1936 = vshll.u32 %v1606, 16
      %v1938 = vrot.slane %v1936, 5
      %v1939 = vsel %vm253, %v1934, %v1938
      %v1940 = vshrl.u32 %v1606, 16
      %v1942 = vrot.slane %v1940, 4
      %v1943 = vor.u32 %v1942, %v1938
      %v1944 = vrot.slane %v1943, 4
      %v1946 = vshll.u32 %v1607, 16
      %v1948 = vrot.slane %v1946, 5
      %v1949 = vsel %vm253, %v1944, %v1948
      %v1951 = vshrl.u32 %v1608, 16
      %v1953 = vrot.slane %v1951, 4
      %v1954 = vshll.u32 %v1608, 16
      %v1956 = vrot.slane %v1954, 5
      %v1957 = vor.u32 %v1953, %v1956
      %v1958 = vrot.slane %v1957, 4
      %v1960 = vshll.u32 %v1609, 16
      %v1962 = vrot.slane %v1960, 5
      %v1963 = vsel %vm253, %v1958, %v1962
      %v1964 = vshrl.u32 %v1609, 16
      %v1966 = vrot.slane %v1964, 4
      %v1967 = vor.u32 %v1966, %v1962
      %v1968 = vrot.slane %v1967, 4
      %v1970 = vshll.u32 %v1610, 16
      %v1972 = vrot.slane %v1970, 5
      %v1973 = vsel %vm253, %v1968, %v1972
      %v1975 = vshrl.u32 %v1611, 16
      %v1977 = vrot.slane %v1975, 4
      %v1978 = vshll.u32 %v1611, 16
      %v1980 = vrot.slane %v1978, 5
      %v1981 = vor.u32 %v1977, %v1980
      %v1982 = vrot.slane %v1981, 4
      %v1984 = vshll.u32 %v1612, 16
      %v1986 = vrot.slane %v1984, 5
      %v1987 = vsel %vm253, %v1982, %v1986
      %v1988 = vshrl.u32 %v1612, 16
      %v1990 = vrot.slane %v1988, 4
      %v1991 = vor.u32 %v1990, %v1986
      %v1992 = vrot.slane %v1991, 4
      %v1994 = vshll.u32 %v1613, 16
      %v1996 = vrot.slane %v1994, 5
      %v1997 = vsel %vm253, %v1992, %v1996
      %s1998 = scalar_lea.vmem %s1, 24
      %v1999 = vld [vmem:[%s1998] sm:$0xf]
      %v2000 = vld [vmem:[%s1998 + $0x4] sm:$0xf]
      %v2001 = vunpack.c.l.b16 %v1627
      %v2002 = vunpack.c.l.b16 %v1637
      %v2003 = vunpack.c.l.b16 %v1651
      %v2004 = vunpack.c.l.b16 %v1661
      %v2005 = vunpack.c.l.b16 %v1675
      %v2006 = vunpack.c.l.b16 %v1685
      %v2007 = vunpack.c.l.b16 %v1699
      %v2008 = vunpack.c.l.b16 %v1709
      %v2009 = vunpack.c.l.b16 %v1723
      %v2010 = vunpack.c.l.b16 %v1733
      %v2011 = vunpack.c.l.b16 %v1747
      %v2012 = vunpack.c.l.b16 %v1757
      %v2013 = vunpack.c.l.b16 %v1771
      %v2014 = vunpack.c.l.b16 %v1781
      %v2015 = vunpack.c.l.b16 %v1795
      %v2016 = vunpack.c.l.b16 %v1805
      %v2017 = vunpack.c.l.b16 %v1819
      %v2018 = vunpack.c.l.b16 %v1829
      %v2019 = vunpack.c.l.b16 %v1843
      %v2020 = vunpack.c.l.b16 %v1853
      %v2021 = vunpack.c.l.b16 %v1867
      %v2022 = vunpack.c.l.b16 %v1877
      %v2023 = vunpack.c.l.b16 %v1891
      %v2024 = vunpack.c.l.b16 %v1901
      %v2025 = vunpack.c.l.b16 %v1915
      %v2026 = vunpack.c.l.b16 %v1925
      %v2027 = vunpack.c.l.b16 %v1939
      %v2028 = vunpack.c.l.b16 %v1949
      %v2029 = vunpack.c.l.b16 %v1963
      %v2030 = vunpack.c.l.b16 %v1973
      %v2031 = vunpack.c.l.b16 %v1987
      %v2032 = vunpack.c.l.b16 %v1997
      %v2033 = vpack.c.b16 %v2002, %v2001
      %v2034 = vpack.c.b16 %v2004, %v2003
      %v2035 = vpack.c.b16 %v2006, %v2005
      %v2036 = vpack.c.b16 %v2008, %v2007
      %v2037 = vpack.c.b16 %v2010, %v2009
      %v2038 = vpack.c.b16 %v2012, %v2011
      %v2039 = vpack.c.b16 %v2014, %v2013
      %v2040 = vpack.c.b16 %v2016, %v2015
      %v2041 = vpack.c.b16 %v2018, %v2017
      %v2042 = vpack.c.b16 %v2020, %v2019
      %v2043 = vpack.c.b16 %v2022, %v2021
      %v2044 = vpack.c.b16 %v2024, %v2023
      %v2045 = vpack.c.b16 %v2026, %v2025
      %v2046 = vpack.c.b16 %v2028, %v2027
      %v2047 = vpack.c.b16 %v2030, %v2029
      %v2048 = vpack.c.b16 %v2032, %v2031
      %v2051 = vunpack.c.l.b16 %v1999
      %v2052 = vunpack.c.l.b16 %v2000
      %v2053 = vpack.c.b16 %v2052, %v2051
      %v2056 = vsel %vm695, %v2033, 0
      %v2059 = vsel %vm695, %v2034, 0
      %v2062 = vsel %vm695, %v2035, 0
      %v2065 = vsel %vm695, %v2036, 0
      %v2068 = vsel %vm695, %v2037, 0
      %v2071 = vsel %vm695, %v2038, 0
      %v2074 = vsel %vm695, %v2039, 0
      %v2077 = vsel %vm695, %v2040, 0
      %v2080 = vsel %vm695, %v2041, 0
      %v2083 = vsel %vm695, %v2042, 0
      %v2086 = vsel %vm695, %v2043, 0
      %v2089 = vsel %vm695, %v2044, 0
      %v2092 = vsel %vm695, %v2045, 0
      %v2095 = vsel %vm695, %v2046, 0
      %v2098 = vsel %vm695, %v2047, 0
      %v2101 = vsel %vm695, %v2048, 0
      %2103 = vmatprep.subr.bf16.mxu0 0
      %2104 = vmatpush1.bf16.msra.mxu0 %v2053
      %2105 = vmatprep.subr.bf16.mxu0 0
      %2106 = vmatpush1.bf16.msra.mxu0 0
      %2107 = vmatprep.subr.bf16.mxu0 0
      %2108 = vmatpush1.bf16.msra.mxu0 0
      %2109 = vmatprep.subr.bf16.mxu0 0
      %2110 = vmatpush1.bf16.msra.mxu0 0
      %2111 = vmatprep.subr.bf16.mxu0 0
      %2112 = vmatpush1.bf16.msra.mxu0 0
      %2113 = vmatprep.subr.bf16.mxu0 0
      %2114 = vmatpush1.bf16.msra.mxu0 0
      %2115 = vmatprep.subr.bf16.mxu0 0
      %2116 = vmatpush1.bf16.msra.mxu0 0
      %2117 = vmatprep.subr.bf16.mxu0 0
      %2118 = vmatpush1.bf16.msra.mxu0 0
      %2119 = vmatprep.subr.bf16.mxu0 0
      %2120 = vmatpush1.bf16.msra.mxu0 0
      %2121 = vmatprep.subr.bf16.mxu0 0
      %2122 = vmatpush1.bf16.msra.mxu0 0
      %2123 = vmatprep.subr.bf16.mxu0 0
      %2124 = vmatpush1.bf16.msra.mxu0 0
      %2125 = vmatprep.subr.bf16.mxu0 0
      %2126 = vmatpush1.bf16.msra.mxu0 0
      %2127 = vmatprep.subr.bf16.mxu0 0
      %2128 = vmatpush1.bf16.msra.mxu0 0
      %2129 = vmatprep.subr.bf16.mxu0 0
      %2130 = vmatpush1.bf16.msra.mxu0 0
      %2131 = vmatprep.subr.bf16.mxu0 0
      %2132 = vmatpush1.bf16.msra.mxu0 0
      %2133 = vmatprep.subr.bf16.mxu0 0
      %2134 = vmatpush1.bf16.msra.mxu0 0
      %2135 = vmatprep.mubr.bf16.mxu0 0
      %2136 = vmatmul.mubr.bf16.gmra.mrb[0].mxu0 %v2056
      %v2137 = vpop.f32.mrb[0].mxu0
      %v2138 = vadd.f32 0.0, %v2137
      %v2139 = vpop.f32.mrb[0].mxu0
      %v2140 = vpop.f32.mrb[0].mxu0
      %v2141 = vadd.f32 0.0, %v2140
      %v2142 = vpop.f32.mrb[0].mxu0
      %2143 = vmatprep.mubr.bf16.mxu0 0
      %2144 = vmatmul.mubr.bf16.gmra.mrb[0].mxu0 %v2059
      %v2145 = vpop.f32.mrb[0].mxu0
      %v2146 = vadd.f32 0.0, %v2145
      %v2147 = vpop.f32.mrb[0].mxu0
      %v2148 = vpop.f32.mrb[0].mxu0
      %v2149 = vadd.f32 0.0, %v2148
      %v2150 = vpop.f32.mrb[0].mxu0
      %2151 = vmatprep.mubr.bf16.mxu0 0
      %2152 = vmatmul.mubr.bf16.gmra.mrb[0].mxu0 %v2062
      %v2153 = vpop.f32.mrb[0].mxu0
      %v2154 = vadd.f32 0.0, %v2153
      %v2155 = vpop.f32.mrb[0].mxu0
      %v2156 = vpop.f32.mrb[0].mxu0
      %v2157 = vadd.f32 0.0, %v2156
      %v2158 = vpop.f32.mrb[0].mxu0
      %2159 = vmatprep.mubr.bf16.mxu0 0
      %2160 = vmatmul.mubr.bf16.gmra.mrb[0].mxu0 %v2065
      %v2161 = vpop.f32.mrb[0].mxu0
      %v2162 = vadd.f32 0.0, %v2161
      %v2163 = vpop.f32.mrb[0].mxu0
      %v2164 = vpop.f32.mrb[0].mxu0
      %v2165 = vadd.f32 0.0, %v2164
      %v2166 = vpop.f32.mrb[0].mxu0
      %2167 = vmatprep.mubr.bf16.mxu0 0
      %2168 = vmatmul.mubr.bf16.gmra.mrb[0].mxu0 %v2068
      %v2169 = vpop.f32.mrb[0].mxu0
      %v2170 = vadd.f32 0.0, %v2169
      %v2171 = vpop.f32.mrb[0].mxu0
      %v2172 = vpop.f32.mrb[0].mxu0
      %v2173 = vadd.f32 0.0, %v2172
      %v2174 = vpop.f32.mrb[0].mxu0
      %2175 = vmatprep.mubr.bf16.mxu0 0
      %2176 = vmatmul.mubr.bf16.gmra.mrb[0].mxu0 %v2071
      %v2177 = vpop.f32.mrb[0].mxu0
      %v2178 = vadd.f32 0.0, %v2177
      %v2179 = vpop.f32.mrb[0].mxu0
      %v2180 = vpop.f32.mrb[0].mxu0
      %v2181 = vadd.f32 0.0, %v2180
      %v2182 = vpop.f32.mrb[0].mxu0
      %2183 = vmatprep.mubr.bf16.mxu0 0
      %2184 = vmatmul.mubr.bf16.gmra.mrb[0].mxu0 %v2074
      %v2185 = vpop.f32.mrb[0].mxu0
      %v2186 = vadd.f32 0.0, %v2185
      %v2187 = vpop.f32.mrb[0].mxu0
      %v2188 = vpop.f32.mrb[0].mxu0
      %v2189 = vadd.f32 0.0, %v2188
      %v2190 = vpop.f32.mrb[0].mxu0
      %2191 = vmatprep.mubr.bf16.mxu0 0
      %2192 = vmatmul.mubr.bf16.gmra.mrb[0].mxu0 %v2077
      %v2193 = vpop.f32.mrb[0].mxu0
      %v2194 = vadd.f32 0.0, %v2193
      %v2195 = vpop.f32.mrb[0].mxu0
      %v2196 = vpop.f32.mrb[0].mxu0
      %v2197 = vadd.f32 0.0, %v2196
      %v2198 = vpop.f32.mrb[0].mxu0
      %2199 = vmatprep.mubr.bf16.mxu0 0
      %2200 = vmatmul.mubr.bf16.gmra.mrb[0].mxu0 %v2080
      %v2201 = vpop.f32.mrb[0].mxu0
      %v2202 = vadd.f32 0.0, %v2201
      %v2203 = vpop.f32.mrb[0].mxu0
      %v2204 = vpop.f32.mrb[0].mxu0
      %v2205 = vadd.f32 0.0, %v2204
      %v2206 = vpop.f32.mrb[0].mxu0
      %2207 = vmatprep.mubr.bf16.mxu0 0
      %2208 = vmatmul.mubr.bf16.gmra.mrb[0].mxu0 %v2083
      %v2209 = vpop.f32.mrb[0].mxu0
      %v2210 = vadd.f32 0.0, %v2209
      %v2211 = vpop.f32.mrb[0].mxu0
      %v2212 = vpop.f32.mrb[0].mxu0
      %v2213 = vadd.f32 0.0, %v2212
      %v2214 = vpop.f32.mrb[0].mxu0
      %2215 = vmatprep.mubr.bf16.mxu0 0
      %2216 = vmatmul.mubr.bf16.gmra.mrb[0].mxu0 %v2086
      %v2217 = vpop.f32.mrb[0].mxu0
      %v2218 = vadd.f32 0.0, %v2217
      %v2219 = vpop.f32.mrb[0].mxu0
      %v2220 = vpop.f32.mrb[0].mxu0
      %v2221 = vadd.f32 0.0, %v2220
      %v2222 = vpop.f32.mrb[0].mxu0
      %2223 = vmatprep.mubr.bf16.mxu0 0
      %2224 = vmatmul.mubr.bf16.gmra.mrb[0].mxu0 %v2089
      %v2225 = vpop.f32.mrb[0].mxu0
      %v2226 = vadd.f32 0.0, %v2225
      %v2227 = vpop.f32.mrb[0].mxu0
      %v2228 = vpop.f32.mrb[0].mxu0
      %v2229 = vadd.f32 0.0, %v2228
      %v2230 = vpop.f32.mrb[0].mxu0
      %2231 = vmatprep.mubr.bf16.mxu0 0
      %2232 = vmatmul.mubr.bf16.gmra.mrb[0].mxu0 %v2092
      %v2233 = vpop.f32.mrb[0].mxu0
      %v2234 = vadd.f32 0.0, %v2233
      %v2235 = vpop.f32.mrb[0].mxu0
      %v2236 = vpop.f32.mrb[0].mxu0
      %v2237 = vadd.f32 0.0, %v2236
      %v2238 = vpop.f32.mrb[0].mxu0
      %2239 = vmatprep.mubr.bf16.mxu0 0
      %2240 = vmatmul.mubr.bf16.gmra.mrb[0].mxu0 %v2095
      %v2241 = vpop.f32.mrb[0].mxu0
      %v2242 = vadd.f32 0.0, %v2241
      %v2243 = vpop.f32.mrb[0].mxu0
      %v2244 = vpop.f32.mrb[0].mxu0
      %v2245 = vadd.f32 0.0, %v2244
      %v2246 = vpop.f32.mrb[0].mxu0
      %2247 = vmatprep.mubr.bf16.mxu0 0
      %2248 = vmatmul.mubr.bf16.gmra.mrb[0].mxu0 %v2098
      %v2249 = vpop.f32.mrb[0].mxu0
      %v2250 = vadd.f32 0.0, %v2249
      %v2251 = vpop.f32.mrb[0].mxu0
      %v2252 = vpop.f32.mrb[0].mxu0
      %v2253 = vadd.f32 0.0, %v2252
      %v2254 = vpop.f32.mrb[0].mxu0
      %2255 = vmatprep.mubr.bf16.mxu0 0
      %2256 = vmatmul.mubr.bf16.gmra.mrb[0].mxu0 %v2101
      %v2257 = vpop.f32.mrb[0].mxu0
      %v2258 = vadd.f32 0.0, %v2257
      %v2259 = vpop.f32.mrb[0].mxu0
      %v2260 = vpop.f32.mrb[0].mxu0
      %v2261 = vadd.f32 0.0, %v2260
      %v2262 = vpop.f32.mrb[0].mxu0
      %2263 = vdwg.mxu0
      %v2264 = vadd.f32 %v1534, %v2138
      %v2265 = vadd.f32 %v1535, %v2141
      %v2266 = vadd.f32 %v1536, %v2146
      %v2267 = vadd.f32 %v1537, %v2149
      %v2268 = vadd.f32 %v1538, %v2154
      %v2269 = vadd.f32 %v1539, %v2157
      %v2270 = vadd.f32 %v1540, %v2162
      %v2271 = vadd.f32 %v1541, %v2165
      %v2272 = vadd.f32 %v1542, %v2170
      %v2273 = vadd.f32 %v1543, %v2173
      %v2274 = vadd.f32 %v1544, %v2178
      %v2275 = vadd.f32 %v1545, %v2181
      %v2276 = vadd.f32 %v1546, %v2186
      %v2277 = vadd.f32 %v1547, %v2189
      %v2278 = vadd.f32 %v1548, %v2194
      %v2279 = vadd.f32 %v1549, %v2197
      %v2280 = vadd.f32 %v1550, %v2202
      %v2281 = vadd.f32 %v1551, %v2205
      %v2282 = vadd.f32 %v1552, %v2210
      %v2283 = vadd.f32 %v1553, %v2213
      %v2284 = vadd.f32 %v1554, %v2218
      %v2285 = vadd.f32 %v1555, %v2221
      %v2286 = vadd.f32 %v1556, %v2226
      %v2287 = vadd.f32 %v1557, %v2229
      %v2288 = vadd.f32 %v1558, %v2234
      %v2289 = vadd.f32 %v1559, %v2237
      %v2290 = vadd.f32 %v1560, %v2242
      %v2291 = vadd.f32 %v1561, %v2245
      %v2292 = vadd.f32 %v1562, %v2250
      %v2293 = vadd.f32 %v1563, %v2253
      %v2294 = vadd.f32 %v1564, %v2258
      %v2295 = vadd.f32 %v1565, %v2261
      %v2296 = vld [vmem:[%s2] sm:$0x1]
      %v2298 = vlaneseq
      %v2299 = vshrl.u32 %v2298, 7
      %v2300 = vsub.s32 0, %v2299
      %v2301 = vrot.slane %v2296, %v2300
      %v2303 = vadd.f32 %v2264, %v2301
      %v2304 = vadd.f32 %v2265, %v2301
      %v2305 = vadd.f32 %v2266, %v2301
      %v2306 = vadd.f32 %v2267, %v2301
      %v2307 = vadd.f32 %v2268, %v2301
      %v2308 = vadd.f32 %v2269, %v2301
      %v2309 = vadd.f32 %v2270, %v2301
      %v2310 = vadd.f32 %v2271, %v2301
      %v2311 = vadd.f32 %v2272, %v2301
      %v2312 = vadd.f32 %v2273, %v2301
      %v2313 = vadd.f32 %v2274, %v2301
      %v2314 = vadd.f32 %v2275, %v2301
      %v2315 = vadd.f32 %v2276, %v2301
      %v2316 = vadd.f32 %v2277, %v2301
      %v2317 = vadd.f32 %v2278, %v2301
      %v2318 = vadd.f32 %v2279, %v2301
      %v2319 = vadd.f32 %v2280, %v2301
      %v2320 = vadd.f32 %v2281, %v2301
      %v2321 = vadd.f32 %v2282, %v2301
      %v2322 = vadd.f32 %v2283, %v2301
      %v2323 = vadd.f32 %v2284, %v2301
      %v2324 = vadd.f32 %v2285, %v2301
      %v2325 = vadd.f32 %v2286, %v2301
      %v2326 = vadd.f32 %v2287, %v2301
      %v2327 = vadd.f32 %v2288, %v2301
      %v2328 = vadd.f32 %v2289, %v2301
      %v2329 = vadd.f32 %v2290, %v2301
      %v2330 = vadd.f32 %v2291, %v2301
      %v2331 = vadd.f32 %v2292, %v2301
      %v2332 = vadd.f32 %v2293, %v2301
      %v2333 = vadd.f32 %v2294, %v2301
      %v2334 = vadd.f32 %v2295, %v2301
      %vm2335 = vcmp.ge.f32.partialorder %v2303, 0.0
      %vm2336 = vcmp.ge.f32.partialorder %v2304, 0.0
      %vm2337 = vcmp.ge.f32.partialorder %v2305, 0.0
      %vm2338 = vcmp.ge.f32.partialorder %v2306, 0.0
      %vm2339 = vcmp.ge.f32.partialorder %v2307, 0.0
      %vm2340 = vcmp.ge.f32.partialorder %v2308, 0.0
      %vm2341 = vcmp.ge.f32.partialorder %v2309, 0.0
      %vm2342 = vcmp.ge.f32.partialorder %v2310, 0.0
      %vm2343 = vcmp.ge.f32.partialorder %v2311, 0.0
      %vm2344 = vcmp.ge.f32.partialorder %v2312, 0.0
      %vm2345 = vcmp.ge.f32.partialorder %v2313, 0.0
      %vm2346 = vcmp.ge.f32.partialorder %v2314, 0.0
      %vm2347 = vcmp.ge.f32.partialorder %v2315, 0.0
      %vm2348 = vcmp.ge.f32.partialorder %v2316, 0.0
      %vm2349 = vcmp.ge.f32.partialorder %v2317, 0.0
      %vm2350 = vcmp.ge.f32.partialorder %v2318, 0.0
      %vm2351 = vcmp.ge.f32.partialorder %v2319, 0.0
      %vm2352 = vcmp.ge.f32.partialorder %v2320, 0.0
      %vm2353 = vcmp.ge.f32.partialorder %v2321, 0.0
      %vm2354 = vcmp.ge.f32.partialorder %v2322, 0.0
      %vm2355 = vcmp.ge.f32.partialorder %v2323, 0.0
      %vm2356 = vcmp.ge.f32.partialorder %v2324, 0.0
      %vm2357 = vcmp.ge.f32.partialorder %v2325, 0.0
      %vm2358 = vcmp.ge.f32.partialorder %v2326, 0.0
      %vm2359 = vcmp.ge.f32.partialorder %v2327, 0.0
      %vm2360 = vcmp.ge.f32.partialorder %v2328, 0.0
      %vm2361 = vcmp.ge.f32.partialorder %v2329, 0.0
      %vm2362 = vcmp.ge.f32.partialorder %v2330, 0.0
      %vm2363 = vcmp.ge.f32.partialorder %v2331, 0.0
      %vm2364 = vcmp.ge.f32.partialorder %v2332, 0.0
      %vm2365 = vcmp.ge.f32.partialorder %v2333, 0.0
      %vm2366 = vcmp.ge.f32.partialorder %v2334, 0.0
      %v2367 = vmul.f32 %v2303, 0.2
      %v2368 = vmul.f32 %v2304, 0.2
      %v2369 = vmul.f32 %v2305, 0.2
      %v2370 = vmul.f32 %v2306, 0.2
      %v2371 = vmul.f32 %v2307, 0.2
      %v2372 = vmul.f32 %v2308, 0.2
      %v2373 = vmul.f32 %v2309, 0.2
      %v2374 = vmul.f32 %v2310, 0.2
      %v2375 = vmul.f32 %v2311, 0.2
      %v2376 = vmul.f32 %v2312, 0.2
      %v2377 = vmul.f32 %v2313, 0.2
      %v2378 = vmul.f32 %v2314, 0.2
      %v2379 = vmul.f32 %v2315, 0.2
      %v2380 = vmul.f32 %v2316, 0.2
      %v2381 = vmul.f32 %v2317, 0.2
      %v2382 = vmul.f32 %v2318, 0.2
      %v2383 = vmul.f32 %v2319, 0.2
      %v2384 = vmul.f32 %v2320, 0.2
      %v2385 = vmul.f32 %v2321, 0.2
      %v2386 = vmul.f32 %v2322, 0.2
      %v2387 = vmul.f32 %v2323, 0.2
      %v2388 = vmul.f32 %v2324, 0.2
      %v2389 = vmul.f32 %v2325, 0.2
      %v2390 = vmul.f32 %v2326, 0.2
      %v2391 = vmul.f32 %v2327, 0.2
      %v2392 = vmul.f32 %v2328, 0.2
      %v2393 = vmul.f32 %v2329, 0.2
      %v2394 = vmul.f32 %v2330, 0.2
      %v2395 = vmul.f32 %v2331, 0.2
      %v2396 = vmul.f32 %v2332, 0.2
      %v2397 = vmul.f32 %v2333, 0.2
      %v2398 = vmul.f32 %v2334, 0.2
      %v2399 = vsel %vm2335, %v2303, %v2367
      %v2400 = vsel %vm2336, %v2304, %v2368
      %v2401 = vsel %vm2337, %v2305, %v2369
      %v2402 = vsel %vm2338, %v2306, %v2370
      %v2403 = vsel %vm2339, %v2307, %v2371
      %v2404 = vsel %vm2340, %v2308, %v2372
      %v2405 = vsel %vm2341, %v2309, %v2373
      %v2406 = vsel %vm2342, %v2310, %v2374
      %v2407 = vsel %vm2343, %v2311, %v2375
      %v2408 = vsel %vm2344, %v2312, %v2376
      %v2409 = vsel %vm2345, %v2313, %v2377
      %v2410 = vsel %vm2346, %v2314, %v2378
      %v2411 = vsel %vm2347, %v2315, %v2379
      %v2412 = vsel %vm2348, %v2316, %v2380
      %v2413 = vsel %vm2349, %v2317, %v2381
      %v2414 = vsel %vm2350, %v2318, %v2382
      %v2415 = vsel %vm2351, %v2319, %v2383
      %v2416 = vsel %vm2352, %v2320, %v2384
      %v2417 = vsel %vm2353, %v2321, %v2385
      %v2418 = vsel %vm2354, %v2322, %v2386
      %v2419 = vsel %vm2355, %v2323, %v2387
      %v2420 = vsel %vm2356, %v2324, %v2388
      %v2421 = vsel %vm2357, %v2325, %v2389
      %v2422 = vsel %vm2358, %v2326, %v2390
      %v2423 = vsel %vm2359, %v2327, %v2391
      %v2424 = vsel %vm2360, %v2328, %v2392
      %v2425 = vsel %vm2361, %v2329, %v2393
      %v2426 = vsel %vm2362, %v2330, %v2394
      %v2427 = vsel %vm2363, %v2331, %v2395
      %v2428 = vsel %vm2364, %v2332, %v2396
      %v2429 = vsel %vm2365, %v2333, %v2397
      %v2430 = vsel %vm2366, %v2334, %v2398
      %v2431 = vpack.c.bf16 %v2400, %v2399
      %v2432 = vpack.c.bf16 %v2402, %v2401
      %v2433 = vpack.c.bf16 %v2404, %v2403
      %v2434 = vpack.c.bf16 %v2406, %v2405
      %v2435 = vpack.c.bf16 %v2408, %v2407
      %v2436 = vpack.c.bf16 %v2410, %v2409
      %v2437 = vpack.c.bf16 %v2412, %v2411
      %v2438 = vpack.c.bf16 %v2414, %v2413
      %v2439 = vpack.c.bf16 %v2416, %v2415
      %v2440 = vpack.c.bf16 %v2418, %v2417
      %v2441 = vpack.c.bf16 %v2420, %v2419
      %v2442 = vpack.c.bf16 %v2422, %v2421
      %v2443 = vpack.c.bf16 %v2424, %v2423
      %v2444 = vpack.c.bf16 %v2426, %v2425
      %v2445 = vpack.c.bf16 %v2428, %v2427
      %v2446 = vpack.c.bf16 %v2430, %v2429
      %v2463 = vunpack.c.l.b16 %v2431
      %v2464 = vunpack.c.h.b16 %v2431
      %v2465 = vunpack.c.l.b16 %v2432
      %v2466 = vunpack.c.h.b16 %v2432
      %v2467 = vunpack.c.l.b16 %v2433
      %v2468 = vunpack.c.h.b16 %v2433
      %v2469 = vunpack.c.l.b16 %v2434
      %v2470 = vunpack.c.h.b16 %v2434
      %v2471 = vunpack.c.l.b16 %v2435
      %v2472 = vunpack.c.h.b16 %v2435
      %v2473 = vunpack.c.l.b16 %v2436
      %v2474 = vunpack.c.h.b16 %v2436
      %v2475 = vunpack.c.l.b16 %v2437
      %v2476 = vunpack.c.h.b16 %v2437
      %v2477 = vunpack.c.l.b16 %v2438
      %v2478 = vunpack.c.h.b16 %v2438
      %v2479 = vunpack.c.l.b16 %v2439
      %v2480 = vunpack.c.h.b16 %v2439
      %v2481 = vunpack.c.l.b16 %v2440
      %v2482 = vunpack.c.h.b16 %v2440
      %v2483 = vunpack.c.l.b16 %v2441
      %v2484 = vunpack.c.h.b16 %v2441
      %v2485 = vunpack.c.l.b16 %v2442
      %v2486 = vunpack.c.h.b16 %v2442
      %v2487 = vunpack.c.l.b16 %v2443
      %v2488 = vunpack.c.h.b16 %v2443
      %v2489 = vunpack.c.l.b16 %v2444
      %v2490 = vunpack.c.h.b16 %v2444
      %v2491 = vunpack.c.l.b16 %v2445
      %v2492 = vunpack.c.h.b16 %v2445
      %v2493 = vunpack.c.l.b16 %v2446
      %v2494 = vunpack.c.h.b16 %v2446
      %v2495 = vpack.c.b16 %v2463, %v2463
      %v2496 = vpack.c.b16 %v2464, %v2464
      %v2497 = vpack.c.b16 %v2465, %v2465
      %v2498 = vpack.c.b16 %v2466, %v2466
      %v2499 = vpack.c.b16 %v2467, %v2467
      %v2500 = vpack.c.b16 %v2468, %v2468
      %v2501 = vpack.c.b16 %v2469, %v2469
      %v2502 = vpack.c.b16 %v2470, %v2470
      %v2503 = vpack.c.b16 %v2471, %v2471
      %v2504 = vpack.c.b16 %v2472, %v2472
      %v2505 = vpack.c.b16 %v2473, %v2473
      %v2506 = vpack.c.b16 %v2474, %v2474
      %v2507 = vpack.c.b16 %v2475, %v2475
      %v2508 = vpack.c.b16 %v2476, %v2476
      %v2509 = vpack.c.b16 %v2477, %v2477
      %v2510 = vpack.c.b16 %v2478, %v2478
      %v2511 = vpack.c.b16 %v2479, %v2479
      %v2512 = vpack.c.b16 %v2480, %v2480
      %v2513 = vpack.c.b16 %v2481, %v2481
      %v2514 = vpack.c.b16 %v2482, %v2482
      %v2515 = vpack.c.b16 %v2483, %v2483
      %v2516 = vpack.c.b16 %v2484, %v2484
      %v2517 = vpack.c.b16 %v2485, %v2485
      %v2518 = vpack.c.b16 %v2486, %v2486
      %v2519 = vpack.c.b16 %v2487, %v2487
      %v2520 = vpack.c.b16 %v2488, %v2488
      %v2521 = vpack.c.b16 %v2489, %v2489
      %v2522 = vpack.c.b16 %v2490, %v2490
      %v2523 = vpack.c.b16 %v2491, %v2491
      %v2524 = vpack.c.b16 %v2492, %v2492
      %v2525 = vpack.c.b16 %v2493, %v2493
      %v2526 = vpack.c.b16 %v2494, %v2494
      %vm2559 = vcmask 60416
      %2560 = vst.msk [vmem:[%s194] sm:$0xf] %vm2559, %v2495
      %2561 = vst.msk [vmem:[%s194 + $0x4] sm:$0xf] %vm2559, %v2496
      %2562 = vst.msk [vmem:[%s194 + $0x8] sm:$0xf] %vm2559, %v2497
      %2563 = vst.msk [vmem:[%s194 + $0xc] sm:$0xf] %vm2559, %v2498
      %2564 = vst.msk [vmem:[%s194 + $0x10] sm:$0xf] %vm2559, %v2499
      %2565 = vst.msk [vmem:[%s194 + $0x14] sm:$0xf] %vm2559, %v2500
      %2566 = vst.msk [vmem:[%s194 + $0x18] sm:$0xf] %vm2559, %v2501
      %2567 = vst.msk [vmem:[%s194 + $0x1c] sm:$0xf] %vm2559, %v2502
      %2568 = vst.msk [vmem:[%s194 + $0x20] sm:$0xf] %vm2559, %v2503
      %2569 = vst.msk [vmem:[%s194 + $0x24] sm:$0xf] %vm2559, %v2504
      %2570 = vst.msk [vmem:[%s194 + $0x28] sm:$0xf] %vm2559, %v2505
      %2571 = vst.msk [vmem:[%s194 + $0x2c] sm:$0xf] %vm2559, %v2506
      %2572 = vst.msk [vmem:[%s194 + $0x30] sm:$0xf] %vm2559, %v2507
      %2573 = vst.msk [vmem:[%s194 + $0x34] sm:$0xf] %vm2559, %v2508
      %2574 = vst.msk [vmem:[%s194 + $0x38] sm:$0xf] %vm2559, %v2509
      %2575 = vst.msk [vmem:[%s194 + $0x3c] sm:$0xf] %vm2559, %v2510
      %2576 = vst.msk [vmem:[%s194 + $0x40] sm:$0xf] %vm2559, %v2511
      %2577 = vst.msk [vmem:[%s194 + $0x44] sm:$0xf] %vm2559, %v2512
      %2578 = vst.msk [vmem:[%s194 + $0x48] sm:$0xf] %vm2559, %v2513
      %2579 = vst.msk [vmem:[%s194 + $0x4c] sm:$0xf] %vm2559, %v2514
      %2580 = vst.msk [vmem:[%s194 + $0x50] sm:$0xf] %vm2559, %v2515
      %2581 = vst.msk [vmem:[%s194 + $0x54] sm:$0xf] %vm2559, %v2516
      %2582 = vst.msk [vmem:[%s194 + $0x58] sm:$0xf] %vm2559, %v2517
      %2583 = vst.msk [vmem:[%s194 + $0x5c] sm:$0xf] %vm2559, %v2518
      %2584 = vst.msk [vmem:[%s194 + $0x60] sm:$0xf] %vm2559, %v2519
      %2585 = vst.msk [vmem:[%s194 + $0x64] sm:$0xf] %vm2559, %v2520
      %2586 = vst.msk [vmem:[%s194 + $0x68] sm:$0xf] %vm2559, %v2521
      %2587 = vst.msk [vmem:[%s194 + $0x6c] sm:$0xf] %vm2559, %v2522
      %2588 = vst.msk [vmem:[%s194 + $0x70] sm:$0xf] %vm2559, %v2523
      %2589 = vst.msk [vmem:[%s194 + $0x74] sm:$0xf] %vm2559, %v2524
      %2590 = vst.msk [vmem:[%s194 + $0x78] sm:$0xf] %vm2559, %v2525
      %2591 = vst.msk [vmem:[%s194 + $0x7c] sm:$0xf] %vm2559, %v2526
      %s2592 = smul.u32 16, %s19
      %p2593 = scmp.lt.s32.totalorder %s18, 1
      %s2594 = scalar_select %p2593, %s18, 1
      %p2595 = scmp.lt.s32.totalorder %s2592, 15
      %s2596 = scalar_select %p2595, %s2592, 15
      %s2597 = smul.addr %s2596, 2
      %s2598 = smul.addr %s2594, 32
      %s2599 = sadd.s32 %s2597, %s2598
      %s2600 = smul.addr %s2599, 4
      %s2601 = scalar_lea.vmem %s3, %s2600
      // Predicated region
      $region33: #{_lambda_.8} parent=31 // pred_check
        %p2602 = pneg %p114
      $region34: #{_lambda_.8} parent=31 // pred_check_branch
        %2604 = sbr.rel (%p2602) target = $region36
      $region35: #{_lambda_.8} parent=31 // pred_region
        %s2605 = smul.u32 16, %s19
      $region36: #{_lambda_.8} parent=31 // pred_fallthru
        _
    $region32: #{_lambda_.8} parent=5 // pred_fallthru
      _
    %p2606 = scmp.le.s32.totalorder 2, %s9
    // Predicated region
    $region37: #{_lambda_.8} parent=5 // pred_check
      %p2607 = pneg %p2606
    $region38: #{_lambda_.8} parent=5 // pred_check_branch
      %2609 = sbr.rel (%p2607) target = $region40
    $region39: #{_lambda_.8} parent=5 // pred_region
      %s2610 = ssub.s32 %s9, 2
      // Predicated region
      $region41: #{_lambda_.8} parent=39 // pred_check
        %p2611 = pneg %p120
      $region42: #{_lambda_.8} parent=39 // pred_check_branch
        %2613 = sbr.rel (%p2611) target = $region44
      $region43: #{_lambda_.8} parent=39 // pred_region
        %s2614 = smul.u32 16, %s21
        %p2615 = scmp.lt.s32.totalorder %s20, 1
        %s2616 = scalar_select %p2615, %s20, 1
        %p2617 = scmp.lt.s32.totalorder %s2614, 15
        %s2618 = scalar_select %p2617, %s2614, 15
        %s2619 = smul.addr %s2618, 2
        %s2620 = smul.addr %s2616, 32
        %s2621 = sadd.s32 %s2619, %s2620
        %s2622 = smul.addr %s2621, 4
        %s2623 = scalar_lea.vmem %s3, %s2622
      $region44: #{_lambda_.8} parent=39 // pred_fallthru
        _
    $region40: #{_lambda_.8} parent=5 // pred_fallthru
      _
  $region6: #{_lambda_.8} parent=0 // loop_footer
    %s13 = sadd.s32 1, %s9
  $region7: #{_lambda_.8} parent=0 // loop_footer_branch
    %8 = sbr.rel target = $region3
  $region8: #{_lambda_.8} parent=0 // loop_exit
    _

// kernel: _lambda_.10
$region0: #{_lambda_.10}
  #allocation0 [shape = 'u32[]', space=smem, size = 0x4, offset = 0x4, fixed_abs, tag = 'smem constant byte address 0x4 - core index']
  #allocation1 [shape = 'u32[144,128]{1,0:T(1,128)}', space=vmem, size = 0x12000, scoped, tag = 'internal scratch']
  %s0 = inlined_call_operand.vmem [shape: bf16[2,8,8,16], index: 0, kind: input, shape index: {}]
  %s1 = inlined_call_operand.vmem [shape: f32[1,16], index: 1, kind: input, shape index: {}]
  %s2 = inlined_call_operand.vmem [shape: f32[1,16], index: 2, kind: input, shape index: {}]
  %s3 = inlined_call_operand.vmem [shape: bf16[2,8,8,16], index: 3, kind: output, shape index: {}]
  %s4 = sld [smem:[#allocation0]]
  $region45: #{_lambda_.10} parent=0
    _
  %s6 = ssub.s32 1, %s4
  %s7 = scalar_select 0, %s6, %s4
  loop: start=0, step=1, limit=4
  $region2: #{_lambda_.10} parent=0 // loop_pre_header
    _
  $region3: #{_lambda_.10} parent=0 // loop_header
    %s9 = sphi 0, %s13
    %p10 = scmp.ge.s32.totalorder %s9, 4
    %s16 = sphi 0, %s28
    %s17 = sphi 0, %s24
    %s18 = sphi 0, %s16
    %s19 = sphi 0, %s17
    %s20 = sphi 0, %s18
    %s21 = sphi 0, %s19
    %s33 = sphi 0, %s35
    %s36 = sphi 0, %s33
    %s37 = sphi 0, %s36
    %s53 = sphi 0, %s37
    %s57 = sphi 0, %s57
    %s59 = sphi 0, %s57
    %s60 = sphi 0, %s59
    %s74 = sphi 0, %s60
    %s78 = sphi 0, %s78
    %s80 = sphi 0, %s78
    %s81 = sphi 0, %s80
    %s95 = sphi 0, %s81
    %s103 = sphi 0, %s105
    %s106 = sphi 0, %s103
    %s107 = sphi 0, %s106
    %s123 = sphi 0, %s107
  $region4: #{_lambda_.10} parent=0 // loop_header_branch
    %12 = sbr.rel (%p10) target = $region8
  $region5: #{_lambda_.10} parent=0 // loop_body
    %s14 = ssub.s32 %s9, 1
    %s15 = ssub.s32 %s9, 2
    %s22 = sadd.s32 1, %s17
    %p23 = scmp.ge.s32.totalorder %s22, 1
    %s24 = scalar_select %p23, 0, %s22
    %s25 = sadd.s32 1, %s16
    %s26 = scalar_select %p23, %s25, %s16
    %p27 = scmp.ge.s32.totalorder %s26, 2
    %s28 = scalar_select %p27, 0, %s26
    %s29 = ssub.s32 %s16, %s28
    %s30 = ssub.s32 %s17, %s24
    %s31 = sor.u32 %s29, %s30
    %p32 = scmp.eq.s32.totalorder %s31, 0
    %s34 = sadd.s32 %s33, 1
    %s35 = scalar_select %p32, %s33, %s34
    %p38 = pneg %p32
    %p39 = scmp.eq.s32.totalorder %s9, 1
    %p40 = por %p38, %p39
    %p41 = scmp.ne.s32.totalorder %s33, %s36
    %p42 = scmp.eq.s32.totalorder %s9, 0
    %p43 = por %p41, %p42
    %p44 = scmp.ne.s32.totalorder %s33, %s36
    %p45 = scmp.eq.s32.totalorder %s14, 1
    %p46 = por %p44, %p45
    %p47 = scmp.ne.s32.totalorder %s36, %s37
    %p48 = scmp.eq.s32.totalorder %s14, 0
    %p49 = por %p47, %p48
    %p50 = scmp.ne.s32.totalorder %s36, %s37
    %p51 = scmp.eq.s32.totalorder %s15, 1
    %p52 = por %p50, %p51
    %p54 = scmp.ne.s32.totalorder %s37, %s53
    %p55 = scmp.eq.s32.totalorder %s15, 0
    %p56 = por %p54, %p55
    %s58 = sadd.s32 %s57, 1
    %p61 = scmp.eq.s32.totalorder %s9, 1
    %p62 = scmp.ne.s32.totalorder %s57, %s59
    %p63 = scmp.eq.s32.totalorder %s9, 0
    %p64 = por %p62, %p63
    %p65 = scmp.ne.s32.totalorder %s57, %s59
    %p66 = scmp.eq.s32.totalorder %s14, 1
    %p67 = por %p65, %p66
    %p68 = scmp.ne.s32.totalorder %s59, %s60
    %p69 = scmp.eq.s32.totalorder %s14, 0
    %p70 = por %p68, %p69
    %p71 = scmp.ne.s32.totalorder %s59, %s60
    %p72 = scmp.eq.s32.totalorder %s15, 1
    %p73 = por %p71, %p72
    %p75 = scmp.ne.s32.totalorder %s60, %s74
    %p76 = scmp.eq.s32.totalorder %s15, 0
    %p77 = por %p75, %p76
    %s79 = sadd.s32 %s78, 1
    %p82 = scmp.eq.s32.totalorder %s9, 1
    %p83 = scmp.ne.s32.totalorder %s78, %s80
    %p84 = scmp.eq.s32.totalorder %s9, 0
    %p85 = por %p83, %p84
    %p86 = scmp.ne.s32.totalorder %s78, %s80
    %p87 = scmp.eq.s32.totalorder %s14, 1
    %p88 = por %p86, %p87
    %p89 = scmp.ne.s32.totalorder %s80, %s81
    %p90 = scmp.eq.s32.totalorder %s14, 0
    %p91 = por %p89, %p90
    %p92 = scmp.ne.s32.totalorder %s80, %s81
    %p93 = scmp.eq.s32.totalorder %s15, 1
    %p94 = por %p92, %p93
    %p96 = scmp.ne.s32.totalorder %s81, %s95
    %p97 = scmp.eq.s32.totalorder %s15, 0
    %p98 = por %p96, %p97
    %s99 = ssub.s32 %s16, %s28
    %s100 = ssub.s32 %s17, %s24
    %s101 = sor.u32 %s99, %s100
    %p102 = scmp.eq.s32.totalorder %s101, 0
    %s104 = sadd.s32 %s103, 1
    %s105 = scalar_select %p102, %s103, %s104
    %p108 = pneg %p102
    %p109 = scmp.eq.s32.totalorder %s9, 1
    %p110 = por %p108, %p109
    %p111 = scmp.ne.s32.totalorder %s103, %s106
    %p112 = scmp.eq.s32.totalorder %s9, 0
    %p113 = por %p111, %p112
    %p114 = scmp.ne.s32.totalorder %s103, %s106
    %p115 = scmp.eq.s32.totalorder %s14, 1
    %p116 = por %p114, %p115
    %p117 = scmp.ne.s32.totalorder %s106, %s107
    %p118 = scmp.eq.s32.totalorder %s14, 0
    %p119 = por %p117, %p118
    %p120 = scmp.ne.s32.totalorder %s106, %s107
    %p121 = scmp.eq.s32.totalorder %s15, 1
    %p122 = por %p120, %p121
    %p124 = scmp.ne.s32.totalorder %s107, %s123
    %p125 = scmp.eq.s32.totalorder %s15, 0
    %p126 = por %p124, %p125
    %p127 = scmp.le.s32.totalorder 1, %s9
    %p128 = scmp.lt.s32.totalorder %s9, 3
    %p129 = pnand %p127, %p128
    %p130 = pneg %p129
    // Predicated region
    $region9: #{_lambda_.10} parent=5 // pred_check
      _
    $region10: #{_lambda_.10} parent=5 // pred_check_branch
      %132 = sbr.rel (%p129) target = $region12
    $region11: #{_lambda_.10} parent=5 // pred_region
      %s133 = ssub.s32 %s9, 1
      // Predicated region
      $region13: #{_lambda_.10} parent=11 // pred_check
        %p134 = pneg %p70
      $region14: #{_lambda_.10} parent=11 // pred_check_branch
        %136 = sbr.rel (%p134) target = $region16
      $region15: #{_lambda_.10} parent=11 // pred_region
        _
      $region16: #{_lambda_.10} parent=11 // pred_fallthru
        _
      // Predicated region
      $region17: #{_lambda_.10} parent=11 // pred_check
        %p137 = pneg %p91
      $region18: #{_lambda_.10} parent=11 // pred_check_branch
        %139 = sbr.rel (%p137) target = $region20
      $region19: #{_lambda_.10} parent=11 // pred_region
        _
      $region20: #{_lambda_.10} parent=11 // pred_fallthru
        _
    $region12: #{_lambda_.10} parent=5 // pred_fallthru
      _
    %p140 = scmp.lt.s32.totalorder %s9, 2
    // Predicated region
    $region21: #{_lambda_.10} parent=5 // pred_check
      %p141 = pneg %p140
    $region22: #{_lambda_.10} parent=5 // pred_check_branch
      %143 = sbr.rel (%p141) target = $region24
    $region23: #{_lambda_.10} parent=5 // pred_region
      // Predicated region
      $region25: #{_lambda_.10} parent=23 // pred_check
        %p144 = pneg %p43
      $region26: #{_lambda_.10} parent=23 // pred_check_branch
        %146 = sbr.rel (%p144) target = $region28
      $region27: #{_lambda_.10} parent=23 // pred_region
        %s147 = smul.u32 8, %s17
        %p148 = scmp.lt.s32.totalorder %s16, 1
        %s149 = scalar_select %p148, %s16, 1
        %p150 = scmp.lt.s32.totalorder %s147, 7
        %s151 = scalar_select %p150, %s147, 7
        %s152 = smul.addr %s149, 8
        %s153 = sadd.s32 %s151, %s152
        %s154 = smul.addr %s153, 4
        %s155 = scalar_lea.vmem %s0, %s154
        %s156 = smul.u32 8, %s17
      $region28: #{_lambda_.10} parent=23 // pred_fallthru
        _
    $region24: #{_lambda_.10} parent=5 // pred_fallthru
      _
    %p157 = scmp.le.s32.totalorder 1, %s9
    %p158 = scmp.lt.s32.totalorder %s9, 3
    %p159 = pnand %p157, %p158
    %p160 = pneg %p159
    // Predicated region
    $region29: #{_lambda_.10} parent=5 // pred_check
      _
    $region30: #{_lambda_.10} parent=5 // pred_check_branch
      %162 = sbr.rel (%p159) target = $region32
    $region31: #{_lambda_.10} parent=5 // pred_region
      %s163 = ssub.s32 %s9, 1
      %s164 = smul.u32 8, %s19
      %p165 = scmp.lt.s32.totalorder %s18, 1
      %s166 = scalar_select %p165, %s18, 1
      %p167 = scmp.lt.s32.totalorder %s164, 7
      %s168 = scalar_select %p167, %s164, 7
      %s169 = smul.addr %s166, 8
      %s170 = sadd.s32 %s168, %s169
      %s171 = smul.addr %s170, 4
      %s172 = scalar_lea.vmem %s0, %s171
      %p173 = pneg %p49
      %p174 = pneg %p46
      %p175 = pneg %p70
      %p176 = pneg %p67
      %p177 = pneg %p91
      %p178 = pneg %p88
      %p179 = pneg %p119
      %p180 = pneg %p116
      %s181 = smul.u32 8, %s19
      %p182 = scmp.lt.s32.totalorder %s18, 1
      %s183 = scalar_select %p182, %s18, 1
      %p184 = scmp.lt.s32.totalorder %s181, 7
      %s185 = scalar_select %p184, %s181, 7
      %s186 = smul.addr %s183, 8
      %s187 = sadd.s32 %s185, %s186
      %s188 = smul.addr %s187, 4
      %s189 = scalar_lea.vmem %s3, %s188
      %s190 = smul.u32 8, %s19
      %p191 = scmp.lt.s32.totalorder %s18, 1
      %s192 = scalar_select %p191, %s18, 1
      %p193 = scmp.lt.s32.totalorder %s190, 7
      %s194 = scalar_select %p193, %s190, 7
      %s195 = smul.addr %s192, 8
      %s196 = sadd.s32 %s194, %s195
      %s197 = smul.addr %s196, 4
      %s198 = scalar_lea.vmem %s0, %s197
      %s199 = smul.u32 8, %s19
      %s200 = smul.u32 8, %s19
      %p201 = scmp.lt.s32.totalorder %s18, 1
      %s202 = scalar_select %p201, %s18, 1
      %p203 = scmp.lt.s32.totalorder %s200, 7
      %s204 = scalar_select %p203, %s200, 7
      %s205 = smul.addr %s202, 8
      %s206 = sadd.s32 %s204, %s205
      %s207 = smul.addr %s206, 4
      %s208 = scalar_lea.vmem %s3, %s207
      %s209 = smul.u32 8, %s19
      %v210 = vld [vmem:[%s198] sm:$0xf]
      %v211 = vld [vmem:[%s198 + $0x4] sm:$0xf]
      %v212 = vld [vmem:[%s198 + $0x8] sm:$0xf]
      %v213 = vld [vmem:[%s198 + $0xc] sm:$0xf]
      %v214 = vld [vmem:[%s198 + $0x10] sm:$0xf]
      %v215 = vld [vmem:[%s198 + $0x14] sm:$0xf]
      %v216 = vld [vmem:[%s198 + $0x18] sm:$0xf]
      %v217 = vld [vmem:[%s198 + $0x1c] sm:$0xf]
      %v218 = vunpack.c.l.bf16 %v210
      %v219 = vunpack.c.l.bf16 %v211
      %v220 = vunpack.c.l.bf16 %v212
      %v221 = vunpack.c.l.bf16 %v213
      %v222 = vunpack.c.l.bf16 %v214
      %v223 = vunpack.c.l.bf16 %v215
      %v224 = vunpack.c.l.bf16 %v216
      %v225 = vunpack.c.l.bf16 %v217
      %v226 = vld [vmem:[%s1] sm:$0x1]
      %v228 = vlaneseq
      %v229 = vshrl.u32 %v228, 7
      %v230 = vsub.s32 0, %v229
      %v231 = vrot.slane %v226, %v230
      %v233 = vmul.f32 %v218, %v231
      %v234 = vmul.f32 %v219, %v231
      %v235 = vmul.f32 %v220, %v231
      %v236 = vmul.f32 %v221, %v231
      %v237 = vmul.f32 %v222, %v231
      %v238 = vmul.f32 %v223, %v231
      %v239 = vmul.f32 %v224, %v231
      %v240 = vmul.f32 %v225, %v231
      %v241 = vld [vmem:[%s2] sm:$0x1]
      %v243 = vlaneseq
      %v244 = vshrl.u32 %v243, 7
      %v245 = vsub.s32 0, %v244
      %v246 = vrot.slane %v241, %v245
      %v248 = vadd.f32 %v233, %v246
      %v249 = vadd.f32 %v234, %v246
      %v250 = vadd.f32 %v235, %v246
      %v251 = vadd.f32 %v236, %v246
      %v252 = vadd.f32 %v237, %v246
      %v253 = vadd.f32 %v238, %v246
      %v254 = vadd.f32 %v239, %v246
      %v255 = vadd.f32 %v240, %v246
      %vm256 = vcmp.ge.f32.partialorder %v248, 0.0
      %vm257 = vcmp.ge.f32.partialorder %v249, 0.0
      %vm258 = vcmp.ge.f32.partialorder %v250, 0.0
      %vm259 = vcmp.ge.f32.partialorder %v251, 0.0
      %vm260 = vcmp.ge.f32.partialorder %v252, 0.0
      %vm261 = vcmp.ge.f32.partialorder %v253, 0.0
      %vm262 = vcmp.ge.f32.partialorder %v254, 0.0
      %vm263 = vcmp.ge.f32.partialorder %v255, 0.0
      %v264 = vmul.f32 %v248, 0.2
      %v265 = vmul.f32 %v249, 0.2
      %v266 = vmul.f32 %v250, 0.2
      %v267 = vmul.f32 %v251, 0.2
      %v268 = vmul.f32 %v252, 0.2
      %v269 = vmul.f32 %v253, 0.2
      %v270 = vmul.f32 %v254, 0.2
      %v271 = vmul.f32 %v255, 0.2
      %v272 = vsel %vm256, %v248, %v264
      %v273 = vsel %vm257, %v249, %v265
      %v274 = vsel %vm258, %v250, %v266
      %v275 = vsel %vm259, %v251, %v267
      %v276 = vsel %vm260, %v252, %v268
      %v277 = vsel %vm261, %v253, %v269
      %v278 = vsel %vm262, %v254, %v270
      %v279 = vsel %vm263, %v255, %v271
      %v280 = vpack.c.bf16 %v272, %v272
      %v281 = vpack.c.bf16 %v273, %v273
      %v282 = vpack.c.bf16 %v274, %v274
      %v283 = vpack.c.bf16 %v275, %v275
      %v284 = vpack.c.bf16 %v276, %v276
      %v285 = vpack.c.bf16 %v277, %v277
      %v286 = vpack.c.bf16 %v278, %v278
      %v287 = vpack.c.bf16 %v279, %v279
      %vm288 = vcmask 125952
      %289 = vst.msk [vmem:[%s208] sm:$0xf] %vm288, %v280
      %290 = vst.msk [vmem:[%s208 + $0x4] sm:$0xf] %vm288, %v281
      %291 = vst.msk [vmem:[%s208 + $0x8] sm:$0xf] %vm288, %v282
      %292 = vst.msk [vmem:[%s208 + $0xc] sm:$0xf] %vm288, %v283
      %293 = vst.msk [vmem:[%s208 + $0x10] sm:$0xf] %vm288, %v284
      %294 = vst.msk [vmem:[%s208 + $0x14] sm:$0xf] %vm288, %v285
      %295 = vst.msk [vmem:[%s208 + $0x18] sm:$0xf] %vm288, %v286
      %296 = vst.msk [vmem:[%s208 + $0x1c] sm:$0xf] %vm288, %v287
      %s297 = smul.u32 8, %s19
      %p298 = scmp.lt.s32.totalorder %s18, 1
      %s299 = scalar_select %p298, %s18, 1
      %p300 = scmp.lt.s32.totalorder %s297, 7
      %s301 = scalar_select %p300, %s297, 7
      %s302 = smul.addr %s299, 8
      %s303 = sadd.s32 %s301, %s302
      %s304 = smul.addr %s303, 4
      %s305 = scalar_lea.vmem %s3, %s304
      // Predicated region
      $region33: #{_lambda_.10} parent=31 // pred_check
        %p306 = pneg %p116
      $region34: #{_lambda_.10} parent=31 // pred_check_branch
        %308 = sbr.rel (%p306) target = $region36
      $region35: #{_lambda_.10} parent=31 // pred_region
        %s309 = smul.u32 8, %s19
      $region36: #{_lambda_.10} parent=31 // pred_fallthru
        _
    $region32: #{_lambda_.10} parent=5 // pred_fallthru
      _
    %p310 = scmp.le.s32.totalorder 2, %s9
    // Predicated region
    $region37: #{_lambda_.10} parent=5 // pred_check
      %p311 = pneg %p310
    $region38: #{_lambda_.10} parent=5 // pred_check_branch
      %313 = sbr.rel (%p311) target = $region40
    $region39: #{_lambda_.10} parent=5 // pred_region
      %s314 = ssub.s32 %s9, 2
      // Predicated region
      $region41: #{_lambda_.10} parent=39 // pred_check
        %p315 = pneg %p122
      $region42: #{_lambda_.10} parent=39 // pred_check_branch
        %317 = sbr.rel (%p315) target = $region44
      $region43: #{_lambda_.10} parent=39 // pred_region
        %s318 = smul.u32 8, %s21
        %p319 = scmp.lt.s32.totalorder %s20, 1
        %s320 = scalar_select %p319, %s20, 1
        %p321 = scmp.lt.s32.totalorder %s318, 7
        %s322 = scalar_select %p321, %s318, 7
        %s323 = smul.addr %s320, 8
        %s324 = sadd.s32 %s322, %s323
        %s325 = smul.addr %s324, 4
        %s326 = scalar_lea.vmem %s3, %s325
      $region44: #{_lambda_.10} parent=39 // pred_fallthru
        _
    $region40: #{_lambda_.10} parent=5 // pred_fallthru
      _
  $region6: #{_lambda_.10} parent=0 // loop_footer
    %s13 = sadd.s32 1, %s9
  $region7: #{_lambda_.10} parent=0 // loop_footer_branch
    %8 = sbr.rel target = $region3
  $region8: #{_lambda_.10} parent=0 // loop_exit
    _

// kernel: _lambda_.9
$region0: #{_lambda_.9}
  #allocation0 [shape = 'u32[]', space=smem, size = 0x4, offset = 0x4, fixed_abs, tag = 'smem constant byte address 0x4 - core index']
  #allocation1 [shape = 'u32[144,128]{1,0:T(1,128)}', space=vmem, size = 0x12000, scoped, tag = 'internal scratch']
  %s0 = inlined_call_operand.vmem [shape: bf16[2,9,9,32], index: 0, kind: input, shape index: {}]
  %s1 = inlined_call_operand.vmem [shape: bf16[4,32,16], index: 1, kind: input, shape index: {}]
  %s2 = inlined_call_operand.vmem [shape: bf16[2,8,8,16], index: 2, kind: output, shape index: {0}]
  %s3 = inlined_call_operand.vmem [shape: f32[2,1,8,16], index: 3, kind: output, shape index: {1}]
  %s4 = inlined_call_operand.vmem [shape: f32[2,1,8,16], index: 4, kind: output, shape index: {2}]
  %5 = xla_tuple %s2, %s3, %s4
  %s6 = sld [smem:[#allocation0]]
  $region57: #{_lambda_.9} parent=0
    _
  %s8 = ssub.s32 1, %s6
  %s9 = scalar_select 0, %s8, %s6
  loop: start=0, step=1, limit=4
  $region2: #{_lambda_.9} parent=0 // loop_pre_header
    _
  $region3: #{_lambda_.9} parent=0 // loop_header
    %s11 = sphi 0, %s15
    %p12 = scmp.ge.s32.totalorder %s11, 4
    %s18 = sphi 0, %s30
    %s19 = sphi 0, %s26
    %s20 = sphi 0, %s18
    %s21 = sphi 0, %s19
    %s22 = sphi 0, %s20
    %s23 = sphi 0, %s21
    %s33 = sphi 0, %s35
    %s36 = sphi 0, %s33
    %s37 = sphi 0, %s36
    %s53 = sphi 0, %s37
    %s57 = sphi 0, %s57
    %s59 = sphi 0, %s57
    %s60 = sphi 0, %s59
    %s74 = sphi 0, %s60
    %s82 = sphi 0, %s84
    %s85 = sphi 0, %s82
    %s86 = sphi 0, %s85
    %s102 = sphi 0, %s86
    %s110 = sphi 0, %s112
    %s113 = sphi 0, %s110
    %s114 = sphi 0, %s113
    %s130 = sphi 0, %s114
    %s138 = sphi 0, %s140
    %s141 = sphi 0, %s138
    %s142 = sphi 0, %s141
    %s158 = sphi 0, %s142
  $region4: #{_lambda_.9} parent=0 // loop_header_branch
    %14 = sbr.rel (%p12) target = $region8
  $region5: #{_lambda_.9} parent=0 // loop_body
    %s16 = ssub.s32 %s11, 1
    %s17 = ssub.s32 %s11, 2
    %s24 = sadd.s32 1, %s19
    %p25 = scmp.ge.s32.totalorder %s24, 1
    %s26 = scalar_select %p25, 0, %s24
    %s27 = sadd.s32 1, %s18
    %s28 = scalar_select %p25, %s27, %s18
    %p29 = scmp.ge.s32.totalorder %s28, 2
    %s30 = scalar_select %p29, 0, %s28
    %s31 = ssub.s32 %s18, %s30
    %p32 = scmp.eq.s32.totalorder %s31, 0
    %s34 = sadd.s32 %s33, 1
    %s35 = scalar_select %p32, %s33, %s34
    %p38 = pneg %p32
    %p39 = scmp.eq.s32.totalorder %s11, 1
    %p40 = por %p38, %p39
    %p41 = scmp.ne.s32.totalorder %s33, %s36
    %p42 = scmp.eq.s32.totalorder %s11, 0
    %p43 = por %p41, %p42
    %p44 = scmp.ne.s32.totalorder %s33, %s36
    %p45 = scmp.eq.s32.totalorder %s16, 1
    %p46 = por %p44, %p45
    %p47 = scmp.ne.s32.totalorder %s36, %s37
    %p48 = scmp.eq.s32.totalorder %s16, 0
    %p49 = por %p47, %p48
    %p50 = scmp.ne.s32.totalorder %s36, %s37
    %p51 = scmp.eq.s32.totalorder %s17, 1
    %p52 = por %p50, %p51
    %p54 = scmp.ne.s32.totalorder %s37, %s53
    %p55 = scmp.eq.s32.totalorder %s17, 0
    %p56 = por %p54, %p55
    %s58 = sadd.s32 %s57, 1
    %p61 = scmp.eq.s32.totalorder %s11, 1
    %p62 = scmp.ne.s32.totalorder %s57, %s59
    %p63 = scmp.eq.s32.totalorder %s11, 0
    %p64 = por %p62, %p63
    %p65 = scmp.ne.s32.totalorder %s57, %s59
    %p66 = scmp.eq.s32.totalorder %s16, 1
    %p67 = por %p65, %p66
    %p68 = scmp.ne.s32.totalorder %s59, %s60
    %p69 = scmp.eq.s32.totalorder %s16, 0
    %p70 = por %p68, %p69
    %p71 = scmp.ne.s32.totalorder %s59, %s60
    %p72 = scmp.eq.s32.totalorder %s17, 1
    %p73 = por %p71, %p72
    %p75 = scmp.ne.s32.totalorder %s60, %s74
    %p76 = scmp.eq.s32.totalorder %s17, 0
    %p77 = por %p75, %p76
    %s78 = ssub.s32 %s18, %s30
    %s79 = ssub.s32 %s19, %s26
    %s80 = sor.u32 %s78, %s79
    %p81 = scmp.eq.s32.totalorder %s80, 0
    %s83 = sadd.s32 %s82, 1
    %s84 = scalar_select %p81, %s82, %s83
    %p87 = pneg %p81
    %p88 = scmp.eq.s32.totalorder %s11, 1
    %p89 = por %p87, %p88
    %p90 = scmp.ne.s32.totalorder %s82, %s85
    %p91 = scmp.eq.s32.totalorder %s11, 0
    %p92 = por %p90, %p91
    %p93 = scmp.ne.s32.totalorder %s82, %s85
    %p94 = scmp.eq.s32.totalorder %s16, 1
    %p95 = por %p93, %p94
    %p96 = scmp.ne.s32.totalorder %s85, %s86
    %p97 = scmp.eq.s32.totalorder %s16, 0
    %p98 = por %p96, %p97
    %p99 = scmp.ne.s32.totalorder %s85, %s86
    %p100 = scmp.eq.s32.totalorder %s17, 1
    %p101 = por %p99, %p100
    %p103 = scmp.ne.s32.totalorder %s86, %s102
    %p104 = scmp.eq.s32.totalorder %s17, 0
    %p105 = por %p103, %p104
    %s106 = ssub.s32 %s18, %s30
    %s107 = ssub.s32 %s19, %s26
    %s108 = sor.u32 %s106, %s107
    %p109 = scmp.eq.s32.totalorder %s108, 0
    %s111 = sadd.s32 %s110, 1
    %s112 = scalar_select %p109, %s110, %s111
    %p115 = pneg %p109
    %p116 = scmp.eq.s32.totalorder %s11, 1
    %p117 = por %p115, %p116
    %p118 = scmp.ne.s32.totalorder %s110, %s113
    %p119 = scmp.eq.s32.totalorder %s11, 0
    %p120 = por %p118, %p119
    %p121 = scmp.ne.s32.totalorder %s110, %s113
    %p122 = scmp.eq.s32.totalorder %s16, 1
    %p123 = por %p121, %p122
    %p124 = scmp.ne.s32.totalorder %s113, %s114
    %p125 = scmp.eq.s32.totalorder %s16, 0
    %p126 = por %p124, %p125
    %p127 = scmp.ne.s32.totalorder %s113, %s114
    %p128 = scmp.eq.s32.totalorder %s17, 1
    %p129 = por %p127, %p128
    %p131 = scmp.ne.s32.totalorder %s114, %s130
    %p132 = scmp.eq.s32.totalorder %s17, 0
    %p133 = por %p131, %p132
    %s134 = ssub.s32 %s18, %s30
    %s135 = ssub.s32 %s19, %s26
    %s136 = sor.u32 %s134, %s135
    %p137 = scmp.eq.s32.totalorder %s136, 0
    %s139 = sadd.s32 %s138, 1
    %s140 = scalar_select %p137, %s138, %s139
    %p143 = pneg %p137
    %p144 = scmp.eq.s32.totalorder %s11, 1
    %p145 = por %p143, %p144
    %p146 = scmp.ne.s32.totalorder %s138, %s141
    %p147 = scmp.eq.s32.totalorder %s11, 0
    %p148 = por %p146, %p147
    %p149 = scmp.ne.s32.totalorder %s138, %s141
    %p150 = scmp.eq.s32.totalorder %s16, 1
    %p151 = por %p149, %p150
    %p152 = scmp.ne.s32.totalorder %s141, %s142
    %p153 = scmp.eq.s32.totalorder %s16, 0
    %p154 = por %p152, %p153
    %p155 = scmp.ne.s32.totalorder %s141, %s142
    %p156 = scmp.eq.s32.totalorder %s17, 1
    %p157 = por %p155, %p156
    %p159 = scmp.ne.s32.totalorder %s142, %s158
    %p160 = scmp.eq.s32.totalorder %s17, 0
    %p161 = por %p159, %p160
    %p162 = scmp.le.s32.totalorder 1, %s11
    %p163 = scmp.lt.s32.totalorder %s11, 3
    %p164 = pnand %p162, %p163
    %p165 = pneg %p164
    // Predicated region
    $region9: #{_lambda_.9} parent=5 // pred_check
      _
    $region10: #{_lambda_.9} parent=5 // pred_check_branch
      %167 = sbr.rel (%p164) target = $region12
    $region11: #{_lambda_.9} parent=5 // pred_region
      %s168 = ssub.s32 %s11, 1
      // Predicated region
      $region13: #{_lambda_.9} parent=11 // pred_check
        %p169 = pneg %p70
      $region14: #{_lambda_.9} parent=11 // pred_check_branch
        %171 = sbr.rel (%p169) target = $region16
      $region15: #{_lambda_.9} parent=11 // pred_region
        _
      $region16: #{_lambda_.9} parent=11 // pred_fallthru
        _
    $region12: #{_lambda_.9} parent=5 // pred_fallthru
      _
    %p172 = scmp.lt.s32.totalorder %s11, 2
    // Predicated region
    $region17: #{_lambda_.9} parent=5 // pred_check
      %p173 = pneg %p172
    $region18: #{_lambda_.9} parent=5 // pred_check_branch
      %175 = sbr.rel (%p173) target = $region20
    $region19: #{_lambda_.9} parent=5 // pred_region
      // Predicated region
      $region21: #{_lambda_.9} parent=19 // pred_check
        %p176 = pneg %p43
      $region22: #{_lambda_.9} parent=19 // pred_check_branch
        %178 = sbr.rel (%p176) target = $region24
      $region23: #{_lambda_.9} parent=19 // pred_region
        %p179 = scmp.lt.s32.totalorder %s18, 1
        %s180 = scalar_select %p179, %s18, 1
        %s181 = smul.addr %s180, 18
        %s182 = smul.addr %s181, 4
        %s183 = scalar_lea.vmem %s0, %s182
      $region24: #{_lambda_.9} parent=19 // pred_fallthru
        _
    $region20: #{_lambda_.9} parent=5 // pred_fallthru
      _
    %p184 = scmp.le.s32.totalorder 1, %s11
    %p185 = scmp.lt.s32.totalorder %s11, 3
    %p186 = pnand %p184, %p185
    %p187 = pneg %p186
    // Predicated region
    $region25: #{_lambda_.9} parent=5 // pred_check
      _
    $region26: #{_lambda_.9} parent=5 // pred_check_branch
      %189 = sbr.rel (%p186) target = $region28
    $region27: #{_lambda_.9} parent=5 // pred_region
      %s190 = ssub.s32 %s11, 1
      %p191 = scmp.lt.s32.totalorder %s20, 1
      %s192 = scalar_select %p191, %s20, 1
      %s193 = smul.addr %s192, 18
      %s194 = smul.addr %s193, 4
      %s195 = scalar_lea.vmem %s0, %s194
      %p196 = pneg %p49
      %p197 = pneg %p46
      %p198 = pneg %p70
      %p199 = pneg %p67
      %p200 = pneg %p98
      %p201 = pneg %p95
      %s202 = smul.u32 8, %s21
      %p203 = scmp.lt.s32.totalorder %s20, 1
      %s204 = scalar_select %p203, %s20, 1
      %p205 = scmp.lt.s32.totalorder %s202, 7
      %s206 = scalar_select %p205, %s202, 7
      %s207 = smul.addr %s204, 8
      %s208 = sadd.s32 %s206, %s207
      %s209 = smul.addr %s208, 4
      %s210 = scalar_lea.vmem %s2, %s209
      %p211 = pneg %p126
      %p212 = pneg %p123
      %p213 = scmp.lt.s32.totalorder %s20, 1
      %s214 = scalar_select %p213, %s20, 1
      %p215 = scmp.lt.s32.totalorder %s21, 0
      %s216 = scalar_select %p215, %s21, 0
      %s217 = sadd.s32 %s216, %s214
      %s218 = smul.addr %s217, 8
      %s219 = scalar_lea.vmem %s3, %s218
      %p220 = pneg %p154
      %p221 = pneg %p151
      %p222 = scmp.lt.s32.totalorder %s20, 1
      %s223 = scalar_select %p222, %s20, 1
      %p224 = scmp.lt.s32.totalorder %s21, 0
      %s225 = scalar_select %p224, %s21, 0
      %s226 = sadd.s32 %s225, %s223
      %s227 = smul.addr %s226, 8
      %s228 = scalar_lea.vmem %s4, %s227
      %p229 = scmp.lt.s32.totalorder %s20, 1
      %s230 = scalar_select %p229, %s20, 1
      %s231 = smul.addr %s230, 18
      %s232 = smul.addr %s231, 4
      %s233 = scalar_lea.vmem %s0, %s232
      %s234 = smul.u32 8, %s21
      %p235 = scmp.lt.s32.totalorder %s20, 1
      %s236 = scalar_select %p235, %s20, 1
      %p237 = scmp.lt.s32.totalorder %s234, 7
      %s238 = scalar_select %p237, %s234, 7
      %s239 = smul.addr %s236, 8
      %s240 = sadd.s32 %s238, %s239
      %s241 = smul.addr %s240, 4
      %s242 = scalar_lea.vmem %s2, %s241
      %s243 = smul.u32 8, %s21
      %p244 = scmp.lt.s32.totalorder %s20, 1
      %s245 = scalar_select %p244, %s20, 1
      %p246 = scmp.lt.s32.totalorder %s21, 0
      %s247 = scalar_select %p246, %s21, 0
      %s248 = sadd.s32 %s247, %s245
      %s249 = smul.addr %s248, 8
      %s250 = scalar_lea.vmem %s3, %s249
      %p251 = scmp.lt.s32.totalorder %s20, 1
      %s252 = scalar_select %p251, %s20, 1
      %p253 = scmp.lt.s32.totalorder %s21, 0
      %s254 = scalar_select %p253, %s21, 0
      %s255 = sadd.s32 %s254, %s252
      %s256 = smul.addr %s255, 8
      %s257 = scalar_lea.vmem %s4, %s256
      %s259 = smul.u32 %s21, 8
      %s260 = smul.u32 %s259, 2
      %s261 = smul.addr %s260, 4
      %s262 = scalar_lea.vmem %s233, %s261
      %v263 = vld [vmem:[%s262] sm:$0xf]
      %v264 = vld [vmem:[%s262 + $0x8] sm:$0xf]
      %v265 = vld [vmem:[%s262 + $0x10] sm:$0xf]
      %v266 = vld [vmem:[%s262 + $0x18] sm:$0xf]
      %v267 = vld [vmem:[%s262 + $0x20] sm:$0xf]
      %v268 = vld [vmem:[%s262 + $0x28] sm:$0xf]
      %v269 = vld [vmem:[%s262 + $0x30] sm:$0xf]
      %v270 = vld [vmem:[%s262 + $0x38] sm:$0xf]
      %v271 = vld [vmem:[%s1] sm:$0xf]
      %v272 = vld [vmem:[%s1 + $0x4] sm:$0xf]
      %v273 = vld [vmem:[%s1 + $0x8] sm:$0xf]
      %v274 = vld [vmem:[%s1 + $0xc] sm:$0xf]
      %v275 = vld [vmem:[%s262 + $0x4] sm:$0x1]
      %v276 = vld [vmem:[%s262 + $0xc] sm:$0x1]
      %v277 = vld [vmem:[%s262 + $0x14] sm:$0x1]
      %v278 = vld [vmem:[%s262 + $0x1c] sm:$0x1]
      %v279 = vld [vmem:[%s262 + $0x24] sm:$0x1]
      %v280 = vld [vmem:[%s262 + $0x2c] sm:$0x1]
      %v281 = vld [vmem:[%s262 + $0x34] sm:$0x1]
      %v282 = vld [vmem:[%s262 + $0x3c] sm:$0x1]
      %vm283 = vsmask.f32 3328
      %vm284 = vsmask.f32 7440
      %vm285 = vmor %vm283, %vm284
      %v287 = vshrl.u32 %v263, 16
      %v289 = vrot.slane %v287, 4
      %v290 = vshll.u32 %v263, 16
      %v292 = vrot.slane %v290, 5
      %v293 = vor.u32 %v289, %v292
      %v294 = vrot.slane %v293, 4
      %v296 = vshll.u32 %v275, 16
      %v298 = vrot.slane %v296, 5
      %v299 = vsel %vm285, %v294, %v298
      %v301 = vshrl.u32 %v264, 16
      %v303 = vrot.slane %v301, 4
      %v304 = vshll.u32 %v264, 16
      %v306 = vrot.slane %v304, 5
      %v307 = vor.u32 %v303, %v306
      %v308 = vrot.slane %v307, 4
      %v310 = vshll.u32 %v276, 16
      %v312 = vrot.slane %v310, 5
      %v313 = vsel %vm285, %v308, %v312
      %v315 = vshrl.u32 %v265, 16
      %v317 = vrot.slane %v315, 4
      %v318 = vshll.u32 %v265, 16
      %v320 = vrot.slane %v318, 5
      %v321 = vor.u32 %v317, %v320
      %v322 = vrot.slane %v321, 4
      %v324 = vshll.u32 %v277, 16
      %v326 = vrot.slane %v324, 5
      %v327 = vsel %vm285, %v322, %v326
      %v329 = vshrl.u32 %v266, 16
      %v331 = vrot.slane %v329, 4
      %v332 = vshll.u32 %v266, 16
      %v334 = vrot.slane %v332, 5
      %v335 = vor.u32 %v331, %v334
      %v336 = vrot.slane %v335, 4
      %v338 = vshll.u32 %v278, 16
      %v340 = vrot.slane %v338, 5
      %v341 = vsel %vm285, %v336, %v340
      %v343 = vshrl.u32 %v267, 16
      %v345 = vrot.slane %v343, 4
      %v346 = vshll.u32 %v267, 16
      %v348 = vrot.slane %v346, 5
      %v349 = vor.u32 %v345, %v348
      %v350 = vrot.slane %v349, 4
      %v352 = vshll.u32 %v279, 16
      %v354 = vrot.slane %v352, 5
      %v355 = vsel %vm285, %v350, %v354
      %v357 = vshrl.u32 %v268, 16
      %v359 = vrot.slane %v357, 4
      %v360 = vshll.u32 %v268, 16
      %v362 = vrot.slane %v360, 5
      %v363 = vor.u32 %v359, %v362
      %v364 = vrot.slane %v363, 4
      %v366 = vshll.u32 %v280, 16
      %v368 = vrot.slane %v366, 5
      %v369 = vsel %vm285, %v364, %v368
      %v371 = vshrl.u32 %v269, 16
      %v373 = vrot.slane %v371, 4
      %v374 = vshll.u32 %v269, 16
      %v376 = vrot.slane %v374, 5
      %v377 = vor.u32 %v373, %v376
      %v378 = vrot.slane %v377, 4
      %v380 = vshll.u32 %v281, 16
      %v382 = vrot.slane %v380, 5
      %v383 = vsel %vm285, %v378, %v382
      %v385 = vshrl.u32 %v270, 16
      %v387 = vrot.slane %v385, 4
      %v388 = vshll.u32 %v270, 16
      %v390 = vrot.slane %v388, 5
      %v391 = vor.u32 %v387, %v390
      %v392 = vrot.slane %v391, 4
      %v394 = vshll.u32 %v282, 16
      %v396 = vrot.slane %v394, 5
      %v397 = vsel %vm285, %v392, %v396
      %s398 = scalar_lea.vmem %s1, 16
      %v399 = vld [vmem:[%s398] sm:$0xf]
      %v400 = vld [vmem:[%s398 + $0x4] sm:$0xf]
      %v401 = vld [vmem:[%s398 + $0x8] sm:$0xf]
      %v402 = vld [vmem:[%s398 + $0xc] sm:$0xf]
      %v403 = vunpack.c.l.b16 %v299
      %v404 = vunpack.c.l.b16 %v313
      %v405 = vunpack.c.l.b16 %v327
      %v406 = vunpack.c.l.b16 %v341
      %v407 = vunpack.c.l.b16 %v355
      %v408 = vunpack.c.l.b16 %v369
      %v409 = vunpack.c.l.b16 %v383
      %v410 = vunpack.c.l.b16 %v397
      %v411 = vpack.c.b16 %v404, %v403
      %v412 = vpack.c.b16 %v406, %v405
      %v413 = vpack.c.b16 %v408, %v407
      %v414 = vpack.c.b16 %v410, %v409
      %v419 = vunpack.c.l.b16 %v399
      %v420 = vunpack.c.l.b16 %v400
      %v421 = vunpack.c.l.b16 %v401
      %v422 = vunpack.c.l.b16 %v402
      %v423 = vpack.c.b16 %v420, %v419
      %v424 = vpack.c.b16 %v422, %v421
      %vm427 = vcmask 261120
      %v429 = vsel %vm427, %v411, 0
      %v432 = vsel %vm427, %v412, 0
      %v435 = vsel %vm427, %v413, 0
      %v438 = vsel %vm427, %v414, 0
      %440 = vmatprep.subr.bf16.mxu0 0
      %441 = vmatpush1.bf16.msra.mxu0 %v423
      %442 = vmatprep.subr.bf16.mxu0 0
      %443 = vmatpush1.bf16.msra.mxu0 %v424
      %444 = vmatprep.subr.bf16.mxu0 0
      %445 = vmatpush1.bf16.msra.mxu0 0
      %446 = vmatprep.subr.bf16.mxu0 0
      %447 = vmatpush1.bf16.msra.mxu0 0
      %448 = vmatprep.subr.bf16.mxu0 0
      %449 = vmatpush1.bf16.msra.mxu0 0
      %450 = vmatprep.subr.bf16.mxu0 0
      %451 = vmatpush1.bf16.msra.mxu0 0
      %452 = vmatprep.subr.bf16.mxu0 0
      %453 = vmatpush1.bf16.msra.mxu0 0
      %454 = vmatprep.subr.bf16.mxu0 0
      %455 = vmatpush1.bf16.msra.mxu0 0
      %456 = vmatprep.subr.bf16.mxu0 0
      %457 = vmatpush1.bf16.msra.mxu0 0
      %458 = vmatprep.subr.bf16.mxu0 0
      %459 = vmatpush1.bf16.msra.mxu0 0
      %460 = vmatprep.subr.bf16.mxu0 0
      %461 = vmatpush1.bf16.msra.mxu0 0
      %462 = vmatprep.subr.bf16.mxu0 0
      %463 = vmatpush1.bf16.msra.mxu0 0
      %464 = vmatprep.subr.bf16.mxu0 0
      %465 = vmatpush1.bf16.msra.mxu0 0
      %466 = vmatprep.subr.bf16.mxu0 0
      %467 = vmatpush1.bf16.msra.mxu0 0
      %468 = vmatprep.subr.bf16.mxu0 0
      %469 = vmatpush1.bf16.msra.mxu0 0
      %470 = vmatprep.subr.bf16.mxu0 0
      %471 = vmatpush1.bf16.msra.mxu0 0
      %472 = vmatprep.mubr.bf16.mxu0 0
      %473 = vmatmul.mubr.bf16.gmra.mrb[0].mxu0 %v429
      %v474 = vpop.f32.mrb[0].mxu0
      %v475 = vadd.f32 0.0, %v474
      %v476 = vpop.f32.mrb[0].mxu0
      %v477 = vpop.f32.mrb[0].mxu0
      %v478 = vadd.f32 0.0, %v477
      %v479 = vpop.f32.mrb[0].mxu0
      %480 = vmatprep.mubr.bf16.mxu0 0
      %481 = vmatmul.mubr.bf16.gmra.mrb[0].mxu0 %v432
      %v482 = vpop.f32.mrb[0].mxu0
      %v483 = vadd.f32 0.0, %v482
      %v484 = vpop.f32.mrb[0].mxu0
      %v485 = vpop.f32.mrb[0].mxu0
      %v486 = vadd.f32 0.0, %v485
      %v487 = vpop.f32.mrb[0].mxu0
      %488 = vmatprep.mubr.bf16.mxu0 0
      %489 = vmatmul.mubr.bf16.gmra.mrb[0].mxu0 %v435
      %v490 = vpop.f32.mrb[0].mxu0
      %v491 = vadd.f32 0.0, %v490
      %v492 = vpop.f32.mrb[0].mxu0
      %v493 = vpop.f32.mrb[0].mxu0
      %v494 = vadd.f32 0.0, %v493
      %v495 = vpop.f32.mrb[0].mxu0
      %496 = vmatprep.mubr.bf16.mxu0 0
      %497 = vmatmul.mubr.bf16.gmra.mrb[0].mxu0 %v438
      %v498 = vpop.f32.mrb[0].mxu0
      %v499 = vadd.f32 0.0, %v498
      %v500 = vpop.f32.mrb[0].mxu0
      %v501 = vpop.f32.mrb[0].mxu0
      %v502 = vadd.f32 0.0, %v501
      %v503 = vpop.f32.mrb[0].mxu0
      %504 = vdwg.mxu0
      %v513 = vunpack.c.l.b16 %v263
      %v514 = vunpack.c.l.b16 %v264
      %v515 = vunpack.c.l.b16 %v265
      %v516 = vunpack.c.l.b16 %v266
      %v517 = vunpack.c.l.b16 %v267
      %v518 = vunpack.c.l.b16 %v268
      %v519 = vunpack.c.l.b16 %v269
      %v520 = vunpack.c.l.b16 %v270
      %v521 = vpack.c.b16 %v514, %v513
      %v522 = vpack.c.b16 %v516, %v515
      %v523 = vpack.c.b16 %v518, %v517
      %v524 = vpack.c.b16 %v520, %v519
      %v529 = vunpack.c.l.b16 %v271
      %v530 = vunpack.c.l.b16 %v272
      %v531 = vunpack.c.l.b16 %v273
      %v532 = vunpack.c.l.b16 %v274
      %v533 = vpack.c.b16 %v530, %v529
      %v534 = vpack.c.b16 %v532, %v531
      %v538 = vsel %vm427, %v521, 0
      %v541 = vsel %vm427, %v522, 0
      %v544 = vsel %vm427, %v523, 0
      %v547 = vsel %vm427, %v524, 0
      %549 = vmatprep.subr.bf16.mxu0 0
      %550 = vmatpush1.bf16.msra.mxu0 %v533
      %551 = vmatprep.subr.bf16.mxu0 0
      %552 = vmatpush1.bf16.msra.mxu0 %v534
      %553 = vmatprep.subr.bf16.mxu0 0
      %554 = vmatpush1.bf16.msra.mxu0 0
      %555 = vmatprep.subr.bf16.mxu0 0
      %556 = vmatpush1.bf16.msra.mxu0 0
      %557 = vmatprep.subr.bf16.mxu0 0
      %558 = vmatpush1.bf16.msra.mxu0 0
      %559 = vmatprep.subr.bf16.mxu0 0
      %560 = vmatpush1.bf16.msra.mxu0 0
      %561 = vmatprep.subr.bf16.mxu0 0
      %562 = vmatpush1.bf16.msra.mxu0 0
      %563 = vmatprep.subr.bf16.mxu0 0
      %564 = vmatpush1.bf16.msra.mxu0 0
      %565 = vmatprep.subr.bf16.mxu0 0
      %566 = vmatpush1.bf16.msra.mxu0 0
      %567 = vmatprep.subr.bf16.mxu0 0
      %568 = vmatpush1.bf16.msra.mxu0 0
      %569 = vmatprep.subr.bf16.mxu0 0
      %570 = vmatpush1.bf16.msra.mxu0 0
      %571 = vmatprep.subr.bf16.mxu0 0
      %572 = vmatpush1.bf16.msra.mxu0 0
      %573 = vmatprep.subr.bf16.mxu0 0
      %574 = vmatpush1.bf16.msra.mxu0 0
      %575 = vmatprep.subr.bf16.mxu0 0
      %576 = vmatpush1.bf16.msra.mxu0 0
      %577 = vmatprep.subr.bf16.mxu0 0
      %578 = vmatpush1.bf16.msra.mxu0 0
      %579 = vmatprep.subr.bf16.mxu0 0
      %580 = vmatpush1.bf16.msra.mxu0 0
      %581 = vmatprep.mubr.bf16.mxu0 0
      %582 = vmatmul.mubr.bf16.gmra.mrb[0].mxu0 %v538
      %v583 = vpop.f32.mrb[0].mxu0
      %v584 = vadd.f32 %v475, %v583
      %v585 = vpop.f32.mrb[0].mxu0
      %v586 = vpop.f32.mrb[0].mxu0
      %v587 = vadd.f32 %v478, %v586
      %v588 = vpop.f32.mrb[0].mxu0
      %589 = vmatprep.mubr.bf16.mxu0 0
      %590 = vmatmul.mubr.bf16.gmra.mrb[0].mxu0 %v541
      %v591 = vpop.f32.mrb[0].mxu0
      %v592 = vadd.f32 %v483, %v591
      %v593 = vpop.f32.mrb[0].mxu0
      %v594 = vpop.f32.mrb[0].mxu0
      %v595 = vadd.f32 %v486, %v594
      %v596 = vpop.f32.mrb[0].mxu0
      %597 = vmatprep.mubr.bf16.mxu0 0
      %598 = vmatmul.mubr.bf16.gmra.mrb[0].mxu0 %v544
      %v599 = vpop.f32.mrb[0].mxu0
      %v600 = vadd.f32 %v491, %v599
      %v601 = vpop.f32.mrb[0].mxu0
      %v602 = vpop.f32.mrb[0].mxu0
      %v603 = vadd.f32 %v494, %v602
      %v604 = vpop.f32.mrb[0].mxu0
      %605 = vmatprep.mubr.bf16.mxu0 0
      %606 = vmatmul.mubr.bf16.gmra.mrb[0].mxu0 %v547
      %v607 = vpop.f32.mrb[0].mxu0
      %v608 = vadd.f32 %v499, %v607
      %v609 = vpop.f32.mrb[0].mxu0
      %v610 = vpop.f32.mrb[0].mxu0
      %v611 = vadd.f32 %v502, %v610
      %v612 = vpop.f32.mrb[0].mxu0
      %613 = vdwg.mxu0
      %s614 = sadd.s32 %s259, 1
      %s615 = smul.u32 %s614, 2
      %s616 = smul.addr %s615, 4
      %s617 = scalar_lea.vmem %s233, %s616
      %v618 = vld [vmem:[%s617] sm:$0xf]
      %v619 = vld [vmem:[%s617 + $0x8] sm:$0xf]
      %v620 = vld [vmem:[%s617 + $0x10] sm:$0xf]
      %v621 = vld [vmem:[%s617 + $0x18] sm:$0xf]
      %v622 = vld [vmem:[%s617 + $0x20] sm:$0xf]
      %v623 = vld [vmem:[%s617 + $0x28] sm:$0xf]
      %v624 = vld [vmem:[%s617 + $0x30] sm:$0xf]
      %v625 = vld [vmem:[%s617 + $0x38] sm:$0xf]
      %s626 = scalar_lea.vmem %s1, 32
      %v627 = vld [vmem:[%s626] sm:$0xf]
      %v628 = vld [vmem:[%s626 + $0x4] sm:$0xf]
      %v629 = vld [vmem:[%s626 + $0x8] sm:$0xf]
      %v630 = vld [vmem:[%s626 + $0xc] sm:$0xf]
      %v639 = vunpack.c.l.b16 %v618
      %v640 = vunpack.c.l.b16 %v619
      %v641 = vunpack.c.l.b16 %v620
      %v642 = vunpack.c.l.b16 %v621
      %v643 = vunpack.c.l.b16 %v622
      %v644 = vunpack.c.l.b16 %v623
      %v645 = vunpack.c.l.b16 %v624
      %v646 = vunpack.c.l.b16 %v625
      %v647 = vpack.c.b16 %v640, %v639
      %v648 = vpack.c.b16 %v642, %v641
      %v649 = vpack.c.b16 %v644, %v643
      %v650 = vpack.c.b16 %v646, %v645
      %v655 = vunpack.c.l.b16 %v627
      %v656 = vunpack.c.l.b16 %v628
      %v657 = vunpack.c.l.b16 %v629
      %v658 = vunpack.c.l.b16 %v630
      %v659 = vpack.c.b16 %v656, %v655
      %v660 = vpack.c.b16 %v658, %v657
      %v664 = vsel %vm427, %v647, 0
      %v667 = vsel %vm427, %v648, 0
      %v670 = vsel %vm427, %v649, 0
      %v673 = vsel %vm427, %v650, 0
      %675 = vmatprep.subr.bf16.mxu0 0
      %676 = vmatpush1.bf16.msra.mxu0 %v659
      %677 = vmatprep.subr.bf16.mxu0 0
      %678 = vmatpush1.bf16.msra.mxu0 %v660
      %679 = vmatprep.subr.bf16.mxu0 0
      %680 = vmatpush1.bf16.msra.mxu0 0
      %681 = vmatprep.subr.bf16.mxu0 0
      %682 = vmatpush1.bf16.msra.mxu0 0
      %683 = vmatprep.subr.bf16.mxu0 0
      %684 = vmatpush1.bf16.msra.mxu0 0
      %685 = vmatprep.subr.bf16.mxu0 0
      %686 = vmatpush1.bf16.msra.mxu0 0
      %687 = vmatprep.subr.bf16.mxu0 0
      %688 = vmatpush1.bf16.msra.mxu0 0
      %689 = vmatprep.subr.bf16.mxu0 0
      %690 = vmatpush1.bf16.msra.mxu0 0
      %691 = vmatprep.subr.bf16.mxu0 0
      %692 = vmatpush1.bf16.msra.mxu0 0
      %693 = vmatprep.subr.bf16.mxu0 0
      %694 = vmatpush1.bf16.msra.mxu0 0
      %695 = vmatprep.subr.bf16.mxu0 0
      %696 = vmatpush1.bf16.msra.mxu0 0
      %697 = vmatprep.subr.bf16.mxu0 0
      %698 = vmatpush1.bf16.msra.mxu0 0
      %699 = vmatprep.subr.bf16.mxu0 0
      %700 = vmatpush1.bf16.msra.mxu0 0
      %701 = vmatprep.subr.bf16.mxu0 0
      %702 = vmatpush1.bf16.msra.mxu0 0
      %703 = vmatprep.subr.bf16.mxu0 0
      %704 = vmatpush1.bf16.msra.mxu0 0
      %705 = vmatprep.subr.bf16.mxu0 0
      %706 = vmatpush1.bf16.msra.mxu0 0
      %707 = vmatprep.mubr.bf16.mxu0 0
      %708 = vmatmul.mubr.bf16.gmra.mrb[0].mxu0 %v664
      %v709 = vpop.f32.mrb[0].mxu0
      %v710 = vadd.f32 0.0, %v709
      %v711 = vpop.f32.mrb[0].mxu0
      %v712 = vpop.f32.mrb[0].mxu0
      %v713 = vadd.f32 0.0, %v712
      %v714 = vpop.f32.mrb[0].mxu0
      %715 = vmatprep.mubr.bf16.mxu0 0
      %716 = vmatmul.mubr.bf16.gmra.mrb[0].mxu0 %v667
      %v717 = vpop.f32.mrb[0].mxu0
      %v718 = vadd.f32 0.0, %v717
      %v719 = vpop.f32.mrb[0].mxu0
      %v720 = vpop.f32.mrb[0].mxu0
      %v721 = vadd.f32 0.0, %v720
      %v722 = vpop.f32.mrb[0].mxu0
      %723 = vmatprep.mubr.bf16.mxu0 0
      %724 = vmatmul.mubr.bf16.gmra.mrb[0].mxu0 %v670
      %v725 = vpop.f32.mrb[0].mxu0
      %v726 = vadd.f32 0.0, %v725
      %v727 = vpop.f32.mrb[0].mxu0
      %v728 = vpop.f32.mrb[0].mxu0
      %v729 = vadd.f32 0.0, %v728
      %v730 = vpop.f32.mrb[0].mxu0
      %731 = vmatprep.mubr.bf16.mxu0 0
      %732 = vmatmul.mubr.bf16.gmra.mrb[0].mxu0 %v673
      %v733 = vpop.f32.mrb[0].mxu0
      %v734 = vadd.f32 0.0, %v733
      %v735 = vpop.f32.mrb[0].mxu0
      %v736 = vpop.f32.mrb[0].mxu0
      %v737 = vadd.f32 0.0, %v736
      %v738 = vpop.f32.mrb[0].mxu0
      %739 = vdwg.mxu0
      %v740 = vadd.f32 %v584, %v710
      %v741 = vadd.f32 %v587, %v713
      %v742 = vadd.f32 %v592, %v718
      %v743 = vadd.f32 %v595, %v721
      %v744 = vadd.f32 %v600, %v726
      %v745 = vadd.f32 %v603, %v729
      %v746 = vadd.f32 %v608, %v734
      %v747 = vadd.f32 %v611, %v737
      %v748 = vld [vmem:[%s617] sm:$0xf]
      %v749 = vld [vmem:[%s617 + $0x4] sm:$0x1]
      %v750 = vld [vmem:[%s617 + $0x8] sm:$0xf]
      %v751 = vld [vmem:[%s617 + $0xc] sm:$0x1]
      %v752 = vld [vmem:[%s617 + $0x10] sm:$0xf]
      %v753 = vld [vmem:[%s617 + $0x14] sm:$0x1]
      %v754 = vld [vmem:[%s617 + $0x18] sm:$0xf]
      %v755 = vld [vmem:[%s617 + $0x1c] sm:$0x1]
      %v756 = vld [vmem:[%s617 + $0x20] sm:$0xf]
      %v757 = vld [vmem:[%s617 + $0x24] sm:$0x1]
      %v758 = vld [vmem:[%s617 + $0x28] sm:$0xf]
      %v759 = vld [vmem:[%s617 + $0x2c] sm:$0x1]
      %v760 = vld [vmem:[%s617 + $0x30] sm:$0xf]
      %v761 = vld [vmem:[%s617 + $0x34] sm:$0x1]
      %v762 = vld [vmem:[%s617 + $0x38] sm:$0xf]
      %v763 = vld [vmem:[%s617 + $0x3c] sm:$0x1]
      %v765 = vshrl.u32 %v748, 16
      %v767 = vrot.slane %v765, 4
      %v768 = vshll.u32 %v748, 16
      %v770 = vrot.slane %v768, 5
      %v771 = vor.u32 %v767, %v770
      %v772 = vrot.slane %v771, 4
      %v774 = vshll.u32 %v749, 16
      %v776 = vrot.slane %v774, 5
      %v777 = vsel %vm285, %v772, %v776
      %v779 = vshrl.u32 %v750, 16
      %v781 = vrot.slane %v779, 4
      %v782 = vshll.u32 %v750, 16
      %v784 = vrot.slane %v782, 5
      %v785 = vor.u32 %v781, %v784
      %v786 = vrot.slane %v785, 4
      %v788 = vshll.u32 %v751, 16
      %v790 = vrot.slane %v788, 5
      %v791 = vsel %vm285, %v786, %v790
      %v793 = vshrl.u32 %v752, 16
      %v795 = vrot.slane %v793, 4
      %v796 = vshll.u32 %v752, 16
      %v798 = vrot.slane %v796, 5
      %v799 = vor.u32 %v795, %v798
      %v800 = vrot.slane %v799, 4
      %v802 = vshll.u32 %v753, 16
      %v804 = vrot.slane %v802, 5
      %v805 = vsel %vm285, %v800, %v804
      %v807 = vshrl.u32 %v754, 16
      %v809 = vrot.slane %v807, 4
      %v810 = vshll.u32 %v754, 16
      %v812 = vrot.slane %v810, 5
      %v813 = vor.u32 %v809, %v812
      %v814 = vrot.slane %v813, 4
      %v816 = vshll.u32 %v755, 16
      %v818 = vrot.slane %v816, 5
      %v819 = vsel %vm285, %v814, %v818
      %v821 = vshrl.u32 %v756, 16
      %v823 = vrot.slane %v821, 4
      %v824 = vshll.u32 %v756, 16
      %v826 = vrot.slane %v824, 5
      %v827 = vor.u32 %v823, %v826
      %v828 = vrot.slane %v827, 4
      %v830 = vshll.u32 %v757, 16
      %v832 = vrot.slane %v830, 5
      %v833 = vsel %vm285, %v828, %v832
      %v835 = vshrl.u32 %v758, 16
      %v837 = vrot.slane %v835, 4
      %v838 = vshll.u32 %v758, 16
      %v840 = vrot.slane %v838, 5
      %v841 = vor.u32 %v837, %v840
      %v842 = vrot.slane %v841, 4
      %v844 = vshll.u32 %v759, 16
      %v846 = vrot.slane %v844, 5
      %v847 = vsel %vm285, %v842, %v846
      %v849 = vshrl.u32 %v760, 16
      %v851 = vrot.slane %v849, 4
      %v852 = vshll.u32 %v760, 16
      %v854 = vrot.slane %v852, 5
      %v855 = vor.u32 %v851, %v854
      %v856 = vrot.slane %v855, 4
      %v858 = vshll.u32 %v761, 16
      %v860 = vrot.slane %v858, 5
      %v861 = vsel %vm285, %v856, %v860
      %v863 = vshrl.u32 %v762, 16
      %v865 = vrot.slane %v863, 4
      %v866 = vshll.u32 %v762, 16
      %v868 = vrot.slane %v866, 5
      %v869 = vor.u32 %v865, %v868
      %v870 = vrot.slane %v869, 4
      %v872 = vshll.u32 %v763, 16
      %v874 = vrot.slane %v872, 5
      %v875 = vsel %vm285, %v870, %v874
      %s876 = scalar_lea.vmem %s1, 48
      %v877 = vld [vmem:[%s876] sm:$0xf]
      %v878 = vld [vmem:[%s876 + $0x4] sm:$0xf]
      %v879 = vld [vmem:[%s876 + $0x8] sm:$0xf]
      %v880 = vld [vmem:[%s876 + $0xc] sm:$0xf]
      %v881 = vunpack.c.l.b16 %v777
      %v882 = vunpack.c.l.b16 %v791
      %v883 = vunpack.c.l.b16 %v805
      %v884 = vunpack.c.l.b16 %v819
      %v885 = vunpack.c.l.b16 %v833
      %v886 = vunpack.c.l.b16 %v847
      %v887 = vunpack.c.l.b16 %v861
      %v888 = vunpack.c.l.b16 %v875
      %v889 = vpack.c.b16 %v882, %v881
      %v890 = vpack.c.b16 %v884, %v883
      %v891 = vpack.c.b16 %v886, %v885
      %v892 = vpack.c.b16 %v888, %v887
      %v897 = vunpack.c.l.b16 %v877
      %v898 = vunpack.c.l.b16 %v878
      %v899 = vunpack.c.l.b16 %v879
      %v900 = vunpack.c.l.b16 %v880
      %v901 = vpack.c.b16 %v898, %v897
      %v902 = vpack.c.b16 %v900, %v899
      %v906 = vsel %vm427, %v889, 0
      %v909 = vsel %vm427, %v890, 0
      %v912 = vsel %vm427, %v891, 0
      %v915 = vsel %vm427, %v892, 0
      %917 = vmatprep.subr.bf16.mxu0 0
      %918 = vmatpush1.bf16.msra.mxu0 %v901
      %919 = vmatprep.subr.bf16.mxu0 0
      %920 = vmatpush1.bf16.msra.mxu0 %v902
      %921 = vmatprep.subr.bf16.mxu0 0
      %922 = vmatpush1.bf16.msra.mxu0 0
      %923 = vmatprep.subr.bf16.mxu0 0
      %924 = vmatpush1.bf16.msra.mxu0 0
      %925 = vmatprep.subr.bf16.mxu0 0
      %926 = vmatpush1.bf16.msra.mxu0 0
      %927 = vmatprep.subr.bf16.mxu0 0
      %928 = vmatpush1.bf16.msra.mxu0 0
      %929 = vmatprep.subr.bf16.mxu0 0
      %930 = vmatpush1.bf16.msra.mxu0 0
      %931 = vmatprep.subr.bf16.mxu0 0
      %932 = vmatpush1.bf16.msra.mxu0 0
      %933 = vmatprep.subr.bf16.mxu0 0
      %934 = vmatpush1.bf16.msra.mxu0 0
      %935 = vmatprep.subr.bf16.mxu0 0
      %936 = vmatpush1.bf16.msra.mxu0 0
      %937 = vmatprep.subr.bf16.mxu0 0
      %938 = vmatpush1.bf16.msra.mxu0 0
      %939 = vmatprep.subr.bf16.mxu0 0
      %940 = vmatpush1.bf16.msra.mxu0 0
      %941 = vmatprep.subr.bf16.mxu0 0
      %942 = vmatpush1.bf16.msra.mxu0 0
      %943 = vmatprep.subr.bf16.mxu0 0
      %944 = vmatpush1.bf16.msra.mxu0 0
      %945 = vmatprep.subr.bf16.mxu0 0
      %946 = vmatpush1.bf16.msra.mxu0 0
      %947 = vmatprep.subr.bf16.mxu0 0
      %948 = vmatpush1.bf16.msra.mxu0 0
      %949 = vmatprep.mubr.bf16.mxu0 0
      %950 = vmatmul.mubr.bf16.gmra.mrb[0].mxu0 %v906
      %v951 = vpop.f32.mrb[0].mxu0
      %v952 = vadd.f32 0.0, %v951
      %v953 = vpop.f32.mrb[0].mxu0
      %v954 = vpop.f32.mrb[0].mxu0
      %v955 = vadd.f32 0.0, %v954
      %v956 = vpop.f32.mrb[0].mxu0
      %957 = vmatprep.mubr.bf16.mxu0 0
      %958 = vmatmul.mubr.bf16.gmra.mrb[0].mxu0 %v909
      %v959 = vpop.f32.mrb[0].mxu0
      %v960 = vadd.f32 0.0, %v959
      %v961 = vpop.f32.mrb[0].mxu0
      %v962 = vpop.f32.mrb[0].mxu0
      %v963 = vadd.f32 0.0, %v962
      %v964 = vpop.f32.mrb[0].mxu0
      %965 = vmatprep.mubr.bf16.mxu0 0
      %966 = vmatmul.mubr.bf16.gmra.mrb[0].mxu0 %v912
      %v967 = vpop.f32.mrb[0].mxu0
      %v968 = vadd.f32 0.0, %v967
      %v969 = vpop.f32.mrb[0].mxu0
      %v970 = vpop.f32.mrb[0].mxu0
      %v971 = vadd.f32 0.0, %v970
      %v972 = vpop.f32.mrb[0].mxu0
      %973 = vmatprep.mubr.bf16.mxu0 0
      %974 = vmatmul.mubr.bf16.gmra.mrb[0].mxu0 %v915
      %v975 = vpop.f32.mrb[0].mxu0
      %v976 = vadd.f32 0.0, %v975
      %v977 = vpop.f32.mrb[0].mxu0
      %v978 = vpop.f32.mrb[0].mxu0
      %v979 = vadd.f32 0.0, %v978
      %v980 = vpop.f32.mrb[0].mxu0
      %981 = vdwg.mxu0
      %v982 = vadd.f32 %v740, %v952
      %v983 = vadd.f32 %v741, %v955
      %v984 = vadd.f32 %v742, %v960
      %v985 = vadd.f32 %v743, %v963
      %v986 = vadd.f32 %v744, %v968
      %v987 = vadd.f32 %v745, %v971
      %v988 = vadd.f32 %v746, %v976
      %v989 = vadd.f32 %v747, %v979
      %v990 = vpack.c.bf16 %v982, %v982
      %v991 = vpack.c.bf16 %v983, %v983
      %v992 = vpack.c.bf16 %v984, %v984
      %v993 = vpack.c.bf16 %v985, %v985
      %v994 = vpack.c.bf16 %v986, %v986
      %v995 = vpack.c.bf16 %v987, %v987
      %v996 = vpack.c.bf16 %v988, %v988
      %v997 = vpack.c.bf16 %v989, %v989
      %vm998 = vcmask 125952
      %999 = vst.msk [vmem:[%s242] sm:$0xf] %vm998, %v990
      %1000 = vst.msk [vmem:[%s242 + $0x4] sm:$0xf] %vm998, %v991
      %1001 = vst.msk [vmem:[%s242 + $0x8] sm:$0xf] %vm998, %v992
      %1002 = vst.msk [vmem:[%s242 + $0xc] sm:$0xf] %vm998, %v993
      %1003 = vst.msk [vmem:[%s242 + $0x10] sm:$0xf] %vm998, %v994
      %1004 = vst.msk [vmem:[%s242 + $0x14] sm:$0xf] %vm998, %v995
      %1005 = vst.msk [vmem:[%s242 + $0x18] sm:$0xf] %vm998, %v996
      %1006 = vst.msk [vmem:[%s242 + $0x1c] sm:$0xf] %vm998, %v997
      %vm1007 = vcmask 130048
      %v1008 = vsel %vm1007, %v982, 0.0
      %v1009 = vsel %vm1007, %v983, 0.0
      %v1010 = vadd.f32 %v1008, %v1009
      %v1011 = vsel %vm1007, %v984, 0.0
      %v1012 = vadd.f32 %v1010, %v1011
      %v1013 = vsel %vm1007, %v985, 0.0
      %v1014 = vadd.f32 %v1012, %v1013
      %v1015 = vsel %vm1007, %v986, 0.0
      %v1016 = vadd.f32 %v1014, %v1015
      %v1017 = vsel %vm1007, %v987, 0.0
      %v1018 = vadd.f32 %v1016, %v1017
      %v1019 = vsel %vm1007, %v988, 0.0
      %v1020 = vadd.f32 %v1018, %v1019
      %v1021 = vsel %vm1007, %v989, 0.0
      %v1022 = vadd.f32 %v1020, %v1021
      %v1023 = vrot.slane %v1022, 4
      %v1024 = vadd.f32 %v1022, %v1023
      %v1025 = vrot.slane %v1024, 2
      %v1026 = vadd.f32 %v1024, %v1025
      %v1027 = vrot.slane %v1026, 1
      %v1028 = vadd.f32 %v1026, %v1027
      %v1029 = vmul.f32 %v982, %v982
      %v1030 = vmul.f32 %v983, %v983
      %v1031 = vmul.f32 %v984, %v984
      %v1032 = vmul.f32 %v985, %v985
      %v1033 = vmul.f32 %v986, %v986
      %v1034 = vmul.f32 %v987, %v987
      %v1035 = vmul.f32 %v988, %v988
      %v1036 = vmul.f32 %v989, %v989
      %v1037 = vsel %vm1007, %v1029, 0.0
      %v1038 = vsel %vm1007, %v1030, 0.0
      %v1039 = vadd.f32 %v1037, %v1038
      %v1040 = vsel %vm1007, %v1031, 0.0
      %v1041 = vadd.f32 %v1039, %v1040
      %v1042 = vsel %vm1007, %v1032, 0.0
      %v1043 = vadd.f32 %v1041, %v1042
      %v1044 = vsel %vm1007, %v1033, 0.0
      %v1045 = vadd.f32 %v1043, %v1044
      %v1046 = vsel %vm1007, %v1034, 0.0
      %v1047 = vadd.f32 %v1045, %v1046
      %v1048 = vsel %vm1007, %v1035, 0.0
      %v1049 = vadd.f32 %v1047, %v1048
      %v1050 = vsel %vm1007, %v1036, 0.0
      %v1051 = vadd.f32 %v1049, %v1050
      %v1052 = vrot.slane %v1051, 4
      %v1053 = vadd.f32 %v1051, %v1052
      %v1054 = vrot.slane %v1053, 2
      %v1055 = vadd.f32 %v1053, %v1054
      %v1056 = vrot.slane %v1055, 1
      %v1057 = vadd.f32 %v1055, %v1056
      %1058 = vst.msk [vmem:[%s250] sm:$0xff] %vm1007, %v1028
      %1059 = vst.msk [vmem:[%s257] sm:$0xff] %vm1007, %v1057
      %s1060 = smul.u32 8, %s21
      %p1061 = scmp.lt.s32.totalorder %s20, 1
      %s1062 = scalar_select %p1061, %s20, 1
      %p1063 = scmp.lt.s32.totalorder %s1060, 7
      %s1064 = scalar_select %p1063, %s1060, 7
      %s1065 = smul.addr %s1062, 8
      %s1066 = sadd.s32 %s1064, %s1065
      %s1067 = smul.addr %s1066, 4
      %s1068 = scalar_lea.vmem %s2, %s1067
      %p1069 = scmp.lt.s32.totalorder %s20, 1
      %s1070 = scalar_select %p1069, %s20, 1
      %p1071 = scmp.lt.s32.totalorder %s21, 0
      %s1072 = scalar_select %p1071, %s21, 0
      %s1073 = sadd.s32 %s1072, %s1070
      %s1074 = smul.addr %s1073, 8
      %s1075 = scalar_lea.vmem %s3, %s1074
      %p1076 = scmp.lt.s32.totalorder %s20, 1
      %s1077 = scalar_select %p1076, %s20, 1
      %p1078 = scmp.lt.s32.totalorder %s21, 0
      %s1079 = scalar_select %p1078, %s21, 0
      %s1080 = sadd.s32 %s1079, %s1077
      %s1081 = smul.addr %s1080, 8
      %s1082 = scalar_lea.vmem %s4, %s1081
      // Predicated region
      $region29: #{_lambda_.9} parent=27 // pred_check
        %p1083 = pneg %p95
      $region30: #{_lambda_.9} parent=27 // pred_check_branch
        %1085 = sbr.rel (%p1083) target = $region32
      $region31: #{_lambda_.9} parent=27 // pred_region
        %s1086 = smul.u32 8, %s21
      $region32: #{_lambda_.9} parent=27 // pred_fallthru
        _
      // Predicated region
      $region33: #{_lambda_.9} parent=27 // pred_check
        %p1087 = pneg %p123
      $region34: #{_lambda_.9} parent=27 // pred_check_branch
        %1089 = sbr.rel (%p1087) target = $region36
      $region35: #{_lambda_.9} parent=27 // pred_region
        _
      $region36: #{_lambda_.9} parent=27 // pred_fallthru
        _
      // Predicated region
      $region37: #{_lambda_.9} parent=27 // pred_check
        %p1090 = pneg %p151
      $region38: #{_lambda_.9} parent=27 // pred_check_branch
        %1092 = sbr.rel (%p1090) target = $region40
      $region39: #{_lambda_.9} parent=27 // pred_region
        _
      $region40: #{_lambda_.9} parent=27 // pred_fallthru
        _
    $region28: #{_lambda_.9} parent=5 // pred_fallthru
      _
    %p1093 = scmp.le.s32.totalorder 2, %s11
    // Predicated region
    $region41: #{_lambda_.9} parent=5 // pred_check
      %p1094 = pneg %p1093
    $region42: #{_lambda_.9} parent=5 // pred_check_branch
      %1096 = sbr.rel (%p1094) target = $region44
    $region43: #{_lambda_.9} parent=5 // pred_region
      %s1097 = ssub.s32 %s11, 2
      // Predicated region
      $region45: #{_lambda_.9} parent=43 // pred_check
        %p1098 = pneg %p101
      $region46: #{_lambda_.9} parent=43 // pred_check_branch
        %1100 = sbr.rel (%p1098) target = $region48
      $region47: #{_lambda_.9} parent=43 // pred_region
        %s1101 = smul.u32 8, %s23
        %p1102 = scmp.lt.s32.totalorder %s22, 1
        %s1103 = scalar_select %p1102, %s22, 1
        %p1104 = scmp.lt.s32.totalorder %s1101, 7
        %s1105 = scalar_select %p1104, %s1101, 7
        %s1106 = smul.addr %s1103, 8
        %s1107 = sadd.s32 %s1105, %s1106
        %s1108 = smul.addr %s1107, 4
        %s1109 = scalar_lea.vmem %s2, %s1108
      $region48: #{_lambda_.9} parent=43 // pred_fallthru
        _
      // Predicated region
      $region49: #{_lambda_.9} parent=43 // pred_check
        %p1110 = pneg %p129
      $region50: #{_lambda_.9} parent=43 // pred_check_branch
        %1112 = sbr.rel (%p1110) target = $region52
      $region51: #{_lambda_.9} parent=43 // pred_region
        %p1113 = scmp.lt.s32.totalorder %s22, 1
        %s1114 = scalar_select %p1113, %s22, 1
        %p1115 = scmp.lt.s32.totalorder %s23, 0
        %s1116 = scalar_select %p1115, %s23, 0
        %s1117 = sadd.s32 %s1116, %s1114
        %s1118 = smul.addr %s1117, 8
        %s1119 = scalar_lea.vmem %s3, %s1118
      $region52: #{_lambda_.9} parent=43 // pred_fallthru
        _
      // Predicated region
      $region53: #{_lambda_.9} parent=43 // pred_check
        %p1120 = pneg %p157
      $region54: #{_lambda_.9} parent=43 // pred_check_branch
        %1122 = sbr.rel (%p1120) target = $region56
      $region55: #{_lambda_.9} parent=43 // pred_region
        %p1123 = scmp.lt.s32.totalorder %s22, 1
        %s1124 = scalar_select %p1123, %s22, 1
        %p1125 = scmp.lt.s32.totalorder %s23, 0
        %s1126 = scalar_select %p1125, %s23, 0
        %s1127 = sadd.s32 %s1126, %s1124
        %s1128 = smul.addr %s1127, 8
        %s1129 = scalar_lea.vmem %s4, %s1128
      $region56: #{_lambda_.9} parent=43 // pred_fallthru
        _
    $region44: #{_lambda_.9} parent=5 // pred_fallthru
      _
  $region6: #{_lambda_.9} parent=0 // loop_footer
    %s15 = sadd.s32 1, %s11
  $region7: #{_lambda_.9} parent=0 // loop_footer_branch
    %10 = sbr.rel target = $region3
  $region8: #{_lambda_.9} parent=0 // loop_exit
    _

// kernel: _lambda_.12
$region0: #{_lambda_.12}
  #allocation0 [shape = 'u32[]', space=smem, size = 0x4, offset = 0x4, fixed_abs, tag = 'smem constant byte address 0x4 - core index']
  #allocation1 [shape = 'u32[144,128]{1,0:T(1,128)}', space=vmem, size = 0x12000, scoped, tag = 'internal scratch']
  %s0 = inlined_call_operand.vmem [shape: bf16[2,4,8,32], index: 0, kind: input, shape index: {}]
  %s1 = inlined_call_operand.vmem [shape: f32[1,32], index: 1, kind: input, shape index: {}]
  %s2 = inlined_call_operand.vmem [shape: f32[1,32], index: 2, kind: input, shape index: {}]
  %s3 = inlined_call_operand.vmem [shape: bf16[2,4,8,32], index: 3, kind: output, shape index: {}]
  %s4 = sld [smem:[#allocation0]]
  $region45: #{_lambda_.12} parent=0
    _
  %s6 = ssub.s32 1, %s4
  %s7 = scalar_select 0, %s6, %s4
  loop: start=0, step=1, limit=4
  $region2: #{_lambda_.12} parent=0 // loop_pre_header
    _
  $region3: #{_lambda_.12} parent=0 // loop_header
    %s9 = sphi 0, %s13
    %p10 = scmp.ge.s32.totalorder %s9, 4
    %s16 = sphi 0, %s28
    %s17 = sphi 0, %s24
    %s18 = sphi 0, %s16
    %s19 = sphi 0, %s17
    %s20 = sphi 0, %s18
    %s21 = sphi 0, %s19
    %s33 = sphi 0, %s35
    %s36 = sphi 0, %s33
    %s37 = sphi 0, %s36
    %s53 = sphi 0, %s37
    %s57 = sphi 0, %s57
    %s59 = sphi 0, %s57
    %s60 = sphi 0, %s59
    %s74 = sphi 0, %s60
    %s78 = sphi 0, %s78
    %s80 = sphi 0, %s78
    %s81 = sphi 0, %s80
    %s95 = sphi 0, %s81
    %s103 = sphi 0, %s105
    %s106 = sphi 0, %s103
    %s107 = sphi 0, %s106
    %s123 = sphi 0, %s107
  $region4: #{_lambda_.12} parent=0 // loop_header_branch
    %12 = sbr.rel (%p10) target = $region8
  $region5: #{_lambda_.12} parent=0 // loop_body
    %s14 = ssub.s32 %s9, 1
    %s15 = ssub.s32 %s9, 2
    %s22 = sadd.s32 1, %s17
    %p23 = scmp.ge.s32.totalorder %s22, 1
    %s24 = scalar_select %p23, 0, %s22
    %s25 = sadd.s32 1, %s16
    %s26 = scalar_select %p23, %s25, %s16
    %p27 = scmp.ge.s32.totalorder %s26, 2
    %s28 = scalar_select %p27, 0, %s26
    %s29 = ssub.s32 %s16, %s28
    %s30 = ssub.s32 %s17, %s24
    %s31 = sor.u32 %s29, %s30
    %p32 = scmp.eq.s32.totalorder %s31, 0
    %s34 = sadd.s32 %s33, 1
    %s35 = scalar_select %p32, %s33, %s34
    %p38 = pneg %p32
    %p39 = scmp.eq.s32.totalorder %s9, 1
    %p40 = por %p38, %p39
    %p41 = scmp.ne.s32.totalorder %s33, %s36
    %p42 = scmp.eq.s32.totalorder %s9, 0
    %p43 = por %p41, %p42
    %p44 = scmp.ne.s32.totalorder %s33, %s36
    %p45 = scmp.eq.s32.totalorder %s14, 1
    %p46 = por %p44, %p45
    %p47 = scmp.ne.s32.totalorder %s36, %s37
    %p48 = scmp.eq.s32.totalorder %s14, 0
    %p49 = por %p47, %p48
    %p50 = scmp.ne.s32.totalorder %s36, %s37
    %p51 = scmp.eq.s32.totalorder %s15, 1
    %p52 = por %p50, %p51
    %p54 = scmp.ne.s32.totalorder %s37, %s53
    %p55 = scmp.eq.s32.totalorder %s15, 0
    %p56 = por %p54, %p55
    %s58 = sadd.s32 %s57, 1
    %p61 = scmp.eq.s32.totalorder %s9, 1
    %p62 = scmp.ne.s32.totalorder %s57, %s59
    %p63 = scmp.eq.s32.totalorder %s9, 0
    %p64 = por %p62, %p63
    %p65 = scmp.ne.s32.totalorder %s57, %s59
    %p66 = scmp.eq.s32.totalorder %s14, 1
    %p67 = por %p65, %p66
    %p68 = scmp.ne.s32.totalorder %s59, %s60
    %p69 = scmp.eq.s32.totalorder %s14, 0
    %p70 = por %p68, %p69
    %p71 = scmp.ne.s32.totalorder %s59, %s60
    %p72 = scmp.eq.s32.totalorder %s15, 1
    %p73 = por %p71, %p72
    %p75 = scmp.ne.s32.totalorder %s60, %s74
    %p76 = scmp.eq.s32.totalorder %s15, 0
    %p77 = por %p75, %p76
    %s79 = sadd.s32 %s78, 1
    %p82 = scmp.eq.s32.totalorder %s9, 1
    %p83 = scmp.ne.s32.totalorder %s78, %s80
    %p84 = scmp.eq.s32.totalorder %s9, 0
    %p85 = por %p83, %p84
    %p86 = scmp.ne.s32.totalorder %s78, %s80
    %p87 = scmp.eq.s32.totalorder %s14, 1
    %p88 = por %p86, %p87
    %p89 = scmp.ne.s32.totalorder %s80, %s81
    %p90 = scmp.eq.s32.totalorder %s14, 0
    %p91 = por %p89, %p90
    %p92 = scmp.ne.s32.totalorder %s80, %s81
    %p93 = scmp.eq.s32.totalorder %s15, 1
    %p94 = por %p92, %p93
    %p96 = scmp.ne.s32.totalorder %s81, %s95
    %p97 = scmp.eq.s32.totalorder %s15, 0
    %p98 = por %p96, %p97
    %s99 = ssub.s32 %s16, %s28
    %s100 = ssub.s32 %s17, %s24
    %s101 = sor.u32 %s99, %s100
    %p102 = scmp.eq.s32.totalorder %s101, 0
    %s104 = sadd.s32 %s103, 1
    %s105 = scalar_select %p102, %s103, %s104
    %p108 = pneg %p102
    %p109 = scmp.eq.s32.totalorder %s9, 1
    %p110 = por %p108, %p109
    %p111 = scmp.ne.s32.totalorder %s103, %s106
    %p112 = scmp.eq.s32.totalorder %s9, 0
    %p113 = por %p111, %p112
    %p114 = scmp.ne.s32.totalorder %s103, %s106
    %p115 = scmp.eq.s32.totalorder %s14, 1
    %p116 = por %p114, %p115
    %p117 = scmp.ne.s32.totalorder %s106, %s107
    %p118 = scmp.eq.s32.totalorder %s14, 0
    %p119 = por %p117, %p118
    %p120 = scmp.ne.s32.totalorder %s106, %s107
    %p121 = scmp.eq.s32.totalorder %s15, 1
    %p122 = por %p120, %p121
    %p124 = scmp.ne.s32.totalorder %s107, %s123
    %p125 = scmp.eq.s32.totalorder %s15, 0
    %p126 = por %p124, %p125
    %p127 = scmp.le.s32.totalorder 1, %s9
    %p128 = scmp.lt.s32.totalorder %s9, 3
    %p129 = pnand %p127, %p128
    %p130 = pneg %p129
    // Predicated region
    $region9: #{_lambda_.12} parent=5 // pred_check
      _
    $region10: #{_lambda_.12} parent=5 // pred_check_branch
      %132 = sbr.rel (%p129) target = $region12
    $region11: #{_lambda_.12} parent=5 // pred_region
      %s133 = ssub.s32 %s9, 1
      // Predicated region
      $region13: #{_lambda_.12} parent=11 // pred_check
        %p134 = pneg %p70
      $region14: #{_lambda_.12} parent=11 // pred_check_branch
        %136 = sbr.rel (%p134) target = $region16
      $region15: #{_lambda_.12} parent=11 // pred_region
        _
      $region16: #{_lambda_.12} parent=11 // pred_fallthru
        _
      // Predicated region
      $region17: #{_lambda_.12} parent=11 // pred_check
        %p137 = pneg %p91
      $region18: #{_lambda_.12} parent=11 // pred_check_branch
        %139 = sbr.rel (%p137) target = $region20
      $region19: #{_lambda_.12} parent=11 // pred_region
        _
      $region20: #{_lambda_.12} parent=11 // pred_fallthru
        _
    $region12: #{_lambda_.12} parent=5 // pred_fallthru
      _
    %p140 = scmp.lt.s32.totalorder %s9, 2
    // Predicated region
    $region21: #{_lambda_.12} parent=5 // pred_check
      %p141 = pneg %p140
    $region22: #{_lambda_.12} parent=5 // pred_check_branch
      %143 = sbr.rel (%p141) target = $region24
    $region23: #{_lambda_.12} parent=5 // pred_region
      // Predicated region
      $region25: #{_lambda_.12} parent=23 // pred_check
        %p144 = pneg %p43
      $region26: #{_lambda_.12} parent=23 // pred_check_branch
        %146 = sbr.rel (%p144) target = $region28
      $region27: #{_lambda_.12} parent=23 // pred_region
        %s147 = smul.u32 4, %s17
        %p148 = scmp.lt.s32.totalorder %s16, 1
        %s149 = scalar_select %p148, %s16, 1
        %p150 = scmp.lt.s32.totalorder %s147, 3
        %s151 = scalar_select %p150, %s147, 3
        %s152 = smul.addr %s149, 4
        %s153 = sadd.s32 %s151, %s152
        %s154 = smul.addr %s153, 4
        %s155 = scalar_lea.vmem %s0, %s154
        %s156 = smul.u32 4, %s17
      $region28: #{_lambda_.12} parent=23 // pred_fallthru
        _
    $region24: #{_lambda_.12} parent=5 // pred_fallthru
      _
    %p157 = scmp.le.s32.totalorder 1, %s9
    %p158 = scmp.lt.s32.totalorder %s9, 3
    %p159 = pnand %p157, %p158
    %p160 = pneg %p159
    // Predicated region
    $region29: #{_lambda_.12} parent=5 // pred_check
      _
    $region30: #{_lambda_.12} parent=5 // pred_check_branch
      %162 = sbr.rel (%p159) target = $region32
    $region31: #{_lambda_.12} parent=5 // pred_region
      %s163 = ssub.s32 %s9, 1
      %s164 = smul.u32 4, %s19
      %p165 = scmp.lt.s32.totalorder %s18, 1
      %s166 = scalar_select %p165, %s18, 1
      %p167 = scmp.lt.s32.totalorder %s164, 3
      %s168 = scalar_select %p167, %s164, 3
      %s169 = smul.addr %s166, 4
      %s170 = sadd.s32 %s168, %s169
      %s171 = smul.addr %s170, 4
      %s172 = scalar_lea.vmem %s0, %s171
      %p173 = pneg %p49
      %p174 = pneg %p46
      %p175 = pneg %p70
      %p176 = pneg %p67
      %p177 = pneg %p91
      %p178 = pneg %p88
      %p179 = pneg %p119
      %p180 = pneg %p116
      %s181 = smul.u32 4, %s19
      %p182 = scmp.lt.s32.totalorder %s18, 1
      %s183 = scalar_select %p182, %s18, 1
      %p184 = scmp.lt.s32.totalorder %s181, 3
      %s185 = scalar_select %p184, %s181, 3
      %s186 = smul.addr %s183, 4
      %s187 = sadd.s32 %s185, %s186
      %s188 = smul.addr %s187, 4
      %s189 = scalar_lea.vmem %s3, %s188
      %s190 = smul.u32 4, %s19
      %p191 = scmp.lt.s32.totalorder %s18, 1
      %s192 = scalar_select %p191, %s18, 1
      %p193 = scmp.lt.s32.totalorder %s190, 3
      %s194 = scalar_select %p193, %s190, 3
      %s195 = smul.addr %s192, 4
      %s196 = sadd.s32 %s194, %s195
      %s197 = smul.addr %s196, 4
      %s198 = scalar_lea.vmem %s0, %s197
      %s199 = smul.u32 4, %s19
      %s200 = smul.u32 4, %s19
      %p201 = scmp.lt.s32.totalorder %s18, 1
      %s202 = scalar_select %p201, %s18, 1
      %p203 = scmp.lt.s32.totalorder %s200, 3
      %s204 = scalar_select %p203, %s200, 3
      %s205 = smul.addr %s202, 4
      %s206 = sadd.s32 %s204, %s205
      %s207 = smul.addr %s206, 4
      %s208 = scalar_lea.vmem %s3, %s207
      %s209 = smul.u32 4, %s19
      %v210 = vld [vmem:[%s198] sm:$0xf]
      %v211 = vld [vmem:[%s198 + $0x4] sm:$0xf]
      %v212 = vld [vmem:[%s198 + $0x8] sm:$0xf]
      %v213 = vld [vmem:[%s198 + $0xc] sm:$0xf]
      %v214 = vunpack.c.l.bf16 %v210
      %v215 = vunpack.c.l.bf16 %v211
      %v216 = vunpack.c.l.bf16 %v212
      %v217 = vunpack.c.l.bf16 %v213
      %v218 = vld [vmem:[%s1] sm:$0x1]
      %v220 = vlaneseq
      %v221 = vshrl.u32 %v220, 7
      %v222 = vsub.s32 0, %v221
      %v223 = vrot.slane %v218, %v222
      %v225 = vmul.f32 %v214, %v223
      %v226 = vmul.f32 %v215, %v223
      %v227 = vmul.f32 %v216, %v223
      %v228 = vmul.f32 %v217, %v223
      %v229 = vld [vmem:[%s2] sm:$0x1]
      %v231 = vlaneseq
      %v232 = vshrl.u32 %v231, 7
      %v233 = vsub.s32 0, %v232
      %v234 = vrot.slane %v229, %v233
      %v236 = vadd.f32 %v225, %v234
      %v237 = vadd.f32 %v226, %v234
      %v238 = vadd.f32 %v227, %v234
      %v239 = vadd.f32 %v228, %v234
      %vm240 = vcmp.ge.f32.partialorder %v236, 0.0
      %vm241 = vcmp.ge.f32.partialorder %v237, 0.0
      %vm242 = vcmp.ge.f32.partialorder %v238, 0.0
      %vm243 = vcmp.ge.f32.partialorder %v239, 0.0
      %v244 = vmul.f32 %v236, 0.2
      %v245 = vmul.f32 %v237, 0.2
      %v246 = vmul.f32 %v238, 0.2
      %v247 = vmul.f32 %v239, 0.2
      %v248 = vsel %vm240, %v236, %v244
      %v249 = vsel %vm241, %v237, %v245
      %v250 = vsel %vm242, %v238, %v246
      %v251 = vsel %vm243, %v239, %v247
      %v252 = vpack.c.bf16 %v248, %v248
      %v253 = vpack.c.bf16 %v249, %v249
      %v254 = vpack.c.bf16 %v250, %v250
      %v255 = vpack.c.bf16 %v251, %v251
      %vm256 = vcmask 257024
      %257 = vst.msk [vmem:[%s208] sm:$0xf] %vm256, %v252
      %258 = vst.msk [vmem:[%s208 + $0x4] sm:$0xf] %vm256, %v253
      %259 = vst.msk [vmem:[%s208 + $0x8] sm:$0xf] %vm256, %v254
      %260 = vst.msk [vmem:[%s208 + $0xc] sm:$0xf] %vm256, %v255
      %s261 = smul.u32 4, %s19
      %p262 = scmp.lt.s32.totalorder %s18, 1
      %s263 = scalar_select %p262, %s18, 1
      %p264 = scmp.lt.s32.totalorder %s261, 3
      %s265 = scalar_select %p264, %s261, 3
      %s266 = smul.addr %s263, 4
      %s267 = sadd.s32 %s265, %s266
      %s268 = smul.addr %s267, 4
      %s269 = scalar_lea.vmem %s3, %s268
      // Predicated region
      $region33: #{_lambda_.12} parent=31 // pred_check
        %p270 = pneg %p116
      $region34: #{_lambda_.12} parent=31 // pred_check_branch
        %272 = sbr.rel (%p270) target = $region36
      $region35: #{_lambda_.12} parent=31 // pred_region
        %s273 = smul.u32 4, %s19
      $region36: #{_lambda_.12} parent=31 // pred_fallthru
        _
    $region32: #{_lambda_.12} parent=5 // pred_fallthru
      _
    %p274 = scmp.le.s32.totalorder 2, %s9
    // Predicated region
    $region37: #{_lambda_.12} parent=5 // pred_check
      %p275 = pneg %p274
    $region38: #{_lambda_.12} parent=5 // pred_check_branch
      %277 = sbr.rel (%p275) target = $region40
    $region39: #{_lambda_.12} parent=5 // pred_region
      %s278 = ssub.s32 %s9, 2
      // Predicated region
      $region41: #{_lambda_.12} parent=39 // pred_check
        %p279 = pneg %p122
      $region42: #{_lambda_.12} parent=39 // pred_check_branch
        %281 = sbr.rel (%p279) target = $region44
      $region43: #{_lambda_.12} parent=39 // pred_region
        %s282 = smul.u32 4, %s21
        %p283 = scmp.lt.s32.totalorder %s20, 1
        %s284 = scalar_select %p283, %s20, 1
        %p285 = scmp.lt.s32.totalorder %s282, 3
        %s286 = scalar_select %p285, %s282, 3
        %s287 = smul.addr %s284, 4
        %s288 = sadd.s32 %s286, %s287
        %s289 = smul.addr %s288, 4
        %s290 = scalar_lea.vmem %s3, %s289
      $region44: #{_lambda_.12} parent=39 // pred_fallthru
        _
    $region40: #{_lambda_.12} parent=5 // pred_fallthru
      _
  $region6: #{_lambda_.12} parent=0 // loop_footer
    %s13 = sadd.s32 1, %s9
  $region7: #{_lambda_.12} parent=0 // loop_footer_branch
    %8 = sbr.rel target = $region3
  $region8: #{_lambda_.12} parent=0 // loop_exit
    _

// kernel: _lambda_.11
$region0: #{_lambda_.11}
  #allocation0 [shape = 'u32[]', space=smem, size = 0x4, offset = 0x4, fixed_abs, tag = 'smem constant byte address 0x4 - core index']
  #allocation1 [shape = 'u32[144,128]{1,0:T(1,128)}', space=vmem, size = 0x12000, scoped, tag = 'internal scratch']
  %s0 = inlined_call_operand.vmem [shape: bf16[2,5,9,64], index: 0, kind: input, shape index: {}]
  %s1 = inlined_call_operand.vmem [shape: bf16[4,64,32], index: 1, kind: input, shape index: {}]
  %s2 = inlined_call_operand.vmem [shape: bf16[2,4,8,32], index: 2, kind: output, shape index: {0}]
  %s3 = inlined_call_operand.vmem [shape: f32[2,1,8,32], index: 3, kind: output, shape index: {1}]
  %s4 = inlined_call_operand.vmem [shape: f32[2,1,8,32], index: 4, kind: output, shape index: {2}]
  %5 = xla_tuple %s2, %s3, %s4
  %s6 = sld [smem:[#allocation0]]
  $region57: #{_lambda_.11} parent=0
    _
  %s8 = ssub.s32 1, %s6
  %s9 = scalar_select 0, %s8, %s6
  loop: start=0, step=1, limit=4
  $region2: #{_lambda_.11} parent=0 // loop_pre_header
    _
  $region3: #{_lambda_.11} parent=0 // loop_header
    %s11 = sphi 0, %s15
    %p12 = scmp.ge.s32.totalorder %s11, 4
    %s18 = sphi 0, %s30
    %s19 = sphi 0, %s26
    %s20 = sphi 0, %s18
    %s21 = sphi 0, %s19
    %s22 = sphi 0, %s20
    %s23 = sphi 0, %s21
    %s33 = sphi 0, %s35
    %s36 = sphi 0, %s33
    %s37 = sphi 0, %s36
    %s53 = sphi 0, %s37
    %s57 = sphi 0, %s57
    %s59 = sphi 0, %s57
    %s60 = sphi 0, %s59
    %s74 = sphi 0, %s60
    %s82 = sphi 0, %s84
    %s85 = sphi 0, %s82
    %s86 = sphi 0, %s85
    %s102 = sphi 0, %s86
    %s110 = sphi 0, %s112
    %s113 = sphi 0, %s110
    %s114 = sphi 0, %s113
    %s130 = sphi 0, %s114
    %s138 = sphi 0, %s140
    %s141 = sphi 0, %s138
    %s142 = sphi 0, %s141
    %s158 = sphi 0, %s142
  $region4: #{_lambda_.11} parent=0 // loop_header_branch
    %14 = sbr.rel (%p12) target = $region8
  $region5: #{_lambda_.11} parent=0 // loop_body
    %s16 = ssub.s32 %s11, 1
    %s17 = ssub.s32 %s11, 2
    %s24 = sadd.s32 1, %s19
    %p25 = scmp.ge.s32.totalorder %s24, 1
    %s26 = scalar_select %p25, 0, %s24
    %s27 = sadd.s32 1, %s18
    %s28 = scalar_select %p25, %s27, %s18
    %p29 = scmp.ge.s32.totalorder %s28, 2
    %s30 = scalar_select %p29, 0, %s28
    %s31 = ssub.s32 %s18, %s30
    %p32 = scmp.eq.s32.totalorder %s31, 0
    %s34 = sadd.s32 %s33, 1
    %s35 = scalar_select %p32, %s33, %s34
    %p38 = pneg %p32
    %p39 = scmp.eq.s32.totalorder %s11, 1
    %p40 = por %p38, %p39
    %p41 = scmp.ne.s32.totalorder %s33, %s36
    %p42 = scmp.eq.s32.totalorder %s11, 0
    %p43 = por %p41, %p42
    %p44 = scmp.ne.s32.totalorder %s33, %s36
    %p45 = scmp.eq.s32.totalorder %s16, 1
    %p46 = por %p44, %p45
    %p47 = scmp.ne.s32.totalorder %s36, %s37
    %p48 = scmp.eq.s32.totalorder %s16, 0
    %p49 = por %p47, %p48
    %p50 = scmp.ne.s32.totalorder %s36, %s37
    %p51 = scmp.eq.s32.totalorder %s17, 1
    %p52 = por %p50, %p51
    %p54 = scmp.ne.s32.totalorder %s37, %s53
    %p55 = scmp.eq.s32.totalorder %s17, 0
    %p56 = por %p54, %p55
    %s58 = sadd.s32 %s57, 1
    %p61 = scmp.eq.s32.totalorder %s11, 1
    %p62 = scmp.ne.s32.totalorder %s57, %s59
    %p63 = scmp.eq.s32.totalorder %s11, 0
    %p64 = por %p62, %p63
    %p65 = scmp.ne.s32.totalorder %s57, %s59
    %p66 = scmp.eq.s32.totalorder %s16, 1
    %p67 = por %p65, %p66
    %p68 = scmp.ne.s32.totalorder %s59, %s60
    %p69 = scmp.eq.s32.totalorder %s16, 0
    %p70 = por %p68, %p69
    %p71 = scmp.ne.s32.totalorder %s59, %s60
    %p72 = scmp.eq.s32.totalorder %s17, 1
    %p73 = por %p71, %p72
    %p75 = scmp.ne.s32.totalorder %s60, %s74
    %p76 = scmp.eq.s32.totalorder %s17, 0
    %p77 = por %p75, %p76
    %s78 = ssub.s32 %s18, %s30
    %s79 = ssub.s32 %s19, %s26
    %s80 = sor.u32 %s78, %s79
    %p81 = scmp.eq.s32.totalorder %s80, 0
    %s83 = sadd.s32 %s82, 1
    %s84 = scalar_select %p81, %s82, %s83
    %p87 = pneg %p81
    %p88 = scmp.eq.s32.totalorder %s11, 1
    %p89 = por %p87, %p88
    %p90 = scmp.ne.s32.totalorder %s82, %s85
    %p91 = scmp.eq.s32.totalorder %s11, 0
    %p92 = por %p90, %p91
    %p93 = scmp.ne.s32.totalorder %s82, %s85
    %p94 = scmp.eq.s32.totalorder %s16, 1
    %p95 = por %p93, %p94
    %p96 = scmp.ne.s32.totalorder %s85, %s86
    %p97 = scmp.eq.s32.totalorder %s16, 0
    %p98 = por %p96, %p97
    %p99 = scmp.ne.s32.totalorder %s85, %s86
    %p100 = scmp.eq.s32.totalorder %s17, 1
    %p101 = por %p99, %p100
    %p103 = scmp.ne.s32.totalorder %s86, %s102
    %p104 = scmp.eq.s32.totalorder %s17, 0
    %p105 = por %p103, %p104
    %s106 = ssub.s32 %s18, %s30
    %s107 = ssub.s32 %s19, %s26
    %s108 = sor.u32 %s106, %s107
    %p109 = scmp.eq.s32.totalorder %s108, 0
    %s111 = sadd.s32 %s110, 1
    %s112 = scalar_select %p109, %s110, %s111
    %p115 = pneg %p109
    %p116 = scmp.eq.s32.totalorder %s11, 1
    %p117 = por %p115, %p116
    %p118 = scmp.ne.s32.totalorder %s110, %s113
    %p119 = scmp.eq.s32.totalorder %s11, 0
    %p120 = por %p118, %p119
    %p121 = scmp.ne.s32.totalorder %s110, %s113
    %p122 = scmp.eq.s32.totalorder %s16, 1
    %p123 = por %p121, %p122
    %p124 = scmp.ne.s32.totalorder %s113, %s114
    %p125 = scmp.eq.s32.totalorder %s16, 0
    %p126 = por %p124, %p125
    %p127 = scmp.ne.s32.totalorder %s113, %s114
    %p128 = scmp.eq.s32.totalorder %s17, 1
    %p129 = por %p127, %p128
    %p131 = scmp.ne.s32.totalorder %s114, %s130
    %p132 = scmp.eq.s32.totalorder %s17, 0
    %p133 = por %p131, %p132
    %s134 = ssub.s32 %s18, %s30
    %s135 = ssub.s32 %s19, %s26
    %s136 = sor.u32 %s134, %s135
    %p137 = scmp.eq.s32.totalorder %s136, 0
    %s139 = sadd.s32 %s138, 1
    %s140 = scalar_select %p137, %s138, %s139
    %p143 = pneg %p137
    %p144 = scmp.eq.s32.totalorder %s11, 1
    %p145 = por %p143, %p144
    %p146 = scmp.ne.s32.totalorder %s138, %s141
    %p147 = scmp.eq.s32.totalorder %s11, 0
    %p148 = por %p146, %p147
    %p149 = scmp.ne.s32.totalorder %s138, %s141
    %p150 = scmp.eq.s32.totalorder %s16, 1
    %p151 = por %p149, %p150
    %p152 = scmp.ne.s32.totalorder %s141, %s142
    %p153 = scmp.eq.s32.totalorder %s16, 0
    %p154 = por %p152, %p153
    %p155 = scmp.ne.s32.totalorder %s141, %s142
    %p156 = scmp.eq.s32.totalorder %s17, 1
    %p157 = por %p155, %p156
    %p159 = scmp.ne.s32.totalorder %s142, %s158
    %p160 = scmp.eq.s32.totalorder %s17, 0
    %p161 = por %p159, %p160
    %p162 = scmp.le.s32.totalorder 1, %s11
    %p163 = scmp.lt.s32.totalorder %s11, 3
    %p164 = pnand %p162, %p163
    %p165 = pneg %p164
    // Predicated region
    $region9: #{_lambda_.11} parent=5 // pred_check
      _
    $region10: #{_lambda_.11} parent=5 // pred_check_branch
      %167 = sbr.rel (%p164) target = $region12
    $region11: #{_lambda_.11} parent=5 // pred_region
      %s168 = ssub.s32 %s11, 1
      // Predicated region
      $region13: #{_lambda_.11} parent=11 // pred_check
        %p169 = pneg %p70
      $region14: #{_lambda_.11} parent=11 // pred_check_branch
        %171 = sbr.rel (%p169) target = $region16
      $region15: #{_lambda_.11} parent=11 // pred_region
        _
      $region16: #{_lambda_.11} parent=11 // pred_fallthru
        _
    $region12: #{_lambda_.11} parent=5 // pred_fallthru
      _
    %p172 = scmp.lt.s32.totalorder %s11, 2
    // Predicated region
    $region17: #{_lambda_.11} parent=5 // pred_check
      %p173 = pneg %p172
    $region18: #{_lambda_.11} parent=5 // pred_check_branch
      %175 = sbr.rel (%p173) target = $region20
    $region19: #{_lambda_.11} parent=5 // pred_region
      // Predicated region
      $region21: #{_lambda_.11} parent=19 // pred_check
        %p176 = pneg %p43
      $region22: #{_lambda_.11} parent=19 // pred_check_branch
        %178 = sbr.rel (%p176) target = $region24
      $region23: #{_lambda_.11} parent=19 // pred_region
        %p179 = scmp.lt.s32.totalorder %s18, 1
        %s180 = scalar_select %p179, %s18, 1
        %s181 = smul.addr %s180, 10
        %s182 = smul.addr %s181, 4
        %s183 = scalar_lea.vmem %s0, %s182
      $region24: #{_lambda_.11} parent=19 // pred_fallthru
        _
    $region20: #{_lambda_.11} parent=5 // pred_fallthru
      _
    %p184 = scmp.le.s32.totalorder 1, %s11
    %p185 = scmp.lt.s32.totalorder %s11, 3
    %p186 = pnand %p184, %p185
    %p187 = pneg %p186
    // Predicated region
    $region25: #{_lambda_.11} parent=5 // pred_check
      _
    $region26: #{_lambda_.11} parent=5 // pred_check_branch
      %189 = sbr.rel (%p186) target = $region28
    $region27: #{_lambda_.11} parent=5 // pred_region
      %s190 = ssub.s32 %s11, 1
      %p191 = scmp.lt.s32.totalorder %s20, 1
      %s192 = scalar_select %p191, %s20, 1
      %s193 = smul.addr %s192, 10
      %s194 = smul.addr %s193, 4
      %s195 = scalar_lea.vmem %s0, %s194
      %p196 = pneg %p49
      %p197 = pneg %p46
      %p198 = pneg %p70
      %p199 = pneg %p67
      %p200 = pneg %p98
      %p201 = pneg %p95
      %s202 = smul.u32 4, %s21
      %p203 = scmp.lt.s32.totalorder %s20, 1
      %s204 = scalar_select %p203, %s20, 1
      %p205 = scmp.lt.s32.totalorder %s202, 3
      %s206 = scalar_select %p205, %s202, 3
      %s207 = smul.addr %s204, 4
      %s208 = sadd.s32 %s206, %s207
      %s209 = smul.addr %s208, 4
      %s210 = scalar_lea.vmem %s2, %s209
      %p211 = pneg %p126
      %p212 = pneg %p123
      %p213 = scmp.lt.s32.totalorder %s20, 1
      %s214 = scalar_select %p213, %s20, 1
      %p215 = scmp.lt.s32.totalorder %s21, 0
      %s216 = scalar_select %p215, %s21, 0
      %s217 = sadd.s32 %s216, %s214
      %s218 = smul.addr %s217, 8
      %s219 = scalar_lea.vmem %s3, %s218
      %p220 = pneg %p154
      %p221 = pneg %p151
      %p222 = scmp.lt.s32.totalorder %s20, 1
      %s223 = scalar_select %p222, %s20, 1
      %p224 = scmp.lt.s32.totalorder %s21, 0
      %s225 = scalar_select %p224, %s21, 0
      %s226 = sadd.s32 %s225, %s223
      %s227 = smul.addr %s226, 8
      %s228 = scalar_lea.vmem %s4, %s227
      %p229 = scmp.lt.s32.totalorder %s20, 1
      %s230 = scalar_select %p229, %s20, 1
      %s231 = smul.addr %s230, 10
      %s232 = smul.addr %s231, 4
      %s233 = scalar_lea.vmem %s0, %s232
      %s234 = smul.u32 4, %s21
      %p235 = scmp.lt.s32.totalorder %s20, 1
      %s236 = scalar_select %p235, %s20, 1
      %p237 = scmp.lt.s32.totalorder %s234, 3
      %s238 = scalar_select %p237, %s234, 3
      %s239 = smul.addr %s236, 4
      %s240 = sadd.s32 %s238, %s239
      %s241 = smul.addr %s240, 4
      %s242 = scalar_lea.vmem %s2, %s241
      %s243 = smul.u32 4, %s21
      %p244 = scmp.lt.s32.totalorder %s20, 1
      %s245 = scalar_select %p244, %s20, 1
      %p246 = scmp.lt.s32.totalorder %s21, 0
      %s247 = scalar_select %p246, %s21, 0
      %s248 = sadd.s32 %s247, %s245
      %s249 = smul.addr %s248, 8
      %s250 = scalar_lea.vmem %s3, %s249
      %p251 = scmp.lt.s32.totalorder %s20, 1
      %s252 = scalar_select %p251, %s20, 1
      %p253 = scmp.lt.s32.totalorder %s21, 0
      %s254 = scalar_select %p253, %s21, 0
      %s255 = sadd.s32 %s254, %s252
      %s256 = smul.addr %s255, 8
      %s257 = scalar_lea.vmem %s4, %s256
      %s259 = smul.u32 %s21, 4
      %s260 = smul.u32 %s259, 2
      %s261 = smul.addr %s260, 4
      %s262 = scalar_lea.vmem %s233, %s261
      %v263 = vld [vmem:[%s262] sm:$0xf]
      %v264 = vld [vmem:[%s262 + $0x8] sm:$0xf]
      %v265 = vld [vmem:[%s262 + $0x10] sm:$0xf]
      %v266 = vld [vmem:[%s262 + $0x18] sm:$0xf]
      %v267 = vld [vmem:[%s1] sm:$0xf]
      %v268 = vld [vmem:[%s1 + $0x4] sm:$0xf]
      %v269 = vld [vmem:[%s1 + $0x8] sm:$0xf]
      %v270 = vld [vmem:[%s1 + $0xc] sm:$0xf]
      %v271 = vld [vmem:[%s1 + $0x10] sm:$0xf]
      %v272 = vld [vmem:[%s1 + $0x14] sm:$0xf]
      %v273 = vld [vmem:[%s1 + $0x18] sm:$0xf]
      %v274 = vld [vmem:[%s1 + $0x1c] sm:$0xf]
      %v275 = vld [vmem:[%s262 + $0x4] sm:$0x1]
      %v276 = vld [vmem:[%s262 + $0xc] sm:$0x1]
      %v277 = vld [vmem:[%s262 + $0x14] sm:$0x1]
      %v278 = vld [vmem:[%s262 + $0x1c] sm:$0x1]
      %vm279 = vsmask.f32 3328
      %vm280 = vsmask.f32 7440
      %vm281 = vmor %vm279, %vm280
      %v283 = vshrl.u32 %v263, 16
      %v285 = vrot.slane %v283, 4
      %v286 = vshll.u32 %v263, 16
      %v288 = vrot.slane %v286, 5
      %v289 = vor.u32 %v285, %v288
      %v290 = vrot.slane %v289, 4
      %v292 = vshll.u32 %v275, 16
      %v294 = vrot.slane %v292, 5
      %v295 = vsel %vm281, %v290, %v294
      %v297 = vshrl.u32 %v264, 16
      %v299 = vrot.slane %v297, 4
      %v300 = vshll.u32 %v264, 16
      %v302 = vrot.slane %v300, 5
      %v303 = vor.u32 %v299, %v302
      %v304 = vrot.slane %v303, 4
      %v306 = vshll.u32 %v276, 16
      %v308 = vrot.slane %v306, 5
      %v309 = vsel %vm281, %v304, %v308
      %v311 = vshrl.u32 %v265, 16
      %v313 = vrot.slane %v311, 4
      %v314 = vshll.u32 %v265, 16
      %v316 = vrot.slane %v314, 5
      %v317 = vor.u32 %v313, %v316
      %v318 = vrot.slane %v317, 4
      %v320 = vshll.u32 %v277, 16
      %v322 = vrot.slane %v320, 5
      %v323 = vsel %vm281, %v318, %v322
      %v325 = vshrl.u32 %v266, 16
      %v327 = vrot.slane %v325, 4
      %v328 = vshll.u32 %v266, 16
      %v330 = vrot.slane %v328, 5
      %v331 = vor.u32 %v327, %v330
      %v332 = vrot.slane %v331, 4
      %v334 = vshll.u32 %v278, 16
      %v336 = vrot.slane %v334, 5
      %v337 = vsel %vm281, %v332, %v336
      %s338 = scalar_lea.vmem %s1, 32
      %v339 = vld [vmem:[%s338] sm:$0xf]
      %v340 = vld [vmem:[%s338 + $0x4] sm:$0xf]
      %v341 = vld [vmem:[%s338 + $0x8] sm:$0xf]
      %v342 = vld [vmem:[%s338 + $0xc] sm:$0xf]
      %v343 = vld [vmem:[%s338 + $0x10] sm:$0xf]
      %v344 = vld [vmem:[%s338 + $0x14] sm:$0xf]
      %v345 = vld [vmem:[%s338 + $0x18] sm:$0xf]
      %v346 = vld [vmem:[%s338 + $0x1c] sm:$0xf]
      %v347 = vunpack.c.l.b16 %v295
      %v348 = vunpack.c.l.b16 %v309
      %v349 = vunpack.c.l.b16 %v323
      %v350 = vunpack.c.l.b16 %v337
      %v351 = vpack.c.b16 %v348, %v347
      %v352 = vpack.c.b16 %v350, %v349
      %v361 = vunpack.c.l.b16 %v339
      %v362 = vunpack.c.l.b16 %v340
      %v363 = vunpack.c.l.b16 %v341
      %v364 = vunpack.c.l.b16 %v342
      %v365 = vunpack.c.l.b16 %v343
      %v366 = vunpack.c.l.b16 %v344
      %v367 = vunpack.c.l.b16 %v345
      %v368 = vunpack.c.l.b16 %v346
      %v369 = vpack.c.b16 %v362, %v361
      %v370 = vpack.c.b16 %v364, %v363
      %v371 = vpack.c.b16 %v366, %v365
      %v372 = vpack.c.b16 %v368, %v367
      %vm377 = vcmask 523264
      %v379 = vsel %vm377, %v351, 0
      %v382 = vsel %vm377, %v352, 0
      %384 = vmatprep.subr.bf16.mxu0 0
      %385 = vmatpush1.bf16.msra.mxu0 %v369
      %386 = vmatprep.subr.bf16.mxu0 0
      %387 = vmatpush1.bf16.msra.mxu0 %v370
      %388 = vmatprep.subr.bf16.mxu0 0
      %389 = vmatpush1.bf16.msra.mxu0 %v371
      %390 = vmatprep.subr.bf16.mxu0 0
      %391 = vmatpush1.bf16.msra.mxu0 %v372
      %392 = vmatprep.subr.bf16.mxu0 0
      %393 = vmatpush1.bf16.msra.mxu0 0
      %394 = vmatprep.subr.bf16.mxu0 0
      %395 = vmatpush1.bf16.msra.mxu0 0
      %396 = vmatprep.subr.bf16.mxu0 0
      %397 = vmatpush1.bf16.msra.mxu0 0
      %398 = vmatprep.subr.bf16.mxu0 0
      %399 = vmatpush1.bf16.msra.mxu0 0
      %400 = vmatprep.subr.bf16.mxu0 0
      %401 = vmatpush1.bf16.msra.mxu0 0
      %402 = vmatprep.subr.bf16.mxu0 0
      %403 = vmatpush1.bf16.msra.mxu0 0
      %404 = vmatprep.subr.bf16.mxu0 0
      %405 = vmatpush1.bf16.msra.mxu0 0
      %406 = vmatprep.subr.bf16.mxu0 0
      %407 = vmatpush1.bf16.msra.mxu0 0
      %408 = vmatprep.subr.bf16.mxu0 0
      %409 = vmatpush1.bf16.msra.mxu0 0
      %410 = vmatprep.subr.bf16.mxu0 0
      %411 = vmatpush1.bf16.msra.mxu0 0
      %412 = vmatprep.subr.bf16.mxu0 0
      %413 = vmatpush1.bf16.msra.mxu0 0
      %414 = vmatprep.subr.bf16.mxu0 0
      %415 = vmatpush1.bf16.msra.mxu0 0
      %416 = vmatprep.mubr.bf16.mxu0 0
      %417 = vmatmul.mubr.bf16.gmra.mrb[0].mxu0 %v379
      %v418 = vpop.f32.mrb[0].mxu0
      %v419 = vadd.f32 0.0, %v418
      %v420 = vpop.f32.mrb[0].mxu0
      %v421 = vpop.f32.mrb[0].mxu0
      %v422 = vadd.f32 0.0, %v421
      %v423 = vpop.f32.mrb[0].mxu0
      %424 = vmatprep.mubr.bf16.mxu0 0
      %425 = vmatmul.mubr.bf16.gmra.mrb[0].mxu0 %v382
      %v426 = vpop.f32.mrb[0].mxu0
      %v427 = vadd.f32 0.0, %v426
      %v428 = vpop.f32.mrb[0].mxu0
      %v429 = vpop.f32.mrb[0].mxu0
      %v430 = vadd.f32 0.0, %v429
      %v431 = vpop.f32.mrb[0].mxu0
      %432 = vdwg.mxu0
      %v437 = vunpack.c.l.b16 %v263
      %v438 = vunpack.c.l.b16 %v264
      %v439 = vunpack.c.l.b16 %v265
      %v440 = vunpack.c.l.b16 %v266
      %v441 = vpack.c.b16 %v438, %v437
      %v442 = vpack.c.b16 %v440, %v439
      %v451 = vunpack.c.l.b16 %v267
      %v452 = vunpack.c.l.b16 %v268
      %v453 = vunpack.c.l.b16 %v269
      %v454 = vunpack.c.l.b16 %v270
      %v455 = vunpack.c.l.b16 %v271
      %v456 = vunpack.c.l.b16 %v272
      %v457 = vunpack.c.l.b16 %v273
      %v458 = vunpack.c.l.b16 %v274
      %v459 = vpack.c.b16 %v452, %v451
      %v460 = vpack.c.b16 %v454, %v453
      %v461 = vpack.c.b16 %v456, %v455
      %v462 = vpack.c.b16 %v458, %v457
      %v468 = vsel %vm377, %v441, 0
      %v471 = vsel %vm377, %v442, 0
      %473 = vmatprep.subr.bf16.mxu0 0
      %474 = vmatpush1.bf16.msra.mxu0 %v459
      %475 = vmatprep.subr.bf16.mxu0 0
      %476 = vmatpush1.bf16.msra.mxu0 %v460
      %477 = vmatprep.subr.bf16.mxu0 0
      %478 = vmatpush1.bf16.msra.mxu0 %v461
      %479 = vmatprep.subr.bf16.mxu0 0
      %480 = vmatpush1.bf16.msra.mxu0 %v462
      %481 = vmatprep.subr.bf16.mxu0 0
      %482 = vmatpush1.bf16.msra.mxu0 0
      %483 = vmatprep.subr.bf16.mxu0 0
      %484 = vmatpush1.bf16.msra.mxu0 0
      %485 = vmatprep.subr.bf16.mxu0 0
      %486 = vmatpush1.bf16.msra.mxu0 0
      %487 = vmatprep.subr.bf16.mxu0 0
      %488 = vmatpush1.bf16.msra.mxu0 0
      %489 = vmatprep.subr.bf16.mxu0 0
      %490 = vmatpush1.bf16.msra.mxu0 0
      %491 = vmatprep.subr.bf16.mxu0 0
      %492 = vmatpush1.bf16.msra.mxu0 0
      %493 = vmatprep.subr.bf16.mxu0 0
      %494 = vmatpush1.bf16.msra.mxu0 0
      %495 = vmatprep.subr.bf16.mxu0 0
      %496 = vmatpush1.bf16.msra.mxu0 0
      %497 = vmatprep.subr.bf16.mxu0 0
      %498 = vmatpush1.bf16.msra.mxu0 0
      %499 = vmatprep.subr.bf16.mxu0 0
      %500 = vmatpush1.bf16.msra.mxu0 0
      %501 = vmatprep.subr.bf16.mxu0 0
      %502 = vmatpush1.bf16.msra.mxu0 0
      %503 = vmatprep.subr.bf16.mxu0 0
      %504 = vmatpush1.bf16.msra.mxu0 0
      %505 = vmatprep.mubr.bf16.mxu0 0
      %506 = vmatmul.mubr.bf16.gmra.mrb[0].mxu0 %v468
      %v507 = vpop.f32.mrb[0].mxu0
      %v508 = vadd.f32 %v419, %v507
      %v509 = vpop.f32.mrb[0].mxu0
      %v510 = vpop.f32.mrb[0].mxu0
      %v511 = vadd.f32 %v422, %v510
      %v512 = vpop.f32.mrb[0].mxu0
      %513 = vmatprep.mubr.bf16.mxu0 0
      %514 = vmatmul.mubr.bf16.gmra.mrb[0].mxu0 %v471
      %v515 = vpop.f32.mrb[0].mxu0
      %v516 = vadd.f32 %v427, %v515
      %v517 = vpop.f32.mrb[0].mxu0
      %v518 = vpop.f32.mrb[0].mxu0
      %v519 = vadd.f32 %v430, %v518
      %v520 = vpop.f32.mrb[0].mxu0
      %521 = vdwg.mxu0
      %s522 = sadd.s32 %s259, 1
      %s523 = smul.u32 %s522, 2
      %s524 = smul.addr %s523, 4
      %s525 = scalar_lea.vmem %s233, %s524
      %v526 = vld [vmem:[%s525] sm:$0xf]
      %v527 = vld [vmem:[%s525 + $0x8] sm:$0xf]
      %v528 = vld [vmem:[%s525 + $0x10] sm:$0xf]
      %v529 = vld [vmem:[%s525 + $0x18] sm:$0xf]
      %s530 = scalar_lea.vmem %s1, 64
      %v531 = vld [vmem:[%s530] sm:$0xf]
      %v532 = vld [vmem:[%s530 + $0x4] sm:$0xf]
      %v533 = vld [vmem:[%s530 + $0x8] sm:$0xf]
      %v534 = vld [vmem:[%s530 + $0xc] sm:$0xf]
      %v535 = vld [vmem:[%s530 + $0x10] sm:$0xf]
      %v536 = vld [vmem:[%s530 + $0x14] sm:$0xf]
      %v537 = vld [vmem:[%s530 + $0x18] sm:$0xf]
      %v538 = vld [vmem:[%s530 + $0x1c] sm:$0xf]
      %v543 = vunpack.c.l.b16 %v526
      %v544 = vunpack.c.l.b16 %v527
      %v545 = vunpack.c.l.b16 %v528
      %v546 = vunpack.c.l.b16 %v529
      %v547 = vpack.c.b16 %v544, %v543
      %v548 = vpack.c.b16 %v546, %v545
      %v557 = vunpack.c.l.b16 %v531
      %v558 = vunpack.c.l.b16 %v532
      %v559 = vunpack.c.l.b16 %v533
      %v560 = vunpack.c.l.b16 %v534
      %v561 = vunpack.c.l.b16 %v535
      %v562 = vunpack.c.l.b16 %v536
      %v563 = vunpack.c.l.b16 %v537
      %v564 = vunpack.c.l.b16 %v538
      %v565 = vpack.c.b16 %v558, %v557
      %v566 = vpack.c.b16 %v560, %v559
      %v567 = vpack.c.b16 %v562, %v561
      %v568 = vpack.c.b16 %v564, %v563
      %v574 = vsel %vm377, %v547, 0
      %v577 = vsel %vm377, %v548, 0
      %579 = vmatprep.subr.bf16.mxu0 0
      %580 = vmatpush1.bf16.msra.mxu0 %v565
      %581 = vmatprep.subr.bf16.mxu0 0
      %582 = vmatpush1.bf16.msra.mxu0 %v566
      %583 = vmatprep.subr.bf16.mxu0 0
      %584 = vmatpush1.bf16.msra.mxu0 %v567
      %585 = vmatprep.subr.bf16.mxu0 0
      %586 = vmatpush1.bf16.msra.mxu0 %v568
      %587 = vmatprep.subr.bf16.mxu0 0
      %588 = vmatpush1.bf16.msra.mxu0 0
      %589 = vmatprep.subr.bf16.mxu0 0
      %590 = vmatpush1.bf16.msra.mxu0 0
      %591 = vmatprep.subr.bf16.mxu0 0
      %592 = vmatpush1.bf16.msra.mxu0 0
      %593 = vmatprep.subr.bf16.mxu0 0
      %594 = vmatpush1.bf16.msra.mxu0 0
      %595 = vmatprep.subr.bf16.mxu0 0
      %596 = vmatpush1.bf16.msra.mxu0 0
      %597 = vmatprep.subr.bf16.mxu0 0
      %598 = vmatpush1.bf16.msra.mxu0 0
      %599 = vmatprep.subr.bf16.mxu0 0
      %600 = vmatpush1.bf16.msra.mxu0 0
      %601 = vmatprep.subr.bf16.mxu0 0
      %602 = vmatpush1.bf16.msra.mxu0 0
      %603 = vmatprep.subr.bf16.mxu0 0
      %604 = vmatpush1.bf16.msra.mxu0 0
      %605 = vmatprep.subr.bf16.mxu0 0
      %606 = vmatpush1.bf16.msra.mxu0 0
      %607 = vmatprep.subr.bf16.mxu0 0
      %608 = vmatpush1.bf16.msra.mxu0 0
      %609 = vmatprep.subr.bf16.mxu0 0
      %610 = vmatpush1.bf16.msra.mxu0 0
      %611 = vmatprep.mubr.bf16.mxu0 0
      %612 = vmatmul.mubr.bf16.gmra.mrb[0].mxu0 %v574
      %v613 = vpop.f32.mrb[0].mxu0
      %v614 = vadd.f32 0.0, %v613
      %v615 = vpop.f32.mrb[0].mxu0
      %v616 = vpop.f32.mrb[0].mxu0
      %v617 = vadd.f32 0.0, %v616
      %v618 = vpop.f32.mrb[0].mxu0
      %619 = vmatprep.mubr.bf16.mxu0 0
      %620 = vmatmul.mubr.bf16.gmra.mrb[0].mxu0 %v577
      %v621 = vpop.f32.mrb[0].mxu0
      %v622 = vadd.f32 0.0, %v621
      %v623 = vpop.f32.mrb[0].mxu0
      %v624 = vpop.f32.mrb[0].mxu0
      %v625 = vadd.f32 0.0, %v624
      %v626 = vpop.f32.mrb[0].mxu0
      %627 = vdwg.mxu0
      %v628 = vadd.f32 %v508, %v614
      %v629 = vadd.f32 %v511, %v617
      %v630 = vadd.f32 %v516, %v622
      %v631 = vadd.f32 %v519, %v625
      %v632 = vld [vmem:[%s525] sm:$0xf]
      %v633 = vld [vmem:[%s525 + $0x4] sm:$0x1]
      %v634 = vld [vmem:[%s525 + $0x8] sm:$0xf]
      %v635 = vld [vmem:[%s525 + $0xc] sm:$0x1]
      %v636 = vld [vmem:[%s525 + $0x10] sm:$0xf]
      %v637 = vld [vmem:[%s525 + $0x14] sm:$0x1]
      %v638 = vld [vmem:[%s525 + $0x18] sm:$0xf]
      %v639 = vld [vmem:[%s525 + $0x1c] sm:$0x1]
      %v641 = vshrl.u32 %v632, 16
      %v643 = vrot.slane %v641, 4
      %v644 = vshll.u32 %v632, 16
      %v646 = vrot.slane %v644, 5
      %v647 = vor.u32 %v643, %v646
      %v648 = vrot.slane %v647, 4
      %v650 = vshll.u32 %v633, 16
      %v652 = vrot.slane %v650, 5
      %v653 = vsel %vm281, %v648, %v652
      %v655 = vshrl.u32 %v634, 16
      %v657 = vrot.slane %v655, 4
      %v658 = vshll.u32 %v634, 16
      %v660 = vrot.slane %v658, 5
      %v661 = vor.u32 %v657, %v660
      %v662 = vrot.slane %v661, 4
      %v664 = vshll.u32 %v635, 16
      %v666 = vrot.slane %v664, 5
      %v667 = vsel %vm281, %v662, %v666
      %v669 = vshrl.u32 %v636, 16
      %v671 = vrot.slane %v669, 4
      %v672 = vshll.u32 %v636, 16
      %v674 = vrot.slane %v672, 5
      %v675 = vor.u32 %v671, %v674
      %v676 = vrot.slane %v675, 4
      %v678 = vshll.u32 %v637, 16
      %v680 = vrot.slane %v678, 5
      %v681 = vsel %vm281, %v676, %v680
      %v683 = vshrl.u32 %v638, 16
      %v685 = vrot.slane %v683, 4
      %v686 = vshll.u32 %v638, 16
      %v688 = vrot.slane %v686, 5
      %v689 = vor.u32 %v685, %v688
      %v690 = vrot.slane %v689, 4
      %v692 = vshll.u32 %v639, 16
      %v694 = vrot.slane %v692, 5
      %v695 = vsel %vm281, %v690, %v694
      %s696 = scalar_lea.vmem %s1, 96
      %v697 = vld [vmem:[%s696] sm:$0xf]
      %v698 = vld [vmem:[%s696 + $0x4] sm:$0xf]
      %v699 = vld [vmem:[%s696 + $0x8] sm:$0xf]
      %v700 = vld [vmem:[%s696 + $0xc] sm:$0xf]
      %v701 = vld [vmem:[%s696 + $0x10] sm:$0xf]
      %v702 = vld [vmem:[%s696 + $0x14] sm:$0xf]
      %v703 = vld [vmem:[%s696 + $0x18] sm:$0xf]
      %v704 = vld [vmem:[%s696 + $0x1c] sm:$0xf]
      %v705 = vunpack.c.l.b16 %v653
      %v706 = vunpack.c.l.b16 %v667
      %v707 = vunpack.c.l.b16 %v681
      %v708 = vunpack.c.l.b16 %v695
      %v709 = vpack.c.b16 %v706, %v705
      %v710 = vpack.c.b16 %v708, %v707
      %v719 = vunpack.c.l.b16 %v697
      %v720 = vunpack.c.l.b16 %v698
      %v721 = vunpack.c.l.b16 %v699
      %v722 = vunpack.c.l.b16 %v700
      %v723 = vunpack.c.l.b16 %v701
      %v724 = vunpack.c.l.b16 %v702
      %v725 = vunpack.c.l.b16 %v703
      %v726 = vunpack.c.l.b16 %v704
      %v727 = vpack.c.b16 %v720, %v719
      %v728 = vpack.c.b16 %v722, %v721
      %v729 = vpack.c.b16 %v724, %v723
      %v730 = vpack.c.b16 %v726, %v725
      %v736 = vsel %vm377, %v709, 0
      %v739 = vsel %vm377, %v710, 0
      %741 = vmatprep.subr.bf16.mxu0 0
      %742 = vmatpush1.bf16.msra.mxu0 %v727
      %743 = vmatprep.subr.bf16.mxu0 0
      %744 = vmatpush1.bf16.msra.mxu0 %v728
      %745 = vmatprep.subr.bf16.mxu0 0
      %746 = vmatpush1.bf16.msra.mxu0 %v729
      %747 = vmatprep.subr.bf16.mxu0 0
      %748 = vmatpush1.bf16.msra.mxu0 %v730
      %749 = vmatprep.subr.bf16.mxu0 0
      %750 = vmatpush1.bf16.msra.mxu0 0
      %751 = vmatprep.subr.bf16.mxu0 0
      %752 = vmatpush1.bf16.msra.mxu0 0
      %753 = vmatprep.subr.bf16.mxu0 0
      %754 = vmatpush1.bf16.msra.mxu0 0
      %755 = vmatprep.subr.bf16.mxu0 0
      %756 = vmatpush1.bf16.msra.mxu0 0
      %757 = vmatprep.subr.bf16.mxu0 0
      %758 = vmatpush1.bf16.msra.mxu0 0
      %759 = vmatprep.subr.bf16.mxu0 0
      %760 = vmatpush1.bf16.msra.mxu0 0
      %761 = vmatprep.subr.bf16.mxu0 0
      %762 = vmatpush1.bf16.msra.mxu0 0
      %763 = vmatprep.subr.bf16.mxu0 0
      %764 = vmatpush1.bf16.msra.mxu0 0
      %765 = vmatprep.subr.bf16.mxu0 0
      %766 = vmatpush1.bf16.msra.mxu0 0
      %767 = vmatprep.subr.bf16.mxu0 0
      %768 = vmatpush1.bf16.msra.mxu0 0
      %769 = vmatprep.subr.bf16.mxu0 0
      %770 = vmatpush1.bf16.msra.mxu0 0
      %771 = vmatprep.subr.bf16.mxu0 0
      %772 = vmatpush1.bf16.msra.mxu0 0
      %773 = vmatprep.mubr.bf16.mxu0 0
      %774 = vmatmul.mubr.bf16.gmra.mrb[0].mxu0 %v736
      %v775 = vpop.f32.mrb[0].mxu0
      %v776 = vadd.f32 0.0, %v775
      %v777 = vpop.f32.mrb[0].mxu0
      %v778 = vpop.f32.mrb[0].mxu0
      %v779 = vadd.f32 0.0, %v778
      %v780 = vpop.f32.mrb[0].mxu0
      %781 = vmatprep.mubr.bf16.mxu0 0
      %782 = vmatmul.mubr.bf16.gmra.mrb[0].mxu0 %v739
      %v783 = vpop.f32.mrb[0].mxu0
      %v784 = vadd.f32 0.0, %v783
      %v785 = vpop.f32.mrb[0].mxu0
      %v786 = vpop.f32.mrb[0].mxu0
      %v787 = vadd.f32 0.0, %v786
      %v788 = vpop.f32.mrb[0].mxu0
      %789 = vdwg.mxu0
      %v790 = vadd.f32 %v628, %v776
      %v791 = vadd.f32 %v629, %v779
      %v792 = vadd.f32 %v630, %v784
      %v793 = vadd.f32 %v631, %v787
      %v794 = vpack.c.bf16 %v790, %v790
      %v795 = vpack.c.bf16 %v791, %v791
      %v796 = vpack.c.bf16 %v792, %v792
      %v797 = vpack.c.bf16 %v793, %v793
      %vm798 = vcmask 257024
      %799 = vst.msk [vmem:[%s242] sm:$0xf] %vm798, %v794
      %800 = vst.msk [vmem:[%s242 + $0x4] sm:$0xf] %vm798, %v795
      %801 = vst.msk [vmem:[%s242 + $0x8] sm:$0xf] %vm798, %v796
      %802 = vst.msk [vmem:[%s242 + $0xc] sm:$0xf] %vm798, %v797
      %v803 = vstv %s259
      %v804 = vadd.s32 %v803, 1
      %v805 = vadd.s32 %v803, 2
      %v806 = vadd.s32 %v803, 3
      %v807 = vlaneseq
      %v808 = vshrl.u32 %v807, 7
      %vm809 = vcmp.lt.s32.totalorder %v803, 4
      %vm810 = vcmp.lt.s32.totalorder %v804, 4
      %vm811 = vcmp.lt.s32.totalorder %v805, 4
      %vm812 = vcmp.lt.s32.totalorder %v806, 4
      %vm813 = vcmp.lt.s32.totalorder %v808, 4
      %vm814 = vmand %vm809, %vm813
      %vm815 = vmand %vm810, %vm813
      %vm816 = vmand %vm811, %vm813
      %vm817 = vmand %vm812, %vm813
      %v818 = vsel %vm814, 1, 0
      %v819 = vsel %vm815, 1, 0
      %v820 = vsel %vm816, 1, 0
      %v821 = vsel %vm817, 1, 0
      %vm822 = vcmp.eq.s32.totalorder %v818, 1
      %vm823 = vcmp.eq.s32.totalorder %v819, 1
      %vm824 = vcmp.eq.s32.totalorder %v820, 1
      %vm825 = vcmp.eq.s32.totalorder %v821, 1
      %v826 = vsel %vm822, %v790, 0.0
      %v827 = vsel %vm823, %v791, 0.0
      %v828 = vsel %vm824, %v792, 0.0
      %v829 = vsel %vm825, %v793, 0.0
      %vm830 = vcmask 261120
      %v831 = vsel %vm830, %v826, 0.0
      %v832 = vsel %vm830, %v827, 0.0
      %v833 = vadd.f32 %v831, %v832
      %v834 = vsel %vm830, %v828, 0.0
      %v835 = vadd.f32 %v833, %v834
      %v836 = vsel %vm830, %v829, 0.0
      %v837 = vadd.f32 %v835, %v836
      %v838 = vrot.slane %v837, 4
      %v839 = vadd.f32 %v837, %v838
      %v840 = vrot.slane %v839, 2
      %v841 = vadd.f32 %v839, %v840
      %v842 = vrot.slane %v841, 1
      %v843 = vadd.f32 %v841, %v842
      %v844 = vmul.f32 %v826, %v826
      %v845 = vmul.f32 %v827, %v827
      %v846 = vmul.f32 %v828, %v828
      %v847 = vmul.f32 %v829, %v829
      %v848 = vsel %vm830, %v844, 0.0
      %v849 = vsel %vm830, %v845, 0.0
      %v850 = vadd.f32 %v848, %v849
      %v851 = vsel %vm830, %v846, 0.0
      %v852 = vadd.f32 %v850, %v851
      %v853 = vsel %vm830, %v847, 0.0
      %v854 = vadd.f32 %v852, %v853
      %v855 = vrot.slane %v854, 4
      %v856 = vadd.f32 %v854, %v855
      %v857 = vrot.slane %v856, 2
      %v858 = vadd.f32 %v856, %v857
      %v859 = vrot.slane %v858, 1
      %v860 = vadd.f32 %v858, %v859
      %861 = vst.msk [vmem:[%s250] sm:$0xff] %vm830, %v843
      %862 = vst.msk [vmem:[%s257] sm:$0xff] %vm830, %v860
      %s863 = smul.u32 4, %s21
      %p864 = scmp.lt.s32.totalorder %s20, 1
      %s865 = scalar_select %p864, %s20, 1
      %p866 = scmp.lt.s32.totalorder %s863, 3
      %s867 = scalar_select %p866, %s863, 3
      %s868 = smul.addr %s865, 4
      %s869 = sadd.s32 %s867, %s868
      %s870 = smul.addr %s869, 4
      %s871 = scalar_lea.vmem %s2, %s870
      %p872 = scmp.lt.s32.totalorder %s20, 1
      %s873 = scalar_select %p872, %s20, 1
      %p874 = scmp.lt.s32.totalorder %s21, 0
      %s875 = scalar_select %p874, %s21, 0
      %s876 = sadd.s32 %s875, %s873
      %s877 = smul.addr %s876, 8
      %s878 = scalar_lea.vmem %s3, %s877
      %p879 = scmp.lt.s32.totalorder %s20, 1
      %s880 = scalar_select %p879, %s20, 1
      %p881 = scmp.lt.s32.totalorder %s21, 0
      %s882 = scalar_select %p881, %s21, 0
      %s883 = sadd.s32 %s882, %s880
      %s884 = smul.addr %s883, 8
      %s885 = scalar_lea.vmem %s4, %s884
      // Predicated region
      $region29: #{_lambda_.11} parent=27 // pred_check
        %p886 = pneg %p95
      $region30: #{_lambda_.11} parent=27 // pred_check_branch
        %888 = sbr.rel (%p886) target = $region32
      $region31: #{_lambda_.11} parent=27 // pred_region
        %s889 = smul.u32 4, %s21
      $region32: #{_lambda_.11} parent=27 // pred_fallthru
        _
      // Predicated region
      $region33: #{_lambda_.11} parent=27 // pred_check
        %p890 = pneg %p123
      $region34: #{_lambda_.11} parent=27 // pred_check_branch
        %892 = sbr.rel (%p890) target = $region36
      $region35: #{_lambda_.11} parent=27 // pred_region
        _
      $region36: #{_lambda_.11} parent=27 // pred_fallthru
        _
      // Predicated region
      $region37: #{_lambda_.11} parent=27 // pred_check
        %p893 = pneg %p151
      $region38: #{_lambda_.11} parent=27 // pred_check_branch
        %895 = sbr.rel (%p893) target = $region40
      $region39: #{_lambda_.11} parent=27 // pred_region
        _
      $region40: #{_lambda_.11} parent=27 // pred_fallthru
        _
    $region28: #{_lambda_.11} parent=5 // pred_fallthru
      _
    %p896 = scmp.le.s32.totalorder 2, %s11
    // Predicated region
    $region41: #{_lambda_.11} parent=5 // pred_check
      %p897 = pneg %p896
    $region42: #{_lambda_.11} parent=5 // pred_check_branch
      %899 = sbr.rel (%p897) target = $region44
    $region43: #{_lambda_.11} parent=5 // pred_region
      %s900 = ssub.s32 %s11, 2
      // Predicated region
      $region45: #{_lambda_.11} parent=43 // pred_check
        %p901 = pneg %p101
      $region46: #{_lambda_.11} parent=43 // pred_check_branch
        %903 = sbr.rel (%p901) target = $region48
      $region47: #{_lambda_.11} parent=43 // pred_region
        %s904 = smul.u32 4, %s23
        %p905 = scmp.lt.s32.totalorder %s22, 1
        %s906 = scalar_select %p905, %s22, 1
        %p907 = scmp.lt.s32.totalorder %s904, 3
        %s908 = scalar_select %p907, %s904, 3
        %s909 = smul.addr %s906, 4
        %s910 = sadd.s32 %s908, %s909
        %s911 = smul.addr %s910, 4
        %s912 = scalar_lea.vmem %s2, %s911
      $region48: #{_lambda_.11} parent=43 // pred_fallthru
        _
      // Predicated region
      $region49: #{_lambda_.11} parent=43 // pred_check
        %p913 = pneg %p129
      $region50: #{_lambda_.11} parent=43 // pred_check_branch
        %915 = sbr.rel (%p913) target = $region52
      $region51: #{_lambda_.11} parent=43 // pred_region
        %p916 = scmp.lt.s32.totalorder %s22, 1
        %s917 = scalar_select %p916, %s22, 1
        %p918 = scmp.lt.s32.totalorder %s23, 0
        %s919 = scalar_select %p918, %s23, 0
        %s920 = sadd.s32 %s919, %s917
        %s921 = smul.addr %s920, 8
        %s922 = scalar_lea.vmem %s3, %s921
      $region52: #{_lambda_.11} parent=43 // pred_fallthru
        _
      // Predicated region
      $region53: #{_lambda_.11} parent=43 // pred_check
        %p923 = pneg %p157
      $region54: #{_lambda_.11} parent=43 // pred_check_branch
        %925 = sbr.rel (%p923) target = $region56
      $region55: #{_lambda_.11} parent=43 // pred_region
        %p926 = scmp.lt.s32.totalorder %s22, 1
        %s927 = scalar_select %p926, %s22, 1
        %p928 = scmp.lt.s32.totalorder %s23, 0
        %s929 = scalar_select %p928, %s23, 0
        %s930 = sadd.s32 %s929, %s927
        %s931 = smul.addr %s930, 8
        %s932 = scalar_lea.vmem %s4, %s931
      $region56: #{_lambda_.11} parent=43 // pred_fallthru
        _
    $region44: #{_lambda_.11} parent=5 // pred_fallthru
      _
  $region6: #{_lambda_.11} parent=0 // loop_footer
    %s15 = sadd.s32 1, %s11
  $region7: #{_lambda_.11} parent=0 // loop_footer_branch
    %10 = sbr.rel target = $region3
  $region8: #{_lambda_.11} parent=0 // loop_exit
    _

// kernel: _lambda_.14
$region0: #{_lambda_.14}
  #allocation0 [shape = 'u32[]', space=smem, size = 0x4, offset = 0x4, fixed_abs, tag = 'smem constant byte address 0x4 - core index']
  #allocation1 [shape = 'u32[144,128]{1,0:T(1,128)}', space=vmem, size = 0x12000, scoped, tag = 'internal scratch']
  %s0 = inlined_call_operand.vmem [shape: bf16[2,3,8,64], index: 0, kind: input, shape index: {}]
  %s1 = inlined_call_operand.vmem [shape: f32[1,64], index: 1, kind: input, shape index: {}]
  %s2 = inlined_call_operand.vmem [shape: f32[1,64], index: 2, kind: input, shape index: {}]
  %s3 = inlined_call_operand.vmem [shape: bf16[2,3,8,64], index: 3, kind: output, shape index: {}]
  %s4 = sld [smem:[#allocation0]]
  $region45: #{_lambda_.14} parent=0
    _
  %s6 = ssub.s32 1, %s4
  %s7 = scalar_select 0, %s6, %s4
  loop: start=0, step=1, limit=4
  $region2: #{_lambda_.14} parent=0 // loop_pre_header
    _
  $region3: #{_lambda_.14} parent=0 // loop_header
    %s9 = sphi 0, %s13
    %p10 = scmp.ge.s32.totalorder %s9, 4
    %s16 = sphi 0, %s28
    %s17 = sphi 0, %s24
    %s18 = sphi 0, %s16
    %s19 = sphi 0, %s17
    %s20 = sphi 0, %s18
    %s21 = sphi 0, %s19
    %s33 = sphi 0, %s35
    %s36 = sphi 0, %s33
    %s37 = sphi 0, %s36
    %s53 = sphi 0, %s37
    %s57 = sphi 0, %s57
    %s59 = sphi 0, %s57
    %s60 = sphi 0, %s59
    %s74 = sphi 0, %s60
    %s78 = sphi 0, %s78
    %s80 = sphi 0, %s78
    %s81 = sphi 0, %s80
    %s95 = sphi 0, %s81
    %s103 = sphi 0, %s105
    %s106 = sphi 0, %s103
    %s107 = sphi 0, %s106
    %s123 = sphi 0, %s107
  $region4: #{_lambda_.14} parent=0 // loop_header_branch
    %12 = sbr.rel (%p10) target = $region8
  $region5: #{_lambda_.14} parent=0 // loop_body
    %s14 = ssub.s32 %s9, 1
    %s15 = ssub.s32 %s9, 2
    %s22 = sadd.s32 1, %s17
    %p23 = scmp.ge.s32.totalorder %s22, 1
    %s24 = scalar_select %p23, 0, %s22
    %s25 = sadd.s32 1, %s16
    %s26 = scalar_select %p23, %s25, %s16
    %p27 = scmp.ge.s32.totalorder %s26, 2
    %s28 = scalar_select %p27, 0, %s26
    %s29 = ssub.s32 %s16, %s28
    %s30 = ssub.s32 %s17, %s24
    %s31 = sor.u32 %s29, %s30
    %p32 = scmp.eq.s32.totalorder %s31, 0
    %s34 = sadd.s32 %s33, 1
    %s35 = scalar_select %p32, %s33, %s34
    %p38 = pneg %p32
    %p39 = scmp.eq.s32.totalorder %s9, 1
    %p40 = por %p38, %p39
    %p41 = scmp.ne.s32.totalorder %s33, %s36
    %p42 = scmp.eq.s32.totalorder %s9, 0
    %p43 = por %p41, %p42
    %p44 = scmp.ne.s32.totalorder %s33, %s36
    %p45 = scmp.eq.s32.totalorder %s14, 1
    %p46 = por %p44, %p45
    %p47 = scmp.ne.s32.totalorder %s36, %s37
    %p48 = scmp.eq.s32.totalorder %s14, 0
    %p49 = por %p47, %p48
    %p50 = scmp.ne.s32.totalorder %s36, %s37
    %p51 = scmp.eq.s32.totalorder %s15, 1
    %p52 = por %p50, %p51
    %p54 = scmp.ne.s32.totalorder %s37, %s53
    %p55 = scmp.eq.s32.totalorder %s15, 0
    %p56 = por %p54, %p55
    %s58 = sadd.s32 %s57, 1
    %p61 = scmp.eq.s32.totalorder %s9, 1
    %p62 = scmp.ne.s32.totalorder %s57, %s59
    %p63 = scmp.eq.s32.totalorder %s9, 0
    %p64 = por %p62, %p63
    %p65 = scmp.ne.s32.totalorder %s57, %s59
    %p66 = scmp.eq.s32.totalorder %s14, 1
    %p67 = por %p65, %p66
    %p68 = scmp.ne.s32.totalorder %s59, %s60
    %p69 = scmp.eq.s32.totalorder %s14, 0
    %p70 = por %p68, %p69
    %p71 = scmp.ne.s32.totalorder %s59, %s60
    %p72 = scmp.eq.s32.totalorder %s15, 1
    %p73 = por %p71, %p72
    %p75 = scmp.ne.s32.totalorder %s60, %s74
    %p76 = scmp.eq.s32.totalorder %s15, 0
    %p77 = por %p75, %p76
    %s79 = sadd.s32 %s78, 1
    %p82 = scmp.eq.s32.totalorder %s9, 1
    %p83 = scmp.ne.s32.totalorder %s78, %s80
    %p84 = scmp.eq.s32.totalorder %s9, 0
    %p85 = por %p83, %p84
    %p86 = scmp.ne.s32.totalorder %s78, %s80
    %p87 = scmp.eq.s32.totalorder %s14, 1
    %p88 = por %p86, %p87
    %p89 = scmp.ne.s32.totalorder %s80, %s81
    %p90 = scmp.eq.s32.totalorder %s14, 0
    %p91 = por %p89, %p90
    %p92 = scmp.ne.s32.totalorder %s80, %s81
    %p93 = scmp.eq.s32.totalorder %s15, 1
    %p94 = por %p92, %p93
    %p96 = scmp.ne.s32.totalorder %s81, %s95
    %p97 = scmp.eq.s32.totalorder %s15, 0
    %p98 = por %p96, %p97
    %s99 = ssub.s32 %s16, %s28
    %s100 = ssub.s32 %s17, %s24
    %s101 = sor.u32 %s99, %s100
    %p102 = scmp.eq.s32.totalorder %s101, 0
    %s104 = sadd.s32 %s103, 1
    %s105 = scalar_select %p102, %s103, %s104
    %p108 = pneg %p102
    %p109 = scmp.eq.s32.totalorder %s9, 1
    %p110 = por %p108, %p109
    %p111 = scmp.ne.s32.totalorder %s103, %s106
    %p112 = scmp.eq.s32.totalorder %s9, 0
    %p113 = por %p111, %p112
    %p114 = scmp.ne.s32.totalorder %s103, %s106
    %p115 = scmp.eq.s32.totalorder %s14, 1
    %p116 = por %p114, %p115
    %p117 = scmp.ne.s32.totalorder %s106, %s107
    %p118 = scmp.eq.s32.totalorder %s14, 0
    %p119 = por %p117, %p118
    %p120 = scmp.ne.s32.totalorder %s106, %s107
    %p121 = scmp.eq.s32.totalorder %s15, 1
    %p122 = por %p120, %p121
    %p124 = scmp.ne.s32.totalorder %s107, %s123
    %p125 = scmp.eq.s32.totalorder %s15, 0
    %p126 = por %p124, %p125
    %p127 = scmp.le.s32.totalorder 1, %s9
    %p128 = scmp.lt.s32.totalorder %s9, 3
    %p129 = pnand %p127, %p128
    %p130 = pneg %p129
    // Predicated region
    $region9: #{_lambda_.14} parent=5 // pred_check
      _
    $region10: #{_lambda_.14} parent=5 // pred_check_branch
      %132 = sbr.rel (%p129) target = $region12
    $region11: #{_lambda_.14} parent=5 // pred_region
      %s133 = ssub.s32 %s9, 1
      // Predicated region
      $region13: #{_lambda_.14} parent=11 // pred_check
        %p134 = pneg %p70
      $region14: #{_lambda_.14} parent=11 // pred_check_branch
        %136 = sbr.rel (%p134) target = $region16
      $region15: #{_lambda_.14} parent=11 // pred_region
        _
      $region16: #{_lambda_.14} parent=11 // pred_fallthru
        _
      // Predicated region
      $region17: #{_lambda_.14} parent=11 // pred_check
        %p137 = pneg %p91
      $region18: #{_lambda_.14} parent=11 // pred_check_branch
        %139 = sbr.rel (%p137) target = $region20
      $region19: #{_lambda_.14} parent=11 // pred_region
        _
      $region20: #{_lambda_.14} parent=11 // pred_fallthru
        _
    $region12: #{_lambda_.14} parent=5 // pred_fallthru
      _
    %p140 = scmp.lt.s32.totalorder %s9, 2
    // Predicated region
    $region21: #{_lambda_.14} parent=5 // pred_check
      %p141 = pneg %p140
    $region22: #{_lambda_.14} parent=5 // pred_check_branch
      %143 = sbr.rel (%p141) target = $region24
    $region23: #{_lambda_.14} parent=5 // pred_region
      // Predicated region
      $region25: #{_lambda_.14} parent=23 // pred_check
        %p144 = pneg %p43
      $region26: #{_lambda_.14} parent=23 // pred_check_branch
        %146 = sbr.rel (%p144) target = $region28
      $region27: #{_lambda_.14} parent=23 // pred_region
        %s147 = smul.u32 3, %s17
        %p148 = scmp.lt.s32.totalorder %s16, 1
        %s149 = scalar_select %p148, %s16, 1
        %p150 = scmp.lt.s32.totalorder %s147, 2
        %s151 = scalar_select %p150, %s147, 2
        %s152 = smul.addr %s149, 3
        %s153 = sadd.s32 %s151, %s152
        %s154 = smul.addr %s153, 4
        %s155 = scalar_lea.vmem %s0, %s154
        %s156 = smul.u32 3, %s17
      $region28: #{_lambda_.14} parent=23 // pred_fallthru
        _
    $region24: #{_lambda_.14} parent=5 // pred_fallthru
      _
    %p157 = scmp.le.s32.totalorder 1, %s9
    %p158 = scmp.lt.s32.totalorder %s9, 3
    %p159 = pnand %p157, %p158
    %p160 = pneg %p159
    // Predicated region
    $region29: #{_lambda_.14} parent=5 // pred_check
      _
    $region30: #{_lambda_.14} parent=5 // pred_check_branch
      %162 = sbr.rel (%p159) target = $region32
    $region31: #{_lambda_.14} parent=5 // pred_region
      %s163 = ssub.s32 %s9, 1
      %s164 = smul.u32 3, %s19
      %p165 = scmp.lt.s32.totalorder %s18, 1
      %s166 = scalar_select %p165, %s18, 1
      %p167 = scmp.lt.s32.totalorder %s164, 2
      %s168 = scalar_select %p167, %s164, 2
      %s169 = smul.addr %s166, 3
      %s170 = sadd.s32 %s168, %s169
      %s171 = smul.addr %s170, 4
      %s172 = scalar_lea.vmem %s0, %s171
      %p173 = pneg %p49
      %p174 = pneg %p46
      %p175 = pneg %p70
      %p176 = pneg %p67
      %p177 = pneg %p91
      %p178 = pneg %p88
      %p179 = pneg %p119
      %p180 = pneg %p116
      %s181 = smul.u32 3, %s19
      %p182 = scmp.lt.s32.totalorder %s18, 1
      %s183 = scalar_select %p182, %s18, 1
      %p184 = scmp.lt.s32.totalorder %s181, 2
      %s185 = scalar_select %p184, %s181, 2
      %s186 = smul.addr %s183, 3
      %s187 = sadd.s32 %s185, %s186
      %s188 = smul.addr %s187, 4
      %s189 = scalar_lea.vmem %s3, %s188
      %s190 = smul.u32 3, %s19
      %p191 = scmp.lt.s32.totalorder %s18, 1
      %s192 = scalar_select %p191, %s18, 1
      %p193 = scmp.lt.s32.totalorder %s190, 2
      %s194 = scalar_select %p193, %s190, 2
      %s195 = smul.addr %s192, 3
      %s196 = sadd.s32 %s194, %s195
      %s197 = smul.addr %s196, 4
      %s198 = scalar_lea.vmem %s0, %s197
      %s199 = smul.u32 3, %s19
      %s200 = smul.u32 3, %s19
      %p201 = scmp.lt.s32.totalorder %s18, 1
      %s202 = scalar_select %p201, %s18, 1
      %p203 = scmp.lt.s32.totalorder %s200, 2
      %s204 = scalar_select %p203, %s200, 2
      %s205 = smul.addr %s202, 3
      %s206 = sadd.s32 %s204, %s205
      %s207 = smul.addr %s206, 4
      %s208 = scalar_lea.vmem %s3, %s207
      %s209 = smul.u32 3, %s19
      %v210 = vld [vmem:[%s198] sm:$0xf]
      %v211 = vld [vmem:[%s198 + $0x4] sm:$0xf]
      %v212 = vld [vmem:[%s198 + $0x8] sm:$0xf]
      %v213 = vunpack.c.l.bf16 %v210
      %v214 = vunpack.c.l.bf16 %v211
      %v215 = vunpack.c.l.bf16 %v212
      %v216 = vld [vmem:[%s1] sm:$0x1]
      %v218 = vlaneseq
      %v219 = vshrl.u32 %v218, 7
      %v220 = vsub.s32 0, %v219
      %v221 = vrot.slane %v216, %v220
      %v223 = vmul.f32 %v213, %v221
      %v224 = vmul.f32 %v214, %v221
      %v225 = vmul.f32 %v215, %v221
      %v226 = vld [vmem:[%s2] sm:$0x1]
      %v228 = vlaneseq
      %v229 = vshrl.u32 %v228, 7
      %v230 = vsub.s32 0, %v229
      %v231 = vrot.slane %v226, %v230
      %v233 = vadd.f32 %v223, %v231
      %v234 = vadd.f32 %v224, %v231
      %v235 = vadd.f32 %v225, %v231
      %vm236 = vcmp.ge.f32.partialorder %v233, 0.0
      %vm237 = vcmp.ge.f32.partialorder %v234, 0.0
      %vm238 = vcmp.ge.f32.partialorder %v235, 0.0
      %v239 = vmul.f32 %v233, 0.2
      %v240 = vmul.f32 %v234, 0.2
      %v241 = vmul.f32 %v235, 0.2
      %v242 = vsel %vm236, %v233, %v239
      %v243 = vsel %vm237, %v234, %v240
      %v244 = vsel %vm238, %v235, %v241
      %v245 = vpack.c.bf16 %v242, %v242
      %v246 = vpack.c.bf16 %v243, %v243
      %v247 = vpack.c.bf16 %v244, %v244
      %vm248 = vcmask 519168
      %249 = vst.msk [vmem:[%s208] sm:$0xf] %vm248, %v245
      %250 = vst.msk [vmem:[%s208 + $0x4] sm:$0xf] %vm248, %v246
      %251 = vst.msk [vmem:[%s208 + $0x8] sm:$0xf] %vm248, %v247
      %s252 = smul.u32 3, %s19
      %p253 = scmp.lt.s32.totalorder %s18, 1
      %s254 = scalar_select %p253, %s18, 1
      %p255 = scmp.lt.s32.totalorder %s252, 2
      %s256 = scalar_select %p255, %s252, 2
      %s257 = smul.addr %s254, 3
      %s258 = sadd.s32 %s256, %s257
      %s259 = smul.addr %s258, 4
      %s260 = scalar_lea.vmem %s3, %s259
      // Predicated region
      $region33: #{_lambda_.14} parent=31 // pred_check
        %p261 = pneg %p116
      $region34: #{_lambda_.14} parent=31 // pred_check_branch
        %263 = sbr.rel (%p261) target = $region36
      $region35: #{_lambda_.14} parent=31 // pred_region
        %s264 = smul.u32 3, %s19
      $region36: #{_lambda_.14} parent=31 // pred_fallthru
        _
    $region32: #{_lambda_.14} parent=5 // pred_fallthru
      _
    %p265 = scmp.le.s32.totalorder 2, %s9
    // Predicated region
    $region37: #{_lambda_.14} parent=5 // pred_check
      %p266 = pneg %p265
    $region38: #{_lambda_.14} parent=5 // pred_check_branch
      %268 = sbr.rel (%p266) target = $region40
    $region39: #{_lambda_.14} parent=5 // pred_region
      %s269 = ssub.s32 %s9, 2
      // Predicated region
      $region41: #{_lambda_.14} parent=39 // pred_check
        %p270 = pneg %p122
      $region42: #{_lambda_.14} parent=39 // pred_check_branch
        %272 = sbr.rel (%p270) target = $region44
      $region43: #{_lambda_.14} parent=39 // pred_region
        %s273 = smul.u32 3, %s21
        %p274 = scmp.lt.s32.totalorder %s20, 1
        %s275 = scalar_select %p274, %s20, 1
        %p276 = scmp.lt.s32.totalorder %s273, 2
        %s277 = scalar_select %p276, %s273, 2
        %s278 = smul.addr %s275, 3
        %s279 = sadd.s32 %s277, %s278
        %s280 = smul.addr %s279, 4
        %s281 = scalar_lea.vmem %s3, %s280
      $region44: #{_lambda_.14} parent=39 // pred_fallthru
        _
    $region40: #{_lambda_.14} parent=5 // pred_fallthru
      _
  $region6: #{_lambda_.14} parent=0 // loop_footer
    %s13 = sadd.s32 1, %s9
  $region7: #{_lambda_.14} parent=0 // loop_footer_branch
    %8 = sbr.rel target = $region3
  $region8: #{_lambda_.14} parent=0 // loop_exit
    _

// kernel: _lambda_.13
$region0: #{_lambda_.13}
  #allocation0 [shape = 'u32[]', space=smem, size = 0x4, offset = 0x4, fixed_abs, tag = 'smem constant byte address 0x4 - core index']
  #allocation1 [shape = 'u32[144,128]{1,0:T(1,128)}', space=vmem, size = 0x12000, scoped, tag = 'internal scratch']
  %s0 = inlined_call_operand.vmem [shape: bf16[2,6,11,32], index: 0, kind: input, shape index: {}]
  %s1 = inlined_call_operand.vmem [shape: bf16[16,32,64], index: 1, kind: input, shape index: {}]
  %s2 = inlined_call_operand.vmem [shape: bf16[2,3,8,64], index: 2, kind: output, shape index: {0}]
  %s3 = inlined_call_operand.vmem [shape: f32[2,1,8,64], index: 3, kind: output, shape index: {1}]
  %s4 = inlined_call_operand.vmem [shape: f32[2,1,8,64], index: 4, kind: output, shape index: {2}]
  %5 = xla_tuple %s2, %s3, %s4
  %s6 = sld [smem:[#allocation0]]
  $region57: #{_lambda_.13} parent=0
    _
  %s8 = ssub.s32 1, %s6
  %s9 = scalar_select 0, %s8, %s6
  loop: start=0, step=1, limit=4
  $region2: #{_lambda_.13} parent=0 // loop_pre_header
    _
  $region3: #{_lambda_.13} parent=0 // loop_header
    %s11 = sphi 0, %s15
    %p12 = scmp.ge.s32.totalorder %s11, 4
    %s18 = sphi 0, %s30
    %s19 = sphi 0, %s26
    %s20 = sphi 0, %s18
    %s21 = sphi 0, %s19
    %s22 = sphi 0, %s20
    %s23 = sphi 0, %s21
    %s33 = sphi 0, %s35
    %s36 = sphi 0, %s33
    %s37 = sphi 0, %s36
    %s53 = sphi 0, %s37
    %s57 = sphi 0, %s57
    %s59 = sphi 0, %s57
    %s60 = sphi 0, %s59
    %s74 = sphi 0, %s60
    %s82 = sphi 0, %s84
    %s85 = sphi 0, %s82
    %s86 = sphi 0, %s85
    %s102 = sphi 0, %s86
    %s110 = sphi 0, %s112
    %s113 = sphi 0, %s110
    %s114 = sphi 0, %s113
    %s130 = sphi 0, %s114
    %s138 = sphi 0, %s140
    %s141 = sphi 0, %s138
    %s142 = sphi 0, %s141
    %s158 = sphi 0, %s142
  $region4: #{_lambda_.13} parent=0 // loop_header_branch
    %14 = sbr.rel (%p12) target = $region8
  $region5: #{_lambda_.13} parent=0 // loop_body
    %s16 = ssub.s32 %s11, 1
    %s17 = ssub.s32 %s11, 2
    %s24 = sadd.s32 1, %s19
    %p25 = scmp.ge.s32.totalorder %s24, 1
    %s26 = scalar_select %p25, 0, %s24
    %s27 = sadd.s32 1, %s18
    %s28 = scalar_select %p25, %s27, %s18
    %p29 = scmp.ge.s32.totalorder %s28, 2
    %s30 = scalar_select %p29, 0, %s28
    %s31 = ssub.s32 %s18, %s30
    %p32 = scmp.eq.s32.totalorder %s31, 0
    %s34 = sadd.s32 %s33, 1
    %s35 = scalar_select %p32, %s33, %s34
    %p38 = pneg %p32
    %p39 = scmp.eq.s32.totalorder %s11, 1
    %p40 = por %p38, %p39
    %p41 = scmp.ne.s32.totalorder %s33, %s36
    %p42 = scmp.eq.s32.totalorder %s11, 0
    %p43 = por %p41, %p42
    %p44 = scmp.ne.s32.totalorder %s33, %s36
    %p45 = scmp.eq.s32.totalorder %s16, 1
    %p46 = por %p44, %p45
    %p47 = scmp.ne.s32.totalorder %s36, %s37
    %p48 = scmp.eq.s32.totalorder %s16, 0
    %p49 = por %p47, %p48
    %p50 = scmp.ne.s32.totalorder %s36, %s37
    %p51 = scmp.eq.s32.totalorder %s17, 1
    %p52 = por %p50, %p51
    %p54 = scmp.ne.s32.totalorder %s37, %s53
    %p55 = scmp.eq.s32.totalorder %s17, 0
    %p56 = por %p54, %p55
    %s58 = sadd.s32 %s57, 1
    %p61 = scmp.eq.s32.totalorder %s11, 1
    %p62 = scmp.ne.s32.totalorder %s57, %s59
    %p63 = scmp.eq.s32.totalorder %s11, 0
    %p64 = por %p62, %p63
    %p65 = scmp.ne.s32.totalorder %s57, %s59
    %p66 = scmp.eq.s32.totalorder %s16, 1
    %p67 = por %p65, %p66
    %p68 = scmp.ne.s32.totalorder %s59, %s60
    %p69 = scmp.eq.s32.totalorder %s16, 0
    %p70 = por %p68, %p69
    %p71 = scmp.ne.s32.totalorder %s59, %s60
    %p72 = scmp.eq.s32.totalorder %s17, 1
    %p73 = por %p71, %p72
    %p75 = scmp.ne.s32.totalorder %s60, %s74
    %p76 = scmp.eq.s32.totalorder %s17, 0
    %p77 = por %p75, %p76
    %s78 = ssub.s32 %s18, %s30
    %s79 = ssub.s32 %s19, %s26
    %s80 = sor.u32 %s78, %s79
    %p81 = scmp.eq.s32.totalorder %s80, 0
    %s83 = sadd.s32 %s82, 1
    %s84 = scalar_select %p81, %s82, %s83
    %p87 = pneg %p81
    %p88 = scmp.eq.s32.totalorder %s11, 1
    %p89 = por %p87, %p88
    %p90 = scmp.ne.s32.totalorder %s82, %s85
    %p91 = scmp.eq.s32.totalorder %s11, 0
    %p92 = por %p90, %p91
    %p93 = scmp.ne.s32.totalorder %s82, %s85
    %p94 = scmp.eq.s32.totalorder %s16, 1
    %p95 = por %p93, %p94
    %p96 = scmp.ne.s32.totalorder %s85, %s86
    %p97 = scmp.eq.s32.totalorder %s16, 0
    %p98 = por %p96, %p97
    %p99 = scmp.ne.s32.totalorder %s85, %s86
    %p100 = scmp.eq.s32.totalorder %s17, 1
    %p101 = por %p99, %p100
    %p103 = scmp.ne.s32.totalorder %s86, %s102
    %p104 = scmp.eq.s32.totalorder %s17, 0
    %p105 = por %p103, %p104
    %s106 = ssub.s32 %s18, %s30
    %s107 = ssub.s32 %s19, %s26
    %s108 = sor.u32 %s106, %s107
    %p109 = scmp.eq.s32.totalorder %s108, 0
    %s111 = sadd.s32 %s110, 1
    %s112 = scalar_select %p109, %s110, %s111
    %p115 = pneg %p109
    %p116 = scmp.eq.s32.totalorder %s11, 1
    %p117 = por %p115, %p116
    %p118 = scmp.ne.s32.totalorder %s110, %s113
    %p119 = scmp.eq.s32.totalorder %s11, 0
    %p120 = por %p118, %p119
    %p121 = scmp.ne.s32.totalorder %s110, %s113
    %p122 = scmp.eq.s32.totalorder %s16, 1
    %p123 = por %p121, %p122
    %p124 = scmp.ne.s32.totalorder %s113, %s114
    %p125 = scmp.eq.s32.totalorder %s16, 0
    %p126 = por %p124, %p125
    %p127 = scmp.ne.s32.totalorder %s113, %s114
    %p128 = scmp.eq.s32.totalorder %s17, 1
    %p129 = por %p127, %p128
    %p131 = scmp.ne.s32.totalorder %s114, %s130
    %p132 = scmp.eq.s32.totalorder %s17, 0
    %p133 = por %p131, %p132
    %s134 = ssub.s32 %s18, %s30
    %s135 = ssub.s32 %s19, %s26
    %s136 = sor.u32 %s134, %s135
    %p137 = scmp.eq.s32.totalorder %s136, 0
    %s139 = sadd.s32 %s138, 1
    %s140 = scalar_select %p137, %s138, %s139
    %p143 = pneg %p137
    %p144 = scmp.eq.s32.totalorder %s11, 1
    %p145 = por %p143, %p144
    %p146 = scmp.ne.s32.totalorder %s138, %s141
    %p147 = scmp.eq.s32.totalorder %s11, 0
    %p148 = por %p146, %p147
    %p149 = scmp.ne.s32.totalorder %s138, %s141
    %p150 = scmp.eq.s32.totalorder %s16, 1
    %p151 = por %p149, %p150
    %p152 = scmp.ne.s32.totalorder %s141, %s142
    %p153 = scmp.eq.s32.totalorder %s16, 0
    %p154 = por %p152, %p153
    %p155 = scmp.ne.s32.totalorder %s141, %s142
    %p156 = scmp.eq.s32.totalorder %s17, 1
    %p157 = por %p155, %p156
    %p159 = scmp.ne.s32.totalorder %s142, %s158
    %p160 = scmp.eq.s32.totalorder %s17, 0
    %p161 = por %p159, %p160
    %p162 = scmp.le.s32.totalorder 1, %s11
    %p163 = scmp.lt.s32.totalorder %s11, 3
    %p164 = pnand %p162, %p163
    %p165 = pneg %p164
    // Predicated region
    $region9: #{_lambda_.13} parent=5 // pred_check
      _
    $region10: #{_lambda_.13} parent=5 // pred_check_branch
      %167 = sbr.rel (%p164) target = $region12
    $region11: #{_lambda_.13} parent=5 // pred_region
      %s168 = ssub.s32 %s11, 1
      // Predicated region
      $region13: #{_lambda_.13} parent=11 // pred_check
        %p169 = pneg %p70
      $region14: #{_lambda_.13} parent=11 // pred_check_branch
        %171 = sbr.rel (%p169) target = $region16
      $region15: #{_lambda_.13} parent=11 // pred_region
        _
      $region16: #{_lambda_.13} parent=11 // pred_fallthru
        _
    $region12: #{_lambda_.13} parent=5 // pred_fallthru
      _
    %p172 = scmp.lt.s32.totalorder %s11, 2
    // Predicated region
    $region17: #{_lambda_.13} parent=5 // pred_check
      %p173 = pneg %p172
    $region18: #{_lambda_.13} parent=5 // pred_check_branch
      %175 = sbr.rel (%p173) target = $region20
    $region19: #{_lambda_.13} parent=5 // pred_region
      // Predicated region
      $region21: #{_lambda_.13} parent=19 // pred_check
        %p176 = pneg %p43
      $region22: #{_lambda_.13} parent=19 // pred_check_branch
        %178 = sbr.rel (%p176) target = $region24
      $region23: #{_lambda_.13} parent=19 // pred_region
        %p179 = scmp.lt.s32.totalorder %s18, 1
        %s180 = scalar_select %p179, %s18, 1
        %s181 = smul.addr %s180, 12
        %s182 = smul.addr %s181, 4
        %s183 = scalar_lea.vmem %s0, %s182
      $region24: #{_lambda_.13} parent=19 // pred_fallthru
        _
    $region20: #{_lambda_.13} parent=5 // pred_fallthru
      _
    %p184 = scmp.le.s32.totalorder 1, %s11
    %p185 = scmp.lt.s32.totalorder %s11, 3
    %p186 = pnand %p184, %p185
    %p187 = pneg %p186
    // Predicated region
    $region25: #{_lambda_.13} parent=5 // pred_check
      _
    $region26: #{_lambda_.13} parent=5 // pred_check_branch
      %189 = sbr.rel (%p186) target = $region28
    $region27: #{_lambda_.13} parent=5 // pred_region
      %s190 = ssub.s32 %s11, 1
      %p191 = scmp.lt.s32.totalorder %s20, 1
      %s192 = scalar_select %p191, %s20, 1
      %s193 = smul.addr %s192, 12
      %s194 = smul.addr %s193, 4
      %s195 = scalar_lea.vmem %s0, %s194
      %p196 = pneg %p49
      %p197 = pneg %p46
      %p198 = pneg %p70
      %p199 = pneg %p67
      %p200 = pneg %p98
      %p201 = pneg %p95
      %s202 = smul.u32 3, %s21
      %p203 = scmp.lt.s32.totalorder %s20, 1
      %s204 = scalar_select %p203, %s20, 1
      %p205 = scmp.lt.s32.totalorder %s202, 2
      %s206 = scalar_select %p205, %s202, 2
      %s207 = smul.addr %s204, 3
      %s208 = sadd.s32 %s206, %s207
      %s209 = smul.addr %s208, 4
      %s210 = scalar_lea.vmem %s2, %s209
      %p211 = pneg %p126
      %p212 = pneg %p123
      %p213 = scmp.lt.s32.totalorder %s20, 1
      %s214 = scalar_select %p213, %s20, 1
      %p215 = scmp.lt.s32.totalorder %s21, 0
      %s216 = scalar_select %p215, %s21, 0
      %s217 = sadd.s32 %s216, %s214
      %s218 = smul.addr %s217, 8
      %s219 = scalar_lea.vmem %s3, %s218
      %p220 = pneg %p154
      %p221 = pneg %p151
      %p222 = scmp.lt.s32.totalorder %s20, 1
      %s223 = scalar_select %p222, %s20, 1
      %p224 = scmp.lt.s32.totalorder %s21, 0
      %s225 = scalar_select %p224, %s21, 0
      %s226 = sadd.s32 %s225, %s223
      %s227 = smul.addr %s226, 8
      %s228 = scalar_lea.vmem %s4, %s227
      %p229 = scmp.lt.s32.totalorder %s20, 1
      %s230 = scalar_select %p229, %s20, 1
      %s231 = smul.addr %s230, 12
      %s232 = smul.addr %s231, 4
      %s233 = scalar_lea.vmem %s0, %s232
      %s234 = smul.u32 3, %s21
      %p235 = scmp.lt.s32.totalorder %s20, 1
      %s236 = scalar_select %p235, %s20, 1
      %p237 = scmp.lt.s32.totalorder %s234, 2
      %s238 = scalar_select %p237, %s234, 2
      %s239 = smul.addr %s236, 3
      %s240 = sadd.s32 %s238, %s239
      %s241 = smul.addr %s240, 4
      %s242 = scalar_lea.vmem %s2, %s241
      %s243 = smul.u32 3, %s21
      %p244 = scmp.lt.s32.totalorder %s20, 1
      %s245 = scalar_select %p244, %s20, 1
      %p246 = scmp.lt.s32.totalorder %s21, 0
      %s247 = scalar_select %p246, %s21, 0
      %s248 = sadd.s32 %s247, %s245
      %s249 = smul.addr %s248, 8
      %s250 = scalar_lea.vmem %s3, %s249
      %p251 = scmp.lt.s32.totalorder %s20, 1
      %s252 = scalar_select %p251, %s20, 1
      %p253 = scmp.lt.s32.totalorder %s21, 0
      %s254 = scalar_select %p253, %s21, 0
      %s255 = sadd.s32 %s254, %s252
      %s256 = smul.addr %s255, 8
      %s257 = scalar_lea.vmem %s4, %s256
      %s259 = smul.u32 %s21, 3
      %s260 = smul.u32 %s259, 2
      %s261 = smul.addr %s260, 4
      %s262 = scalar_lea.vmem %s233, %s261
      %v263 = vld [vmem:[%s262] sm:$0xf]
      %v264 = vld [vmem:[%s262 + $0x8] sm:$0xf]
      %v265 = vld [vmem:[%s262 + $0x10] sm:$0xf]
      %v266 = vld [vmem:[%s1] sm:$0xf]
      %v267 = vld [vmem:[%s1 + $0x4] sm:$0xf]
      %v268 = vld [vmem:[%s1 + $0x8] sm:$0xf]
      %v269 = vld [vmem:[%s1 + $0xc] sm:$0xf]
      %v270 = vld [vmem:[%s262 + $0x4] sm:$0x1]
      %v271 = vld [vmem:[%s262 + $0xc] sm:$0x1]
      %v272 = vld [vmem:[%s262 + $0x14] sm:$0x1]
      %vm273 = vsmask.f32 3328
      %vm274 = vsmask.f32 7440
      %vm275 = vmor %vm273, %vm274
      %v277 = vshrl.u32 %v263, 16
      %v279 = vrot.slane %v277, 4
      %v280 = vshll.u32 %v263, 16
      %v282 = vrot.slane %v280, 5
      %v283 = vor.u32 %v279, %v282
      %v284 = vrot.slane %v283, 4
      %v286 = vshll.u32 %v270, 16
      %v288 = vrot.slane %v286, 5
      %v289 = vsel %vm275, %v284, %v288
      %v291 = vshrl.u32 %v264, 16
      %v293 = vrot.slane %v291, 4
      %v294 = vshll.u32 %v264, 16
      %v296 = vrot.slane %v294, 5
      %v297 = vor.u32 %v293, %v296
      %v298 = vrot.slane %v297, 4
      %v300 = vshll.u32 %v271, 16
      %v302 = vrot.slane %v300, 5
      %v303 = vsel %vm275, %v298, %v302
      %v305 = vshrl.u32 %v265, 16
      %v307 = vrot.slane %v305, 4
      %v308 = vshll.u32 %v265, 16
      %v310 = vrot.slane %v308, 5
      %v311 = vor.u32 %v307, %v310
      %v312 = vrot.slane %v311, 4
      %v314 = vshll.u32 %v272, 16
      %v316 = vrot.slane %v314, 5
      %v317 = vsel %vm275, %v312, %v316
      %s318 = scalar_lea.vmem %s1, 16
      %v319 = vld [vmem:[%s318] sm:$0xf]
      %v320 = vld [vmem:[%s318 + $0x4] sm:$0xf]
      %v321 = vld [vmem:[%s318 + $0x8] sm:$0xf]
      %v322 = vld [vmem:[%s318 + $0xc] sm:$0xf]
      %v323 = vunpack.c.l.b16 %v289
      %v324 = vunpack.c.l.b16 %v303
      %v325 = vunpack.c.l.b16 %v317
      %v326 = vpack.c.b16 %v324, %v323
      %v327 = vpack.c.b16 %v325, %v325
      %v332 = vunpack.c.l.b16 %v319
      %v333 = vunpack.c.l.b16 %v320
      %v334 = vunpack.c.l.b16 %v321
      %v335 = vunpack.c.l.b16 %v322
      %v336 = vpack.c.b16 %v333, %v332
      %v337 = vpack.c.b16 %v335, %v334
      %vm340 = vcmask 261120
      %v342 = vsel %vm340, %v326, 0
      %v345 = vsel %vm340, %v327, 0
      %347 = vmatprep.subr.bf16.mxu0 0
      %348 = vmatpush1.bf16.msra.mxu0 %v336
      %349 = vmatprep.subr.bf16.mxu0 0
      %350 = vmatpush1.bf16.msra.mxu0 %v337
      %351 = vmatprep.subr.bf16.mxu0 0
      %352 = vmatpush1.bf16.msra.mxu0 0
      %353 = vmatprep.subr.bf16.mxu0 0
      %354 = vmatpush1.bf16.msra.mxu0 0
      %355 = vmatprep.subr.bf16.mxu0 0
      %356 = vmatpush1.bf16.msra.mxu0 0
      %357 = vmatprep.subr.bf16.mxu0 0
      %358 = vmatpush1.bf16.msra.mxu0 0
      %359 = vmatprep.subr.bf16.mxu0 0
      %360 = vmatpush1.bf16.msra.mxu0 0
      %361 = vmatprep.subr.bf16.mxu0 0
      %362 = vmatpush1.bf16.msra.mxu0 0
      %363 = vmatprep.subr.bf16.mxu0 0
      %364 = vmatpush1.bf16.msra.mxu0 0
      %365 = vmatprep.subr.bf16.mxu0 0
      %366 = vmatpush1.bf16.msra.mxu0 0
      %367 = vmatprep.subr.bf16.mxu0 0
      %368 = vmatpush1.bf16.msra.mxu0 0
      %369 = vmatprep.subr.bf16.mxu0 0
      %370 = vmatpush1.bf16.msra.mxu0 0
      %371 = vmatprep.subr.bf16.mxu0 0
      %372 = vmatpush1.bf16.msra.mxu0 0
      %373 = vmatprep.subr.bf16.mxu0 0
      %374 = vmatpush1.bf16.msra.mxu0 0
      %375 = vmatprep.subr.bf16.mxu0 0
      %376 = vmatpush1.bf16.msra.mxu0 0
      %377 = vmatprep.subr.bf16.mxu0 0
      %378 = vmatpush1.bf16.msra.mxu0 0
      %379 = vmatprep.mubr.bf16.mxu0 0
      %380 = vmatmul.mubr.bf16.gmra.mrb[0].mxu0 %v342
      %v381 = vpop.f32.mrb[0].mxu0
      %v382 = vadd.f32 0.0, %v381
      %v383 = vpop.f32.mrb[0].mxu0
      %v384 = vpop.f32.mrb[0].mxu0
      %v385 = vadd.f32 0.0, %v384
      %v386 = vpop.f32.mrb[0].mxu0
      %387 = vmatprep.mubr.bf16.mxu0 0
      %388 = vmatmul.mubr.bf16.gmra.mrb[0].mxu0 %v345
      %v389 = vpop.f32.mrb[0].mxu0
      %v390 = vadd.f32 0.0, %v389
      %v391 = vpop.f32.mrb[0].mxu0
      %v392 = vpop.f32.mrb[0].mxu0
      %v393 = vpop.f32.mrb[0].mxu0
      %394 = vdwg.mxu0
      %v398 = vunpack.c.l.b16 %v263
      %v399 = vunpack.c.l.b16 %v264
      %v400 = vunpack.c.l.b16 %v265
      %v401 = vpack.c.b16 %v399, %v398
      %v402 = vpack.c.b16 %v400, %v400
      %v407 = vunpack.c.l.b16 %v266
      %v408 = vunpack.c.l.b16 %v267
      %v409 = vunpack.c.l.b16 %v268
      %v410 = vunpack.c.l.b16 %v269
      %v411 = vpack.c.b16 %v408, %v407
      %v412 = vpack.c.b16 %v410, %v409
      %v416 = vsel %vm340, %v401, 0
      %v419 = vsel %vm340, %v402, 0
      %421 = vmatprep.subr.bf16.mxu0 0
      %422 = vmatpush1.bf16.msra.mxu0 %v411
      %423 = vmatprep.subr.bf16.mxu0 0
      %424 = vmatpush1.bf16.msra.mxu0 %v412
      %425 = vmatprep.subr.bf16.mxu0 0
      %426 = vmatpush1.bf16.msra.mxu0 0
      %427 = vmatprep.subr.bf16.mxu0 0
      %428 = vmatpush1.bf16.msra.mxu0 0
      %429 = vmatprep.subr.bf16.mxu0 0
      %430 = vmatpush1.bf16.msra.mxu0 0
      %431 = vmatprep.subr.bf16.mxu0 0
      %432 = vmatpush1.bf16.msra.mxu0 0
      %433 = vmatprep.subr.bf16.mxu0 0
      %434 = vmatpush1.bf16.msra.mxu0 0
      %435 = vmatprep.subr.bf16.mxu0 0
      %436 = vmatpush1.bf16.msra.mxu0 0
      %437 = vmatprep.subr.bf16.mxu0 0
      %438 = vmatpush1.bf16.msra.mxu0 0
      %439 = vmatprep.subr.bf16.mxu0 0
      %440 = vmatpush1.bf16.msra.mxu0 0
      %441 = vmatprep.subr.bf16.mxu0 0
      %442 = vmatpush1.bf16.msra.mxu0 0
      %443 = vmatprep.subr.bf16.mxu0 0
      %444 = vmatpush1.bf16.msra.mxu0 0
      %445 = vmatprep.subr.bf16.mxu0 0
      %446 = vmatpush1.bf16.msra.mxu0 0
      %447 = vmatprep.subr.bf16.mxu0 0
      %448 = vmatpush1.bf16.msra.mxu0 0
      %449 = vmatprep.subr.bf16.mxu0 0
      %450 = vmatpush1.bf16.msra.mxu0 0
      %451 = vmatprep.subr.bf16.mxu0 0
      %452 = vmatpush1.bf16.msra.mxu0 0
      %453 = vmatprep.mubr.bf16.mxu0 0
      %454 = vmatmul.mubr.bf16.gmra.mrb[0].mxu0 %v416
      %v455 = vpop.f32.mrb[0].mxu0
      %v456 = vadd.f32 %v382, %v455
      %v457 = vpop.f32.mrb[0].mxu0
      %v458 = vpop.f32.mrb[0].mxu0
      %v459 = vadd.f32 %v385, %v458
      %v460 = vpop.f32.mrb[0].mxu0
      %461 = vmatprep.mubr.bf16.mxu0 0
      %462 = vmatmul.mubr.bf16.gmra.mrb[0].mxu0 %v419
      %v463 = vpop.f32.mrb[0].mxu0
      %v464 = vadd.f32 %v390, %v463
      %v465 = vpop.f32.mrb[0].mxu0
      %v466 = vpop.f32.mrb[0].mxu0
      %v467 = vpop.f32.mrb[0].mxu0
      %468 = vdwg.mxu0
      %v469 = vld [vmem:[%s262] sm:$0xe]
      %v470 = vld [vmem:[%s262 + $0x8] sm:$0xe]
      %v471 = vld [vmem:[%s262 + $0x10] sm:$0xe]
      %vm478 = vcmask 1042432
      %vm479 = vcmask 1046532
      %vm480 = vmor %vm478, %vm479
      %v481 = vrot.slane %v469, 5
      %v482 = vrot.slane %v481, 4
      %v483 = vrot.slane %v270, 5
      %v484 = vsel %vm480, %v482, %v483
      %v485 = vrot.slane %v470, 5
      %v486 = vrot.slane %v485, 4
      %v487 = vrot.slane %v271, 5
      %v488 = vsel %vm480, %v486, %v487
      %v489 = vrot.slane %v471, 5
      %v490 = vrot.slane %v489, 4
      %v491 = vrot.slane %v272, 5
      %v492 = vsel %vm480, %v490, %v491
      %s493 = scalar_lea.vmem %s1, 32
      %v494 = vld [vmem:[%s493] sm:$0xf]
      %v495 = vld [vmem:[%s493 + $0x4] sm:$0xf]
      %v496 = vld [vmem:[%s493 + $0x8] sm:$0xf]
      %v497 = vld [vmem:[%s493 + $0xc] sm:$0xf]
      %v498 = vunpack.c.l.b16 %v484
      %v499 = vunpack.c.l.b16 %v488
      %v500 = vunpack.c.l.b16 %v492
      %v501 = vpack.c.b16 %v499, %v498
      %v502 = vpack.c.b16 %v500, %v500
      %v507 = vunpack.c.l.b16 %v494
      %v508 = vunpack.c.l.b16 %v495
      %v509 = vunpack.c.l.b16 %v496
      %v510 = vunpack.c.l.b16 %v497
      %v511 = vpack.c.b16 %v508, %v507
      %v512 = vpack.c.b16 %v510, %v509
      %v516 = vsel %vm340, %v501, 0
      %v519 = vsel %vm340, %v502, 0
      %521 = vmatprep.subr.bf16.mxu0 0
      %522 = vmatpush1.bf16.msra.mxu0 %v511
      %523 = vmatprep.subr.bf16.mxu0 0
      %524 = vmatpush1.bf16.msra.mxu0 %v512
      %525 = vmatprep.subr.bf16.mxu0 0
      %526 = vmatpush1.bf16.msra.mxu0 0
      %527 = vmatprep.subr.bf16.mxu0 0
      %528 = vmatpush1.bf16.msra.mxu0 0
      %529 = vmatprep.subr.bf16.mxu0 0
      %530 = vmatpush1.bf16.msra.mxu0 0
      %531 = vmatprep.subr.bf16.mxu0 0
      %532 = vmatpush1.bf16.msra.mxu0 0
      %533 = vmatprep.subr.bf16.mxu0 0
      %534 = vmatpush1.bf16.msra.mxu0 0
      %535 = vmatprep.subr.bf16.mxu0 0
      %536 = vmatpush1.bf16.msra.mxu0 0
      %537 = vmatprep.subr.bf16.mxu0 0
      %538 = vmatpush1.bf16.msra.mxu0 0
      %539 = vmatprep.subr.bf16.mxu0 0
      %540 = vmatpush1.bf16.msra.mxu0 0
      %541 = vmatprep.subr.bf16.mxu0 0
      %542 = vmatpush1.bf16.msra.mxu0 0
      %543 = vmatprep.subr.bf16.mxu0 0
      %544 = vmatpush1.bf16.msra.mxu0 0
      %545 = vmatprep.subr.bf16.mxu0 0
      %546 = vmatpush1.bf16.msra.mxu0 0
      %547 = vmatprep.subr.bf16.mxu0 0
      %548 = vmatpush1.bf16.msra.mxu0 0
      %549 = vmatprep.subr.bf16.mxu0 0
      %550 = vmatpush1.bf16.msra.mxu0 0
      %551 = vmatprep.subr.bf16.mxu0 0
      %552 = vmatpush1.bf16.msra.mxu0 0
      %553 = vmatprep.mubr.bf16.mxu0 0
      %554 = vmatmul.mubr.bf16.gmra.mrb[0].mxu0 %v516
      %v555 = vpop.f32.mrb[0].mxu0
      %v556 = vadd.f32 0.0, %v555
      %v557 = vpop.f32.mrb[0].mxu0
      %v558 = vpop.f32.mrb[0].mxu0
      %v559 = vadd.f32 0.0, %v558
      %v560 = vpop.f32.mrb[0].mxu0
      %561 = vmatprep.mubr.bf16.mxu0 0
      %562 = vmatmul.mubr.bf16.gmra.mrb[0].mxu0 %v519
      %v563 = vpop.f32.mrb[0].mxu0
      %v564 = vadd.f32 0.0, %v563
      %v565 = vpop.f32.mrb[0].mxu0
      %v566 = vpop.f32.mrb[0].mxu0
      %v567 = vpop.f32.mrb[0].mxu0
      %568 = vdwg.mxu0
      %v569 = vadd.f32 %v456, %v556
      %v570 = vadd.f32 %v459, %v559
      %v571 = vadd.f32 %v464, %v564
      %v572 = vld [vmem:[%s262 + $0x4] sm:$0x3]
      %v573 = vld [vmem:[%s262 + $0xc] sm:$0x3]
      %v574 = vld [vmem:[%s262 + $0x14] sm:$0x3]
      %vm575 = vsmask.f32 2304
      %vm576 = vsmask.f32 6416
      %vm577 = vmor %vm575, %vm576
      %v579 = vshrl.u32 %v469, 16
      %v581 = vrot.slane %v579, 5
      %v582 = vshll.u32 %v469, 16
      %v584 = vrot.slane %v582, 6
      %v585 = vor.u32 %v581, %v584
      %v586 = vrot.slane %v585, 4
      %v588 = vshrl.u32 %v572, 16
      %v590 = vrot.slane %v588, 5
      %v591 = vshll.u32 %v572, 16
      %v593 = vrot.slane %v591, 6
      %v594 = vor.u32 %v590, %v593
      %v595 = vsel %vm577, %v586, %v594
      %v597 = vshrl.u32 %v470, 16
      %v599 = vrot.slane %v597, 5
      %v600 = vshll.u32 %v470, 16
      %v602 = vrot.slane %v600, 6
      %v603 = vor.u32 %v599, %v602
      %v604 = vrot.slane %v603, 4
      %v606 = vshrl.u32 %v573, 16
      %v608 = vrot.slane %v606, 5
      %v609 = vshll.u32 %v573, 16
      %v611 = vrot.slane %v609, 6
      %v612 = vor.u32 %v608, %v611
      %v613 = vsel %vm577, %v604, %v612
      %v615 = vshrl.u32 %v471, 16
      %v617 = vrot.slane %v615, 5
      %v618 = vshll.u32 %v471, 16
      %v620 = vrot.slane %v618, 6
      %v621 = vor.u32 %v617, %v620
      %v622 = vrot.slane %v621, 4
      %v624 = vshrl.u32 %v574, 16
      %v626 = vrot.slane %v624, 5
      %v627 = vshll.u32 %v574, 16
      %v629 = vrot.slane %v627, 6
      %v630 = vor.u32 %v626, %v629
      %v631 = vsel %vm577, %v622, %v630
      %s632 = scalar_lea.vmem %s1, 48
      %v633 = vld [vmem:[%s632] sm:$0xf]
      %v634 = vld [vmem:[%s632 + $0x4] sm:$0xf]
      %v635 = vld [vmem:[%s632 + $0x8] sm:$0xf]
      %v636 = vld [vmem:[%s632 + $0xc] sm:$0xf]
      %v637 = vunpack.c.l.b16 %v595
      %v638 = vunpack.c.l.b16 %v613
      %v639 = vunpack.c.l.b16 %v631
      %v640 = vpack.c.b16 %v638, %v637
      %v641 = vpack.c.b16 %v639, %v639
      %v646 = vunpack.c.l.b16 %v633
      %v647 = vunpack.c.l.b16 %v634
      %v648 = vunpack.c.l.b16 %v635
      %v649 = vunpack.c.l.b16 %v636
      %v650 = vpack.c.b16 %v647, %v646
      %v651 = vpack.c.b16 %v649, %v648
      %v655 = vsel %vm340, %v640, 0
      %v658 = vsel %vm340, %v641, 0
      %660 = vmatprep.subr.bf16.mxu0 0
      %661 = vmatpush1.bf16.msra.mxu0 %v650
      %662 = vmatprep.subr.bf16.mxu0 0
      %663 = vmatpush1.bf16.msra.mxu0 %v651
      %664 = vmatprep.subr.bf16.mxu0 0
      %665 = vmatpush1.bf16.msra.mxu0 0
      %666 = vmatprep.subr.bf16.mxu0 0
      %667 = vmatpush1.bf16.msra.mxu0 0
      %668 = vmatprep.subr.bf16.mxu0 0
      %669 = vmatpush1.bf16.msra.mxu0 0
      %670 = vmatprep.subr.bf16.mxu0 0
      %671 = vmatpush1.bf16.msra.mxu0 0
      %672 = vmatprep.subr.bf16.mxu0 0
      %673 = vmatpush1.bf16.msra.mxu0 0
      %674 = vmatprep.subr.bf16.mxu0 0
      %675 = vmatpush1.bf16.msra.mxu0 0
      %676 = vmatprep.subr.bf16.mxu0 0
      %677 = vmatpush1.bf16.msra.mxu0 0
      %678 = vmatprep.subr.bf16.mxu0 0
      %679 = vmatpush1.bf16.msra.mxu0 0
      %680 = vmatprep.subr.bf16.mxu0 0
      %681 = vmatpush1.bf16.msra.mxu0 0
      %682 = vmatprep.subr.bf16.mxu0 0
      %683 = vmatpush1.bf16.msra.mxu0 0
      %684 = vmatprep.subr.bf16.mxu0 0
      %685 = vmatpush1.bf16.msra.mxu0 0
      %686 = vmatprep.subr.bf16.mxu0 0
      %687 = vmatpush1.bf16.msra.mxu0 0
      %688 = vmatprep.subr.bf16.mxu0 0
      %689 = vmatpush1.bf16.msra.mxu0 0
      %690 = vmatprep.subr.bf16.mxu0 0
      %691 = vmatpush1.bf16.msra.mxu0 0
      %692 = vmatprep.mubr.bf16.mxu0 0
      %693 = vmatmul.mubr.bf16.gmra.mrb[0].mxu0 %v655
      %v694 = vpop.f32.mrb[0].mxu0
      %v695 = vadd.f32 0.0, %v694
      %v696 = vpop.f32.mrb[0].mxu0
      %v697 = vpop.f32.mrb[0].mxu0
      %v698 = vadd.f32 0.0, %v697
      %v699 = vpop.f32.mrb[0].mxu0
      %700 = vmatprep.mubr.bf16.mxu0 0
      %701 = vmatmul.mubr.bf16.gmra.mrb[0].mxu0 %v658
      %v702 = vpop.f32.mrb[0].mxu0
      %v703 = vadd.f32 0.0, %v702
      %v704 = vpop.f32.mrb[0].mxu0
      %v705 = vpop.f32.mrb[0].mxu0
      %v706 = vpop.f32.mrb[0].mxu0
      %707 = vdwg.mxu0
      %v708 = vadd.f32 %v569, %v695
      %v709 = vadd.f32 %v570, %v698
      %v710 = vadd.f32 %v571, %v703
      %s711 = sadd.s32 %s259, 1
      %s712 = smul.u32 %s711, 2
      %s713 = smul.addr %s712, 4
      %s714 = scalar_lea.vmem %s233, %s713
      %v715 = vld [vmem:[%s714] sm:$0xf]
      %v716 = vld [vmem:[%s714 + $0x8] sm:$0xf]
      %v717 = vld [vmem:[%s714 + $0x10] sm:$0xf]
      %s718 = scalar_lea.vmem %s1, 64
      %v719 = vld [vmem:[%s718] sm:$0xf]
      %v720 = vld [vmem:[%s718 + $0x4] sm:$0xf]
      %v721 = vld [vmem:[%s718 + $0x8] sm:$0xf]
      %v722 = vld [vmem:[%s718 + $0xc] sm:$0xf]
      %v726 = vunpack.c.l.b16 %v715
      %v727 = vunpack.c.l.b16 %v716
      %v728 = vunpack.c.l.b16 %v717
      %v729 = vpack.c.b16 %v727, %v726
      %v730 = vpack.c.b16 %v728, %v728
      %v735 = vunpack.c.l.b16 %v719
      %v736 = vunpack.c.l.b16 %v720
      %v737 = vunpack.c.l.b16 %v721
      %v738 = vunpack.c.l.b16 %v722
      %v739 = vpack.c.b16 %v736, %v735
      %v740 = vpack.c.b16 %v738, %v737
      %v744 = vsel %vm340, %v729, 0
      %v747 = vsel %vm340, %v730, 0
      %749 = vmatprep.subr.bf16.mxu0 0
      %750 = vmatpush1.bf16.msra.mxu0 %v739
      %751 = vmatprep.subr.bf16.mxu0 0
      %752 = vmatpush1.bf16.msra.mxu0 %v740
      %753 = vmatprep.subr.bf16.mxu0 0
      %754 = vmatpush1.bf16.msra.mxu0 0
      %755 = vmatprep.subr.bf16.mxu0 0
      %756 = vmatpush1.bf16.msra.mxu0 0
      %757 = vmatprep.subr.bf16.mxu0 0
      %758 = vmatpush1.bf16.msra.mxu0 0
      %759 = vmatprep.subr.bf16.mxu0 0
      %760 = vmatpush1.bf16.msra.mxu0 0
      %761 = vmatprep.subr.bf16.mxu0 0
      %762 = vmatpush1.bf16.msra.mxu0 0
      %763 = vmatprep.subr.bf16.mxu0 0
      %764 = vmatpush1.bf16.msra.mxu0 0
      %765 = vmatprep.subr.bf16.mxu0 0
      %766 = vmatpush1.bf16.msra.mxu0 0
      %767 = vmatprep.subr.bf16.mxu0 0
      %768 = vmatpush1.bf16.msra.mxu0 0
      %769 = vmatprep.subr.bf16.mxu0 0
      %770 = vmatpush1.bf16.msra.mxu0 0
      %771 = vmatprep.subr.bf16.mxu0 0
      %772 = vmatpush1.bf16.msra.mxu0 0
      %773 = vmatprep.subr.bf16.mxu0 0
      %774 = vmatpush1.bf16.msra.mxu0 0
      %775 = vmatprep.subr.bf16.mxu0 0
      %776 = vmatpush1.bf16.msra.mxu0 0
      %777 = vmatprep.subr.bf16.mxu0 0
      %778 = vmatpush1.bf16.msra.mxu0 0
      %779 = vmatprep.subr.bf16.mxu0 0
      %780 = vmatpush1.bf16.msra.mxu0 0
      %781 = vmatprep.mubr.bf16.mxu0 0
      %782 = vmatmul.mubr.bf16.gmra.mrb[0].mxu0 %v744
      %v783 = vpop.f32.mrb[0].mxu0
      %v784 = vadd.f32 0.0, %v783
      %v785 = vpop.f32.mrb[0].mxu0
      %v786 = vpop.f32.mrb[0].mxu0
      %v787 = vadd.f32 0.0, %v786
      %v788 = vpop.f32.mrb[0].mxu0
      %789 = vmatprep.mubr.bf16.mxu0 0
      %790 = vmatmul.mubr.bf16.gmra.mrb[0].mxu0 %v747
      %v791 = vpop.f32.mrb[0].mxu0
      %v792 = vadd.f32 0.0, %v791
      %v793 = vpop.f32.mrb[0].mxu0
      %v794 = vpop.f32.mrb[0].mxu0
      %v795 = vpop.f32.mrb[0].mxu0
      %796 = vdwg.mxu0
      %v797 = vadd.f32 %v708, %v784
      %v798 = vadd.f32 %v709, %v787
      %v799 = vadd.f32 %v710, %v792
      %v800 = vld [vmem:[%s714] sm:$0xf]
      %v801 = vld [vmem:[%s714 + $0x4] sm:$0x1]
      %v802 = vld [vmem:[%s714 + $0x8] sm:$0xf]
      %v803 = vld [vmem:[%s714 + $0xc] sm:$0x1]
      %v804 = vld [vmem:[%s714 + $0x10] sm:$0xf]
      %v805 = vld [vmem:[%s714 + $0x14] sm:$0x1]
      %v807 = vshrl.u32 %v800, 16
      %v809 = vrot.slane %v807, 4
      %v810 = vshll.u32 %v800, 16
      %v812 = vrot.slane %v810, 5
      %v813 = vor.u32 %v809, %v812
      %v814 = vrot.slane %v813, 4
      %v816 = vshll.u32 %v801, 16
      %v818 = vrot.slane %v816, 5
      %v819 = vsel %vm275, %v814, %v818
      %v821 = vshrl.u32 %v802, 16
      %v823 = vrot.slane %v821, 4
      %v824 = vshll.u32 %v802, 16
      %v826 = vrot.slane %v824, 5
      %v827 = vor.u32 %v823, %v826
      %v828 = vrot.slane %v827, 4
      %v830 = vshll.u32 %v803, 16
      %v832 = vrot.slane %v830, 5
      %v833 = vsel %vm275, %v828, %v832
      %v835 = vshrl.u32 %v804, 16
      %v837 = vrot.slane %v835, 4
      %v838 = vshll.u32 %v804, 16
      %v840 = vrot.slane %v838, 5
      %v841 = vor.u32 %v837, %v840
      %v842 = vrot.slane %v841, 4
      %v844 = vshll.u32 %v805, 16
      %v846 = vrot.slane %v844, 5
      %v847 = vsel %vm275, %v842, %v846
      %s848 = scalar_lea.vmem %s1, 80
      %v849 = vld [vmem:[%s848] sm:$0xf]
      %v850 = vld [vmem:[%s848 + $0x4] sm:$0xf]
      %v851 = vld [vmem:[%s848 + $0x8] sm:$0xf]
      %v852 = vld [vmem:[%s848 + $0xc] sm:$0xf]
      %v853 = vunpack.c.l.b16 %v819
      %v854 = vunpack.c.l.b16 %v833
      %v855 = vunpack.c.l.b16 %v847
      %v856 = vpack.c.b16 %v854, %v853
      %v857 = vpack.c.b16 %v855, %v855
      %v862 = vunpack.c.l.b16 %v849
      %v863 = vunpack.c.l.b16 %v850
      %v864 = vunpack.c.l.b16 %v851
      %v865 = vunpack.c.l.b16 %v852
      %v866 = vpack.c.b16 %v863, %v862
      %v867 = vpack.c.b16 %v865, %v864
      %v871 = vsel %vm340, %v856, 0
      %v874 = vsel %vm340, %v857, 0
      %876 = vmatprep.subr.bf16.mxu0 0
      %877 = vmatpush1.bf16.msra.mxu0 %v866
      %878 = vmatprep.subr.bf16.mxu0 0
      %879 = vmatpush1.bf16.msra.mxu0 %v867
      %880 = vmatprep.subr.bf16.mxu0 0
      %881 = vmatpush1.bf16.msra.mxu0 0
      %882 = vmatprep.subr.bf16.mxu0 0
      %883 = vmatpush1.bf16.msra.mxu0 0
      %884 = vmatprep.subr.bf16.mxu0 0
      %885 = vmatpush1.bf16.msra.mxu0 0
      %886 = vmatprep.subr.bf16.mxu0 0
      %887 = vmatpush1.bf16.msra.mxu0 0
      %888 = vmatprep.subr.bf16.mxu0 0
      %889 = vmatpush1.bf16.msra.mxu0 0
      %890 = vmatprep.subr.bf16.mxu0 0
      %891 = vmatpush1.bf16.msra.mxu0 0
      %892 = vmatprep.subr.bf16.mxu0 0
      %893 = vmatpush1.bf16.msra.mxu0 0
      %894 = vmatprep.subr.bf16.mxu0 0
      %895 = vmatpush1.bf16.msra.mxu0 0
      %896 = vmatprep.subr.bf16.mxu0 0
      %897 = vmatpush1.bf16.msra.mxu0 0
      %898 = vmatprep.subr.bf16.mxu0 0
      %899 = vmatpush1.bf16.msra.mxu0 0
      %900 = vmatprep.subr.bf16.mxu0 0
      %901 = vmatpush1.bf16.msra.mxu0 0
      %902 = vmatprep.subr.bf16.mxu0 0
      %903 = vmatpush1.bf16.msra.mxu0 0
      %904 = vmatprep.subr.bf16.mxu0 0
      %905 = vmatpush1.bf16.msra.mxu0 0
      %906 = vmatprep.subr.bf16.mxu0 0
      %907 = vmatpush1.bf16.msra.mxu0 0
      %908 = vmatprep.mubr.bf16.mxu0 0
      %909 = vmatmul.mubr.bf16.gmra.mrb[0].mxu0 %v871
      %v910 = vpop.f32.mrb[0].mxu0
      %v911 = vadd.f32 0.0, %v910
      %v912 = vpop.f32.mrb[0].mxu0
      %v913 = vpop.f32.mrb[0].mxu0
      %v914 = vadd.f32 0.0, %v913
      %v915 = vpop.f32.mrb[0].mxu0
      %916 = vmatprep.mubr.bf16.mxu0 0
      %917 = vmatmul.mubr.bf16.gmra.mrb[0].mxu0 %v874
      %v918 = vpop.f32.mrb[0].mxu0
      %v919 = vadd.f32 0.0, %v918
      %v920 = vpop.f32.mrb[0].mxu0
      %v921 = vpop.f32.mrb[0].mxu0
      %v922 = vpop.f32.mrb[0].mxu0
      %923 = vdwg.mxu0
      %v924 = vadd.f32 %v797, %v911
      %v925 = vadd.f32 %v798, %v914
      %v926 = vadd.f32 %v799, %v919
      %v927 = vld [vmem:[%s714] sm:$0xe]
      %v928 = vld [vmem:[%s714 + $0x8] sm:$0xe]
      %v929 = vld [vmem:[%s714 + $0x10] sm:$0xe]
      %v936 = vrot.slane %v927, 5
      %v937 = vrot.slane %v936, 4
      %v938 = vrot.slane %v801, 5
      %v939 = vsel %vm480, %v937, %v938
      %v940 = vrot.slane %v928, 5
      %v941 = vrot.slane %v940, 4
      %v942 = vrot.slane %v803, 5
      %v943 = vsel %vm480, %v941, %v942
      %v944 = vrot.slane %v929, 5
      %v945 = vrot.slane %v944, 4
      %v946 = vrot.slane %v805, 5
      %v947 = vsel %vm480, %v945, %v946
      %s948 = scalar_lea.vmem %s1, 96
      %v949 = vld [vmem:[%s948] sm:$0xf]
      %v950 = vld [vmem:[%s948 + $0x4] sm:$0xf]
      %v951 = vld [vmem:[%s948 + $0x8] sm:$0xf]
      %v952 = vld [vmem:[%s948 + $0xc] sm:$0xf]
      %v953 = vunpack.c.l.b16 %v939
      %v954 = vunpack.c.l.b16 %v943
      %v955 = vunpack.c.l.b16 %v947
      %v956 = vpack.c.b16 %v954, %v953
      %v957 = vpack.c.b16 %v955, %v955
      %v962 = vunpack.c.l.b16 %v949
      %v963 = vunpack.c.l.b16 %v950
      %v964 = vunpack.c.l.b16 %v951
      %v965 = vunpack.c.l.b16 %v952
      %v966 = vpack.c.b16 %v963, %v962
      %v967 = vpack.c.b16 %v965, %v964
      %v971 = vsel %vm340, %v956, 0
      %v974 = vsel %vm340, %v957, 0
      %976 = vmatprep.subr.bf16.mxu0 0
      %977 = vmatpush1.bf16.msra.mxu0 %v966
      %978 = vmatprep.subr.bf16.mxu0 0
      %979 = vmatpush1.bf16.msra.mxu0 %v967
      %980 = vmatprep.subr.bf16.mxu0 0
      %981 = vmatpush1.bf16.msra.mxu0 0
      %982 = vmatprep.subr.bf16.mxu0 0
      %983 = vmatpush1.bf16.msra.mxu0 0
      %984 = vmatprep.subr.bf16.mxu0 0
      %985 = vmatpush1.bf16.msra.mxu0 0
      %986 = vmatprep.subr.bf16.mxu0 0
      %987 = vmatpush1.bf16.msra.mxu0 0
      %988 = vmatprep.subr.bf16.mxu0 0
      %989 = vmatpush1.bf16.msra.mxu0 0
      %990 = vmatprep.subr.bf16.mxu0 0
      %991 = vmatpush1.bf16.msra.mxu0 0
      %992 = vmatprep.subr.bf16.mxu0 0
      %993 = vmatpush1.bf16.msra.mxu0 0
      %994 = vmatprep.subr.bf16.mxu0 0
      %995 = vmatpush1.bf16.msra.mxu0 0
      %996 = vmatprep.subr.bf16.mxu0 0
      %997 = vmatpush1.bf16.msra.mxu0 0
      %998 = vmatprep.subr.bf16.mxu0 0
      %999 = vmatpush1.bf16.msra.mxu0 0
      %1000 = vmatprep.subr.bf16.mxu0 0
      %1001 = vmatpush1.bf16.msra.mxu0 0
      %1002 = vmatprep.subr.bf16.mxu0 0
      %1003 = vmatpush1.bf16.msra.mxu0 0
      %1004 = vmatprep.subr.bf16.mxu0 0
      %1005 = vmatpush1.bf16.msra.mxu0 0
      %1006 = vmatprep.subr.bf16.mxu0 0
      %1007 = vmatpush1.bf16.msra.mxu0 0
      %1008 = vmatprep.mubr.bf16.mxu0 0
      %1009 = vmatmul.mubr.bf16.gmra.mrb[0].mxu0 %v971
      %v1010 = vpop.f32.mrb[0].mxu0
      %v1011 = vadd.f32 0.0, %v1010
      %v1012 = vpop.f32.mrb[0].mxu0
      %v1013 = vpop.f32.mrb[0].mxu0
      %v1014 = vadd.f32 0.0, %v1013
      %v1015 = vpop.f32.mrb[0].mxu0
      %1016 = vmatprep.mubr.bf16.mxu0 0
      %1017 = vmatmul.mubr.bf16.gmra.mrb[0].mxu0 %v974
      %v1018 = vpop.f32.mrb[0].mxu0
      %v1019 = vadd.f32 0.0, %v1018
      %v1020 = vpop.f32.mrb[0].mxu0
      %v1021 = vpop.f32.mrb[0].mxu0
      %v1022 = vpop.f32.mrb[0].mxu0
      %1023 = vdwg.mxu0
      %v1024 = vadd.f32 %v924, %v1011
      %v1025 = vadd.f32 %v925, %v1014
      %v1026 = vadd.f32 %v926, %v1019
      %v1027 = vld [vmem:[%s714 + $0x4] sm:$0x3]
      %v1028 = vld [vmem:[%s714 + $0xc] sm:$0x3]
      %v1029 = vld [vmem:[%s714 + $0x14] sm:$0x3]
      %v1031 = vshrl.u32 %v927, 16
      %v1033 = vrot.slane %v1031, 5
      %v1034 = vshll.u32 %v927, 16
      %v1036 = vrot.slane %v1034, 6
      %v1037 = vor.u32 %v1033, %v1036
      %v1038 = vrot.slane %v1037, 4
      %v1040 = vshrl.u32 %v1027, 16
      %v1042 = vrot.slane %v1040, 5
      %v1043 = vshll.u32 %v1027, 16
      %v1045 = vrot.slane %v1043, 6
      %v1046 = vor.u32 %v1042, %v1045
      %v1047 = vsel %vm577, %v1038, %v1046
      %v1049 = vshrl.u32 %v928, 16
      %v1051 = vrot.slane %v1049, 5
      %v1052 = vshll.u32 %v928, 16
      %v1054 = vrot.slane %v1052, 6
      %v1055 = vor.u32 %v1051, %v1054
      %v1056 = vrot.slane %v1055, 4
      %v1058 = vshrl.u32 %v1028, 16
      %v1060 = vrot.slane %v1058, 5
      %v1061 = vshll.u32 %v1028, 16
      %v1063 = vrot.slane %v1061, 6
      %v1064 = vor.u32 %v1060, %v1063
      %v1065 = vsel %vm577, %v1056, %v1064
      %v1067 = vshrl.u32 %v929, 16
      %v1069 = vrot.slane %v1067, 5
      %v1070 = vshll.u32 %v929, 16
      %v1072 = vrot.slane %v1070, 6
      %v1073 = vor.u32 %v1069, %v1072
      %v1074 = vrot.slane %v1073, 4
      %v1076 = vshrl.u32 %v1029, 16
      %v1078 = vrot.slane %v1076, 5
      %v1079 = vshll.u32 %v1029, 16
      %v1081 = vrot.slane %v1079, 6
      %v1082 = vor.u32 %v1078, %v1081
      %v1083 = vsel %vm577, %v1074, %v1082
      %s1084 = scalar_lea.vmem %s1, 112
      %v1085 = vld [vmem:[%s1084] sm:$0xf]
      %v1086 = vld [vmem:[%s1084 + $0x4] sm:$0xf]
      %v1087 = vld [vmem:[%s1084 + $0x8] sm:$0xf]
      %v1088 = vld [vmem:[%s1084 + $0xc] sm:$0xf]
      %v1089 = vunpack.c.l.b16 %v1047
      %v1090 = vunpack.c.l.b16 %v1065
      %v1091 = vunpack.c.l.b16 %v1083
      %v1092 = vpack.c.b16 %v1090, %v1089
      %v1093 = vpack.c.b16 %v1091, %v1091
      %v1098 = vunpack.c.l.b16 %v1085
      %v1099 = vunpack.c.l.b16 %v1086
      %v1100 = vunpack.c.l.b16 %v1087
      %v1101 = vunpack.c.l.b16 %v1088
      %v1102 = vpack.c.b16 %v1099, %v1098
      %v1103 = vpack.c.b16 %v1101, %v1100
      %v1107 = vsel %vm340, %v1092, 0
      %v1110 = vsel %vm340, %v1093, 0
      %1112 = vmatprep.subr.bf16.mxu0 0
      %1113 = vmatpush1.bf16.msra.mxu0 %v1102
      %1114 = vmatprep.subr.bf16.mxu0 0
      %1115 = vmatpush1.bf16.msra.mxu0 %v1103
      %1116 = vmatprep.subr.bf16.mxu0 0
      %1117 = vmatpush1.bf16.msra.mxu0 0
      %1118 = vmatprep.subr.bf16.mxu0 0
      %1119 = vmatpush1.bf16.msra.mxu0 0
      %1120 = vmatprep.subr.bf16.mxu0 0
      %1121 = vmatpush1.bf16.msra.mxu0 0
      %1122 = vmatprep.subr.bf16.mxu0 0
      %1123 = vmatpush1.bf16.msra.mxu0 0
      %1124 = vmatprep.subr.bf16.mxu0 0
      %1125 = vmatpush1.bf16.msra.mxu0 0
      %1126 = vmatprep.subr.bf16.mxu0 0
      %1127 = vmatpush1.bf16.msra.mxu0 0
      %1128 = vmatprep.subr.bf16.mxu0 0
      %1129 = vmatpush1.bf16.msra.mxu0 0
      %1130 = vmatprep.subr.bf16.mxu0 0
      %1131 = vmatpush1.bf16.msra.mxu0 0
      %1132 = vmatprep.subr.bf16.mxu0 0
      %1133 = vmatpush1.bf16.msra.mxu0 0
      %1134 = vmatprep.subr.bf16.mxu0 0
      %1135 = vmatpush1.bf16.msra.mxu0 0
      %1136 = vmatprep.subr.bf16.mxu0 0
      %1137 = vmatpush1.bf16.msra.mxu0 0
      %1138 = vmatprep.subr.bf16.mxu0 0
      %1139 = vmatpush1.bf16.msra.mxu0 0
      %1140 = vmatprep.subr.bf16.mxu0 0
      %1141 = vmatpush1.bf16.msra.mxu0 0
      %1142 = vmatprep.subr.bf16.mxu0 0
      %1143 = vmatpush1.bf16.msra.mxu0 0
      %1144 = vmatprep.mubr.bf16.mxu0 0
      %1145 = vmatmul.mubr.bf16.gmra.mrb[0].mxu0 %v1107
      %v1146 = vpop.f32.mrb[0].mxu0
      %v1147 = vadd.f32 0.0, %v1146
      %v1148 = vpop.f32.mrb[0].mxu0
      %v1149 = vpop.f32.mrb[0].mxu0
      %v1150 = vadd.f32 0.0, %v1149
      %v1151 = vpop.f32.mrb[0].mxu0
      %1152 = vmatprep.mubr.bf16.mxu0 0
      %1153 = vmatmul.mubr.bf16.gmra.mrb[0].mxu0 %v1110
      %v1154 = vpop.f32.mrb[0].mxu0
      %v1155 = vadd.f32 0.0, %v1154
      %v1156 = vpop.f32.mrb[0].mxu0
      %v1157 = vpop.f32.mrb[0].mxu0
      %v1158 = vpop.f32.mrb[0].mxu0
      %1159 = vdwg.mxu0
      %v1160 = vadd.f32 %v1024, %v1147
      %v1161 = vadd.f32 %v1025, %v1150
      %v1162 = vadd.f32 %v1026, %v1155
      %s1163 = sadd.s32 %s259, 2
      %s1164 = smul.u32 %s1163, 2
      %s1165 = smul.addr %s1164, 4
      %s1166 = scalar_lea.vmem %s233, %s1165
      %v1167 = vld [vmem:[%s1166] sm:$0xf]
      %v1168 = vld [vmem:[%s1166 + $0x8] sm:$0xf]
      %v1169 = vld [vmem:[%s1166 + $0x10] sm:$0xf]
      %s1170 = scalar_lea.vmem %s1, 128
      %v1171 = vld [vmem:[%s1170] sm:$0xf]
      %v1172 = vld [vmem:[%s1170 + $0x4] sm:$0xf]
      %v1173 = vld [vmem:[%s1170 + $0x8] sm:$0xf]
      %v1174 = vld [vmem:[%s1170 + $0xc] sm:$0xf]
      %v1178 = vunpack.c.l.b16 %v1167
      %v1179 = vunpack.c.l.b16 %v1168
      %v1180 = vunpack.c.l.b16 %v1169
      %v1181 = vpack.c.b16 %v1179, %v1178
      %v1182 = vpack.c.b16 %v1180, %v1180
      %v1187 = vunpack.c.l.b16 %v1171
      %v1188 = vunpack.c.l.b16 %v1172
      %v1189 = vunpack.c.l.b16 %v1173
      %v1190 = vunpack.c.l.b16 %v1174
      %v1191 = vpack.c.b16 %v1188, %v1187
      %v1192 = vpack.c.b16 %v1190, %v1189
      %v1196 = vsel %vm340, %v1181, 0
      %v1199 = vsel %vm340, %v1182, 0
      %1201 = vmatprep.subr.bf16.mxu0 0
      %1202 = vmatpush1.bf16.msra.mxu0 %v1191
      %1203 = vmatprep.subr.bf16.mxu0 0
      %1204 = vmatpush1.bf16.msra.mxu0 %v1192
      %1205 = vmatprep.subr.bf16.mxu0 0
      %1206 = vmatpush1.bf16.msra.mxu0 0
      %1207 = vmatprep.subr.bf16.mxu0 0
      %1208 = vmatpush1.bf16.msra.mxu0 0
      %1209 = vmatprep.subr.bf16.mxu0 0
      %1210 = vmatpush1.bf16.msra.mxu0 0
      %1211 = vmatprep.subr.bf16.mxu0 0
      %1212 = vmatpush1.bf16.msra.mxu0 0
      %1213 = vmatprep.subr.bf16.mxu0 0
      %1214 = vmatpush1.bf16.msra.mxu0 0
      %1215 = vmatprep.subr.bf16.mxu0 0
      %1216 = vmatpush1.bf16.msra.mxu0 0
      %1217 = vmatprep.subr.bf16.mxu0 0
      %1218 = vmatpush1.bf16.msra.mxu0 0
      %1219 = vmatprep.subr.bf16.mxu0 0
      %1220 = vmatpush1.bf16.msra.mxu0 0
      %1221 = vmatprep.subr.bf16.mxu0 0
      %1222 = vmatpush1.bf16.msra.mxu0 0
      %1223 = vmatprep.subr.bf16.mxu0 0
      %1224 = vmatpush1.bf16.msra.mxu0 0
      %1225 = vmatprep.subr.bf16.mxu0 0
      %1226 = vmatpush1.bf16.msra.mxu0 0
      %1227 = vmatprep.subr.bf16.mxu0 0
      %1228 = vmatpush1.bf16.msra.mxu0 0
      %1229 = vmatprep.subr.bf16.mxu0 0
      %1230 = vmatpush1.bf16.msra.mxu0 0
      %1231 = vmatprep.subr.bf16.mxu0 0
      %1232 = vmatpush1.bf16.msra.mxu0 0
      %1233 = vmatprep.mubr.bf16.mxu0 0
      %1234 = vmatmul.mubr.bf16.gmra.mrb[0].mxu0 %v1196
      %v1235 = vpop.f32.mrb[0].mxu0
      %v1236 = vadd.f32 0.0, %v1235
      %v1237 = vpop.f32.mrb[0].mxu0
      %v1238 = vpop.f32.mrb[0].mxu0
      %v1239 = vadd.f32 0.0, %v1238
      %v1240 = vpop.f32.mrb[0].mxu0
      %1241 = vmatprep.mubr.bf16.mxu0 0
      %1242 = vmatmul.mubr.bf16.gmra.mrb[0].mxu0 %v1199
      %v1243 = vpop.f32.mrb[0].mxu0
      %v1244 = vadd.f32 0.0, %v1243
      %v1245 = vpop.f32.mrb[0].mxu0
      %v1246 = vpop.f32.mrb[0].mxu0
      %v1247 = vpop.f32.mrb[0].mxu0
      %1248 = vdwg.mxu0
      %v1249 = vadd.f32 %v1160, %v1236
      %v1250 = vadd.f32 %v1161, %v1239
      %v1251 = vadd.f32 %v1162, %v1244
      %v1252 = vld [vmem:[%s1166] sm:$0xf]
      %v1253 = vld [vmem:[%s1166 + $0x4] sm:$0x1]
      %v1254 = vld [vmem:[%s1166 + $0x8] sm:$0xf]
      %v1255 = vld [vmem:[%s1166 + $0xc] sm:$0x1]
      %v1256 = vld [vmem:[%s1166 + $0x10] sm:$0xf]
      %v1257 = vld [vmem:[%s1166 + $0x14] sm:$0x1]
      %v1259 = vshrl.u32 %v1252, 16
      %v1261 = vrot.slane %v1259, 4
      %v1262 = vshll.u32 %v1252, 16
      %v1264 = vrot.slane %v1262, 5
      %v1265 = vor.u32 %v1261, %v1264
      %v1266 = vrot.slane %v1265, 4
      %v1268 = vshll.u32 %v1253, 16
      %v1270 = vrot.slane %v1268, 5
      %v1271 = vsel %vm275, %v1266, %v1270
      %v1273 = vshrl.u32 %v1254, 16
      %v1275 = vrot.slane %v1273, 4
      %v1276 = vshll.u32 %v1254, 16
      %v1278 = vrot.slane %v1276, 5
      %v1279 = vor.u32 %v1275, %v1278
      %v1280 = vrot.slane %v1279, 4
      %v1282 = vshll.u32 %v1255, 16
      %v1284 = vrot.slane %v1282, 5
      %v1285 = vsel %vm275, %v1280, %v1284
      %v1287 = vshrl.u32 %v1256, 16
      %v1289 = vrot.slane %v1287, 4
      %v1290 = vshll.u32 %v1256, 16
      %v1292 = vrot.slane %v1290, 5
      %v1293 = vor.u32 %v1289, %v1292
      %v1294 = vrot.slane %v1293, 4
      %v1296 = vshll.u32 %v1257, 16
      %v1298 = vrot.slane %v1296, 5
      %v1299 = vsel %vm275, %v1294, %v1298
      %s1300 = scalar_lea.vmem %s1, 144
      %v1301 = vld [vmem:[%s1300] sm:$0xf]
      %v1302 = vld [vmem:[%s1300 + $0x4] sm:$0xf]
      %v1303 = vld [vmem:[%s1300 + $0x8] sm:$0xf]
      %v1304 = vld [vmem:[%s1300 + $0xc] sm:$0xf]
      %v1305 = vunpack.c.l.b16 %v1271
      %v1306 = vunpack.c.l.b16 %v1285
      %v1307 = vunpack.c.l.b16 %v1299
      %v1308 = vpack.c.b16 %v1306, %v1305
      %v1309 = vpack.c.b16 %v1307, %v1307
      %v1314 = vunpack.c.l.b16 %v1301
      %v1315 = vunpack.c.l.b16 %v1302
      %v1316 = vunpack.c.l.b16 %v1303
      %v1317 = vunpack.c.l.b16 %v1304
      %v1318 = vpack.c.b16 %v1315, %v1314
      %v1319 = vpack.c.b16 %v1317, %v1316
      %v1323 = vsel %vm340, %v1308, 0
      %v1326 = vsel %vm340, %v1309, 0
      %1328 = vmatprep.subr.bf16.mxu0 0
      %1329 = vmatpush1.bf16.msra.mxu0 %v1318
      %1330 = vmatprep.subr.bf16.mxu0 0
      %1331 = vmatpush1.bf16.msra.mxu0 %v1319
      %1332 = vmatprep.subr.bf16.mxu0 0
      %1333 = vmatpush1.bf16.msra.mxu0 0
      %1334 = vmatprep.subr.bf16.mxu0 0
      %1335 = vmatpush1.bf16.msra.mxu0 0
      %1336 = vmatprep.subr.bf16.mxu0 0
      %1337 = vmatpush1.bf16.msra.mxu0 0
      %1338 = vmatprep.subr.bf16.mxu0 0
      %1339 = vmatpush1.bf16.msra.mxu0 0
      %1340 = vmatprep.subr.bf16.mxu0 0
      %1341 = vmatpush1.bf16.msra.mxu0 0
      %1342 = vmatprep.subr.bf16.mxu0 0
      %1343 = vmatpush1.bf16.msra.mxu0 0
      %1344 = vmatprep.subr.bf16.mxu0 0
      %1345 = vmatpush1.bf16.msra.mxu0 0
      %1346 = vmatprep.subr.bf16.mxu0 0
      %1347 = vmatpush1.bf16.msra.mxu0 0
      %1348 = vmatprep.subr.bf16.mxu0 0
      %1349 = vmatpush1.bf16.msra.mxu0 0
      %1350 = vmatprep.subr.bf16.mxu0 0
      %1351 = vmatpush1.bf16.msra.mxu0 0
      %1352 = vmatprep.subr.bf16.mxu0 0
      %1353 = vmatpush1.bf16.msra.mxu0 0
      %1354 = vmatprep.subr.bf16.mxu0 0
      %1355 = vmatpush1.bf16.msra.mxu0 0
      %1356 = vmatprep.subr.bf16.mxu0 0
      %1357 = vmatpush1.bf16.msra.mxu0 0
      %1358 = vmatprep.subr.bf16.mxu0 0
      %1359 = vmatpush1.bf16.msra.mxu0 0
      %1360 = vmatprep.mubr.bf16.mxu0 0
      %1361 = vmatmul.mubr.bf16.gmra.mrb[0].mxu0 %v1323
      %v1362 = vpop.f32.mrb[0].mxu0
      %v1363 = vadd.f32 0.0, %v1362
      %v1364 = vpop.f32.mrb[0].mxu0
      %v1365 = vpop.f32.mrb[0].mxu0
      %v1366 = vadd.f32 0.0, %v1365
      %v1367 = vpop.f32.mrb[0].mxu0
      %1368 = vmatprep.mubr.bf16.mxu0 0
      %1369 = vmatmul.mubr.bf16.gmra.mrb[0].mxu0 %v1326
      %v1370 = vpop.f32.mrb[0].mxu0
      %v1371 = vadd.f32 0.0, %v1370
      %v1372 = vpop.f32.mrb[0].mxu0
      %v1373 = vpop.f32.mrb[0].mxu0
      %v1374 = vpop.f32.mrb[0].mxu0
      %1375 = vdwg.mxu0
      %v1376 = vadd.f32 %v1249, %v1363
      %v1377 = vadd.f32 %v1250, %v1366
      %v1378 = vadd.f32 %v1251, %v1371
      %v1379 = vld [vmem:[%s1166] sm:$0xe]
      %v1380 = vld [vmem:[%s1166 + $0x8] sm:$0xe]
      %v1381 = vld [vmem:[%s1166 + $0x10] sm:$0xe]
      %v1388 = vrot.slane %v1379, 5
      %v1389 = vrot.slane %v1388, 4
      %v1390 = vrot.slane %v1253, 5
      %v1391 = vsel %vm480, %v1389, %v1390
      %v1392 = vrot.slane %v1380, 5
      %v1393 = vrot.slane %v1392, 4
      %v1394 = vrot.slane %v1255, 5
      %v1395 = vsel %vm480, %v1393, %v1394
      %v1396 = vrot.slane %v1381, 5
      %v1397 = vrot.slane %v1396, 4
      %v1398 = vrot.slane %v1257, 5
      %v1399 = vsel %vm480, %v1397, %v1398
      %s1400 = scalar_lea.vmem %s1, 160
      %v1401 = vld [vmem:[%s1400] sm:$0xf]
      %v1402 = vld [vmem:[%s1400 + $0x4] sm:$0xf]
      %v1403 = vld [vmem:[%s1400 + $0x8] sm:$0xf]
      %v1404 = vld [vmem:[%s1400 + $0xc] sm:$0xf]
      %v1405 = vunpack.c.l.b16 %v1391
      %v1406 = vunpack.c.l.b16 %v1395
      %v1407 = vunpack.c.l.b16 %v1399
      %v1408 = vpack.c.b16 %v1406, %v1405
      %v1409 = vpack.c.b16 %v1407, %v1407
      %v1414 = vunpack.c.l.b16 %v1401
      %v1415 = vunpack.c.l.b16 %v1402
      %v1416 = vunpack.c.l.b16 %v1403
      %v1417 = vunpack.c.l.b16 %v1404
      %v1418 = vpack.c.b16 %v1415, %v1414
      %v1419 = vpack.c.b16 %v1417, %v1416
      %v1423 = vsel %vm340, %v1408, 0
      %v1426 = vsel %vm340, %v1409, 0
      %1428 = vmatprep.subr.bf16.mxu0 0
      %1429 = vmatpush1.bf16.msra.mxu0 %v1418
      %1430 = vmatprep.subr.bf16.mxu0 0
      %1431 = vmatpush1.bf16.msra.mxu0 %v1419
      %1432 = vmatprep.subr.bf16.mxu0 0
      %1433 = vmatpush1.bf16.msra.mxu0 0
      %1434 = vmatprep.subr.bf16.mxu0 0
      %1435 = vmatpush1.bf16.msra.mxu0 0
      %1436 = vmatprep.subr.bf16.mxu0 0
      %1437 = vmatpush1.bf16.msra.mxu0 0
      %1438 = vmatprep.subr.bf16.mxu0 0
      %1439 = vmatpush1.bf16.msra.mxu0 0
      %1440 = vmatprep.subr.bf16.mxu0 0
      %1441 = vmatpush1.bf16.msra.mxu0 0
      %1442 = vmatprep.subr.bf16.mxu0 0
      %1443 = vmatpush1.bf16.msra.mxu0 0
      %1444 = vmatprep.subr.bf16.mxu0 0
      %1445 = vmatpush1.bf16.msra.mxu0 0
      %1446 = vmatprep.subr.bf16.mxu0 0
      %1447 = vmatpush1.bf16.msra.mxu0 0
      %1448 = vmatprep.subr.bf16.mxu0 0
      %1449 = vmatpush1.bf16.msra.mxu0 0
      %1450 = vmatprep.subr.bf16.mxu0 0
      %1451 = vmatpush1.bf16.msra.mxu0 0
      %1452 = vmatprep.subr.bf16.mxu0 0
      %1453 = vmatpush1.bf16.msra.mxu0 0
      %1454 = vmatprep.subr.bf16.mxu0 0
      %1455 = vmatpush1.bf16.msra.mxu0 0
      %1456 = vmatprep.subr.bf16.mxu0 0
      %1457 = vmatpush1.bf16.msra.mxu0 0
      %1458 = vmatprep.subr.bf16.mxu0 0
      %1459 = vmatpush1.bf16.msra.mxu0 0
      %1460 = vmatprep.mubr.bf16.mxu0 0
      %1461 = vmatmul.mubr.bf16.gmra.mrb[0].mxu0 %v1423
      %v1462 = vpop.f32.mrb[0].mxu0
      %v1463 = vadd.f32 0.0, %v1462
      %v1464 = vpop.f32.mrb[0].mxu0
      %v1465 = vpop.f32.mrb[0].mxu0
      %v1466 = vadd.f32 0.0, %v1465
      %v1467 = vpop.f32.mrb[0].mxu0
      %1468 = vmatprep.mubr.bf16.mxu0 0
      %1469 = vmatmul.mubr.bf16.gmra.mrb[0].mxu0 %v1426
      %v1470 = vpop.f32.mrb[0].mxu0
      %v1471 = vadd.f32 0.0, %v1470
      %v1472 = vpop.f32.mrb[0].mxu0
      %v1473 = vpop.f32.mrb[0].mxu0
      %v1474 = vpop.f32.mrb[0].mxu0
      %1475 = vdwg.mxu0
      %v1476 = vadd.f32 %v1376, %v1463
      %v1477 = vadd.f32 %v1377, %v1466
      %v1478 = vadd.f32 %v1378, %v1471
      %v1479 = vld [vmem:[%s1166 + $0x4] sm:$0x3]
      %v1480 = vld [vmem:[%s1166 + $0xc] sm:$0x3]
      %v1481 = vld [vmem:[%s1166 + $0x14] sm:$0x3]
      %v1483 = vshrl.u32 %v1379, 16
      %v1485 = vrot.slane %v1483, 5
      %v1486 = vshll.u32 %v1379, 16
      %v1488 = vrot.slane %v1486, 6
      %v1489 = vor.u32 %v1485, %v1488
      %v1490 = vrot.slane %v1489, 4
      %v1492 = vshrl.u32 %v1479, 16
      %v1494 = vrot.slane %v1492, 5
      %v1495 = vshll.u32 %v1479, 16
      %v1497 = vrot.slane %v1495, 6
      %v1498 = vor.u32 %v1494, %v1497
      %v1499 = vsel %vm577, %v1490, %v1498
      %v1501 = vshrl.u32 %v1380, 16
      %v1503 = vrot.slane %v1501, 5
      %v1504 = vshll.u32 %v1380, 16
      %v1506 = vrot.slane %v1504, 6
      %v1507 = vor.u32 %v1503, %v1506
      %v1508 = vrot.slane %v1507, 4
      %v1510 = vshrl.u32 %v1480, 16
      %v1512 = vrot.slane %v1510, 5
      %v1513 = vshll.u32 %v1480, 16
      %v1515 = vrot.slane %v1513, 6
      %v1516 = vor.u32 %v1512, %v1515
      %v1517 = vsel %vm577, %v1508, %v1516
      %v1519 = vshrl.u32 %v1381, 16
      %v1521 = vrot.slane %v1519, 5
      %v1522 = vshll.u32 %v1381, 16
      %v1524 = vrot.slane %v1522, 6
      %v1525 = vor.u32 %v1521, %v1524
      %v1526 = vrot.slane %v1525, 4
      %v1528 = vshrl.u32 %v1481, 16
      %v1530 = vrot.slane %v1528, 5
      %v1531 = vshll.u32 %v1481, 16
      %v1533 = vrot.slane %v1531, 6
      %v1534 = vor.u32 %v1530, %v1533
      %v1535 = vsel %vm577, %v1526, %v1534
      %s1536 = scalar_lea.vmem %s1, 176
      %v1537 = vld [vmem:[%s1536] sm:$0xf]
      %v1538 = vld [vmem:[%s1536 + $0x4] sm:$0xf]
      %v1539 = vld [vmem:[%s1536 + $0x8] sm:$0xf]
      %v1540 = vld [vmem:[%s1536 + $0xc] sm:$0xf]
      %v1541 = vunpack.c.l.b16 %v1499
      %v1542 = vunpack.c.l.b16 %v1517
      %v1543 = vunpack.c.l.b16 %v1535
      %v1544 = vpack.c.b16 %v1542, %v1541
      %v1545 = vpack.c.b16 %v1543, %v1543
      %v1550 = vunpack.c.l.b16 %v1537
      %v1551 = vunpack.c.l.b16 %v1538
      %v1552 = vunpack.c.l.b16 %v1539
      %v1553 = vunpack.c.l.b16 %v1540
      %v1554 = vpack.c.b16 %v1551, %v1550
      %v1555 = vpack.c.b16 %v1553, %v1552
      %v1559 = vsel %vm340, %v1544, 0
      %v1562 = vsel %vm340, %v1545, 0
      %1564 = vmatprep.subr.bf16.mxu0 0
      %1565 = vmatpush1.bf16.msra.mxu0 %v1554
      %1566 = vmatprep.subr.bf16.mxu0 0
      %1567 = vmatpush1.bf16.msra.mxu0 %v1555
      %1568 = vmatprep.subr.bf16.mxu0 0
      %1569 = vmatpush1.bf16.msra.mxu0 0
      %1570 = vmatprep.subr.bf16.mxu0 0
      %1571 = vmatpush1.bf16.msra.mxu0 0
      %1572 = vmatprep.subr.bf16.mxu0 0
      %1573 = vmatpush1.bf16.msra.mxu0 0
      %1574 = vmatprep.subr.bf16.mxu0 0
      %1575 = vmatpush1.bf16.msra.mxu0 0
      %1576 = vmatprep.subr.bf16.mxu0 0
      %1577 = vmatpush1.bf16.msra.mxu0 0
      %1578 = vmatprep.subr.bf16.mxu0 0
      %1579 = vmatpush1.bf16.msra.mxu0 0
      %1580 = vmatprep.subr.bf16.mxu0 0
      %1581 = vmatpush1.bf16.msra.mxu0 0
      %1582 = vmatprep.subr.bf16.mxu0 0
      %1583 = vmatpush1.bf16.msra.mxu0 0
      %1584 = vmatprep.subr.bf16.mxu0 0
      %1585 = vmatpush1.bf16.msra.mxu0 0
      %1586 = vmatprep.subr.bf16.mxu0 0
      %1587 = vmatpush1.bf16.msra.mxu0 0
      %1588 = vmatprep.subr.bf16.mxu0 0
      %1589 = vmatpush1.bf16.msra.mxu0 0
      %1590 = vmatprep.subr.bf16.mxu0 0
      %1591 = vmatpush1.bf16.msra.mxu0 0
      %1592 = vmatprep.subr.bf16.mxu0 0
      %1593 = vmatpush1.bf16.msra.mxu0 0
      %1594 = vmatprep.subr.bf16.mxu0 0
      %1595 = vmatpush1.bf16.msra.mxu0 0
      %1596 = vmatprep.mubr.bf16.mxu0 0
      %1597 = vmatmul.mubr.bf16.gmra.mrb[0].mxu0 %v1559
      %v1598 = vpop.f32.mrb[0].mxu0
      %v1599 = vadd.f32 0.0, %v1598
      %v1600 = vpop.f32.mrb[0].mxu0
      %v1601 = vpop.f32.mrb[0].mxu0
      %v1602 = vadd.f32 0.0, %v1601
      %v1603 = vpop.f32.mrb[0].mxu0
      %1604 = vmatprep.mubr.bf16.mxu0 0
      %1605 = vmatmul.mubr.bf16.gmra.mrb[0].mxu0 %v1562
      %v1606 = vpop.f32.mrb[0].mxu0
      %v1607 = vadd.f32 0.0, %v1606
      %v1608 = vpop.f32.mrb[0].mxu0
      %v1609 = vpop.f32.mrb[0].mxu0
      %v1610 = vpop.f32.mrb[0].mxu0
      %1611 = vdwg.mxu0
      %v1612 = vadd.f32 %v1476, %v1599
      %v1613 = vadd.f32 %v1477, %v1602
      %v1614 = vadd.f32 %v1478, %v1607
      %s1615 = sadd.s32 %s259, 3
      %s1616 = smul.u32 %s1615, 2
      %s1617 = smul.addr %s1616, 4
      %s1618 = scalar_lea.vmem %s233, %s1617
      %v1619 = vld [vmem:[%s1618] sm:$0xf]
      %v1620 = vld [vmem:[%s1618 + $0x8] sm:$0xf]
      %v1621 = vld [vmem:[%s1618 + $0x10] sm:$0xf]
      %s1622 = scalar_lea.vmem %s1, 192
      %v1623 = vld [vmem:[%s1622] sm:$0xf]
      %v1624 = vld [vmem:[%s1622 + $0x4] sm:$0xf]
      %v1625 = vld [vmem:[%s1622 + $0x8] sm:$0xf]
      %v1626 = vld [vmem:[%s1622 + $0xc] sm:$0xf]
      %v1630 = vunpack.c.l.b16 %v1619
      %v1631 = vunpack.c.l.b16 %v1620
      %v1632 = vunpack.c.l.b16 %v1621
      %v1633 = vpack.c.b16 %v1631, %v1630
      %v1634 = vpack.c.b16 %v1632, %v1632
      %v1639 = vunpack.c.l.b16 %v1623
      %v1640 = vunpack.c.l.b16 %v1624
      %v1641 = vunpack.c.l.b16 %v1625
      %v1642 = vunpack.c.l.b16 %v1626
      %v1643 = vpack.c.b16 %v1640, %v1639
      %v1644 = vpack.c.b16 %v1642, %v1641
      %v1648 = vsel %vm340, %v1633, 0
      %v1651 = vsel %vm340, %v1634, 0
      %1653 = vmatprep.subr.bf16.mxu0 0
      %1654 = vmatpush1.bf16.msra.mxu0 %v1643
      %1655 = vmatprep.subr.bf16.mxu0 0
      %1656 = vmatpush1.bf16.msra.mxu0 %v1644
      %1657 = vmatprep.subr.bf16.mxu0 0
      %1658 = vmatpush1.bf16.msra.mxu0 0
      %1659 = vmatprep.subr.bf16.mxu0 0
      %1660 = vmatpush1.bf16.msra.mxu0 0
      %1661 = vmatprep.subr.bf16.mxu0 0
      %1662 = vmatpush1.bf16.msra.mxu0 0
      %1663 = vmatprep.subr.bf16.mxu0 0
      %1664 = vmatpush1.bf16.msra.mxu0 0
      %1665 = vmatprep.subr.bf16.mxu0 0
      %1666 = vmatpush1.bf16.msra.mxu0 0
      %1667 = vmatprep.subr.bf16.mxu0 0
      %1668 = vmatpush1.bf16.msra.mxu0 0
      %1669 = vmatprep.subr.bf16.mxu0 0
      %1670 = vmatpush1.bf16.msra.mxu0 0
      %1671 = vmatprep.subr.bf16.mxu0 0
      %1672 = vmatpush1.bf16.msra.mxu0 0
      %1673 = vmatprep.subr.bf16.mxu0 0
      %1674 = vmatpush1.bf16.msra.mxu0 0
      %1675 = vmatprep.subr.bf16.mxu0 0
      %1676 = vmatpush1.bf16.msra.mxu0 0
      %1677 = vmatprep.subr.bf16.mxu0 0
      %1678 = vmatpush1.bf16.msra.mxu0 0
      %1679 = vmatprep.subr.bf16.mxu0 0
      %1680 = vmatpush1.bf16.msra.mxu0 0
      %1681 = vmatprep.subr.bf16.mxu0 0
      %1682 = vmatpush1.bf16.msra.mxu0 0
      %1683 = vmatprep.subr.bf16.mxu0 0
      %1684 = vmatpush1.bf16.msra.mxu0 0
      %1685 = vmatprep.mubr.bf16.mxu0 0
      %1686 = vmatmul.mubr.bf16.gmra.mrb[0].mxu0 %v1648
      %v1687 = vpop.f32.mrb[0].mxu0
      %v1688 = vadd.f32 0.0, %v1687
      %v1689 = vpop.f32.mrb[0].mxu0
      %v1690 = vpop.f32.mrb[0].mxu0
      %v1691 = vadd.f32 0.0, %v1690
      %v1692 = vpop.f32.mrb[0].mxu0
      %1693 = vmatprep.mubr.bf16.mxu0 0
      %1694 = vmatmul.mubr.bf16.gmra.mrb[0].mxu0 %v1651
      %v1695 = vpop.f32.mrb[0].mxu0
      %v1696 = vadd.f32 0.0, %v1695
      %v1697 = vpop.f32.mrb[0].mxu0
      %v1698 = vpop.f32.mrb[0].mxu0
      %v1699 = vpop.f32.mrb[0].mxu0
      %1700 = vdwg.mxu0
      %v1701 = vadd.f32 %v1612, %v1688
      %v1702 = vadd.f32 %v1613, %v1691
      %v1703 = vadd.f32 %v1614, %v1696
      %v1704 = vld [vmem:[%s1618] sm:$0xf]
      %v1705 = vld [vmem:[%s1618 + $0x4] sm:$0x1]
      %v1706 = vld [vmem:[%s1618 + $0x8] sm:$0xf]
      %v1707 = vld [vmem:[%s1618 + $0xc] sm:$0x1]
      %v1708 = vld [vmem:[%s1618 + $0x10] sm:$0xf]
      %v1709 = vld [vmem:[%s1618 + $0x14] sm:$0x1]
      %v1711 = vshrl.u32 %v1704, 16
      %v1713 = vrot.slane %v1711, 4
      %v1714 = vshll.u32 %v1704, 16
      %v1716 = vrot.slane %v1714, 5
      %v1717 = vor.u32 %v1713, %v1716
      %v1718 = vrot.slane %v1717, 4
      %v1720 = vshll.u32 %v1705, 16
      %v1722 = vrot.slane %v1720, 5
      %v1723 = vsel %vm275, %v1718, %v1722
      %v1725 = vshrl.u32 %v1706, 16
      %v1727 = vrot.slane %v1725, 4
      %v1728 = vshll.u32 %v1706, 16
      %v1730 = vrot.slane %v1728, 5
      %v1731 = vor.u32 %v1727, %v1730
      %v1732 = vrot.slane %v1731, 4
      %v1734 = vshll.u32 %v1707, 16
      %v1736 = vrot.slane %v1734, 5
      %v1737 = vsel %vm275, %v1732, %v1736
      %v1739 = vshrl.u32 %v1708, 16
      %v1741 = vrot.slane %v1739, 4
      %v1742 = vshll.u32 %v1708, 16
      %v1744 = vrot.slane %v1742, 5
      %v1745 = vor.u32 %v1741, %v1744
      %v1746 = vrot.slane %v1745, 4
      %v1748 = vshll.u32 %v1709, 16
      %v1750 = vrot.slane %v1748, 5
      %v1751 = vsel %vm275, %v1746, %v1750
      %s1752 = scalar_lea.vmem %s1, 208
      %v1753 = vld [vmem:[%s1752] sm:$0xf]
      %v1754 = vld [vmem:[%s1752 + $0x4] sm:$0xf]
      %v1755 = vld [vmem:[%s1752 + $0x8] sm:$0xf]
      %v1756 = vld [vmem:[%s1752 + $0xc] sm:$0xf]
      %v1757 = vunpack.c.l.b16 %v1723
      %v1758 = vunpack.c.l.b16 %v1737
      %v1759 = vunpack.c.l.b16 %v1751
      %v1760 = vpack.c.b16 %v1758, %v1757
      %v1761 = vpack.c.b16 %v1759, %v1759
      %v1766 = vunpack.c.l.b16 %v1753
      %v1767 = vunpack.c.l.b16 %v1754
      %v1768 = vunpack.c.l.b16 %v1755
      %v1769 = vunpack.c.l.b16 %v1756
      %v1770 = vpack.c.b16 %v1767, %v1766
      %v1771 = vpack.c.b16 %v1769, %v1768
      %v1775 = vsel %vm340, %v1760, 0
      %v1778 = vsel %vm340, %v1761, 0
      %1780 = vmatprep.subr.bf16.mxu0 0
      %1781 = vmatpush1.bf16.msra.mxu0 %v1770
      %1782 = vmatprep.subr.bf16.mxu0 0
      %1783 = vmatpush1.bf16.msra.mxu0 %v1771
      %1784 = vmatprep.subr.bf16.mxu0 0
      %1785 = vmatpush1.bf16.msra.mxu0 0
      %1786 = vmatprep.subr.bf16.mxu0 0
      %1787 = vmatpush1.bf16.msra.mxu0 0
      %1788 = vmatprep.subr.bf16.mxu0 0
      %1789 = vmatpush1.bf16.msra.mxu0 0
      %1790 = vmatprep.subr.bf16.mxu0 0
      %1791 = vmatpush1.bf16.msra.mxu0 0
      %1792 = vmatprep.subr.bf16.mxu0 0
      %1793 = vmatpush1.bf16.msra.mxu0 0
      %1794 = vmatprep.subr.bf16.mxu0 0
      %1795 = vmatpush1.bf16.msra.mxu0 0
      %1796 = vmatprep.subr.bf16.mxu0 0
      %1797 = vmatpush1.bf16.msra.mxu0 0
      %1798 = vmatprep.subr.bf16.mxu0 0
      %1799 = vmatpush1.bf16.msra.mxu0 0
      %1800 = vmatprep.subr.bf16.mxu0 0
      %1801 = vmatpush1.bf16.msra.mxu0 0
      %1802 = vmatprep.subr.bf16.mxu0 0
      %1803 = vmatpush1.bf16.msra.mxu0 0
      %1804 = vmatprep.subr.bf16.mxu0 0
      %1805 = vmatpush1.bf16.msra.mxu0 0
      %1806 = vmatprep.subr.bf16.mxu0 0
      %1807 = vmatpush1.bf16.msra.mxu0 0
      %1808 = vmatprep.subr.bf16.mxu0 0
      %1809 = vmatpush1.bf16.msra.mxu0 0
      %1810 = vmatprep.subr.bf16.mxu0 0
      %1811 = vmatpush1.bf16.msra.mxu0 0
      %1812 = vmatprep.mubr.bf16.mxu0 0
      %1813 = vmatmul.mubr.bf16.gmra.mrb[0].mxu0 %v1775
      %v1814 = vpop.f32.mrb[0].mxu0
      %v1815 = vadd.f32 0.0, %v1814
      %v1816 = vpop.f32.mrb[0].mxu0
      %v1817 = vpop.f32.mrb[0].mxu0
      %v1818 = vadd.f32 0.0, %v1817
      %v1819 = vpop.f32.mrb[0].mxu0
      %1820 = vmatprep.mubr.bf16.mxu0 0
      %1821 = vmatmul.mubr.bf16.gmra.mrb[0].mxu0 %v1778
      %v1822 = vpop.f32.mrb[0].mxu0
      %v1823 = vadd.f32 0.0, %v1822
      %v1824 = vpop.f32.mrb[0].mxu0
      %v1825 = vpop.f32.mrb[0].mxu0
      %v1826 = vpop.f32.mrb[0].mxu0
      %1827 = vdwg.mxu0
      %v1828 = vadd.f32 %v1701, %v1815
      %v1829 = vadd.f32 %v1702, %v1818
      %v1830 = vadd.f32 %v1703, %v1823
      %v1831 = vld [vmem:[%s1618] sm:$0xe]
      %v1832 = vld [vmem:[%s1618 + $0x8] sm:$0xe]
      %v1833 = vld [vmem:[%s1618 + $0x10] sm:$0xe]
      %v1840 = vrot.slane %v1831, 5
      %v1841 = vrot.slane %v1840, 4
      %v1842 = vrot.slane %v1705, 5
      %v1843 = vsel %vm480, %v1841, %v1842
      %v1844 = vrot.slane %v1832, 5
      %v1845 = vrot.slane %v1844, 4
      %v1846 = vrot.slane %v1707, 5
      %v1847 = vsel %vm480, %v1845, %v1846
      %v1848 = vrot.slane %v1833, 5
      %v1849 = vrot.slane %v1848, 4
      %v1850 = vrot.slane %v1709, 5
      %v1851 = vsel %vm480, %v1849, %v1850
      %s1852 = scalar_lea.vmem %s1, 224
      %v1853 = vld [vmem:[%s1852] sm:$0xf]
      %v1854 = vld [vmem:[%s1852 + $0x4] sm:$0xf]
      %v1855 = vld [vmem:[%s1852 + $0x8] sm:$0xf]
      %v1856 = vld [vmem:[%s1852 + $0xc] sm:$0xf]
      %v1857 = vunpack.c.l.b16 %v1843
      %v1858 = vunpack.c.l.b16 %v1847
      %v1859 = vunpack.c.l.b16 %v1851
      %v1860 = vpack.c.b16 %v1858, %v1857
      %v1861 = vpack.c.b16 %v1859, %v1859
      %v1866 = vunpack.c.l.b16 %v1853
      %v1867 = vunpack.c.l.b16 %v1854
      %v1868 = vunpack.c.l.b16 %v1855
      %v1869 = vunpack.c.l.b16 %v1856
      %v1870 = vpack.c.b16 %v1867, %v1866
      %v1871 = vpack.c.b16 %v1869, %v1868
      %v1875 = vsel %vm340, %v1860, 0
      %v1878 = vsel %vm340, %v1861, 0
      %1880 = vmatprep.subr.bf16.mxu0 0
      %1881 = vmatpush1.bf16.msra.mxu0 %v1870
      %1882 = vmatprep.subr.bf16.mxu0 0
      %1883 = vmatpush1.bf16.msra.mxu0 %v1871
      %1884 = vmatprep.subr.bf16.mxu0 0
      %1885 = vmatpush1.bf16.msra.mxu0 0
      %1886 = vmatprep.subr.bf16.mxu0 0
      %1887 = vmatpush1.bf16.msra.mxu0 0
      %1888 = vmatprep.subr.bf16.mxu0 0
      %1889 = vmatpush1.bf16.msra.mxu0 0
      %1890 = vmatprep.subr.bf16.mxu0 0
      %1891 = vmatpush1.bf16.msra.mxu0 0
      %1892 = vmatprep.subr.bf16.mxu0 0
      %1893 = vmatpush1.bf16.msra.mxu0 0
      %1894 = vmatprep.subr.bf16.mxu0 0
      %1895 = vmatpush1.bf16.msra.mxu0 0
      %1896 = vmatprep.subr.bf16.mxu0 0
      %1897 = vmatpush1.bf16.msra.mxu0 0
      %1898 = vmatprep.subr.bf16.mxu0 0
      %1899 = vmatpush1.bf16.msra.mxu0 0
      %1900 = vmatprep.subr.bf16.mxu0 0
      %1901 = vmatpush1.bf16.msra.mxu0 0
      %1902 = vmatprep.subr.bf16.mxu0 0
      %1903 = vmatpush1.bf16.msra.mxu0 0
      %1904 = vmatprep.subr.bf16.mxu0 0
      %1905 = vmatpush1.bf16.msra.mxu0 0
      %1906 = vmatprep.subr.bf16.mxu0 0
      %1907 = vmatpush1.bf16.msra.mxu0 0
      %1908 = vmatprep.subr.bf16.mxu0 0
      %1909 = vmatpush1.bf16.msra.mxu0 0
      %1910 = vmatprep.subr.bf16.mxu0 0
      %1911 = vmatpush1.bf16.msra.mxu0 0
      %1912 = vmatprep.mubr.bf16.mxu0 0
      %1913 = vmatmul.mubr.bf16.gmra.mrb[0].mxu0 %v1875
      %v1914 = vpop.f32.mrb[0].mxu0
      %v1915 = vadd.f32 0.0, %v1914
      %v1916 = vpop.f32.mrb[0].mxu0
      %v1917 = vpop.f32.mrb[0].mxu0
      %v1918 = vadd.f32 0.0, %v1917
      %v1919 = vpop.f32.mrb[0].mxu0
      %1920 = vmatprep.mubr.bf16.mxu0 0
      %1921 = vmatmul.mubr.bf16.gmra.mrb[0].mxu0 %v1878
      %v1922 = vpop.f32.mrb[0].mxu0
      %v1923 = vadd.f32 0.0, %v1922
      %v1924 = vpop.f32.mrb[0].mxu0
      %v1925 = vpop.f32.mrb[0].mxu0
      %v1926 = vpop.f32.mrb[0].mxu0
      %1927 = vdwg.mxu0
      %v1928 = vadd.f32 %v1828, %v1915
      %v1929 = vadd.f32 %v1829, %v1918
      %v1930 = vadd.f32 %v1830, %v1923
      %v1931 = vld [vmem:[%s1618 + $0x4] sm:$0x3]
      %v1932 = vld [vmem:[%s1618 + $0xc] sm:$0x3]
      %v1933 = vld [vmem:[%s1618 + $0x14] sm:$0x3]
      %v1935 = vshrl.u32 %v1831, 16
      %v1937 = vrot.slane %v1935, 5
      %v1938 = vshll.u32 %v1831, 16
      %v1940 = vrot.slane %v1938, 6
      %v1941 = vor.u32 %v1937, %v1940
      %v1942 = vrot.slane %v1941, 4
      %v1944 = vshrl.u32 %v1931, 16
      %v1946 = vrot.slane %v1944, 5
      %v1947 = vshll.u32 %v1931, 16
      %v1949 = vrot.slane %v1947, 6
      %v1950 = vor.u32 %v1946, %v1949
      %v1951 = vsel %vm577, %v1942, %v1950
      %v1953 = vshrl.u32 %v1832, 16
      %v1955 = vrot.slane %v1953, 5
      %v1956 = vshll.u32 %v1832, 16
      %v1958 = vrot.slane %v1956, 6
      %v1959 = vor.u32 %v1955, %v1958
      %v1960 = vrot.slane %v1959, 4
      %v1962 = vshrl.u32 %v1932, 16
      %v1964 = vrot.slane %v1962, 5
      %v1965 = vshll.u32 %v1932, 16
      %v1967 = vrot.slane %v1965, 6
      %v1968 = vor.u32 %v1964, %v1967
      %v1969 = vsel %vm577, %v1960, %v1968
      %v1971 = vshrl.u32 %v1833, 16
      %v1973 = vrot.slane %v1971, 5
      %v1974 = vshll.u32 %v1833, 16
      %v1976 = vrot.slane %v1974, 6
      %v1977 = vor.u32 %v1973, %v1976
      %v1978 = vrot.slane %v1977, 4
      %v1980 = vshrl.u32 %v1933, 16
      %v1982 = vrot.slane %v1980, 5
      %v1983 = vshll.u32 %v1933, 16
      %v1985 = vrot.slane %v1983, 6
      %v1986 = vor.u32 %v1982, %v1985
      %v1987 = vsel %vm577, %v1978, %v1986
      %s1988 = scalar_lea.vmem %s1, 240
      %v1989 = vld [vmem:[%s1988] sm:$0xf]
      %v1990 = vld [vmem:[%s1988 + $0x4] sm:$0xf]
      %v1991 = vld [vmem:[%s1988 + $0x8] sm:$0xf]
      %v1992 = vld [vmem:[%s1988 + $0xc] sm:$0xf]
      %v1993 = vunpack.c.l.b16 %v1951
      %v1994 = vunpack.c.l.b16 %v1969
      %v1995 = vunpack.c.l.b16 %v1987
      %v1996 = vpack.c.b16 %v1994, %v1993
      %v1997 = vpack.c.b16 %v1995, %v1995
      %v2002 = vunpack.c.l.b16 %v1989
      %v2003 = vunpack.c.l.b16 %v1990
      %v2004 = vunpack.c.l.b16 %v1991
      %v2005 = vunpack.c.l.b16 %v1992
      %v2006 = vpack.c.b16 %v2003, %v2002
      %v2007 = vpack.c.b16 %v2005, %v2004
      %v2011 = vsel %vm340, %v1996, 0
      %v2014 = vsel %vm340, %v1997, 0
      %2016 = vmatprep.subr.bf16.mxu0 0
      %2017 = vmatpush1.bf16.msra.mxu0 %v2006
      %2018 = vmatprep.subr.bf16.mxu0 0
      %2019 = vmatpush1.bf16.msra.mxu0 %v2007
      %2020 = vmatprep.subr.bf16.mxu0 0
      %2021 = vmatpush1.bf16.msra.mxu0 0
      %2022 = vmatprep.subr.bf16.mxu0 0
      %2023 = vmatpush1.bf16.msra.mxu0 0
      %2024 = vmatprep.subr.bf16.mxu0 0
      %2025 = vmatpush1.bf16.msra.mxu0 0
      %2026 = vmatprep.subr.bf16.mxu0 0
      %2027 = vmatpush1.bf16.msra.mxu0 0
      %2028 = vmatprep.subr.bf16.mxu0 0
      %2029 = vmatpush1.bf16.msra.mxu0 0
      %2030 = vmatprep.subr.bf16.mxu0 0
      %2031 = vmatpush1.bf16.msra.mxu0 0
      %2032 = vmatprep.subr.bf16.mxu0 0
      %2033 = vmatpush1.bf16.msra.mxu0 0
      %2034 = vmatprep.subr.bf16.mxu0 0
      %2035 = vmatpush1.bf16.msra.mxu0 0
      %2036 = vmatprep.subr.bf16.mxu0 0
      %2037 = vmatpush1.bf16.msra.mxu0 0
      %2038 = vmatprep.subr.bf16.mxu0 0
      %2039 = vmatpush1.bf16.msra.mxu0 0
      %2040 = vmatprep.subr.bf16.mxu0 0
      %2041 = vmatpush1.bf16.msra.mxu0 0
      %2042 = vmatprep.subr.bf16.mxu0 0
      %2043 = vmatpush1.bf16.msra.mxu0 0
      %2044 = vmatprep.subr.bf16.mxu0 0
      %2045 = vmatpush1.bf16.msra.mxu0 0
      %2046 = vmatprep.subr.bf16.mxu0 0
      %2047 = vmatpush1.bf16.msra.mxu0 0
      %2048 = vmatprep.mubr.bf16.mxu0 0
      %2049 = vmatmul.mubr.bf16.gmra.mrb[0].mxu0 %v2011
      %v2050 = vpop.f32.mrb[0].mxu0
      %v2051 = vadd.f32 0.0, %v2050
      %v2052 = vpop.f32.mrb[0].mxu0
      %v2053 = vpop.f32.mrb[0].mxu0
      %v2054 = vadd.f32 0.0, %v2053
      %v2055 = vpop.f32.mrb[0].mxu0
      %2056 = vmatprep.mubr.bf16.mxu0 0
      %2057 = vmatmul.mubr.bf16.gmra.mrb[0].mxu0 %v2014
      %v2058 = vpop.f32.mrb[0].mxu0
      %v2059 = vadd.f32 0.0, %v2058
      %v2060 = vpop.f32.mrb[0].mxu0
      %v2061 = vpop.f32.mrb[0].mxu0
      %v2062 = vpop.f32.mrb[0].mxu0
      %2063 = vdwg.mxu0
      %v2064 = vadd.f32 %v1928, %v2051
      %v2065 = vadd.f32 %v1929, %v2054
      %v2066 = vadd.f32 %v1930, %v2059
      %v2067 = vpack.c.bf16 %v2064, %v2064
      %v2068 = vpack.c.bf16 %v2065, %v2065
      %v2069 = vpack.c.bf16 %v2066, %v2066
      %vm2070 = vcmask 519168
      %2071 = vst.msk [vmem:[%s242] sm:$0xf] %vm2070, %v2067
      %2072 = vst.msk [vmem:[%s242 + $0x4] sm:$0xf] %vm2070, %v2068
      %2073 = vst.msk [vmem:[%s242 + $0x8] sm:$0xf] %vm2070, %v2069
      %v2074 = vstv %s259
      %v2075 = vadd.s32 %v2074, 1
      %v2076 = vadd.s32 %v2074, 2
      %v2077 = vlaneseq
      %v2078 = vshrl.u32 %v2077, 7
      %vm2079 = vcmp.lt.s32.totalorder %v2074, 3
      %vm2080 = vcmp.lt.s32.totalorder %v2075, 3
      %vm2081 = vcmp.lt.s32.totalorder %v2076, 3
      %vm2082 = vcmp.lt.s32.totalorder %v2078, 3
      %vm2083 = vmand %vm2079, %vm2082
      %vm2084 = vmand %vm2080, %vm2082
      %vm2085 = vmand %vm2081, %vm2082
      %v2086 = vsel %vm2083, 1, 0
      %v2087 = vsel %vm2084, 1, 0
      %v2088 = vsel %vm2085, 1, 0
      %vm2089 = vcmp.eq.s32.totalorder %v2086, 1
      %vm2090 = vcmp.eq.s32.totalorder %v2087, 1
      %vm2091 = vcmp.eq.s32.totalorder %v2088, 1
      %v2092 = vsel %vm2089, %v2064, 0.0
      %v2093 = vsel %vm2090, %v2065, 0.0
      %v2094 = vsel %vm2091, %v2066, 0.0
      %vm2095 = vcmask 523264
      %v2096 = vsel %vm2095, %v2092, 0.0
      %v2097 = vsel %vm2095, %v2093, 0.0
      %v2098 = vadd.f32 %v2096, %v2097
      %v2099 = vsel %vm2095, %v2094, 0.0
      %v2100 = vadd.f32 %v2098, %v2099
      %v2101 = vrot.slane %v2100, 4
      %v2102 = vadd.f32 %v2100, %v2101
      %v2103 = vrot.slane %v2102, 2
      %v2104 = vadd.f32 %v2102, %v2103
      %v2105 = vrot.slane %v2104, 1
      %v2106 = vadd.f32 %v2104, %v2105
      %v2107 = vmul.f32 %v2092, %v2092
      %v2108 = vmul.f32 %v2093, %v2093
      %v2109 = vmul.f32 %v2094, %v2094
      %v2110 = vsel %vm2095, %v2107, 0.0
      %v2111 = vsel %vm2095, %v2108, 0.0
      %v2112 = vadd.f32 %v2110, %v2111
      %v2113 = vsel %vm2095, %v2109, 0.0
      %v2114 = vadd.f32 %v2112, %v2113
      %v2115 = vrot.slane %v2114, 4
      %v2116 = vadd.f32 %v2114, %v2115
      %v2117 = vrot.slane %v2116, 2
      %v2118 = vadd.f32 %v2116, %v2117
      %v2119 = vrot.slane %v2118, 1
      %v2120 = vadd.f32 %v2118, %v2119
      %2121 = vst.msk [vmem:[%s250] sm:$0xff] %vm2095, %v2106
      %2122 = vst.msk [vmem:[%s257] sm:$0xff] %vm2095, %v2120
      %s2123 = smul.u32 3, %s21
      %p2124 = scmp.lt.s32.totalorder %s20, 1
      %s2125 = scalar_select %p2124, %s20, 1
      %p2126 = scmp.lt.s32.totalorder %s2123, 2
      %s2127 = scalar_select %p2126, %s2123, 2
      %s2128 = smul.addr %s2125, 3
      %s2129 = sadd.s32 %s2127, %s2128
      %s2130 = smul.addr %s2129, 4
      %s2131 = scalar_lea.vmem %s2, %s2130
      %p2132 = scmp.lt.s32.totalorder %s20, 1
      %s2133 = scalar_select %p2132, %s20, 1
      %p2134 = scmp.lt.s32.totalorder %s21, 0
      %s2135 = scalar_select %p2134, %s21, 0
      %s2136 = sadd.s32 %s2135, %s2133
      %s2137 = smul.addr %s2136, 8
      %s2138 = scalar_lea.vmem %s3, %s2137
      %p2139 = scmp.lt.s32.totalorder %s20, 1
      %s2140 = scalar_select %p2139, %s20, 1
      %p2141 = scmp.lt.s32.totalorder %s21, 0
      %s2142 = scalar_select %p2141, %s21, 0
      %s2143 = sadd.s32 %s2142, %s2140
      %s2144 = smul.addr %s2143, 8
      %s2145 = scalar_lea.vmem %s4, %s2144
      // Predicated region
      $region29: #{_lambda_.13} parent=27 // pred_check
        %p2146 = pneg %p95
      $region30: #{_lambda_.13} parent=27 // pred_check_branch
        %2148 = sbr.rel (%p2146) target = $region32
      $region31: #{_lambda_.13} parent=27 // pred_region
        %s2149 = smul.u32 3, %s21
      $region32: #{_lambda_.13} parent=27 // pred_fallthru
        _
      // Predicated region
      $region33: #{_lambda_.13} parent=27 // pred_check
        %p2150 = pneg %p123
      $region34: #{_lambda_.13} parent=27 // pred_check_branch
        %2152 = sbr.rel (%p2150) target = $region36
      $region35: #{_lambda_.13} parent=27 // pred_region
        _
      $region36: #{_lambda_.13} parent=27 // pred_fallthru
        _
      // Predicated region
      $region37: #{_lambda_.13} parent=27 // pred_check
        %p2153 = pneg %p151
      $region38: #{_lambda_.13} parent=27 // pred_check_branch
        %2155 = sbr.rel (%p2153) target = $region40
      $region39: #{_lambda_.13} parent=27 // pred_region
        _
      $region40: #{_lambda_.13} parent=27 // pred_fallthru
        _
    $region28: #{_lambda_.13} parent=5 // pred_fallthru
      _
    %p2156 = scmp.le.s32.totalorder 2, %s11
    // Predicated region
    $region41: #{_lambda_.13} parent=5 // pred_check
      %p2157 = pneg %p2156
    $region42: #{_lambda_.13} parent=5 // pred_check_branch
      %2159 = sbr.rel (%p2157) target = $region44
    $region43: #{_lambda_.13} parent=5 // pred_region
      %s2160 = ssub.s32 %s11, 2
      // Predicated region
      $region45: #{_lambda_.13} parent=43 // pred_check
        %p2161 = pneg %p101
      $region46: #{_lambda_.13} parent=43 // pred_check_branch
        %2163 = sbr.rel (%p2161) target = $region48
      $region47: #{_lambda_.13} parent=43 // pred_region
        %s2164 = smul.u32 3, %s23
        %p2165 = scmp.lt.s32.totalorder %s22, 1
        %s2166 = scalar_select %p2165, %s22, 1
        %p2167 = scmp.lt.s32.totalorder %s2164, 2
        %s2168 = scalar_select %p2167, %s2164, 2
        %s2169 = smul.addr %s2166, 3
        %s2170 = sadd.s32 %s2168, %s2169
        %s2171 = smul.addr %s2170, 4
        %s2172 = scalar_lea.vmem %s2, %s2171
      $region48: #{_lambda_.13} parent=43 // pred_fallthru
        _
      // Predicated region
      $region49: #{_lambda_.13} parent=43 // pred_check
        %p2173 = pneg %p129
      $region50: #{_lambda_.13} parent=43 // pred_check_branch
        %2175 = sbr.rel (%p2173) target = $region52
      $region51: #{_lambda_.13} parent=43 // pred_region
        %p2176 = scmp.lt.s32.totalorder %s22, 1
        %s2177 = scalar_select %p2176, %s22, 1
        %p2178 = scmp.lt.s32.totalorder %s23, 0
        %s2179 = scalar_select %p2178, %s23, 0
        %s2180 = sadd.s32 %s2179, %s2177
        %s2181 = smul.addr %s2180, 8
        %s2182 = scalar_lea.vmem %s3, %s2181
      $region52: #{_lambda_.13} parent=43 // pred_fallthru
        _
      // Predicated region
      $region53: #{_lambda_.13} parent=43 // pred_check
        %p2183 = pneg %p157
      $region54: #{_lambda_.13} parent=43 // pred_check_branch
        %2185 = sbr.rel (%p2183) target = $region56
      $region55: #{_lambda_.13} parent=43 // pred_region
        %p2186 = scmp.lt.s32.totalorder %s22, 1
        %s2187 = scalar_select %p2186, %s22, 1
        %p2188 = scmp.lt.s32.totalorder %s23, 0
        %s2189 = scalar_select %p2188, %s23, 0
        %s2190 = sadd.s32 %s2189, %s2187
        %s2191 = smul.addr %s2190, 8
        %s2192 = scalar_lea.vmem %s4, %s2191
      $region56: #{_lambda_.13} parent=43 // pred_fallthru
        _
    $region44: #{_lambda_.13} parent=5 // pred_fallthru
      _
  $region6: #{_lambda_.13} parent=0 // loop_footer
    %s15 = sadd.s32 1, %s11
  $region7: #{_lambda_.13} parent=0 // loop_footer_branch
    %10 = sbr.rel target = $region3
  $region8: #{_lambda_.13} parent=0 // loop_exit
    _

// kernel: _lambda_.15
$region0: #{_lambda_.15}
  #allocation0 [shape = 'u32[]', space=smem, size = 0x4, offset = 0x4, fixed_abs, tag = 'smem constant byte address 0x4 - core index']
  #allocation1 [shape = 'u32[144,128]{1,0:T(1,128)}', space=vmem, size = 0x12000, scoped, tag = 'internal scratch']
  #allocation2 [shape = 'f32[1,1]{1,0:T(1,128)S(1)}', space=vmem, size = 0x200, scoped, tag = 'scoped memory for _lambda_.15']
  %s0 = inlined_call_operand.vmem [shape: bf16[2,5,5,64], index: 0, kind: input, shape index: {}]
  %s1 = inlined_call_operand.vmem [shape: f32[16,64], index: 1, kind: input, shape index: {}]
  %s2 = inlined_call_operand.<no memory space> [shape: f32[1,1], index: 2, kind: input, shape index: {}]
  %s3 = inlined_call_operand.hbm [shape: f32[2,2,2], index: 3, kind: output, shape index: {}]
  %s4 = sld [smem:[#allocation0]]
  $region45: #{_lambda_.15} parent=0
    _
  %s6 = ssub.s32 1, %s4
  %s7 = scalar_select 0, %s6, %s4
  %v8 = vstv %s2
  %9 = vst [vmem:[#allocation2] sm:$0x1] %v8
  $region1: #{_lambda_.15} parent=0
    #allocation3 [shape = 'u8[2048]{0}', space=vmem, size = 0x800, scoped, tag = 'output window, operand 0']
    #allocation4 [shape = 's32[2]{0}', space=sflag, size = 0x8, scoped, tag = 'scoped memory for _lambda_.15']
    %10 = vsyncpa [#allocation4], 0
    %s11 = scalar_lea.sflag [#allocation4], 1
    %12 = vsyncpa %s11, 0
    loop: start=0, step=1, limit=4
    $region2: #{_lambda_.15} parent=1 // loop_pre_header
      _
    $region3: #{_lambda_.15} parent=1 // loop_header
      %s14 = sphi 0, %s18
      %p15 = scmp.ge.s32.totalorder %s14, 4
      %s24 = sphi 0, %s26
      %s27 = sphi 0, %s24
      %s28 = sphi 0, %s27
      %s44 = sphi 0, %s28
      %s48 = sphi 0, %s48
      %s50 = sphi 0, %s48
      %s51 = sphi 0, %s50
      %s65 = sphi 0, %s51
      %s69 = sphi 0, %s69
      %s71 = sphi 0, %s69
      %s72 = sphi 0, %s71
      %s86 = sphi 0, %s72
      %s92 = sphi 0, %s94
      %s95 = sphi 0, %s92
      %s96 = sphi 0, %s95
      %s112 = sphi 0, %s96
    $region4: #{_lambda_.15} parent=1 // loop_header_branch
      %17 = sbr.rel (%p15) target = $region8
    $region5: #{_lambda_.15} parent=1 // loop_body
      %s19 = ssub.s32 %s14, 1
      %s20 = ssub.s32 %s14, 2
      %s21 = sadd.s32 %s14, 1
      %s22 = ssub.s32 %s14, %s21
      %p23 = scmp.eq.s32.totalorder %s22, 0
      %s25 = sadd.s32 %s24, 1
      %s26 = scalar_select %p23, %s24, %s25
      %p29 = pneg %p23
      %p30 = scmp.eq.s32.totalorder %s14, 1
      %p31 = por %p29, %p30
      %p32 = scmp.ne.s32.totalorder %s24, %s27
      %p33 = scmp.eq.s32.totalorder %s14, 0
      %p34 = por %p32, %p33
      %p35 = scmp.ne.s32.totalorder %s24, %s27
      %p36 = scmp.eq.s32.totalorder %s19, 1
      %p37 = por %p35, %p36
      %p38 = scmp.ne.s32.totalorder %s27, %s28
      %p39 = scmp.eq.s32.totalorder %s19, 0
      %p40 = por %p38, %p39
      %p41 = scmp.ne.s32.totalorder %s27, %s28
      %p42 = scmp.eq.s32.totalorder %s20, 1
      %p43 = por %p41, %p42
      %p45 = scmp.ne.s32.totalorder %s28, %s44
      %p46 = scmp.eq.s32.totalorder %s20, 0
      %p47 = por %p45, %p46
      %s49 = sadd.s32 %s48, 1
      %p52 = scmp.eq.s32.totalorder %s14, 1
      %p53 = scmp.ne.s32.totalorder %s48, %s50
      %p54 = scmp.eq.s32.totalorder %s14, 0
      %p55 = por %p53, %p54
      %p56 = scmp.ne.s32.totalorder %s48, %s50
      %p57 = scmp.eq.s32.totalorder %s19, 1
      %p58 = por %p56, %p57
      %p59 = scmp.ne.s32.totalorder %s50, %s51
      %p60 = scmp.eq.s32.totalorder %s19, 0
      %p61 = por %p59, %p60
      %p62 = scmp.ne.s32.totalorder %s50, %s51
      %p63 = scmp.eq.s32.totalorder %s20, 1
      %p64 = por %p62, %p63
      %p66 = scmp.ne.s32.totalorder %s51, %s65
      %p67 = scmp.eq.s32.totalorder %s20, 0
      %p68 = por %p66, %p67
      %s70 = sadd.s32 %s69, 1
      %p73 = scmp.eq.s32.totalorder %s14, 1
      %p74 = scmp.ne.s32.totalorder %s69, %s71
      %p75 = scmp.eq.s32.totalorder %s14, 0
      %p76 = por %p74, %p75
      %p77 = scmp.ne.s32.totalorder %s69, %s71
      %p78 = scmp.eq.s32.totalorder %s19, 1
      %p79 = por %p77, %p78
      %p80 = scmp.ne.s32.totalorder %s71, %s72
      %p81 = scmp.eq.s32.totalorder %s19, 0
      %p82 = por %p80, %p81
      %p83 = scmp.ne.s32.totalorder %s71, %s72
      %p84 = scmp.eq.s32.totalorder %s20, 1
      %p85 = por %p83, %p84
      %p87 = scmp.ne.s32.totalorder %s72, %s86
      %p88 = scmp.eq.s32.totalorder %s20, 0
      %p89 = por %p87, %p88
      %s90 = ssub.s32 %s14, %s21
      %p91 = scmp.eq.s32.totalorder %s90, 0
      %s93 = sadd.s32 %s92, 1
      %s94 = scalar_select %p91, %s92, %s93
      %p97 = pneg %p91
      %p98 = scmp.eq.s32.totalorder %s14, 1
      %p99 = por %p97, %p98
      %p100 = scmp.ne.s32.totalorder %s92, %s95
      %p101 = scmp.eq.s32.totalorder %s14, 0
      %p102 = por %p100, %p101
      %p103 = scmp.ne.s32.totalorder %s92, %s95
      %p104 = scmp.eq.s32.totalorder %s19, 1
      %p105 = por %p103, %p104
      %p106 = scmp.ne.s32.totalorder %s95, %s96
      %p107 = scmp.eq.s32.totalorder %s19, 0
      %p108 = por %p106, %p107
      %p109 = scmp.ne.s32.totalorder %s95, %s96
      %p110 = scmp.eq.s32.totalorder %s20, 1
      %p111 = por %p109, %p110
      %p113 = scmp.ne.s32.totalorder %s96, %s112
      %p114 = scmp.eq.s32.totalorder %s20, 0
      %p115 = por %p113, %p114
      %p116 = scmp.le.s32.totalorder 1, %s14
      %p117 = scmp.lt.s32.totalorder %s14, 3
      %p118 = pnand %p116, %p117
      %p119 = pneg %p118
      // Predicated region
      $region9: #{_lambda_.15} parent=5 // pred_check
        _
      $region10: #{_lambda_.15} parent=5 // pred_check_branch
        %121 = sbr.rel (%p118) target = $region12
      $region11: #{_lambda_.15} parent=5 // pred_region
        %s122 = ssub.s32 %s14, 1
        // Predicated region
        $region13: #{_lambda_.15} parent=11 // pred_check
          %p123 = pneg %p61
        $region14: #{_lambda_.15} parent=11 // pred_check_branch
          %125 = sbr.rel (%p123) target = $region16
        $region15: #{_lambda_.15} parent=11 // pred_region
          _
        $region16: #{_lambda_.15} parent=11 // pred_fallthru
          _
        // Predicated region
        $region17: #{_lambda_.15} parent=11 // pred_check
          %p126 = pneg %p82
        $region18: #{_lambda_.15} parent=11 // pred_check_branch
          %128 = sbr.rel (%p126) target = $region20
        $region19: #{_lambda_.15} parent=11 // pred_region
          _
        $region20: #{_lambda_.15} parent=11 // pred_fallthru
          _
      $region12: #{_lambda_.15} parent=5 // pred_fallthru
        _
      %p129 = scmp.lt.s32.totalorder %s14, 2
      // Predicated region
      $region21: #{_lambda_.15} parent=5 // pred_check
        %p130 = pneg %p129
      $region22: #{_lambda_.15} parent=5 // pred_check_branch
        %132 = sbr.rel (%p130) target = $region24
      $region23: #{_lambda_.15} parent=5 // pred_region
        // Predicated region
        $region25: #{_lambda_.15} parent=23 // pred_check
          %p133 = pneg %p34
        $region26: #{_lambda_.15} parent=23 // pred_check_branch
          %135 = sbr.rel (%p133) target = $region28
        $region27: #{_lambda_.15} parent=23 // pred_region
          %p136 = scmp.lt.s32.totalorder %s14, 1
          %s137 = scalar_select %p136, %s14, 1
          %s138 = smul.addr %s137, 5
          %s139 = smul.addr %s138, 4
          %s140 = scalar_lea.vmem %s0, %s139
        $region28: #{_lambda_.15} parent=23 // pred_fallthru
          _
      $region24: #{_lambda_.15} parent=5 // pred_fallthru
        _
      %p141 = scmp.le.s32.totalorder 1, %s14
      %p142 = scmp.lt.s32.totalorder %s14, 3
      %p143 = pnand %p141, %p142
      %p144 = pneg %p143
      // Predicated region
      $region29: #{_lambda_.15} parent=5 // pred_check
        _
      $region30: #{_lambda_.15} parent=5 // pred_check_branch
        %146 = sbr.rel (%p143) target = $region32
      $region31: #{_lambda_.15} parent=5 // pred_region
        %s147 = ssub.s32 %s14, 1
        %p148 = scmp.lt.s32.totalorder %s19, 1
        %s149 = scalar_select %p148, %s19, 1
        %s150 = smul.addr %s149, 5
        %s151 = smul.addr %s150, 4
        %s152 = scalar_lea.vmem %s0, %s151
        %p153 = pneg %p40
        %p154 = pneg %p37
        %p155 = pneg %p61
        %p156 = pneg %p58
        %p157 = pneg %p82
        %p158 = pneg %p79
        %p159 = pneg %p108
        %p160 = pneg %p105
        %s161 = sand.u32 %s95, 1
        %s162 = scalar_lea.sflag [#allocation4], %s161
        %s163 = sand.u32 %s95, 1
        %s164 = smul.addr %s163, 2
        %s165 = scalar_lea.vmem [#allocation3], %s164
        %p166 = scmp.lt.s32.totalorder %s19, 1
        %s167 = scalar_select %p166, %s19, 1
        %s168 = smul.addr %s167, 5
        %s169 = smul.addr %s168, 4
        %s170 = scalar_lea.vmem %s0, %s169
        %v171 = vld [vmem:[%s170] sm:$0x7]
        %v172 = vld [vmem:[%s170 + $0x4] sm:$0x7]
        %v173 = vld [vmem:[%s170 + $0x8] sm:$0x7]
        %v174 = vld [vmem:[%s170 + $0xc] sm:$0x7]
        %v175 = vld [vmem:[%s170 + $0x10] sm:$0x7]
        %v176 = vunpack.c.l.bf16 %v171
        %v177 = vunpack.c.l.bf16 %v172
        %v178 = vunpack.c.l.bf16 %v173
        %v179 = vunpack.c.l.bf16 %v174
        %v180 = vunpack.c.l.bf16 %v175
        %v181 = vld [vmem:[%s1] sm:$0x1]
        %v182 = vlaneseq
        %v183 = vshrl.u32 %v182, 7
        %v184 = vsub.s32 0, %v183
        %v185 = vrot.slane %v181, %v184
        %v186 = vmul.f32 %v176, %v185
        %v187 = vmul.f32 %v177, %v185
        %v188 = vadd.f32 %v186, 0.0
        %v189 = vadd.f32 %v187, 0.0
        %v190 = vld [vmem:[%s1 + $0x1] sm:$0x1]
        %v191 = vlaneseq
        %v192 = vshrl.u32 %v191, 7
        %v193 = vsub.s32 0, %v192
        %v194 = vrot.slane %v190, %v193
        %v195 = vmul.f32 %v176, %v194
        %v196 = vmul.f32 %v177, %v194
        %v199 = vrot.slane %v195, 1
        %v200 = vrot.slane %v196, 1
        %v203 = vadd.f32 %v188, %v199
        %v204 = vadd.f32 %v189, %v200
        %v205 = vld [vmem:[%s1 + $0x2] sm:$0x1]
        %v206 = vlaneseq
        %v207 = vshrl.u32 %v206, 7
        %v208 = vsub.s32 0, %v207
        %v209 = vrot.slane %v205, %v208
        %v210 = vmul.f32 %v176, %v209
        %v211 = vmul.f32 %v177, %v209
        %v214 = vrot.slane %v210, 2
        %v215 = vrot.slane %v211, 2
        %v218 = vadd.f32 %v203, %v214
        %v219 = vadd.f32 %v204, %v215
        %v220 = vld [vmem:[%s1 + $0x3] sm:$0x1]
        %v221 = vlaneseq
        %v222 = vshrl.u32 %v221, 7
        %v223 = vsub.s32 0, %v222
        %v224 = vrot.slane %v220, %v223
        %v225 = vmul.f32 %v176, %v224
        %v226 = vmul.f32 %v177, %v224
        %v229 = vrot.slane %v225, 3
        %v230 = vrot.slane %v226, 3
        %v233 = vadd.f32 %v218, %v229
        %v234 = vadd.f32 %v219, %v230
        %v235 = vld [vmem:[%s1 + $0x4] sm:$0x1]
        %v236 = vlaneseq
        %v237 = vshrl.u32 %v236, 7
        %v238 = vsub.s32 0, %v237
        %v239 = vrot.slane %v235, %v238
        %v240 = vmul.f32 %v177, %v239
        %v241 = vmul.f32 %v178, %v239
        %v242 = vadd.f32 %v233, %v240
        %v243 = vadd.f32 %v234, %v241
        %v244 = vld [vmem:[%s1 + $0x5] sm:$0x1]
        %v245 = vlaneseq
        %v246 = vshrl.u32 %v245, 7
        %v247 = vsub.s32 0, %v246
        %v248 = vrot.slane %v244, %v247
        %v249 = vmul.f32 %v177, %v248
        %v250 = vmul.f32 %v178, %v248
        %v253 = vrot.slane %v249, 1
        %v254 = vrot.slane %v250, 1
        %v257 = vadd.f32 %v242, %v253
        %v258 = vadd.f32 %v243, %v254
        %v259 = vld [vmem:[%s1 + $0x6] sm:$0x1]
        %v260 = vlaneseq
        %v261 = vshrl.u32 %v260, 7
        %v262 = vsub.s32 0, %v261
        %v263 = vrot.slane %v259, %v262
        %v264 = vmul.f32 %v177, %v263
        %v265 = vmul.f32 %v178, %v263
        %v268 = vrot.slane %v264, 2
        %v269 = vrot.slane %v265, 2
        %v272 = vadd.f32 %v257, %v268
        %v273 = vadd.f32 %v258, %v269
        %v274 = vld [vmem:[%s1 + $0x7] sm:$0x1]
        %v275 = vlaneseq
        %v276 = vshrl.u32 %v275, 7
        %v277 = vsub.s32 0, %v276
        %v278 = vrot.slane %v274, %v277
        %v279 = vmul.f32 %v177, %v278
        %v280 = vmul.f32 %v178, %v278
        %v283 = vrot.slane %v279, 3
        %v284 = vrot.slane %v280, 3
        %v287 = vadd.f32 %v272, %v283
        %v288 = vadd.f32 %v273, %v284
        %v289 = vld [vmem:[%s1 + $0x8] sm:$0x1]
        %v290 = vlaneseq
        %v291 = vshrl.u32 %v290, 7
        %v292 = vsub.s32 0, %v291
        %v293 = vrot.slane %v289, %v292
        %v294 = vmul.f32 %v178, %v293
        %v295 = vmul.f32 %v179, %v293
        %v296 = vadd.f32 %v287, %v294
        %v297 = vadd.f32 %v288, %v295
        %v298 = vld [vmem:[%s1 + $0x9] sm:$0x1]
        %v299 = vlaneseq
        %v300 = vshrl.u32 %v299, 7
        %v301 = vsub.s32 0, %v300
        %v302 = vrot.slane %v298, %v301
        %v303 = vmul.f32 %v178, %v302
        %v304 = vmul.f32 %v179, %v302
        %v307 = vrot.slane %v303, 1
        %v308 = vrot.slane %v304, 1
        %v311 = vadd.f32 %v296, %v307
        %v312 = vadd.f32 %v297, %v308
        %v313 = vld [vmem:[%s1 + $0xa] sm:$0x1]
        %v314 = vlaneseq
        %v315 = vshrl.u32 %v314, 7
        %v316 = vsub.s32 0, %v315
        %v317 = vrot.slane %v313, %v316
        %v318 = vmul.f32 %v178, %v317
        %v319 = vmul.f32 %v179, %v317
        %v322 = vrot.slane %v318, 2
        %v323 = vrot.slane %v319, 2
        %v326 = vadd.f32 %v311, %v322
        %v327 = vadd.f32 %v312, %v323
        %v328 = vld [vmem:[%s1 + $0xb] sm:$0x1]
        %v329 = vlaneseq
        %v330 = vshrl.u32 %v329, 7
        %v331 = vsub.s32 0, %v330
        %v332 = vrot.slane %v328, %v331
        %v333 = vmul.f32 %v178, %v332
        %v334 = vmul.f32 %v179, %v332
        %v337 = vrot.slane %v333, 3
        %v338 = vrot.slane %v334, 3
        %v341 = vadd.f32 %v326, %v337
        %v342 = vadd.f32 %v327, %v338
        %v343 = vld [vmem:[%s1 + $0xc] sm:$0x1]
        %v344 = vlaneseq
        %v345 = vshrl.u32 %v344, 7
        %v346 = vsub.s32 0, %v345
        %v347 = vrot.slane %v343, %v346
        %v348 = vmul.f32 %v179, %v347
        %v349 = vmul.f32 %v180, %v347
        %v350 = vadd.f32 %v341, %v348
        %v351 = vadd.f32 %v342, %v349
        %v352 = vld [vmem:[%s1 + $0xd] sm:$0x1]
        %v353 = vlaneseq
        %v354 = vshrl.u32 %v353, 7
        %v355 = vsub.s32 0, %v354
        %v356 = vrot.slane %v352, %v355
        %v357 = vmul.f32 %v179, %v356
        %v358 = vmul.f32 %v180, %v356
        %v361 = vrot.slane %v357, 1
        %v362 = vrot.slane %v358, 1
        %v365 = vadd.f32 %v350, %v361
        %v366 = vadd.f32 %v351, %v362
        %v367 = vld [vmem:[%s1 + $0xe] sm:$0x1]
        %v368 = vlaneseq
        %v369 = vshrl.u32 %v368, 7
        %v370 = vsub.s32 0, %v369
        %v371 = vrot.slane %v367, %v370
        %v372 = vmul.f32 %v179, %v371
        %v373 = vmul.f32 %v180, %v371
        %v376 = vrot.slane %v372, 2
        %v377 = vrot.slane %v373, 2
        %v380 = vadd.f32 %v365, %v376
        %v381 = vadd.f32 %v366, %v377
        %v382 = vld [vmem:[%s1 + $0xf] sm:$0x1]
        %v383 = vlaneseq
        %v384 = vshrl.u32 %v383, 7
        %v385 = vsub.s32 0, %v384
        %v386 = vrot.slane %v382, %v385
        %v387 = vmul.f32 %v179, %v386
        %v388 = vmul.f32 %v180, %v386
        %v391 = vrot.slane %v387, 3
        %v392 = vrot.slane %v388, 3
        %v395 = vadd.f32 %v380, %v391
        %v396 = vadd.f32 %v381, %v392
        %vm397 = vcmask 517120
        %v398 = vsel %vm397, %v395, 0.0
        %399 = vadd.xlane.f32.xlu0 %v398
        %v400 = vpop.xlane.xlu0 %399
        %v401 = vsel %vm397, %v396, 0.0
        %402 = vadd.xlane.f32.xlu0 %v401
        %v403 = vpop.xlane.xlu0 %402
        %v404 = vld [vmem:[#allocation2] sm:$0x1]
        %v406 = vlaneseq
        %v407 = vshrl.u32 %v406, 7
        %v408 = vsub.s32 0, %v407
        %v409 = vrot.slane %v404, %v408
        %410 = vset.pattern.permute.xlu0 0
        %411 = vperm.xlu0 %410, %v409
        %v412 = vpop.permute.xlu0 %411
        %v414 = vadd.f32 %v400, %v412
        %v415 = vadd.f32 %v403, %v412
        %v418 = vlaneseq
        %v419 = vand.u32 %v418, 127
        %v420 = vlaneseq
        %v421 = vshrl.u32 %v420, 7
        %v422 = vsub.s32 %v419, %v421
        %v423 = vrot.slane %v414, %v422
        %v424 = vlaneseq
        %v425 = vshrl.u32 %v424, 7
        %v426 = vsub.s32 %v419, %v425
        %v427 = vrot.slane %v415, %v426
        %vm428 = vcmask 1041409
        %v429 = vsel %vm428, %v427, %v423
        %vm431 = vcmask 9216
        %432 = vst.msk [vmem:[%s165] sm:$0x3] %vm431, %v429
        %s433 = sand.u32 %s95, 1
        %s434 = scalar_lea.sflag [#allocation4], %s433
        %s435 = sand.u32 %s95, 1
        %s436 = smul.addr %s435, 2
        %s437 = scalar_lea.vmem [#allocation3], %s436
        // Predicated region
        $region33: #{_lambda_.15} parent=31 // pred_check
          %p438 = pneg %p105
        $region34: #{_lambda_.15} parent=31 // pred_check_branch
          %440 = sbr.rel (%p438) target = $region36
        $region35: #{_lambda_.15} parent=31 // pred_region
          %s442 = ssub.s32 32, 32
          %443 = vsyncadd %s434, %s442
          %s444 = smul.addr %s19, 32
          %s445 = scalar_lea.hbm %s3, %s444
          %s447 = sshll.u32 %s437, 4
          %s448 = int_to_ptr.vmem [resolvable:$true] %s447
          %450 = dma.vmem_to_hbm [thread:$0]  %s448, 32, %s445, %s434
        $region36: #{_lambda_.15} parent=31 // pred_fallthru
          _
      $region32: #{_lambda_.15} parent=5 // pred_fallthru
        _
      %p451 = scmp.le.s32.totalorder 2, %s14
      // Predicated region
      $region37: #{_lambda_.15} parent=5 // pred_check
        %p452 = pneg %p451
      $region38: #{_lambda_.15} parent=5 // pred_check_branch
        %454 = sbr.rel (%p452) target = $region40
      $region39: #{_lambda_.15} parent=5 // pred_region
        %s455 = ssub.s32 %s14, 2
        // Predicated region
        $region41: #{_lambda_.15} parent=39 // pred_check
          %p456 = pneg %p111
        $region42: #{_lambda_.15} parent=39 // pred_check_branch
          %458 = sbr.rel (%p456) target = $region44
        $region43: #{_lambda_.15} parent=39 // pred_region
          %s459 = sand.u32 %s96, 1
          %s460 = scalar_lea.sflag [#allocation4], %s459
          %s461 = sand.u32 %s96, 1
          %s462 = smul.addr %s461, 2
          %s463 = scalar_lea.vmem [#allocation3], %s462
          %464 = dma.done %s460, 32
        $region44: #{_lambda_.15} parent=39 // pred_fallthru
          _
      $region40: #{_lambda_.15} parent=5 // pred_fallthru
        _
    $region6: #{_lambda_.15} parent=1 // loop_footer
      %s18 = sadd.s32 1, %s14
    $region7: #{_lambda_.15} parent=1 // loop_footer_branch
      %13 = sbr.rel target = $region3
    $region8: #{_lambda_.15} parent=1 // loop_exit
      _
    %465 = vsyncpa [#allocation4], 1
    %s466 = scalar_lea.sflag [#allocation4], 1
    %467 = vsyncpa %s466, 1

</llo_original>
